<compile_context>
chip_gen: v5e
topology: v5e:2x2
jax: 0.10.0
libtpu: 0.0.40
codegen_flags: <defaults>
</compile_context>

<pallas_src>
import functools

import jax
import jax.numpy as jnp
import numpy as np
from jax.experimental import pallas as pl
from jax.experimental.pallas import tpu as pltpu

NEG_SLOPE = 0.01  # nn.LeakyReLU() default


# ----------------------------------------------------------------------------
# Fused Pallas kernel: whole encoder for ONE batch sample (grid over batch)
# ----------------------------------------------------------------------------
def _encoder_kernel(*refs, stage_cfg, ksize, neg_slope, height, width):
    """refs = (x_ref, w_refs..., feature_out_refs..., pad_buf_a, pad_buf_b).

    x_ref : (1, H, W, Cin) f32 input block (one batch sample), VMEM
    w_ref : (K*K, Cin, Cout) f32 per conv (HWIO flattened over taps), VMEM
    f_ref : (1, Hs, Ws, Cout_s) f32 per stage (pre-pool feature block), VMEM
    bufs  : two (1, H+2p, W+2p, Cmax) f32 scratch buffers, reused (ping-pong)
            as zero-border padded activation storage for every conv.
    """
    n_convs = sum(len(s) for s in stage_cfg)
    n_stages = len(stage_cfg)
    x_ref = refs[0]
    w_refs = refs[1:1 + n_convs]
    f_refs = refs[1 + n_convs:1 + n_convs + n_stages]
    bufs = refs[1 + n_convs + n_stages:]
    pad = ksize // 2

    def zero_border(buf, hh, ww, cc):
        # Zero ONLY the pad-wide border strips of the (1, hh+2p, ww+2p, cc) view
        # (the interior is fully overwritten afterwards, so no redundant zero-fill).
        hp, wp = hh + 2 * pad, ww + 2 * pad
        zrow = jnp.zeros((1, pad, wp, cc), jnp.float32)
        buf[:, 0:pad, 0:wp, 0:cc] = zrow
        buf[:, hp - pad:hp, 0:wp, 0:cc] = zrow
        zcol = jnp.zeros((1, hp, pad, cc), jnp.float32)
        buf[:, 0:hp, 0:pad, 0:cc] = zcol
        buf[:, 0:hp, wp - pad:wp, 0:cc] = zcol

    h, w = height, width
    src = 0  # index of the buffer holding the current conv's padded input

    # Stage-0 input: zero the padded border once, copy the sample into the interior.
    cin0 = stage_cfg[0][0][0]
    zero_border(bufs[src], h, w, cin0)
    bufs[src][:, pad:pad + h, pad:pad + w, 0:cin0] = x_ref[...]

    conv_idx = 0
    for si, stage in enumerate(stage_cfg):
        for cj, (cin, cout) in enumerate(stage):
            last_conv = cj == len(stage) - 1
            w_ref = w_refs[conv_idx]  # (K*K, cin, cout)

            if not last_conv:
                # Destination of this conv is the other padded buffer.
                zero_border(bufs[1 - src], h, w, cout)

            # Row-chunked conv: <=128 output pixels per chunk keeps each operand and
            # the f32 accumulator at <=16 vregs (no register spills).
            rb = max(1, min(h, 128 // w))
            for y0 in range(0, h, rb):
                r = min(rb, h - y0)
                acc = jnp.zeros((r * w, cout), jnp.float32)
                for dy in range(ksize):
                    for dx in range(ksize):
                        # Lane-offset-0 tap read straight from the padded scratch ref.
                        tap = bufs[src][:, y0 + dy:y0 + dy + r, dx:dx + w, 0:cin]
                        acc = acc + jnp.dot(tap.reshape(r * w, cin),
                                            w_ref[dy * ksize + dx],
                                            preferred_element_type=jnp.float32)
                y = jnp.where(acc >= 0, acc, neg_slope * acc)       # LeakyReLU (VPU)
                y = y.reshape(1, r, w, cout)                        # leading-dim split
                if last_conv:
                    f_refs[si][:, y0:y0 + r, :, :] = y              # stage feature
                else:
                    bufs[1 - src][:, pad + y0:pad + y0 + r, pad:pad + w, 0:cout] = y
            if not last_conv:
                src = 1 - src
            conv_idx += 1

        # 2x2 / stride-2 max pool feeding the next stage (the final stage's pooled
        # output is discarded by Encoder.forward, so skip it there).
        if si < n_stages - 1:
            cs = stage[-1][1]
            h2, w2 = h // 2, w // 2
            feat = f_refs[si][...]                                  # (1, h, w, cs)
            # H-pool: factor-2 dim sits outside the (sublane, lane) tile -> no relayout.
            hmax = jnp.max(feat.reshape(1, h2, 2, w, cs), axis=2)   # (1, h2, w, cs)
            # Stash into the (now dead) source buffer so W can be pooled with
            # stride-2 ref reads instead of a size-2-in-sublane reshape.
            bufs[src][:, 0:h2, 0:w, 0:cs] = hmax
            pooled = jnp.maximum(bufs[src][:, 0:h2, pl.ds(0, w2, 2), 0:cs],
                                 bufs[src][:, 0:h2, pl.ds(1, w2, 2), 0:cs])
            zero_border(bufs[1 - src], h2, w2, cs)
            bufs[1 - src][:, pad:pad + h2, pad:pad + w2, 0:cs] = pooled
            src = 1 - src
            h, w = h2, w2


# ----------------------------------------------------------------------------
# Wrapper: one pallas_call, grid over batch ("parallel" -> both TCs on v7x)
# ----------------------------------------------------------------------------
def encoder_forward(x_nhwc, params, *, ksize):
    """x_nhwc: (N, H, W, Cin) f32; params: list[stage][conv] of HWIO (K,K,Cin,Cout) f32.

    Returns the list of pre-pool features per stage (NHWC), matching Encoder.forward.
    """
    n, h, w, c_in = x_nhwc.shape
    pad = ksize // 2

    stage_cfg, w3d = [], []
    for stage in params:
        cfg = []
        for wgt in stage:
            k, _, cin, cout = wgt.shape
            assert k == ksize
            cfg.append((cin, cout))
            # HWIO -> (K*K, Cin, Cout); tap index dy*K+dx matches the kernel tap loop.
            w3d.append(wgt.reshape(k * k, cin, cout))
        stage_cfg.append(tuple(cfg))
    stage_cfg = tuple(stage_cfg)
    assert stage_cfg[0][0][0] == c_in
    n_stages = len(stage_cfg)
    c_max = max(max(max(ci, co) for ci, co in cfg) for cfg in stage_cfg)

    out_shapes, out_specs = [], []
    hs, ws = h, w
    for si, cfg in enumerate(stage_cfg):
        cs = cfg[-1][1]
        out_shapes.append(jax.ShapeDtypeStruct((n, hs, ws, cs), jnp.float32))
        out_specs.append(pl.BlockSpec((1, hs, ws, cs), lambda i: (i, 0, 0, 0)))
        if si < n_stages - 1:
            assert hs % 2 == 0 and ws % 2 == 0, "MaxPool2d(2) needs even H/W per stage"
            hs, ws = hs // 2, ws // 2

    in_specs = [pl.BlockSpec((1, h, w, c_in), lambda i: (i, 0, 0, 0))]
    in_specs += [pl.BlockSpec(wm.shape, lambda i: (0, 0, 0)) for wm in w3d]

    kernel = functools.partial(_encoder_kernel, stage_cfg=stage_cfg, ksize=ksize,
                               neg_slope=NEG_SLOPE, height=h, width=w)

    # Two ping-pong padded-activation buffers sized for the largest stage
    # (~0.45 MiB padded total; no vmem_limit_bytes override needed at this size).
    scratch_shapes = [
        pltpu.VMEM((1, h + 2 * pad, w + 2 * pad, c_max), jnp.float32)
        for _ in range(2)
    ]

    feats = pl.pallas_call(
        kernel,
        grid=(n,),
        out_shape=tuple(out_shapes),
        in_specs=in_specs,
        out_specs=tuple(out_specs),
        scratch_shapes=scratch_shapes,
        compiler_params=pltpu.CompilerParams(dimension_semantics=("parallel",)),
    )(x_nhwc, *w3d)
    return list(feats)


# ----------------------------------------------------------------------------
# Parameters + pure-JAX reference (verification glue)
# ----------------------------------------------------------------------------
def init_encoder_params(key, n_ch_in, n_enc_stages, n_convs_per_stage, n_filters, ksize):
    """Deterministic synthetic weights; shapes match nn.Conv2d(cin, cout, k, bias=False)
    but stored as HWIO (K, K, Cin, Cout)."""
    n_ch_list = [n_ch_in] + [int(n_filters) * 2 ** ne for ne in range(n_enc_stages)]
    params = []
    for s in range(n_enc_stages):
        cin, cout = n_ch_list[s], n_ch_list[s + 1]
        stage = []
        for c in range(n_convs_per_stage):
            ci = cin if c == 0 else cout
            key, sub = jax.random.split(key)
            fan_in = ci * ksize * ksize
            wgt = jax.random.normal(sub, (ksize, ksize, ci, cout), jnp.float32) / np.sqrt(fan_in)
            stage.append(wgt)
        params.append(stage)
    return params


def encoder_reference(x_nhwc, params):
    feats = []
    x = x_nhwc
    for stage in params:
        for wgt in stage:
            x = jax.lax.conv_general_dilated(
                x, wgt, window_strides=(1, 1), padding="SAME",
                dimension_numbers=("NHWC", "HWIO", "NHWC"))
            x = jnp.where(x >= 0, x, NEG_SLOPE * x)
        feats.append(x)
        x = jax.lax.reduce_window(
            x, -jnp.inf, jax.lax.max,
            window_dimensions=(1, 2, 2, 1), window_strides=(1, 2, 2, 1),
            padding="VALID")
    return feats


if __name__ == "__main__":
    # Encoder(dim=2, n_ch_in=4, n_enc_stages=2, n_convs_per_stage=2, n_filters=8)
    N, C_IN, H, W = 2, 4, 16, 16
    N_ENC_STAGES, N_CONVS, N_FILTERS, KSIZE = 2, 2, 8, 3

    key = jax.random.PRNGKey(0)
    key, xkey = jax.random.split(key)
    x_nchw = jax.random.normal(xkey, (N, C_IN, H, W), jnp.float32)  # PyTorch layout
    x_nhwc = jnp.transpose(x_nchw, (0, 2, 3, 1))                    # kernel layout

    params = init_encoder_params(key, C_IN, N_ENC_STAGES, N_CONVS, N_FILTERS, KSIZE)

    fwd = jax.jit(functools.partial(encoder_forward, ksize=KSIZE))
    feats = fwd(x_nhwc, params)
    feats = [jax.block_until_ready(f) for f in feats]

    # Verify against a pure-JAX reference (loose tol: MXU f32 matmuls use reduced
    # internal precision; values are O(1) so 1e-2 is comfortably safe).
    ref_feats = encoder_reference(x_nhwc, params)
    for f, r in zip(feats, ref_feats):
        assert f.shape == r.shape and f.dtype == r.dtype
        np.testing.assert_allclose(np.asarray(f), np.asarray(r), rtol=1e-2, atol=1e-2)

    # Expected feature shapes: NHWC (2,16,16,8)/(2,8,8,16) == NCHW (2,8,16,16)/(2,16,8,8)
    assert feats[0].shape == (N, H, W, N_FILTERS)
    assert feats[1].shape == (N, H // 2, W // 2, 2 * N_FILTERS)
    feats_nchw = [jnp.transpose(f, (0, 3, 1, 2)) for f in feats]
    assert feats_nchw[0].shape == (N, N_FILTERS, H, W)
    assert feats_nchw[1].shape == (N, 2 * N_FILTERS, H // 2, W // 2)

    print("KERNEL_OK")
</pallas_src>

<mosaic_0001>
module attributes {stable_mosaic.version = 11 : i64} {
  func.func @_encoder_kernel(%arg0: i32, %arg1: memref<1x16x16x4xf32, #tpu.memory_space<vmem>>, %arg2: memref<9x4x8xf32, #tpu.memory_space<vmem>>, %arg3: memref<9x8x8xf32, #tpu.memory_space<vmem>>, %arg4: memref<9x8x16xf32, #tpu.memory_space<vmem>>, %arg5: memref<9x16x16xf32, #tpu.memory_space<vmem>>, %arg6: memref<1x16x16x8xf32, #tpu.memory_space<vmem>>, %arg7: memref<1x8x8x16xf32, #tpu.memory_space<vmem>>, %arg8: memref<1x18x18x16xf32, #tpu.memory_space<vmem>>, %arg9: memref<1x18x18x16xf32, #tpu.memory_space<vmem>>) attributes {dimension_semantics = [#tpu.dimension_semantics<parallel>], iteration_bounds = array<i64: 2>, scalar_prefetch = 0 : i64, scratch_operands = 2 : i64, tpu.core_type = #tpu.core_type<tc>, window_params = [{transform_indices = @transform_0, window_bounds = array<i64: 1, 16, 16, 4>}, {pipeline_mode = #tpu.pipeline_mode<synchronous>, transform_indices = @transform_1, window_bounds = array<i64: 9, 4, 8>}, {pipeline_mode = #tpu.pipeline_mode<synchronous>, transform_indices = @transform_2, window_bounds = array<i64: 9, 8, 8>}, {pipeline_mode = #tpu.pipeline_mode<synchronous>, transform_indices = @transform_3, window_bounds = array<i64: 9, 8, 16>}, {pipeline_mode = #tpu.pipeline_mode<synchronous>, transform_indices = @transform_4, window_bounds = array<i64: 9, 16, 16>}, {transform_indices = @transform_5, window_bounds = array<i64: 1, 16, 16, 8>}, {transform_indices = @transform_6, window_bounds = array<i64: 1, 8, 8, 16>}]} {
    %cst = arith.constant 0.000000e+00 : f32
    %0 = vector.broadcast %cst : f32 to vector<1x1x18x4xf32>
    %c0 = arith.constant 0 : index
    %c0_0 = arith.constant 0 : index
    %c0_1 = arith.constant 0 : index
    %c0_2 = arith.constant 0 : index
    %1 = vector.load %arg8[%c0, %c0_0, %c0_1, %c0_2] : memref<1x18x18x16xf32, #tpu.memory_space<vmem>>, vector<1x1x18x4xf32>
    tpu.vector_store %arg8[%c0, %c0_0, %c0_1, %c0_2], %0 {strides = array<i32>} : memref<1x18x18x16xf32, #tpu.memory_space<vmem>>, vector<1x1x18x4xf32>,
    %c0_3 = arith.constant 0 : index
    %c17 = arith.constant 17 : index
    %c0_4 = arith.constant 0 : index
    %c0_5 = arith.constant 0 : index
    %2 = vector.load %arg8[%c0_3, %c17, %c0_4, %c0_5] : memref<1x18x18x16xf32, #tpu.memory_space<vmem>>, vector<1x1x18x4xf32>
    tpu.vector_store %arg8[%c0_3, %c17, %c0_4, %c0_5], %0 {strides = array<i32>} : memref<1x18x18x16xf32, #tpu.memory_space<vmem>>, vector<1x1x18x4xf32>,
    %cst_6 = arith.constant 0.000000e+00 : f32
    %3 = vector.broadcast %cst_6 : f32 to vector<1x18x1x4xf32>
    %c0_7 = arith.constant 0 : index
    %c0_8 = arith.constant 0 : index
    %c0_9 = arith.constant 0 : index
    %c0_10 = arith.constant 0 : index
    %4 = vector.load %arg8[%c0_7, %c0_8, %c0_9, %c0_10] : memref<1x18x18x16xf32, #tpu.memory_space<vmem>>, vector<1x18x1x4xf32>
    tpu.vector_store %arg8[%c0_7, %c0_8, %c0_9, %c0_10], %3 {strides = array<i32>} : memref<1x18x18x16xf32, #tpu.memory_space<vmem>>, vector<1x18x1x4xf32>,
    %c0_11 = arith.constant 0 : index
    %c0_12 = arith.constant 0 : index
    %c17_13 = arith.constant 17 : index
    %c0_14 = arith.constant 0 : index
    %5 = vector.load %arg8[%c0_11, %c0_12, %c17_13, %c0_14] : memref<1x18x18x16xf32, #tpu.memory_space<vmem>>, vector<1x18x1x4xf32>
    tpu.vector_store %arg8[%c0_11, %c0_12, %c17_13, %c0_14], %3 {strides = array<i32>} : memref<1x18x18x16xf32, #tpu.memory_space<vmem>>, vector<1x18x1x4xf32>,
    %c0_15 = arith.constant 0 : index
    %c0_16 = arith.constant 0 : index
    %c0_17 = arith.constant 0 : index
    %c0_18 = arith.constant 0 : index
    %6 = vector.load %arg1[%c0_15, %c0_16, %c0_17, %c0_18] : memref<1x16x16x4xf32, #tpu.memory_space<vmem>>, vector<1x16x16x4xf32>
    %c0_19 = arith.constant 0 : index
    %c1 = arith.constant 1 : index
    %c1_20 = arith.constant 1 : index
    %c0_21 = arith.constant 0 : index
    %7 = vector.load %arg8[%c0_19, %c1, %c1_20, %c0_21] : memref<1x18x18x16xf32, #tpu.memory_space<vmem>>, vector<1x16x16x4xf32>
    tpu.vector_store %arg8[%c0_19, %c1, %c1_20, %c0_21], %6 {strides = array<i32>} : memref<1x18x18x16xf32, #tpu.memory_space<vmem>>, vector<1x16x16x4xf32>,
    %cst_22 = arith.constant 0.000000e+00 : f32
    %8 = vector.broadcast %cst_22 : f32 to vector<1x1x18x8xf32>
    %c0_23 = arith.constant 0 : index
    %c0_24 = arith.constant 0 : index
    %c0_25 = arith.constant 0 : index
    %c0_26 = arith.constant 0 : index
    %9 = vector.load %arg9[%c0_23, %c0_24, %c0_25, %c0_26] : memref<1x18x18x16xf32, #tpu.memory_space<vmem>>, vector<1x1x18x8xf32>
    tpu.vector_store %arg9[%c0_23, %c0_24, %c0_25, %c0_26], %8 {strides = array<i32>} : memref<1x18x18x16xf32, #tpu.memory_space<vmem>>, vector<1x1x18x8xf32>,
    %c0_27 = arith.constant 0 : index
    %c17_28 = arith.constant 17 : index
    %c0_29 = arith.constant 0 : index
    %c0_30 = arith.constant 0 : index
    %10 = vector.load %arg9[%c0_27, %c17_28, %c0_29, %c0_30] : memref<1x18x18x16xf32, #tpu.memory_space<vmem>>, vector<1x1x18x8xf32>
    tpu.vector_store %arg9[%c0_27, %c17_28, %c0_29, %c0_30], %8 {strides = array<i32>} : memref<1x18x18x16xf32, #tpu.memory_space<vmem>>, vector<1x1x18x8xf32>,
    %cst_31 = arith.constant 0.000000e+00 : f32
    %11 = vector.broadcast %cst_31 : f32 to vector<1x18x1x8xf32>
    %c0_32 = arith.constant 0 : index
    %c0_33 = arith.constant 0 : index
    %c0_34 = arith.constant 0 : index
    %c0_35 = arith.constant 0 : index
    %12 = vector.load %arg9[%c0_32, %c0_33, %c0_34, %c0_35] : memref<1x18x18x16xf32, #tpu.memory_space<vmem>>, vector<1x18x1x8xf32>
    tpu.vector_store %arg9[%c0_32, %c0_33, %c0_34, %c0_35], %11 {strides = array<i32>} : memref<1x18x18x16xf32, #tpu.memory_space<vmem>>, vector<1x18x1x8xf32>,
    %c0_36 = arith.constant 0 : index
    %c0_37 = arith.constant 0 : index
    %c17_38 = arith.constant 17 : index
    %c0_39 = arith.constant 0 : index
    %13 = vector.load %arg9[%c0_36, %c0_37, %c17_38, %c0_39] : memref<1x18x18x16xf32, #tpu.memory_space<vmem>>, vector<1x18x1x8xf32>
    tpu.vector_store %arg9[%c0_36, %c0_37, %c17_38, %c0_39], %11 {strides = array<i32>} : memref<1x18x18x16xf32, #tpu.memory_space<vmem>>, vector<1x18x1x8xf32>,
    %cst_40 = arith.constant 0.000000e+00 : f32
    %14 = vector.broadcast %cst_40 : f32 to vector<128x8xf32>
    %c0_41 = arith.constant 0 : index
    %c0_42 = arith.constant 0 : index
    %c0_43 = arith.constant 0 : index
    %c0_44 = arith.constant 0 : index
    %15 = vector.load %arg8[%c0_41, %c0_42, %c0_43, %c0_44] : memref<1x18x18x16xf32, #tpu.memory_space<vmem>>, vector<1x8x16x4xf32>
    %16 = vector.shape_cast %15 : vector<1x8x16x4xf32> to vector<128x4xf32>
    %c0_45 = arith.constant 0 : index
    %c0_46 = arith.constant 0 : index
    %c0_47 = arith.constant 0 : index
    %17 = vector.load %arg2[%c0_45, %c0_46, %c0_47] : memref<9x4x8xf32, #tpu.memory_space<vmem>>, vector<1x4x8xf32>
    %18 = vector.shape_cast %17 : vector<1x4x8xf32> to vector<4x8xf32>
    %cst_48 = arith.constant dense<0.000000e+00> : vector<128x8xf32>
    %19 = tpu.matmul %16, %18, %cst_48 {dimension_numbers = #tpu.dot_dimension_numbers<[1], [0], [0], [1], [0, 0, 1, 1], [], []>} : vector<128x4xf32>, vector<4x8xf32>, vector<128x8xf32> -> vector<128x8xf32>
    %20 = arith.addf %14, %19 : vector<128x8xf32>
    %c0_49 = arith.constant 0 : index
    %c0_50 = arith.constant 0 : index
    %c1_51 = arith.constant 1 : index
    %c0_52 = arith.constant 0 : index
    %21 = vector.load %arg8[%c0_49, %c0_50, %c1_51, %c0_52] : memref<1x18x18x16xf32, #tpu.memory_space<vmem>>, vector<1x8x16x4xf32>
    %22 = vector.shape_cast %21 : vector<1x8x16x4xf32> to vector<128x4xf32>
    %c1_53 = arith.constant 1 : index
    %c0_54 = arith.constant 0 : index
    %c0_55 = arith.constant 0 : index
    %23 = vector.load %arg2[%c1_53, %c0_54, %c0_55] : memref<9x4x8xf32, #tpu.memory_space<vmem>>, vector<1x4x8xf32>
    %24 = vector.shape_cast %23 : vector<1x4x8xf32> to vector<4x8xf32>
    %cst_56 = arith.constant dense<0.000000e+00> : vector<128x8xf32>
    %25 = tpu.matmul %22, %24, %cst_56 {dimension_numbers = #tpu.dot_dimension_numbers<[1], [0], [0], [1], [0, 0, 1, 1], [], []>} : vector<128x4xf32>, vector<4x8xf32>, vector<128x8xf32> -> vector<128x8xf32>
    %26 = arith.addf %20, %25 : vector<128x8xf32>
    %c0_57 = arith.constant 0 : index
    %c0_58 = arith.constant 0 : index
    %c2 = arith.constant 2 : index
    %c0_59 = arith.constant 0 : index
    %27 = vector.load %arg8[%c0_57, %c0_58, %c2, %c0_59] : memref<1x18x18x16xf32, #tpu.memory_space<vmem>>, vector<1x8x16x4xf32>
    %28 = vector.shape_cast %27 : vector<1x8x16x4xf32> to vector<128x4xf32>
    %c2_60 = arith.constant 2 : index
    %c0_61 = arith.constant 0 : index
    %c0_62 = arith.constant 0 : index
    %29 = vector.load %arg2[%c2_60, %c0_61, %c0_62] : memref<9x4x8xf32, #tpu.memory_space<vmem>>, vector<1x4x8xf32>
    %30 = vector.shape_cast %29 : vector<1x4x8xf32> to vector<4x8xf32>
    %cst_63 = arith.constant dense<0.000000e+00> : vector<128x8xf32>
    %31 = tpu.matmul %28, %30, %cst_63 {dimension_numbers = #tpu.dot_dimension_numbers<[1], [0], [0], [1], [0, 0, 1, 1], [], []>} : vector<128x4xf32>, vector<4x8xf32>, vector<128x8xf32> -> vector<128x8xf32>
    %32 = arith.addf %26, %31 : vector<128x8xf32>
    %c0_64 = arith.constant 0 : index
    %c1_65 = arith.constant 1 : index
    %c0_66 = arith.constant 0 : index
    %c0_67 = arith.constant 0 : index
    %33 = vector.load %arg8[%c0_64, %c1_65, %c0_66, %c0_67] : memref<1x18x18x16xf32, #tpu.memory_space<vmem>>, vector<1x8x16x4xf32>
    %34 = vector.shape_cast %33 : vector<1x8x16x4xf32> to vector<128x4xf32>
    %c3 = arith.constant 3 : index
    %c0_68 = arith.constant 0 : index
    %c0_69 = arith.constant 0 : index
    %35 = vector.load %arg2[%c3, %c0_68, %c0_69] : memref<9x4x8xf32, #tpu.memory_space<vmem>>, vector<1x4x8xf32>
    %36 = vector.shape_cast %35 : vector<1x4x8xf32> to vector<4x8xf32>
    %cst_70 = arith.constant dense<0.000000e+00> : vector<128x8xf32>
    %37 = tpu.matmul %34, %36, %cst_70 {dimension_numbers = #tpu.dot_dimension_numbers<[1], [0], [0], [1], [0, 0, 1, 1], [], []>} : vector<128x4xf32>, vector<4x8xf32>, vector<128x8xf32> -> vector<128x8xf32>
    %38 = arith.addf %32, %37 : vector<128x8xf32>
    %c0_71 = arith.constant 0 : index
    %c1_72 = arith.constant 1 : index
    %c1_73 = arith.constant 1 : index
    %c0_74 = arith.constant 0 : index
    %39 = vector.load %arg8[%c0_71, %c1_72, %c1_73, %c0_74] : memref<1x18x18x16xf32, #tpu.memory_space<vmem>>, vector<1x8x16x4xf32>
    %40 = vector.shape_cast %39 : vector<1x8x16x4xf32> to vector<128x4xf32>
    %c4 = arith.constant 4 : index
    %c0_75 = arith.constant 0 : index
    %c0_76 = arith.constant 0 : index
    %41 = vector.load %arg2[%c4, %c0_75, %c0_76] : memref<9x4x8xf32, #tpu.memory_space<vmem>>, vector<1x4x8xf32>
    %42 = vector.shape_cast %41 : vector<1x4x8xf32> to vector<4x8xf32>
    %cst_77 = arith.constant dense<0.000000e+00> : vector<128x8xf32>
    %43 = tpu.matmul %40, %42, %cst_77 {dimension_numbers = #tpu.dot_dimension_numbers<[1], [0], [0], [1], [0, 0, 1, 1], [], []>} : vector<128x4xf32>, vector<4x8xf32>, vector<128x8xf32> -> vector<128x8xf32>
    %44 = arith.addf %38, %43 : vector<128x8xf32>
    %c0_78 = arith.constant 0 : index
    %c1_79 = arith.constant 1 : index
    %c2_80 = arith.constant 2 : index
    %c0_81 = arith.constant 0 : index
    %45 = vector.load %arg8[%c0_78, %c1_79, %c2_80, %c0_81] : memref<1x18x18x16xf32, #tpu.memory_space<vmem>>, vector<1x8x16x4xf32>
    %46 = vector.shape_cast %45 : vector<1x8x16x4xf32> to vector<128x4xf32>
    %c5 = arith.constant 5 : index
    %c0_82 = arith.constant 0 : index
    %c0_83 = arith.constant 0 : index
    %47 = vector.load %arg2[%c5, %c0_82, %c0_83] : memref<9x4x8xf32, #tpu.memory_space<vmem>>, vector<1x4x8xf32>
    %48 = vector.shape_cast %47 : vector<1x4x8xf32> to vector<4x8xf32>
    %cst_84 = arith.constant dense<0.000000e+00> : vector<128x8xf32>
    %49 = tpu.matmul %46, %48, %cst_84 {dimension_numbers = #tpu.dot_dimension_numbers<[1], [0], [0], [1], [0, 0, 1, 1], [], []>} : vector<128x4xf32>, vector<4x8xf32>, vector<128x8xf32> -> vector<128x8xf32>
    %50 = arith.addf %44, %49 : vector<128x8xf32>
    %c0_85 = arith.constant 0 : index
    %c2_86 = arith.constant 2 : index
    %c0_87 = arith.constant 0 : index
    %c0_88 = arith.constant 0 : index
    %51 = vector.load %arg8[%c0_85, %c2_86, %c0_87, %c0_88] : memref<1x18x18x16xf32, #tpu.memory_space<vmem>>, vector<1x8x16x4xf32>
    %52 = vector.shape_cast %51 : vector<1x8x16x4xf32> to vector<128x4xf32>
    %c6 = arith.constant 6 : index
    %c0_89 = arith.constant 0 : index
    %c0_90 = arith.constant 0 : index
    %53 = vector.load %arg2[%c6, %c0_89, %c0_90] : memref<9x4x8xf32, #tpu.memory_space<vmem>>, vector<1x4x8xf32>
    %54 = vector.shape_cast %53 : vector<1x4x8xf32> to vector<4x8xf32>
    %cst_91 = arith.constant dense<0.000000e+00> : vector<128x8xf32>
    %55 = tpu.matmul %52, %54, %cst_91 {dimension_numbers = #tpu.dot_dimension_numbers<[1], [0], [0], [1], [0, 0, 1, 1], [], []>} : vector<128x4xf32>, vector<4x8xf32>, vector<128x8xf32> -> vector<128x8xf32>
    %56 = arith.addf %50, %55 : vector<128x8xf32>
    %c0_92 = arith.constant 0 : index
    %c2_93 = arith.constant 2 : index
    %c1_94 = arith.constant 1 : index
    %c0_95 = arith.constant 0 : index
    %57 = vector.load %arg8[%c0_92, %c2_93, %c1_94, %c0_95] : memref<1x18x18x16xf32, #tpu.memory_space<vmem>>, vector<1x8x16x4xf32>
    %58 = vector.shape_cast %57 : vector<1x8x16x4xf32> to vector<128x4xf32>
    %c7 = arith.constant 7 : index
    %c0_96 = arith.constant 0 : index
    %c0_97 = arith.constant 0 : index
    %59 = vector.load %arg2[%c7, %c0_96, %c0_97] : memref<9x4x8xf32, #tpu.memory_space<vmem>>, vector<1x4x8xf32>
    %60 = vector.shape_cast %59 : vector<1x4x8xf32> to vector<4x8xf32>
    %cst_98 = arith.constant dense<0.000000e+00> : vector<128x8xf32>
    %61 = tpu.matmul %58, %60, %cst_98 {dimension_numbers = #tpu.dot_dimension_numbers<[1], [0], [0], [1], [0, 0, 1, 1], [], []>} : vector<128x4xf32>, vector<4x8xf32>, vector<128x8xf32> -> vector<128x8xf32>
    %62 = arith.addf %56, %61 : vector<128x8xf32>
    %c0_99 = arith.constant 0 : index
    %c2_100 = arith.constant 2 : index
    %c2_101 = arith.constant 2 : index
    %c0_102 = arith.constant 0 : index
    %63 = vector.load %arg8[%c0_99, %c2_100, %c2_101, %c0_102] : memref<1x18x18x16xf32, #tpu.memory_space<vmem>>, vector<1x8x16x4xf32>
    %64 = vector.shape_cast %63 : vector<1x8x16x4xf32> to vector<128x4xf32>
    %c8 = arith.constant 8 : index
    %c0_103 = arith.constant 0 : index
    %c0_104 = arith.constant 0 : index
    %65 = vector.load %arg2[%c8, %c0_103, %c0_104] : memref<9x4x8xf32, #tpu.memory_space<vmem>>, vector<1x4x8xf32>
    %66 = vector.shape_cast %65 : vector<1x4x8xf32> to vector<4x8xf32>
    %cst_105 = arith.constant dense<0.000000e+00> : vector<128x8xf32>
    %67 = tpu.matmul %64, %66, %cst_105 {dimension_numbers = #tpu.dot_dimension_numbers<[1], [0], [0], [1], [0, 0, 1, 1], [], []>} : vector<128x4xf32>, vector<4x8xf32>, vector<128x8xf32> -> vector<128x8xf32>
    %68 = arith.addf %62, %67 : vector<128x8xf32>
    %cst_106 = arith.constant 0.000000e+00 : f32
    %69 = vector.broadcast %cst_106 : f32 to vector<128x8xf32>
    %70 = arith.cmpf oge, %68, %69 : vector<128x8xf32>
    %cst_107 = arith.constant 0.00999999977 : f32
    %71 = vector.broadcast %cst_107 : f32 to vector<128x8xf32>
    %72 = arith.mulf %71, %68 : vector<128x8xf32>
    %73 = arith.select %70, %68, %72 : vector<128x8xi1>, vector<128x8xf32>
    %74 = vector.shape_cast %73 : vector<128x8xf32> to vector<1x8x16x8xf32>
    %c0_108 = arith.constant 0 : index
    %c1_109 = arith.constant 1 : index
    %c1_110 = arith.constant 1 : index
    %c0_111 = arith.constant 0 : index
    %75 = vector.load %arg9[%c0_108, %c1_109, %c1_110, %c0_111] : memref<1x18x18x16xf32, #tpu.memory_space<vmem>>, vector<1x8x16x8xf32>
    tpu.vector_store %arg9[%c0_108, %c1_109, %c1_110, %c0_111], %74 {strides = array<i32>} : memref<1x18x18x16xf32, #tpu.memory_space<vmem>>, vector<1x8x16x8xf32>,
    %cst_112 = arith.constant 0.000000e+00 : f32
    %76 = vector.broadcast %cst_112 : f32 to vector<128x8xf32>
    %c0_113 = arith.constant 0 : index
    %c8_114 = arith.constant 8 : index
    %c0_115 = arith.constant 0 : index
    %c0_116 = arith.constant 0 : index
    %77 = vector.load %arg8[%c0_113, %c8_114, %c0_115, %c0_116] : memref<1x18x18x16xf32, #tpu.memory_space<vmem>>, vector<1x8x16x4xf32>
    %78 = vector.shape_cast %77 : vector<1x8x16x4xf32> to vector<128x4xf32>
    %c0_117 = arith.constant 0 : index
    %c0_118 = arith.constant 0 : index
    %c0_119 = arith.constant 0 : index
    %79 = vector.load %arg2[%c0_117, %c0_118, %c0_119] : memref<9x4x8xf32, #tpu.memory_space<vmem>>, vector<1x4x8xf32>
    %80 = vector.shape_cast %79 : vector<1x4x8xf32> to vector<4x8xf32>
    %cst_120 = arith.constant dense<0.000000e+00> : vector<128x8xf32>
    %81 = tpu.matmul %78, %80, %cst_120 {dimension_numbers = #tpu.dot_dimension_numbers<[1], [0], [0], [1], [0, 0, 1, 1], [], []>} : vector<128x4xf32>, vector<4x8xf32>, vector<128x8xf32> -> vector<128x8xf32>
    %82 = arith.addf %76, %81 : vector<128x8xf32>
    %c0_121 = arith.constant 0 : index
    %c8_122 = arith.constant 8 : index
    %c1_123 = arith.constant 1 : index
    %c0_124 = arith.constant 0 : index
    %83 = vector.load %arg8[%c0_121, %c8_122, %c1_123, %c0_124] : memref<1x18x18x16xf32, #tpu.memory_space<vmem>>, vector<1x8x16x4xf32>
    %84 = vector.shape_cast %83 : vector<1x8x16x4xf32> to vector<128x4xf32>
    %c1_125 = arith.constant 1 : index
    %c0_126 = arith.constant 0 : index
    %c0_127 = arith.constant 0 : index
    %85 = vector.load %arg2[%c1_125, %c0_126, %c0_127] : memref<9x4x8xf32, #tpu.memory_space<vmem>>, vector<1x4x8xf32>
    %86 = vector.shape_cast %85 : vector<1x4x8xf32> to vector<4x8xf32>
    %cst_128 = arith.constant dense<0.000000e+00> : vector<128x8xf32>
    %87 = tpu.matmul %84, %86, %cst_128 {dimension_numbers = #tpu.dot_dimension_numbers<[1], [0], [0], [1], [0, 0, 1, 1], [], []>} : vector<128x4xf32>, vector<4x8xf32>, vector<128x8xf32> -> vector<128x8xf32>
    %88 = arith.addf %82, %87 : vector<128x8xf32>
    %c0_129 = arith.constant 0 : index
    %c8_130 = arith.constant 8 : index
    %c2_131 = arith.constant 2 : index
    %c0_132 = arith.constant 0 : index
    %89 = vector.load %arg8[%c0_129, %c8_130, %c2_131, %c0_132] : memref<1x18x18x16xf32, #tpu.memory_space<vmem>>, vector<1x8x16x4xf32>
    %90 = vector.shape_cast %89 : vector<1x8x16x4xf32> to vector<128x4xf32>
    %c2_133 = arith.constant 2 : index
    %c0_134 = arith.constant 0 : index
    %c0_135 = arith.constant 0 : index
    %91 = vector.load %arg2[%c2_133, %c0_134, %c0_135] : memref<9x4x8xf32, #tpu.memory_space<vmem>>, vector<1x4x8xf32>
    %92 = vector.shape_cast %91 : vector<1x4x8xf32> to vector<4x8xf32>
    %cst_136 = arith.constant dense<0.000000e+00> : vector<128x8xf32>
    %93 = tpu.matmul %90, %92, %cst_136 {dimension_numbers = #tpu.dot_dimension_numbers<[1], [0], [0], [1], [0, 0, 1, 1], [], []>} : vector<128x4xf32>, vector<4x8xf32>, vector<128x8xf32> -> vector<128x8xf32>
    %94 = arith.addf %88, %93 : vector<128x8xf32>
    %c0_137 = arith.constant 0 : index
    %c9 = arith.constant 9 : index
    %c0_138 = arith.constant 0 : index
    %c0_139 = arith.constant 0 : index
    %95 = vector.load %arg8[%c0_137, %c9, %c0_138, %c0_139] : memref<1x18x18x16xf32, #tpu.memory_space<vmem>>, vector<1x8x16x4xf32>
    %96 = vector.shape_cast %95 : vector<1x8x16x4xf32> to vector<128x4xf32>
    %c3_140 = arith.constant 3 : index
    %c0_141 = arith.constant 0 : index
    %c0_142 = arith.constant 0 : index
    %97 = vector.load %arg2[%c3_140, %c0_141, %c0_142] : memref<9x4x8xf32, #tpu.memory_space<vmem>>, vector<1x4x8xf32>
    %98 = vector.shape_cast %97 : vector<1x4x8xf32> to vector<4x8xf32>
    %cst_143 = arith.constant dense<0.000000e+00> : vector<128x8xf32>
    %99 = tpu.matmul %96, %98, %cst_143 {dimension_numbers = #tpu.dot_dimension_numbers<[1], [0], [0], [1], [0, 0, 1, 1], [], []>} : vector<128x4xf32>, vector<4x8xf32>, vector<128x8xf32> -> vector<128x8xf32>
    %100 = arith.addf %94, %99 : vector<128x8xf32>
    %c0_144 = arith.constant 0 : index
    %c9_145 = arith.constant 9 : index
    %c1_146 = arith.constant 1 : index
    %c0_147 = arith.constant 0 : index
    %101 = vector.load %arg8[%c0_144, %c9_145, %c1_146, %c0_147] : memref<1x18x18x16xf32, #tpu.memory_space<vmem>>, vector<1x8x16x4xf32>
    %102 = vector.shape_cast %101 : vector<1x8x16x4xf32> to vector<128x4xf32>
    %c4_148 = arith.constant 4 : index
    %c0_149 = arith.constant 0 : index
    %c0_150 = arith.constant 0 : index
    %103 = vector.load %arg2[%c4_148, %c0_149, %c0_150] : memref<9x4x8xf32, #tpu.memory_space<vmem>>, vector<1x4x8xf32>
    %104 = vector.shape_cast %103 : vector<1x4x8xf32> to vector<4x8xf32>
    %cst_151 = arith.constant dense<0.000000e+00> : vector<128x8xf32>
    %105 = tpu.matmul %102, %104, %cst_151 {dimension_numbers = #tpu.dot_dimension_numbers<[1], [0], [0], [1], [0, 0, 1, 1], [], []>} : vector<128x4xf32>, vector<4x8xf32>, vector<128x8xf32> -> vector<128x8xf32>
    %106 = arith.addf %100, %105 : vector<128x8xf32>
    %c0_152 = arith.constant 0 : index
    %c9_153 = arith.constant 9 : index
    %c2_154 = arith.constant 2 : index
    %c0_155 = arith.constant 0 : index
    %107 = vector.load %arg8[%c0_152, %c9_153, %c2_154, %c0_155] : memref<1x18x18x16xf32, #tpu.memory_space<vmem>>, vector<1x8x16x4xf32>
    %108 = vector.shape_cast %107 : vector<1x8x16x4xf32> to vector<128x4xf32>
    %c5_156 = arith.constant 5 : index
    %c0_157 = arith.constant 0 : index
    %c0_158 = arith.constant 0 : index
    %109 = vector.load %arg2[%c5_156, %c0_157, %c0_158] : memref<9x4x8xf32, #tpu.memory_space<vmem>>, vector<1x4x8xf32>
    %110 = vector.shape_cast %109 : vector<1x4x8xf32> to vector<4x8xf32>
    %cst_159 = arith.constant dense<0.000000e+00> : vector<128x8xf32>
    %111 = tpu.matmul %108, %110, %cst_159 {dimension_numbers = #tpu.dot_dimension_numbers<[1], [0], [0], [1], [0, 0, 1, 1], [], []>} : vector<128x4xf32>, vector<4x8xf32>, vector<128x8xf32> -> vector<128x8xf32>
    %112 = arith.addf %106, %111 : vector<128x8xf32>
    %c0_160 = arith.constant 0 : index
    %c10 = arith.constant 10 : index
    %c0_161 = arith.constant 0 : index
    %c0_162 = arith.constant 0 : index
    %113 = vector.load %arg8[%c0_160, %c10, %c0_161, %c0_162] : memref<1x18x18x16xf32, #tpu.memory_space<vmem>>, vector<1x8x16x4xf32>
    %114 = vector.shape_cast %113 : vector<1x8x16x4xf32> to vector<128x4xf32>
    %c6_163 = arith.constant 6 : index
    %c0_164 = arith.constant 0 : index
    %c0_165 = arith.constant 0 : index
    %115 = vector.load %arg2[%c6_163, %c0_164, %c0_165] : memref<9x4x8xf32, #tpu.memory_space<vmem>>, vector<1x4x8xf32>
    %116 = vector.shape_cast %115 : vector<1x4x8xf32> to vector<4x8xf32>
    %cst_166 = arith.constant dense<0.000000e+00> : vector<128x8xf32>
    %117 = tpu.matmul %114, %116, %cst_166 {dimension_numbers = #tpu.dot_dimension_numbers<[1], [0], [0], [1], [0, 0, 1, 1], [], []>} : vector<128x4xf32>, vector<4x8xf32>, vector<128x8xf32> -> vector<128x8xf32>
    %118 = arith.addf %112, %117 : vector<128x8xf32>
    %c0_167 = arith.constant 0 : index
    %c10_168 = arith.constant 10 : index
    %c1_169 = arith.constant 1 : index
    %c0_170 = arith.constant 0 : index
    %119 = vector.load %arg8[%c0_167, %c10_168, %c1_169, %c0_170] : memref<1x18x18x16xf32, #tpu.memory_space<vmem>>, vector<1x8x16x4xf32>
    %120 = vector.shape_cast %119 : vector<1x8x16x4xf32> to vector<128x4xf32>
    %c7_171 = arith.constant 7 : index
    %c0_172 = arith.constant 0 : index
    %c0_173 = arith.constant 0 : index
    %121 = vector.load %arg2[%c7_171, %c0_172, %c0_173] : memref<9x4x8xf32, #tpu.memory_space<vmem>>, vector<1x4x8xf32>
    %122 = vector.shape_cast %121 : vector<1x4x8xf32> to vector<4x8xf32>
    %cst_174 = arith.constant dense<0.000000e+00> : vector<128x8xf32>
    %123 = tpu.matmul %120, %122, %cst_174 {dimension_numbers = #tpu.dot_dimension_numbers<[1], [0], [0], [1], [0, 0, 1, 1], [], []>} : vector<128x4xf32>, vector<4x8xf32>, vector<128x8xf32> -> vector<128x8xf32>
    %124 = arith.addf %118, %123 : vector<128x8xf32>
    %c0_175 = arith.constant 0 : index
    %c10_176 = arith.constant 10 : index
    %c2_177 = arith.constant 2 : index
    %c0_178 = arith.constant 0 : index
    %125 = vector.load %arg8[%c0_175, %c10_176, %c2_177, %c0_178] : memref<1x18x18x16xf32, #tpu.memory_space<vmem>>, vector<1x8x16x4xf32>
    %126 = vector.shape_cast %125 : vector<1x8x16x4xf32> to vector<128x4xf32>
    %c8_179 = arith.constant 8 : index
    %c0_180 = arith.constant 0 : index
    %c0_181 = arith.constant 0 : index
    %127 = vector.load %arg2[%c8_179, %c0_180, %c0_181] : memref<9x4x8xf32, #tpu.memory_space<vmem>>, vector<1x4x8xf32>
    %128 = vector.shape_cast %127 : vector<1x4x8xf32> to vector<4x8xf32>
    %cst_182 = arith.constant dense<0.000000e+00> : vector<128x8xf32>
    %129 = tpu.matmul %126, %128, %cst_182 {dimension_numbers = #tpu.dot_dimension_numbers<[1], [0], [0], [1], [0, 0, 1, 1], [], []>} : vector<128x4xf32>, vector<4x8xf32>, vector<128x8xf32> -> vector<128x8xf32>
    %130 = arith.addf %124, %129 : vector<128x8xf32>
    %cst_183 = arith.constant 0.000000e+00 : f32
    %131 = vector.broadcast %cst_183 : f32 to vector<128x8xf32>
    %132 = arith.cmpf oge, %130, %131 : vector<128x8xf32>
    %cst_184 = arith.constant 0.00999999977 : f32
    %133 = vector.broadcast %cst_184 : f32 to vector<128x8xf32>
    %134 = arith.mulf %133, %130 : vector<128x8xf32>
    %135 = arith.select %132, %130, %134 : vector<128x8xi1>, vector<128x8xf32>
    %136 = vector.shape_cast %135 : vector<128x8xf32> to vector<1x8x16x8xf32>
    %c0_185 = arith.constant 0 : index
    %c9_186 = arith.constant 9 : index
    %c1_187 = arith.constant 1 : index
    %c0_188 = arith.constant 0 : index
    %137 = vector.load %arg9[%c0_185, %c9_186, %c1_187, %c0_188] : memref<1x18x18x16xf32, #tpu.memory_space<vmem>>, vector<1x8x16x8xf32>
    tpu.vector_store %arg9[%c0_185, %c9_186, %c1_187, %c0_188], %136 {strides = array<i32>} : memref<1x18x18x16xf32, #tpu.memory_space<vmem>>, vector<1x8x16x8xf32>,
    %cst_189 = arith.constant 0.000000e+00 : f32
    %138 = vector.broadcast %cst_189 : f32 to vector<128x8xf32>
    %c0_190 = arith.constant 0 : index
    %c0_191 = arith.constant 0 : index
    %c0_192 = arith.constant 0 : index
    %c0_193 = arith.constant 0 : index
    %139 = vector.load %arg9[%c0_190, %c0_191, %c0_192, %c0_193] : memref<1x18x18x16xf32, #tpu.memory_space<vmem>>, vector<1x8x16x8xf32>
    %140 = vector.shape_cast %139 : vector<1x8x16x8xf32> to vector<128x8xf32>
    %c0_194 = arith.constant 0 : index
    %c0_195 = arith.constant 0 : index
    %c0_196 = arith.constant 0 : index
    %141 = vector.load %arg3[%c0_194, %c0_195, %c0_196] : memref<9x8x8xf32, #tpu.memory_space<vmem>>, vector<1x8x8xf32>
    %142 = vector.shape_cast %141 : vector<1x8x8xf32> to vector<8x8xf32>
    %cst_197 = arith.constant dense<0.000000e+00> : vector<128x8xf32>
    %143 = tpu.matmul %140, %142, %cst_197 {dimension_numbers = #tpu.dot_dimension_numbers<[1], [0], [0], [1], [0, 0, 1, 1], [], []>} : vector<128x8xf32>, vector<8x8xf32>, vector<128x8xf32> -> vector<128x8xf32>
    %144 = arith.addf %138, %143 : vector<128x8xf32>
    %c0_198 = arith.constant 0 : index
    %c0_199 = arith.constant 0 : index
    %c1_200 = arith.constant 1 : index
    %c0_201 = arith.constant 0 : index
    %145 = vector.load %arg9[%c0_198, %c0_199, %c1_200, %c0_201] : memref<1x18x18x16xf32, #tpu.memory_space<vmem>>, vector<1x8x16x8xf32>
    %146 = vector.shape_cast %145 : vector<1x8x16x8xf32> to vector<128x8xf32>
    %c1_202 = arith.constant 1 : index
    %c0_203 = arith.constant 0 : index
    %c0_204 = arith.constant 0 : index
    %147 = vector.load %arg3[%c1_202, %c0_203, %c0_204] : memref<9x8x8xf32, #tpu.memory_space<vmem>>, vector<1x8x8xf32>
    %148 = vector.shape_cast %147 : vector<1x8x8xf32> to vector<8x8xf32>
    %cst_205 = arith.constant dense<0.000000e+00> : vector<128x8xf32>
    %149 = tpu.matmul %146, %148, %cst_205 {dimension_numbers = #tpu.dot_dimension_numbers<[1], [0], [0], [1], [0, 0, 1, 1], [], []>} : vector<128x8xf32>, vector<8x8xf32>, vector<128x8xf32> -> vector<128x8xf32>
    %150 = arith.addf %144, %149 : vector<128x8xf32>
    %c0_206 = arith.constant 0 : index
    %c0_207 = arith.constant 0 : index
    %c2_208 = arith.constant 2 : index
    %c0_209 = arith.constant 0 : index
    %151 = vector.load %arg9[%c0_206, %c0_207, %c2_208, %c0_209] : memref<1x18x18x16xf32, #tpu.memory_space<vmem>>, vector<1x8x16x8xf32>
    %152 = vector.shape_cast %151 : vector<1x8x16x8xf32> to vector<128x8xf32>
    %c2_210 = arith.constant 2 : index
    %c0_211 = arith.constant 0 : index
    %c0_212 = arith.constant 0 : index
    %153 = vector.load %arg3[%c2_210, %c0_211, %c0_212] : memref<9x8x8xf32, #tpu.memory_space<vmem>>, vector<1x8x8xf32>
    %154 = vector.shape_cast %153 : vector<1x8x8xf32> to vector<8x8xf32>
    %cst_213 = arith.constant dense<0.000000e+00> : vector<128x8xf32>
    %155 = tpu.matmul %152, %154, %cst_213 {dimension_numbers = #tpu.dot_dimension_numbers<[1], [0], [0], [1], [0, 0, 1, 1], [], []>} : vector<128x8xf32>, vector<8x8xf32>, vector<128x8xf32> -> vector<128x8xf32>
    %156 = arith.addf %150, %155 : vector<128x8xf32>
    %c0_214 = arith.constant 0 : index
    %c1_215 = arith.constant 1 : index
    %c0_216 = arith.constant 0 : index
    %c0_217 = arith.constant 0 : index
    %157 = vector.load %arg9[%c0_214, %c1_215, %c0_216, %c0_217] : memref<1x18x18x16xf32, #tpu.memory_space<vmem>>, vector<1x8x16x8xf32>
    %158 = vector.shape_cast %157 : vector<1x8x16x8xf32> to vector<128x8xf32>
    %c3_218 = arith.constant 3 : index
    %c0_219 = arith.constant 0 : index
    %c0_220 = arith.constant 0 : index
    %159 = vector.load %arg3[%c3_218, %c0_219, %c0_220] : memref<9x8x8xf32, #tpu.memory_space<vmem>>, vector<1x8x8xf32>
    %160 = vector.shape_cast %159 : vector<1x8x8xf32> to vector<8x8xf32>
    %cst_221 = arith.constant dense<0.000000e+00> : vector<128x8xf32>
    %161 = tpu.matmul %158, %160, %cst_221 {dimension_numbers = #tpu.dot_dimension_numbers<[1], [0], [0], [1], [0, 0, 1, 1], [], []>} : vector<128x8xf32>, vector<8x8xf32>, vector<128x8xf32> -> vector<128x8xf32>
    %162 = arith.addf %156, %161 : vector<128x8xf32>
    %c0_222 = arith.constant 0 : index
    %c1_223 = arith.constant 1 : index
    %c1_224 = arith.constant 1 : index
    %c0_225 = arith.constant 0 : index
    %163 = vector.load %arg9[%c0_222, %c1_223, %c1_224, %c0_225] : memref<1x18x18x16xf32, #tpu.memory_space<vmem>>, vector<1x8x16x8xf32>
    %164 = vector.shape_cast %163 : vector<1x8x16x8xf32> to vector<128x8xf32>
    %c4_226 = arith.constant 4 : index
    %c0_227 = arith.constant 0 : index
    %c0_228 = arith.constant 0 : index
    %165 = vector.load %arg3[%c4_226, %c0_227, %c0_228] : memref<9x8x8xf32, #tpu.memory_space<vmem>>, vector<1x8x8xf32>
    %166 = vector.shape_cast %165 : vector<1x8x8xf32> to vector<8x8xf32>
    %cst_229 = arith.constant dense<0.000000e+00> : vector<128x8xf32>
    %167 = tpu.matmul %164, %166, %cst_229 {dimension_numbers = #tpu.dot_dimension_numbers<[1], [0], [0], [1], [0, 0, 1, 1], [], []>} : vector<128x8xf32>, vector<8x8xf32>, vector<128x8xf32> -> vector<128x8xf32>
    %168 = arith.addf %162, %167 : vector<128x8xf32>
    %c0_230 = arith.constant 0 : index
    %c1_231 = arith.constant 1 : index
    %c2_232 = arith.constant 2 : index
    %c0_233 = arith.constant 0 : index
    %169 = vector.load %arg9[%c0_230, %c1_231, %c2_232, %c0_233] : memref<1x18x18x16xf32, #tpu.memory_space<vmem>>, vector<1x8x16x8xf32>
    %170 = vector.shape_cast %169 : vector<1x8x16x8xf32> to vector<128x8xf32>
    %c5_234 = arith.constant 5 : index
    %c0_235 = arith.constant 0 : index
    %c0_236 = arith.constant 0 : index
    %171 = vector.load %arg3[%c5_234, %c0_235, %c0_236] : memref<9x8x8xf32, #tpu.memory_space<vmem>>, vector<1x8x8xf32>
    %172 = vector.shape_cast %171 : vector<1x8x8xf32> to vector<8x8xf32>
    %cst_237 = arith.constant dense<0.000000e+00> : vector<128x8xf32>
    %173 = tpu.matmul %170, %172, %cst_237 {dimension_numbers = #tpu.dot_dimension_numbers<[1], [0], [0], [1], [0, 0, 1, 1], [], []>} : vector<128x8xf32>, vector<8x8xf32>, vector<128x8xf32> -> vector<128x8xf32>
    %174 = arith.addf %168, %173 : vector<128x8xf32>
    %c0_238 = arith.constant 0 : index
    %c2_239 = arith.constant 2 : index
    %c0_240 = arith.constant 0 : index
    %c0_241 = arith.constant 0 : index
    %175 = vector.load %arg9[%c0_238, %c2_239, %c0_240, %c0_241] : memref<1x18x18x16xf32, #tpu.memory_space<vmem>>, vector<1x8x16x8xf32>
    %176 = vector.shape_cast %175 : vector<1x8x16x8xf32> to vector<128x8xf32>
    %c6_242 = arith.constant 6 : index
    %c0_243 = arith.constant 0 : index
    %c0_244 = arith.constant 0 : index
    %177 = vector.load %arg3[%c6_242, %c0_243, %c0_244] : memref<9x8x8xf32, #tpu.memory_space<vmem>>, vector<1x8x8xf32>
    %178 = vector.shape_cast %177 : vector<1x8x8xf32> to vector<8x8xf32>
    %cst_245 = arith.constant dense<0.000000e+00> : vector<128x8xf32>
    %179 = tpu.matmul %176, %178, %cst_245 {dimension_numbers = #tpu.dot_dimension_numbers<[1], [0], [0], [1], [0, 0, 1, 1], [], []>} : vector<128x8xf32>, vector<8x8xf32>, vector<128x8xf32> -> vector<128x8xf32>
    %180 = arith.addf %174, %179 : vector<128x8xf32>
    %c0_246 = arith.constant 0 : index
    %c2_247 = arith.constant 2 : index
    %c1_248 = arith.constant 1 : index
    %c0_249 = arith.constant 0 : index
    %181 = vector.load %arg9[%c0_246, %c2_247, %c1_248, %c0_249] : memref<1x18x18x16xf32, #tpu.memory_space<vmem>>, vector<1x8x16x8xf32>
    %182 = vector.shape_cast %181 : vector<1x8x16x8xf32> to vector<128x8xf32>
    %c7_250 = arith.constant 7 : index
    %c0_251 = arith.constant 0 : index
    %c0_252 = arith.constant 0 : index
    %183 = vector.load %arg3[%c7_250, %c0_251, %c0_252] : memref<9x8x8xf32, #tpu.memory_space<vmem>>, vector<1x8x8xf32>
    %184 = vector.shape_cast %183 : vector<1x8x8xf32> to vector<8x8xf32>
    %cst_253 = arith.constant dense<0.000000e+00> : vector<128x8xf32>
    %185 = tpu.matmul %182, %184, %cst_253 {dimension_numbers = #tpu.dot_dimension_numbers<[1], [0], [0], [1], [0, 0, 1, 1], [], []>} : vector<128x8xf32>, vector<8x8xf32>, vector<128x8xf32> -> vector<128x8xf32>
    %186 = arith.addf %180, %185 : vector<128x8xf32>
    %c0_254 = arith.constant 0 : index
    %c2_255 = arith.constant 2 : index
    %c2_256 = arith.constant 2 : index
    %c0_257 = arith.constant 0 : index
    %187 = vector.load %arg9[%c0_254, %c2_255, %c2_256, %c0_257] : memref<1x18x18x16xf32, #tpu.memory_space<vmem>>, vector<1x8x16x8xf32>
    %188 = vector.shape_cast %187 : vector<1x8x16x8xf32> to vector<128x8xf32>
    %c8_258 = arith.constant 8 : index
    %c0_259 = arith.constant 0 : index
    %c0_260 = arith.constant 0 : index
    %189 = vector.load %arg3[%c8_258, %c0_259, %c0_260] : memref<9x8x8xf32, #tpu.memory_space<vmem>>, vector<1x8x8xf32>
    %190 = vector.shape_cast %189 : vector<1x8x8xf32> to vector<8x8xf32>
    %cst_261 = arith.constant dense<0.000000e+00> : vector<128x8xf32>
    %191 = tpu.matmul %188, %190, %cst_261 {dimension_numbers = #tpu.dot_dimension_numbers<[1], [0], [0], [1], [0, 0, 1, 1], [], []>} : vector<128x8xf32>, vector<8x8xf32>, vector<128x8xf32> -> vector<128x8xf32>
    %192 = arith.addf %186, %191 : vector<128x8xf32>
    %cst_262 = arith.constant 0.000000e+00 : f32
    %193 = vector.broadcast %cst_262 : f32 to vector<128x8xf32>
    %194 = arith.cmpf oge, %192, %193 : vector<128x8xf32>
    %cst_263 = arith.constant 0.00999999977 : f32
    %195 = vector.broadcast %cst_263 : f32 to vector<128x8xf32>
    %196 = arith.mulf %195, %192 : vector<128x8xf32>
    %197 = arith.select %194, %192, %196 : vector<128x8xi1>, vector<128x8xf32>
    %198 = vector.shape_cast %197 : vector<128x8xf32> to vector<1x8x16x8xf32>
    %c0_264 = arith.constant 0 : index
    %c0_265 = arith.constant 0 : index
    %c0_266 = arith.constant 0 : index
    %c0_267 = arith.constant 0 : index
    %199 = vector.load %arg6[%c0_264, %c0_265, %c0_266, %c0_267] : memref<1x16x16x8xf32, #tpu.memory_space<vmem>>, vector<1x8x16x8xf32>
    tpu.vector_store %arg6[%c0_264, %c0_265, %c0_266, %c0_267], %198 {strides = array<i32>} : memref<1x16x16x8xf32, #tpu.memory_space<vmem>>, vector<1x8x16x8xf32>,
    %cst_268 = arith.constant 0.000000e+00 : f32
    %200 = vector.broadcast %cst_268 : f32 to vector<128x8xf32>
    %c0_269 = arith.constant 0 : index
    %c8_270 = arith.constant 8 : index
    %c0_271 = arith.constant 0 : index
    %c0_272 = arith.constant 0 : index
    %201 = vector.load %arg9[%c0_269, %c8_270, %c0_271, %c0_272] : memref<1x18x18x16xf32, #tpu.memory_space<vmem>>, vector<1x8x16x8xf32>
    %202 = vector.shape_cast %201 : vector<1x8x16x8xf32> to vector<128x8xf32>
    %c0_273 = arith.constant 0 : index
    %c0_274 = arith.constant 0 : index
    %c0_275 = arith.constant 0 : index
    %203 = vector.load %arg3[%c0_273, %c0_274, %c0_275] : memref<9x8x8xf32, #tpu.memory_space<vmem>>, vector<1x8x8xf32>
    %204 = vector.shape_cast %203 : vector<1x8x8xf32> to vector<8x8xf32>
    %cst_276 = arith.constant dense<0.000000e+00> : vector<128x8xf32>
    %205 = tpu.matmul %202, %204, %cst_276 {dimension_numbers = #tpu.dot_dimension_numbers<[1], [0], [0], [1], [0, 0, 1, 1], [], []>} : vector<128x8xf32>, vector<8x8xf32>, vector<128x8xf32> -> vector<128x8xf32>
    %206 = arith.addf %200, %205 : vector<128x8xf32>
    %c0_277 = arith.constant 0 : index
    %c8_278 = arith.constant 8 : index
    %c1_279 = arith.constant 1 : index
    %c0_280 = arith.constant 0 : index
    %207 = vector.load %arg9[%c0_277, %c8_278, %c1_279, %c0_280] : memref<1x18x18x16xf32, #tpu.memory_space<vmem>>, vector<1x8x16x8xf32>
    %208 = vector.shape_cast %207 : vector<1x8x16x8xf32> to vector<128x8xf32>
    %c1_281 = arith.constant 1 : index
    %c0_282 = arith.constant 0 : index
    %c0_283 = arith.constant 0 : index
    %209 = vector.load %arg3[%c1_281, %c0_282, %c0_283] : memref<9x8x8xf32, #tpu.memory_space<vmem>>, vector<1x8x8xf32>
    %210 = vector.shape_cast %209 : vector<1x8x8xf32> to vector<8x8xf32>
    %cst_284 = arith.constant dense<0.000000e+00> : vector<128x8xf32>
    %211 = tpu.matmul %208, %210, %cst_284 {dimension_numbers = #tpu.dot_dimension_numbers<[1], [0], [0], [1], [0, 0, 1, 1], [], []>} : vector<128x8xf32>, vector<8x8xf32>, vector<128x8xf32> -> vector<128x8xf32>
    %212 = arith.addf %206, %211 : vector<128x8xf32>
    %c0_285 = arith.constant 0 : index
    %c8_286 = arith.constant 8 : index
    %c2_287 = arith.constant 2 : index
    %c0_288 = arith.constant 0 : index
    %213 = vector.load %arg9[%c0_285, %c8_286, %c2_287, %c0_288] : memref<1x18x18x16xf32, #tpu.memory_space<vmem>>, vector<1x8x16x8xf32>
    %214 = vector.shape_cast %213 : vector<1x8x16x8xf32> to vector<128x8xf32>
    %c2_289 = arith.constant 2 : index
    %c0_290 = arith.constant 0 : index
    %c0_291 = arith.constant 0 : index
    %215 = vector.load %arg3[%c2_289, %c0_290, %c0_291] : memref<9x8x8xf32, #tpu.memory_space<vmem>>, vector<1x8x8xf32>
    %216 = vector.shape_cast %215 : vector<1x8x8xf32> to vector<8x8xf32>
    %cst_292 = arith.constant dense<0.000000e+00> : vector<128x8xf32>
    %217 = tpu.matmul %214, %216, %cst_292 {dimension_numbers = #tpu.dot_dimension_numbers<[1], [0], [0], [1], [0, 0, 1, 1], [], []>} : vector<128x8xf32>, vector<8x8xf32>, vector<128x8xf32> -> vector<128x8xf32>
    %218 = arith.addf %212, %217 : vector<128x8xf32>
    %c0_293 = arith.constant 0 : index
    %c9_294 = arith.constant 9 : index
    %c0_295 = arith.constant 0 : index
    %c0_296 = arith.constant 0 : index
    %219 = vector.load %arg9[%c0_293, %c9_294, %c0_295, %c0_296] : memref<1x18x18x16xf32, #tpu.memory_space<vmem>>, vector<1x8x16x8xf32>
    %220 = vector.shape_cast %219 : vector<1x8x16x8xf32> to vector<128x8xf32>
    %c3_297 = arith.constant 3 : index
    %c0_298 = arith.constant 0 : index
    %c0_299 = arith.constant 0 : index
    %221 = vector.load %arg3[%c3_297, %c0_298, %c0_299] : memref<9x8x8xf32, #tpu.memory_space<vmem>>, vector<1x8x8xf32>
    %222 = vector.shape_cast %221 : vector<1x8x8xf32> to vector<8x8xf32>
    %cst_300 = arith.constant dense<0.000000e+00> : vector<128x8xf32>
    %223 = tpu.matmul %220, %222, %cst_300 {dimension_numbers = #tpu.dot_dimension_numbers<[1], [0], [0], [1], [0, 0, 1, 1], [], []>} : vector<128x8xf32>, vector<8x8xf32>, vector<128x8xf32> -> vector<128x8xf32>
    %224 = arith.addf %218, %223 : vector<128x8xf32>
    %c0_301 = arith.constant 0 : index
    %c9_302 = arith.constant 9 : index
    %c1_303 = arith.constant 1 : index
    %c0_304 = arith.constant 0 : index
    %225 = vector.load %arg9[%c0_301, %c9_302, %c1_303, %c0_304] : memref<1x18x18x16xf32, #tpu.memory_space<vmem>>, vector<1x8x16x8xf32>
    %226 = vector.shape_cast %225 : vector<1x8x16x8xf32> to vector<128x8xf32>
    %c4_305 = arith.constant 4 : index
    %c0_306 = arith.constant 0 : index
    %c0_307 = arith.constant 0 : index
    %227 = vector.load %arg3[%c4_305, %c0_306, %c0_307] : memref<9x8x8xf32, #tpu.memory_space<vmem>>, vector<1x8x8xf32>
    %228 = vector.shape_cast %227 : vector<1x8x8xf32> to vector<8x8xf32>
    %cst_308 = arith.constant dense<0.000000e+00> : vector<128x8xf32>
    %229 = tpu.matmul %226, %228, %cst_308 {dimension_numbers = #tpu.dot_dimension_numbers<[1], [0], [0], [1], [0, 0, 1, 1], [], []>} : vector<128x8xf32>, vector<8x8xf32>, vector<128x8xf32> -> vector<128x8xf32>
    %230 = arith.addf %224, %229 : vector<128x8xf32>
    %c0_309 = arith.constant 0 : index
    %c9_310 = arith.constant 9 : index
    %c2_311 = arith.constant 2 : index
    %c0_312 = arith.constant 0 : index
    %231 = vector.load %arg9[%c0_309, %c9_310, %c2_311, %c0_312] : memref<1x18x18x16xf32, #tpu.memory_space<vmem>>, vector<1x8x16x8xf32>
    %232 = vector.shape_cast %231 : vector<1x8x16x8xf32> to vector<128x8xf32>
    %c5_313 = arith.constant 5 : index
    %c0_314 = arith.constant 0 : index
    %c0_315 = arith.constant 0 : index
    %233 = vector.load %arg3[%c5_313, %c0_314, %c0_315] : memref<9x8x8xf32, #tpu.memory_space<vmem>>, vector<1x8x8xf32>
    %234 = vector.shape_cast %233 : vector<1x8x8xf32> to vector<8x8xf32>
    %cst_316 = arith.constant dense<0.000000e+00> : vector<128x8xf32>
    %235 = tpu.matmul %232, %234, %cst_316 {dimension_numbers = #tpu.dot_dimension_numbers<[1], [0], [0], [1], [0, 0, 1, 1], [], []>} : vector<128x8xf32>, vector<8x8xf32>, vector<128x8xf32> -> vector<128x8xf32>
    %236 = arith.addf %230, %235 : vector<128x8xf32>
    %c0_317 = arith.constant 0 : index
    %c10_318 = arith.constant 10 : index
    %c0_319 = arith.constant 0 : index
    %c0_320 = arith.constant 0 : index
    %237 = vector.load %arg9[%c0_317, %c10_318, %c0_319, %c0_320] : memref<1x18x18x16xf32, #tpu.memory_space<vmem>>, vector<1x8x16x8xf32>
    %238 = vector.shape_cast %237 : vector<1x8x16x8xf32> to vector<128x8xf32>
    %c6_321 = arith.constant 6 : index
    %c0_322 = arith.constant 0 : index
    %c0_323 = arith.constant 0 : index
    %239 = vector.load %arg3[%c6_321, %c0_322, %c0_323] : memref<9x8x8xf32, #tpu.memory_space<vmem>>, vector<1x8x8xf32>
    %240 = vector.shape_cast %239 : vector<1x8x8xf32> to vector<8x8xf32>
    %cst_324 = arith.constant dense<0.000000e+00> : vector<128x8xf32>
    %241 = tpu.matmul %238, %240, %cst_324 {dimension_numbers = #tpu.dot_dimension_numbers<[1], [0], [0], [1], [0, 0, 1, 1], [], []>} : vector<128x8xf32>, vector<8x8xf32>, vector<128x8xf32> -> vector<128x8xf32>
    %242 = arith.addf %236, %241 : vector<128x8xf32>
    %c0_325 = arith.constant 0 : index
    %c10_326 = arith.constant 10 : index
    %c1_327 = arith.constant 1 : index
    %c0_328 = arith.constant 0 : index
    %243 = vector.load %arg9[%c0_325, %c10_326, %c1_327, %c0_328] : memref<1x18x18x16xf32, #tpu.memory_space<vmem>>, vector<1x8x16x8xf32>
    %244 = vector.shape_cast %243 : vector<1x8x16x8xf32> to vector<128x8xf32>
    %c7_329 = arith.constant 7 : index
    %c0_330 = arith.constant 0 : index
    %c0_331 = arith.constant 0 : index
    %245 = vector.load %arg3[%c7_329, %c0_330, %c0_331] : memref<9x8x8xf32, #tpu.memory_space<vmem>>, vector<1x8x8xf32>
    %246 = vector.shape_cast %245 : vector<1x8x8xf32> to vector<8x8xf32>
    %cst_332 = arith.constant dense<0.000000e+00> : vector<128x8xf32>
    %247 = tpu.matmul %244, %246, %cst_332 {dimension_numbers = #tpu.dot_dimension_numbers<[1], [0], [0], [1], [0, 0, 1, 1], [], []>} : vector<128x8xf32>, vector<8x8xf32>, vector<128x8xf32> -> vector<128x8xf32>
    %248 = arith.addf %242, %247 : vector<128x8xf32>
    %c0_333 = arith.constant 0 : index
    %c10_334 = arith.constant 10 : index
    %c2_335 = arith.constant 2 : index
    %c0_336 = arith.constant 0 : index
    %249 = vector.load %arg9[%c0_333, %c10_334, %c2_335, %c0_336] : memref<1x18x18x16xf32, #tpu.memory_space<vmem>>, vector<1x8x16x8xf32>
    %250 = vector.shape_cast %249 : vector<1x8x16x8xf32> to vector<128x8xf32>
    %c8_337 = arith.constant 8 : index
    %c0_338 = arith.constant 0 : index
    %c0_339 = arith.constant 0 : index
    %251 = vector.load %arg3[%c8_337, %c0_338, %c0_339] : memref<9x8x8xf32, #tpu.memory_space<vmem>>, vector<1x8x8xf32>
    %252 = vector.shape_cast %251 : vector<1x8x8xf32> to vector<8x8xf32>
    %cst_340 = arith.constant dense<0.000000e+00> : vector<128x8xf32>
    %253 = tpu.matmul %250, %252, %cst_340 {dimension_numbers = #tpu.dot_dimension_numbers<[1], [0], [0], [1], [0, 0, 1, 1], [], []>} : vector<128x8xf32>, vector<8x8xf32>, vector<128x8xf32> -> vector<128x8xf32>
    %254 = arith.addf %248, %253 : vector<128x8xf32>
    %cst_341 = arith.constant 0.000000e+00 : f32
    %255 = vector.broadcast %cst_341 : f32 to vector<128x8xf32>
    %256 = arith.cmpf oge, %254, %255 : vector<128x8xf32>
    %cst_342 = arith.constant 0.00999999977 : f32
    %257 = vector.broadcast %cst_342 : f32 to vector<128x8xf32>
    %258 = arith.mulf %257, %254 : vector<128x8xf32>
    %259 = arith.select %256, %254, %258 : vector<128x8xi1>, vector<128x8xf32>
    %260 = vector.shape_cast %259 : vector<128x8xf32> to vector<1x8x16x8xf32>
    %c0_343 = arith.constant 0 : index
    %c8_344 = arith.constant 8 : index
    %c0_345 = arith.constant 0 : index
    %c0_346 = arith.constant 0 : index
    %261 = vector.load %arg6[%c0_343, %c8_344, %c0_345, %c0_346] : memref<1x16x16x8xf32, #tpu.memory_space<vmem>>, vector<1x8x16x8xf32>
    tpu.vector_store %arg6[%c0_343, %c8_344, %c0_345, %c0_346], %260 {strides = array<i32>} : memref<1x16x16x8xf32, #tpu.memory_space<vmem>>, vector<1x8x16x8xf32>,
    %c0_347 = arith.constant 0 : index
    %c0_348 = arith.constant 0 : index
    %c0_349 = arith.constant 0 : index
    %c0_350 = arith.constant 0 : index
    %262 = vector.load %arg6[%c0_347, %c0_348, %c0_349, %c0_350] : memref<1x16x16x8xf32, #tpu.memory_space<vmem>>, vector<1x16x16x8xf32>
    %263 = vector.shape_cast %262 : vector<1x16x16x8xf32> to vector<1x8x2x16x8xf32>
    %cst_351 = arith.constant dense<0xFF800000> : vector<1x8x16x8xf32>
    %264 = vector.multi_reduction <maximumf>, %263, %cst_351 [2] : vector<1x8x2x16x8xf32> to vector<1x8x16x8xf32>
    %c0_352 = arith.constant 0 : index
    %c0_353 = arith.constant 0 : index
    %c0_354 = arith.constant 0 : index
    %c0_355 = arith.constant 0 : index
    %265 = vector.load %arg9[%c0_352, %c0_353, %c0_354, %c0_355] : memref<1x18x18x16xf32, #tpu.memory_space<vmem>>, vector<1x8x16x8xf32>
    tpu.vector_store %arg9[%c0_352, %c0_353, %c0_354, %c0_355], %264 {strides = array<i32>} : memref<1x18x18x16xf32, #tpu.memory_space<vmem>>, vector<1x8x16x8xf32>,
    %c0_356 = arith.constant 0 : index
    %c0_357 = arith.constant 0 : index
    %c0_358 = arith.constant 0 : index
    %c0_359 = arith.constant 0 : index
    %266 = tpu.strided_load %arg9[%c0_356, %c0_357, %c0_358, %c0_359] {strides = array<i32: 1, 1, 2, 1>} : memref<1x18x18x16xf32, #tpu.memory_space<vmem>>, vector<1x8x8x8xf32>
    %c0_360 = arith.constant 0 : index
    %c0_361 = arith.constant 0 : index
    %c1_362 = arith.constant 1 : index
    %c0_363 = arith.constant 0 : index
    %267 = tpu.strided_load %arg9[%c0_360, %c0_361, %c1_362, %c0_363] {strides = array<i32: 1, 1, 2, 1>} : memref<1x18x18x16xf32, #tpu.memory_space<vmem>>, vector<1x8x8x8xf32>
    %268 = arith.maximumf %266, %267 : vector<1x8x8x8xf32>
    %cst_364 = arith.constant 0.000000e+00 : f32
    %269 = vector.broadcast %cst_364 : f32 to vector<1x1x10x8xf32>
    %c0_365 = arith.constant 0 : index
    %c0_366 = arith.constant 0 : index
    %c0_367 = arith.constant 0 : index
    %c0_368 = arith.constant 0 : index
    %270 = vector.load %arg8[%c0_365, %c0_366, %c0_367, %c0_368] : memref<1x18x18x16xf32, #tpu.memory_space<vmem>>, vector<1x1x10x8xf32>
    tpu.vector_store %arg8[%c0_365, %c0_366, %c0_367, %c0_368], %269 {strides = array<i32>} : memref<1x18x18x16xf32, #tpu.memory_space<vmem>>, vector<1x1x10x8xf32>,
    %c0_369 = arith.constant 0 : index
    %c9_370 = arith.constant 9 : index
    %c0_371 = arith.constant 0 : index
    %c0_372 = arith.constant 0 : index
    %271 = vector.load %arg8[%c0_369, %c9_370, %c0_371, %c0_372] : memref<1x18x18x16xf32, #tpu.memory_space<vmem>>, vector<1x1x10x8xf32>
    tpu.vector_store %arg8[%c0_369, %c9_370, %c0_371, %c0_372], %269 {strides = array<i32>} : memref<1x18x18x16xf32, #tpu.memory_space<vmem>>, vector<1x1x10x8xf32>,
    %cst_373 = arith.constant 0.000000e+00 : f32
    %272 = vector.broadcast %cst_373 : f32 to vector<1x10x1x8xf32>
    %c0_374 = arith.constant 0 : index
    %c0_375 = arith.constant 0 : index
    %c0_376 = arith.constant 0 : index
    %c0_377 = arith.constant 0 : index
    %273 = vector.load %arg8[%c0_374, %c0_375, %c0_376, %c0_377] : memref<1x18x18x16xf32, #tpu.memory_space<vmem>>, vector<1x10x1x8xf32>
    tpu.vector_store %arg8[%c0_374, %c0_375, %c0_376, %c0_377], %272 {strides = array<i32>} : memref<1x18x18x16xf32, #tpu.memory_space<vmem>>, vector<1x10x1x8xf32>,
    %c0_378 = arith.constant 0 : index
    %c0_379 = arith.constant 0 : index
    %c9_380 = arith.constant 9 : index
    %c0_381 = arith.constant 0 : index
    %274 = vector.load %arg8[%c0_378, %c0_379, %c9_380, %c0_381] : memref<1x18x18x16xf32, #tpu.memory_space<vmem>>, vector<1x10x1x8xf32>
    tpu.vector_store %arg8[%c0_378, %c0_379, %c9_380, %c0_381], %272 {strides = array<i32>} : memref<1x18x18x16xf32, #tpu.memory_space<vmem>>, vector<1x10x1x8xf32>,
    %c0_382 = arith.constant 0 : index
    %c1_383 = arith.constant 1 : index
    %c1_384 = arith.constant 1 : index
    %c0_385 = arith.constant 0 : index
    %275 = vector.load %arg8[%c0_382, %c1_383, %c1_384, %c0_385] : memref<1x18x18x16xf32, #tpu.memory_space<vmem>>, vector<1x8x8x8xf32>
    tpu.vector_store %arg8[%c0_382, %c1_383, %c1_384, %c0_385], %268 {strides = array<i32>} : memref<1x18x18x16xf32, #tpu.memory_space<vmem>>, vector<1x8x8x8xf32>,
    %cst_386 = arith.constant 0.000000e+00 : f32
    %276 = vector.broadcast %cst_386 : f32 to vector<1x1x10x16xf32>
    %c0_387 = arith.constant 0 : index
    %c0_388 = arith.constant 0 : index
    %c0_389 = arith.constant 0 : index
    %c0_390 = arith.constant 0 : index
    %277 = vector.load %arg9[%c0_387, %c0_388, %c0_389, %c0_390] : memref<1x18x18x16xf32, #tpu.memory_space<vmem>>, vector<1x1x10x16xf32>
    tpu.vector_store %arg9[%c0_387, %c0_388, %c0_389, %c0_390], %276 {strides = array<i32>} : memref<1x18x18x16xf32, #tpu.memory_space<vmem>>, vector<1x1x10x16xf32>,
    %c0_391 = arith.constant 0 : index
    %c9_392 = arith.constant 9 : index
    %c0_393 = arith.constant 0 : index
    %c0_394 = arith.constant 0 : index
    %278 = vector.load %arg9[%c0_391, %c9_392, %c0_393, %c0_394] : memref<1x18x18x16xf32, #tpu.memory_space<vmem>>, vector<1x1x10x16xf32>
    tpu.vector_store %arg9[%c0_391, %c9_392, %c0_393, %c0_394], %276 {strides = array<i32>} : memref<1x18x18x16xf32, #tpu.memory_space<vmem>>, vector<1x1x10x16xf32>,
    %cst_395 = arith.constant 0.000000e+00 : f32
    %279 = vector.broadcast %cst_395 : f32 to vector<1x10x1x16xf32>
    %c0_396 = arith.constant 0 : index
    %c0_397 = arith.constant 0 : index
    %c0_398 = arith.constant 0 : index
    %c0_399 = arith.constant 0 : index
    %280 = vector.load %arg9[%c0_396, %c0_397, %c0_398, %c0_399] : memref<1x18x18x16xf32, #tpu.memory_space<vmem>>, vector<1x10x1x16xf32>
    tpu.vector_store %arg9[%c0_396, %c0_397, %c0_398, %c0_399], %279 {strides = array<i32>} : memref<1x18x18x16xf32, #tpu.memory_space<vmem>>, vector<1x10x1x16xf32>,
    %c0_400 = arith.constant 0 : index
    %c0_401 = arith.constant 0 : index
    %c9_402 = arith.constant 9 : index
    %c0_403 = arith.constant 0 : index
    %281 = vector.load %arg9[%c0_400, %c0_401, %c9_402, %c0_403] : memref<1x18x18x16xf32, #tpu.memory_space<vmem>>, vector<1x10x1x16xf32>
    tpu.vector_store %arg9[%c0_400, %c0_401, %c9_402, %c0_403], %279 {strides = array<i32>} : memref<1x18x18x16xf32, #tpu.memory_space<vmem>>, vector<1x10x1x16xf32>,
    %cst_404 = arith.constant 0.000000e+00 : f32
    %282 = vector.broadcast %cst_404 : f32 to vector<64x16xf32>
    %c0_405 = arith.constant 0 : index
    %c0_406 = arith.constant 0 : index
    %c0_407 = arith.constant 0 : index
    %c0_408 = arith.constant 0 : index
    %283 = vector.load %arg8[%c0_405, %c0_406, %c0_407, %c0_408] : memref<1x18x18x16xf32, #tpu.memory_space<vmem>>, vector<1x8x8x8xf32>
    %284 = vector.shape_cast %283 : vector<1x8x8x8xf32> to vector<64x8xf32>
    %c0_409 = arith.constant 0 : index
    %c0_410 = arith.constant 0 : index
    %c0_411 = arith.constant 0 : index
    %285 = vector.load %arg4[%c0_409, %c0_410, %c0_411] : memref<9x8x16xf32, #tpu.memory_space<vmem>>, vector<1x8x16xf32>
    %286 = vector.shape_cast %285 : vector<1x8x16xf32> to vector<8x16xf32>
    %cst_412 = arith.constant dense<0.000000e+00> : vector<64x16xf32>
    %287 = tpu.matmul %284, %286, %cst_412 {dimension_numbers = #tpu.dot_dimension_numbers<[1], [0], [0], [1], [0, 0, 1, 1], [], []>} : vector<64x8xf32>, vector<8x16xf32>, vector<64x16xf32> -> vector<64x16xf32>
    %288 = arith.addf %282, %287 : vector<64x16xf32>
    %c0_413 = arith.constant 0 : index
    %c0_414 = arith.constant 0 : index
    %c1_415 = arith.constant 1 : index
    %c0_416 = arith.constant 0 : index
    %289 = vector.load %arg8[%c0_413, %c0_414, %c1_415, %c0_416] : memref<1x18x18x16xf32, #tpu.memory_space<vmem>>, vector<1x8x8x8xf32>
    %290 = vector.shape_cast %289 : vector<1x8x8x8xf32> to vector<64x8xf32>
    %c1_417 = arith.constant 1 : index
    %c0_418 = arith.constant 0 : index
    %c0_419 = arith.constant 0 : index
    %291 = vector.load %arg4[%c1_417, %c0_418, %c0_419] : memref<9x8x16xf32, #tpu.memory_space<vmem>>, vector<1x8x16xf32>
    %292 = vector.shape_cast %291 : vector<1x8x16xf32> to vector<8x16xf32>
    %cst_420 = arith.constant dense<0.000000e+00> : vector<64x16xf32>
    %293 = tpu.matmul %290, %292, %cst_420 {dimension_numbers = #tpu.dot_dimension_numbers<[1], [0], [0], [1], [0, 0, 1, 1], [], []>} : vector<64x8xf32>, vector<8x16xf32>, vector<64x16xf32> -> vector<64x16xf32>
    %294 = arith.addf %288, %293 : vector<64x16xf32>
    %c0_421 = arith.constant 0 : index
    %c0_422 = arith.constant 0 : index
    %c2_423 = arith.constant 2 : index
    %c0_424 = arith.constant 0 : index
    %295 = vector.load %arg8[%c0_421, %c0_422, %c2_423, %c0_424] : memref<1x18x18x16xf32, #tpu.memory_space<vmem>>, vector<1x8x8x8xf32>
    %296 = vector.shape_cast %295 : vector<1x8x8x8xf32> to vector<64x8xf32>
    %c2_425 = arith.constant 2 : index
    %c0_426 = arith.constant 0 : index
    %c0_427 = arith.constant 0 : index
    %297 = vector.load %arg4[%c2_425, %c0_426, %c0_427] : memref<9x8x16xf32, #tpu.memory_space<vmem>>, vector<1x8x16xf32>
    %298 = vector.shape_cast %297 : vector<1x8x16xf32> to vector<8x16xf32>
    %cst_428 = arith.constant dense<0.000000e+00> : vector<64x16xf32>
    %299 = tpu.matmul %296, %298, %cst_428 {dimension_numbers = #tpu.dot_dimension_numbers<[1], [0], [0], [1], [0, 0, 1, 1], [], []>} : vector<64x8xf32>, vector<8x16xf32>, vector<64x16xf32> -> vector<64x16xf32>
    %300 = arith.addf %294, %299 : vector<64x16xf32>
    %c0_429 = arith.constant 0 : index
    %c1_430 = arith.constant 1 : index
    %c0_431 = arith.constant 0 : index
    %c0_432 = arith.constant 0 : index
    %301 = vector.load %arg8[%c0_429, %c1_430, %c0_431, %c0_432] : memref<1x18x18x16xf32, #tpu.memory_space<vmem>>, vector<1x8x8x8xf32>
    %302 = vector.shape_cast %301 : vector<1x8x8x8xf32> to vector<64x8xf32>
    %c3_433 = arith.constant 3 : index
    %c0_434 = arith.constant 0 : index
    %c0_435 = arith.constant 0 : index
    %303 = vector.load %arg4[%c3_433, %c0_434, %c0_435] : memref<9x8x16xf32, #tpu.memory_space<vmem>>, vector<1x8x16xf32>
    %304 = vector.shape_cast %303 : vector<1x8x16xf32> to vector<8x16xf32>
    %cst_436 = arith.constant dense<0.000000e+00> : vector<64x16xf32>
    %305 = tpu.matmul %302, %304, %cst_436 {dimension_numbers = #tpu.dot_dimension_numbers<[1], [0], [0], [1], [0, 0, 1, 1], [], []>} : vector<64x8xf32>, vector<8x16xf32>, vector<64x16xf32> -> vector<64x16xf32>
    %306 = arith.addf %300, %305 : vector<64x16xf32>
    %c0_437 = arith.constant 0 : index
    %c1_438 = arith.constant 1 : index
    %c1_439 = arith.constant 1 : index
    %c0_440 = arith.constant 0 : index
    %307 = vector.load %arg8[%c0_437, %c1_438, %c1_439, %c0_440] : memref<1x18x18x16xf32, #tpu.memory_space<vmem>>, vector<1x8x8x8xf32>
    %308 = vector.shape_cast %307 : vector<1x8x8x8xf32> to vector<64x8xf32>
    %c4_441 = arith.constant 4 : index
    %c0_442 = arith.constant 0 : index
    %c0_443 = arith.constant 0 : index
    %309 = vector.load %arg4[%c4_441, %c0_442, %c0_443] : memref<9x8x16xf32, #tpu.memory_space<vmem>>, vector<1x8x16xf32>
    %310 = vector.shape_cast %309 : vector<1x8x16xf32> to vector<8x16xf32>
    %cst_444 = arith.constant dense<0.000000e+00> : vector<64x16xf32>
    %311 = tpu.matmul %308, %310, %cst_444 {dimension_numbers = #tpu.dot_dimension_numbers<[1], [0], [0], [1], [0, 0, 1, 1], [], []>} : vector<64x8xf32>, vector<8x16xf32>, vector<64x16xf32> -> vector<64x16xf32>
    %312 = arith.addf %306, %311 : vector<64x16xf32>
    %c0_445 = arith.constant 0 : index
    %c1_446 = arith.constant 1 : index
    %c2_447 = arith.constant 2 : index
    %c0_448 = arith.constant 0 : index
    %313 = vector.load %arg8[%c0_445, %c1_446, %c2_447, %c0_448] : memref<1x18x18x16xf32, #tpu.memory_space<vmem>>, vector<1x8x8x8xf32>
    %314 = vector.shape_cast %313 : vector<1x8x8x8xf32> to vector<64x8xf32>
    %c5_449 = arith.constant 5 : index
    %c0_450 = arith.constant 0 : index
    %c0_451 = arith.constant 0 : index
    %315 = vector.load %arg4[%c5_449, %c0_450, %c0_451] : memref<9x8x16xf32, #tpu.memory_space<vmem>>, vector<1x8x16xf32>
    %316 = vector.shape_cast %315 : vector<1x8x16xf32> to vector<8x16xf32>
    %cst_452 = arith.constant dense<0.000000e+00> : vector<64x16xf32>
    %317 = tpu.matmul %314, %316, %cst_452 {dimension_numbers = #tpu.dot_dimension_numbers<[1], [0], [0], [1], [0, 0, 1, 1], [], []>} : vector<64x8xf32>, vector<8x16xf32>, vector<64x16xf32> -> vector<64x16xf32>
    %318 = arith.addf %312, %317 : vector<64x16xf32>
    %c0_453 = arith.constant 0 : index
    %c2_454 = arith.constant 2 : index
    %c0_455 = arith.constant 0 : index
    %c0_456 = arith.constant 0 : index
    %319 = vector.load %arg8[%c0_453, %c2_454, %c0_455, %c0_456] : memref<1x18x18x16xf32, #tpu.memory_space<vmem>>, vector<1x8x8x8xf32>
    %320 = vector.shape_cast %319 : vector<1x8x8x8xf32> to vector<64x8xf32>
    %c6_457 = arith.constant 6 : index
    %c0_458 = arith.constant 0 : index
    %c0_459 = arith.constant 0 : index
    %321 = vector.load %arg4[%c6_457, %c0_458, %c0_459] : memref<9x8x16xf32, #tpu.memory_space<vmem>>, vector<1x8x16xf32>
    %322 = vector.shape_cast %321 : vector<1x8x16xf32> to vector<8x16xf32>
    %cst_460 = arith.constant dense<0.000000e+00> : vector<64x16xf32>
    %323 = tpu.matmul %320, %322, %cst_460 {dimension_numbers = #tpu.dot_dimension_numbers<[1], [0], [0], [1], [0, 0, 1, 1], [], []>} : vector<64x8xf32>, vector<8x16xf32>, vector<64x16xf32> -> vector<64x16xf32>
    %324 = arith.addf %318, %323 : vector<64x16xf32>
    %c0_461 = arith.constant 0 : index
    %c2_462 = arith.constant 2 : index
    %c1_463 = arith.constant 1 : index
    %c0_464 = arith.constant 0 : index
    %325 = vector.load %arg8[%c0_461, %c2_462, %c1_463, %c0_464] : memref<1x18x18x16xf32, #tpu.memory_space<vmem>>, vector<1x8x8x8xf32>
    %326 = vector.shape_cast %325 : vector<1x8x8x8xf32> to vector<64x8xf32>
    %c7_465 = arith.constant 7 : index
    %c0_466 = arith.constant 0 : index
    %c0_467 = arith.constant 0 : index
    %327 = vector.load %arg4[%c7_465, %c0_466, %c0_467] : memref<9x8x16xf32, #tpu.memory_space<vmem>>, vector<1x8x16xf32>
    %328 = vector.shape_cast %327 : vector<1x8x16xf32> to vector<8x16xf32>
    %cst_468 = arith.constant dense<0.000000e+00> : vector<64x16xf32>
    %329 = tpu.matmul %326, %328, %cst_468 {dimension_numbers = #tpu.dot_dimension_numbers<[1], [0], [0], [1], [0, 0, 1, 1], [], []>} : vector<64x8xf32>, vector<8x16xf32>, vector<64x16xf32> -> vector<64x16xf32>
    %330 = arith.addf %324, %329 : vector<64x16xf32>
    %c0_469 = arith.constant 0 : index
    %c2_470 = arith.constant 2 : index
    %c2_471 = arith.constant 2 : index
    %c0_472 = arith.constant 0 : index
    %331 = vector.load %arg8[%c0_469, %c2_470, %c2_471, %c0_472] : memref<1x18x18x16xf32, #tpu.memory_space<vmem>>, vector<1x8x8x8xf32>
    %332 = vector.shape_cast %331 : vector<1x8x8x8xf32> to vector<64x8xf32>
    %c8_473 = arith.constant 8 : index
    %c0_474 = arith.constant 0 : index
    %c0_475 = arith.constant 0 : index
    %333 = vector.load %arg4[%c8_473, %c0_474, %c0_475] : memref<9x8x16xf32, #tpu.memory_space<vmem>>, vector<1x8x16xf32>
    %334 = vector.shape_cast %333 : vector<1x8x16xf32> to vector<8x16xf32>
    %cst_476 = arith.constant dense<0.000000e+00> : vector<64x16xf32>
    %335 = tpu.matmul %332, %334, %cst_476 {dimension_numbers = #tpu.dot_dimension_numbers<[1], [0], [0], [1], [0, 0, 1, 1], [], []>} : vector<64x8xf32>, vector<8x16xf32>, vector<64x16xf32> -> vector<64x16xf32>
    %336 = arith.addf %330, %335 : vector<64x16xf32>
    %cst_477 = arith.constant 0.000000e+00 : f32
    %337 = vector.broadcast %cst_477 : f32 to vector<64x16xf32>
    %338 = arith.cmpf oge, %336, %337 : vector<64x16xf32>
    %cst_478 = arith.constant 0.00999999977 : f32
    %339 = vector.broadcast %cst_478 : f32 to vector<64x16xf32>
    %340 = arith.mulf %339, %336 : vector<64x16xf32>
    %341 = arith.select %338, %336, %340 : vector<64x16xi1>, vector<64x16xf32>
    %342 = vector.shape_cast %341 : vector<64x16xf32> to vector<1x8x8x16xf32>
    %c0_479 = arith.constant 0 : index
    %c1_480 = arith.constant 1 : index
    %c1_481 = arith.constant 1 : index
    %c0_482 = arith.constant 0 : index
    %343 = vector.load %arg9[%c0_479, %c1_480, %c1_481, %c0_482] : memref<1x18x18x16xf32, #tpu.memory_space<vmem>>, vector<1x8x8x16xf32>
    tpu.vector_store %arg9[%c0_479, %c1_480, %c1_481, %c0_482], %342 {strides = array<i32>} : memref<1x18x18x16xf32, #tpu.memory_space<vmem>>, vector<1x8x8x16xf32>,
    %cst_483 = arith.constant 0.000000e+00 : f32
    %344 = vector.broadcast %cst_483 : f32 to vector<64x16xf32>
    %c0_484 = arith.constant 0 : index
    %c0_485 = arith.constant 0 : index
    %c0_486 = arith.constant 0 : index
    %c0_487 = arith.constant 0 : index
    %345 = vector.load %arg9[%c0_484, %c0_485, %c0_486, %c0_487] : memref<1x18x18x16xf32, #tpu.memory_space<vmem>>, vector<1x8x8x16xf32>
    %346 = vector.shape_cast %345 : vector<1x8x8x16xf32> to vector<64x16xf32>
    %c0_488 = arith.constant 0 : index
    %c0_489 = arith.constant 0 : index
    %c0_490 = arith.constant 0 : index
    %347 = vector.load %arg5[%c0_488, %c0_489, %c0_490] : memref<9x16x16xf32, #tpu.memory_space<vmem>>, vector<1x16x16xf32>
    %348 = vector.shape_cast %347 : vector<1x16x16xf32> to vector<16x16xf32>
    %cst_491 = arith.constant dense<0.000000e+00> : vector<64x16xf32>
    %349 = tpu.matmul %346, %348, %cst_491 {dimension_numbers = #tpu.dot_dimension_numbers<[1], [0], [0], [1], [0, 0, 1, 1], [], []>} : vector<64x16xf32>, vector<16x16xf32>, vector<64x16xf32> -> vector<64x16xf32>
    %350 = arith.addf %344, %349 : vector<64x16xf32>
    %c0_492 = arith.constant 0 : index
    %c0_493 = arith.constant 0 : index
    %c1_494 = arith.constant 1 : index
    %c0_495 = arith.constant 0 : index
    %351 = vector.load %arg9[%c0_492, %c0_493, %c1_494, %c0_495] : memref<1x18x18x16xf32, #tpu.memory_space<vmem>>, vector<1x8x8x16xf32>
    %352 = vector.shape_cast %351 : vector<1x8x8x16xf32> to vector<64x16xf32>
    %c1_496 = arith.constant 1 : index
    %c0_497 = arith.constant 0 : index
    %c0_498 = arith.constant 0 : index
    %353 = vector.load %arg5[%c1_496, %c0_497, %c0_498] : memref<9x16x16xf32, #tpu.memory_space<vmem>>, vector<1x16x16xf32>
    %354 = vector.shape_cast %353 : vector<1x16x16xf32> to vector<16x16xf32>
    %cst_499 = arith.constant dense<0.000000e+00> : vector<64x16xf32>
    %355 = tpu.matmul %352, %354, %cst_499 {dimension_numbers = #tpu.dot_dimension_numbers<[1], [0], [0], [1], [0, 0, 1, 1], [], []>} : vector<64x16xf32>, vector<16x16xf32>, vector<64x16xf32> -> vector<64x16xf32>
    %356 = arith.addf %350, %355 : vector<64x16xf32>
    %c0_500 = arith.constant 0 : index
    %c0_501 = arith.constant 0 : index
    %c2_502 = arith.constant 2 : index
    %c0_503 = arith.constant 0 : index
    %357 = vector.load %arg9[%c0_500, %c0_501, %c2_502, %c0_503] : memref<1x18x18x16xf32, #tpu.memory_space<vmem>>, vector<1x8x8x16xf32>
    %358 = vector.shape_cast %357 : vector<1x8x8x16xf32> to vector<64x16xf32>
    %c2_504 = arith.constant 2 : index
    %c0_505 = arith.constant 0 : index
    %c0_506 = arith.constant 0 : index
    %359 = vector.load %arg5[%c2_504, %c0_505, %c0_506] : memref<9x16x16xf32, #tpu.memory_space<vmem>>, vector<1x16x16xf32>
    %360 = vector.shape_cast %359 : vector<1x16x16xf32> to vector<16x16xf32>
    %cst_507 = arith.constant dense<0.000000e+00> : vector<64x16xf32>
    %361 = tpu.matmul %358, %360, %cst_507 {dimension_numbers = #tpu.dot_dimension_numbers<[1], [0], [0], [1], [0, 0, 1, 1], [], []>} : vector<64x16xf32>, vector<16x16xf32>, vector<64x16xf32> -> vector<64x16xf32>
    %362 = arith.addf %356, %361 : vector<64x16xf32>
    %c0_508 = arith.constant 0 : index
    %c1_509 = arith.constant 1 : index
    %c0_510 = arith.constant 0 : index
    %c0_511 = arith.constant 0 : index
    %363 = vector.load %arg9[%c0_508, %c1_509, %c0_510, %c0_511] : memref<1x18x18x16xf32, #tpu.memory_space<vmem>>, vector<1x8x8x16xf32>
    %364 = vector.shape_cast %363 : vector<1x8x8x16xf32> to vector<64x16xf32>
    %c3_512 = arith.constant 3 : index
    %c0_513 = arith.constant 0 : index
    %c0_514 = arith.constant 0 : index
    %365 = vector.load %arg5[%c3_512, %c0_513, %c0_514] : memref<9x16x16xf32, #tpu.memory_space<vmem>>, vector<1x16x16xf32>
    %366 = vector.shape_cast %365 : vector<1x16x16xf32> to vector<16x16xf32>
    %cst_515 = arith.constant dense<0.000000e+00> : vector<64x16xf32>
    %367 = tpu.matmul %364, %366, %cst_515 {dimension_numbers = #tpu.dot_dimension_numbers<[1], [0], [0], [1], [0, 0, 1, 1], [], []>} : vector<64x16xf32>, vector<16x16xf32>, vector<64x16xf32> -> vector<64x16xf32>
    %368 = arith.addf %362, %367 : vector<64x16xf32>
    %c0_516 = arith.constant 0 : index
    %c1_517 = arith.constant 1 : index
    %c1_518 = arith.constant 1 : index
    %c0_519 = arith.constant 0 : index
    %369 = vector.load %arg9[%c0_516, %c1_517, %c1_518, %c0_519] : memref<1x18x18x16xf32, #tpu.memory_space<vmem>>, vector<1x8x8x16xf32>
    %370 = vector.shape_cast %369 : vector<1x8x8x16xf32> to vector<64x16xf32>
    %c4_520 = arith.constant 4 : index
    %c0_521 = arith.constant 0 : index
    %c0_522 = arith.constant 0 : index
    %371 = vector.load %arg5[%c4_520, %c0_521, %c0_522] : memref<9x16x16xf32, #tpu.memory_space<vmem>>, vector<1x16x16xf32>
    %372 = vector.shape_cast %371 : vector<1x16x16xf32> to vector<16x16xf32>
    %cst_523 = arith.constant dense<0.000000e+00> : vector<64x16xf32>
    %373 = tpu.matmul %370, %372, %cst_523 {dimension_numbers = #tpu.dot_dimension_numbers<[1], [0], [0], [1], [0, 0, 1, 1], [], []>} : vector<64x16xf32>, vector<16x16xf32>, vector<64x16xf32> -> vector<64x16xf32>
    %374 = arith.addf %368, %373 : vector<64x16xf32>
    %c0_524 = arith.constant 0 : index
    %c1_525 = arith.constant 1 : index
    %c2_526 = arith.constant 2 : index
    %c0_527 = arith.constant 0 : index
    %375 = vector.load %arg9[%c0_524, %c1_525, %c2_526, %c0_527] : memref<1x18x18x16xf32, #tpu.memory_space<vmem>>, vector<1x8x8x16xf32>
    %376 = vector.shape_cast %375 : vector<1x8x8x16xf32> to vector<64x16xf32>
    %c5_528 = arith.constant 5 : index
    %c0_529 = arith.constant 0 : index
    %c0_530 = arith.constant 0 : index
    %377 = vector.load %arg5[%c5_528, %c0_529, %c0_530] : memref<9x16x16xf32, #tpu.memory_space<vmem>>, vector<1x16x16xf32>
    %378 = vector.shape_cast %377 : vector<1x16x16xf32> to vector<16x16xf32>
    %cst_531 = arith.constant dense<0.000000e+00> : vector<64x16xf32>
    %379 = tpu.matmul %376, %378, %cst_531 {dimension_numbers = #tpu.dot_dimension_numbers<[1], [0], [0], [1], [0, 0, 1, 1], [], []>} : vector<64x16xf32>, vector<16x16xf32>, vector<64x16xf32> -> vector<64x16xf32>
    %380 = arith.addf %374, %379 : vector<64x16xf32>
    %c0_532 = arith.constant 0 : index
    %c2_533 = arith.constant 2 : index
    %c0_534 = arith.constant 0 : index
    %c0_535 = arith.constant 0 : index
    %381 = vector.load %arg9[%c0_532, %c2_533, %c0_534, %c0_535] : memref<1x18x18x16xf32, #tpu.memory_space<vmem>>, vector<1x8x8x16xf32>
    %382 = vector.shape_cast %381 : vector<1x8x8x16xf32> to vector<64x16xf32>
    %c6_536 = arith.constant 6 : index
    %c0_537 = arith.constant 0 : index
    %c0_538 = arith.constant 0 : index
    %383 = vector.load %arg5[%c6_536, %c0_537, %c0_538] : memref<9x16x16xf32, #tpu.memory_space<vmem>>, vector<1x16x16xf32>
    %384 = vector.shape_cast %383 : vector<1x16x16xf32> to vector<16x16xf32>
    %cst_539 = arith.constant dense<0.000000e+00> : vector<64x16xf32>
    %385 = tpu.matmul %382, %384, %cst_539 {dimension_numbers = #tpu.dot_dimension_numbers<[1], [0], [0], [1], [0, 0, 1, 1], [], []>} : vector<64x16xf32>, vector<16x16xf32>, vector<64x16xf32> -> vector<64x16xf32>
    %386 = arith.addf %380, %385 : vector<64x16xf32>
    %c0_540 = arith.constant 0 : index
    %c2_541 = arith.constant 2 : index
    %c1_542 = arith.constant 1 : index
    %c0_543 = arith.constant 0 : index
    %387 = vector.load %arg9[%c0_540, %c2_541, %c1_542, %c0_543] : memref<1x18x18x16xf32, #tpu.memory_space<vmem>>, vector<1x8x8x16xf32>
    %388 = vector.shape_cast %387 : vector<1x8x8x16xf32> to vector<64x16xf32>
    %c7_544 = arith.constant 7 : index
    %c0_545 = arith.constant 0 : index
    %c0_546 = arith.constant 0 : index
    %389 = vector.load %arg5[%c7_544, %c0_545, %c0_546] : memref<9x16x16xf32, #tpu.memory_space<vmem>>, vector<1x16x16xf32>
    %390 = vector.shape_cast %389 : vector<1x16x16xf32> to vector<16x16xf32>
    %cst_547 = arith.constant dense<0.000000e+00> : vector<64x16xf32>
    %391 = tpu.matmul %388, %390, %cst_547 {dimension_numbers = #tpu.dot_dimension_numbers<[1], [0], [0], [1], [0, 0, 1, 1], [], []>} : vector<64x16xf32>, vector<16x16xf32>, vector<64x16xf32> -> vector<64x16xf32>
    %392 = arith.addf %386, %391 : vector<64x16xf32>
    %c0_548 = arith.constant 0 : index
    %c2_549 = arith.constant 2 : index
    %c2_550 = arith.constant 2 : index
    %c0_551 = arith.constant 0 : index
    %393 = vector.load %arg9[%c0_548, %c2_549, %c2_550, %c0_551] : memref<1x18x18x16xf32, #tpu.memory_space<vmem>>, vector<1x8x8x16xf32>
    %394 = vector.shape_cast %393 : vector<1x8x8x16xf32> to vector<64x16xf32>
    %c8_552 = arith.constant 8 : index
    %c0_553 = arith.constant 0 : index
    %c0_554 = arith.constant 0 : index
    %395 = vector.load %arg5[%c8_552, %c0_553, %c0_554] : memref<9x16x16xf32, #tpu.memory_space<vmem>>, vector<1x16x16xf32>
    %396 = vector.shape_cast %395 : vector<1x16x16xf32> to vector<16x16xf32>
    %cst_555 = arith.constant dense<0.000000e+00> : vector<64x16xf32>
    %397 = tpu.matmul %394, %396, %cst_555 {dimension_numbers = #tpu.dot_dimension_numbers<[1], [0], [0], [1], [0, 0, 1, 1], [], []>} : vector<64x16xf32>, vector<16x16xf32>, vector<64x16xf32> -> vector<64x16xf32>
    %398 = arith.addf %392, %397 : vector<64x16xf32>
    %cst_556 = arith.constant 0.000000e+00 : f32
    %399 = vector.broadcast %cst_556 : f32 to vector<64x16xf32>
    %400 = arith.cmpf oge, %398, %399 : vector<64x16xf32>
    %cst_557 = arith.constant 0.00999999977 : f32
    %401 = vector.broadcast %cst_557 : f32 to vector<64x16xf32>
    %402 = arith.mulf %401, %398 : vector<64x16xf32>
    %403 = arith.select %400, %398, %402 : vector<64x16xi1>, vector<64x16xf32>
    %404 = vector.shape_cast %403 : vector<64x16xf32> to vector<1x8x8x16xf32>
    %c0_558 = arith.constant 0 : index
    %c0_559 = arith.constant 0 : index
    %c0_560 = arith.constant 0 : index
    %c0_561 = arith.constant 0 : index
    %405 = vector.load %arg7[%c0_558, %c0_559, %c0_560, %c0_561] : memref<1x8x8x16xf32, #tpu.memory_space<vmem>>, vector<1x8x8x16xf32>
    tpu.vector_store %arg7[%c0_558, %c0_559, %c0_560, %c0_561], %404 {strides = array<i32>} : memref<1x8x8x16xf32, #tpu.memory_space<vmem>>, vector<1x8x8x16xf32>,
    return
  }
  func.func @transform_0(%arg0: i32) -> (i32, i32, i32, i32) {
    %c0_i32 = arith.constant 0 : i32
    %c0_i32_0 = arith.constant 0 : i32
    %c0_i32_1 = arith.constant 0 : i32
    %c0_i32_2 = arith.constant 0 : i32
    return %arg0, %c0_i32, %c0_i32_0, %c0_i32_1 : i32, i32, i32, i32
  }
  func.func @transform_1(%arg0: i32) -> (i32, i32, i32) {
    %c0_i32 = arith.constant 0 : i32
    %c0_i32_0 = arith.constant 0 : i32
    %c0_i32_1 = arith.constant 0 : i32
    %c0_i32_2 = arith.constant 0 : i32
    return %c0_i32, %c0_i32_0, %c0_i32_1 : i32, i32, i32
  }
  func.func @transform_2(%arg0: i32) -> (i32, i32, i32) {
    %c0_i32 = arith.constant 0 : i32
    %c0_i32_0 = arith.constant 0 : i32
    %c0_i32_1 = arith.constant 0 : i32
    %c0_i32_2 = arith.constant 0 : i32
    return %c0_i32, %c0_i32_0, %c0_i32_1 : i32, i32, i32
  }
  func.func @transform_3(%arg0: i32) -> (i32, i32, i32) {
    %c0_i32 = arith.constant 0 : i32
    %c0_i32_0 = arith.constant 0 : i32
    %c0_i32_1 = arith.constant 0 : i32
    %c0_i32_2 = arith.constant 0 : i32
    return %c0_i32, %c0_i32_0, %c0_i32_1 : i32, i32, i32
  }
  func.func @transform_4(%arg0: i32) -> (i32, i32, i32) {
    %c0_i32 = arith.constant 0 : i32
    %c0_i32_0 = arith.constant 0 : i32
    %c0_i32_1 = arith.constant 0 : i32
    %c0_i32_2 = arith.constant 0 : i32
    return %c0_i32, %c0_i32_0, %c0_i32_1 : i32, i32, i32
  }
  func.func @transform_5(%arg0: i32) -> (i32, i32, i32, i32) {
    %c0_i32 = arith.constant 0 : i32
    %c0_i32_0 = arith.constant 0 : i32
    %c0_i32_1 = arith.constant 0 : i32
    %c0_i32_2 = arith.constant 0 : i32
    return %arg0, %c0_i32, %c0_i32_0, %c0_i32_1 : i32, i32, i32, i32
  }
  func.func @transform_6(%arg0: i32) -> (i32, i32, i32, i32) {
    %c0_i32 = arith.constant 0 : i32
    %c0_i32_0 = arith.constant 0 : i32
    %c0_i32_1 = arith.constant 0 : i32
    %c0_i32_2 = arith.constant 0 : i32
    return %arg0, %c0_i32, %c0_i32_0, %c0_i32_1 : i32, i32, i32, i32
  }
}

</mosaic_0001>

<llo_original>
// kernel: encoder_forward.1
$region0: #{encoder_forward.1}
  #allocation0 [shape = 'u32[]', space=smem, size = 0x4, offset = 0x4, fixed_abs, tag = 'smem constant byte address 0x4 - core index']
  #allocation1 [shape = 'u32[72,128]{1,0:T(1,128)}', space=vmem, size = 0x9000, scoped, tag = 'internal scratch']
  #allocation2 [shape = 'f32[1,18,18,16]{3,2,1,0:T(8,128)}', space=vmem, size = 0x36000, scoped, tag = 'scratch operand']
  #allocation3 [shape = 'f32[1,18,18,16]{3,2,1,0:T(8,128)}', space=vmem, size = 0x36000, scoped, tag = 'scratch operand']
  %s0 = inlined_call_operand.vmem [shape: f32[2,16,16,4], index: 0, kind: input, shape index: {}]
  %s1 = inlined_call_operand.vmem [shape: f32[9,4,8], index: 1, kind: input, shape index: {}]
  %s2 = inlined_call_operand.vmem [shape: f32[9,8,8], index: 2, kind: input, shape index: {}]
  %s3 = inlined_call_operand.vmem [shape: f32[9,8,16], index: 3, kind: input, shape index: {}]
  %s4 = inlined_call_operand.vmem [shape: f32[9,16,16], index: 4, kind: input, shape index: {}]
  %s5 = inlined_call_operand.vmem [shape: f32[2,16,16,8], index: 5, kind: output, shape index: {0}]
  %s6 = inlined_call_operand.hbm [shape: f32[2,8,8,16], index: 6, kind: output, shape index: {1}]
  %7 = xla_tuple %s5, %s6
  %s8 = sld [smem:[#allocation0]]
  $region61: #{encoder_forward.1} parent=0
    _
  %s10 = ssub.s32 1, %s8
  %s11 = scalar_select 0, %s10, %s8
  $region1: #{encoder_forward.1} parent=0
    #allocation4 [shape = 'u8[65536]{0}', space=vmem, size = 0x10000, scoped, tag = 'output window, operand 1']
    #allocation5 [shape = 's32[2]{0}', space=sflag, size = 0x8, scoped, tag = 'scoped memory for encoder_forward.1']
    %12 = vsyncpa [#allocation5], 0
    %s13 = scalar_lea.sflag [#allocation5], 1
    %14 = vsyncpa %s13, 0
    loop: start=0, step=1, limit=4
    $region2: #{encoder_forward.1} parent=1 // loop_pre_header
      _
    $region3: #{encoder_forward.1} parent=1 // loop_header
      %s16 = sphi 0, %s20
      %p17 = scmp.ge.s32.totalorder %s16, 4
      %s26 = sphi 0, %s28
      %s29 = sphi 0, %s26
      %s30 = sphi 0, %s29
      %s46 = sphi 0, %s30
      %s50 = sphi 0, %s50
      %s52 = sphi 0, %s50
      %s53 = sphi 0, %s52
      %s67 = sphi 0, %s53
      %s71 = sphi 0, %s71
      %s73 = sphi 0, %s71
      %s74 = sphi 0, %s73
      %s88 = sphi 0, %s74
      %s92 = sphi 0, %s92
      %s94 = sphi 0, %s92
      %s95 = sphi 0, %s94
      %s109 = sphi 0, %s95
      %s113 = sphi 0, %s113
      %s115 = sphi 0, %s113
      %s116 = sphi 0, %s115
      %s130 = sphi 0, %s116
      %s136 = sphi 0, %s138
      %s139 = sphi 0, %s136
      %s140 = sphi 0, %s139
      %s156 = sphi 0, %s140
      %s162 = sphi 0, %s164
      %s165 = sphi 0, %s162
      %s166 = sphi 0, %s165
      %s182 = sphi 0, %s166
    $region4: #{encoder_forward.1} parent=1 // loop_header_branch
      %19 = sbr.rel (%p17) target = $region8
    $region5: #{encoder_forward.1} parent=1 // loop_body
      %s21 = ssub.s32 %s16, 1
      %s22 = ssub.s32 %s16, 2
      %s23 = sadd.s32 %s16, 1
      %s24 = ssub.s32 %s16, %s23
      %p25 = scmp.eq.s32.totalorder %s24, 0
      %s27 = sadd.s32 %s26, 1
      %s28 = scalar_select %p25, %s26, %s27
      %p31 = pneg %p25
      %p32 = scmp.eq.s32.totalorder %s16, 1
      %p33 = por %p31, %p32
      %p34 = scmp.ne.s32.totalorder %s26, %s29
      %p35 = scmp.eq.s32.totalorder %s16, 0
      %p36 = por %p34, %p35
      %p37 = scmp.ne.s32.totalorder %s26, %s29
      %p38 = scmp.eq.s32.totalorder %s21, 1
      %p39 = por %p37, %p38
      %p40 = scmp.ne.s32.totalorder %s29, %s30
      %p41 = scmp.eq.s32.totalorder %s21, 0
      %p42 = por %p40, %p41
      %p43 = scmp.ne.s32.totalorder %s29, %s30
      %p44 = scmp.eq.s32.totalorder %s22, 1
      %p45 = por %p43, %p44
      %p47 = scmp.ne.s32.totalorder %s30, %s46
      %p48 = scmp.eq.s32.totalorder %s22, 0
      %p49 = por %p47, %p48
      %s51 = sadd.s32 %s50, 1
      %p54 = scmp.eq.s32.totalorder %s16, 1
      %p55 = scmp.ne.s32.totalorder %s50, %s52
      %p56 = scmp.eq.s32.totalorder %s16, 0
      %p57 = por %p55, %p56
      %p58 = scmp.ne.s32.totalorder %s50, %s52
      %p59 = scmp.eq.s32.totalorder %s21, 1
      %p60 = por %p58, %p59
      %p61 = scmp.ne.s32.totalorder %s52, %s53
      %p62 = scmp.eq.s32.totalorder %s21, 0
      %p63 = por %p61, %p62
      %p64 = scmp.ne.s32.totalorder %s52, %s53
      %p65 = scmp.eq.s32.totalorder %s22, 1
      %p66 = por %p64, %p65
      %p68 = scmp.ne.s32.totalorder %s53, %s67
      %p69 = scmp.eq.s32.totalorder %s22, 0
      %p70 = por %p68, %p69
      %s72 = sadd.s32 %s71, 1
      %p75 = scmp.eq.s32.totalorder %s16, 1
      %p76 = scmp.ne.s32.totalorder %s71, %s73
      %p77 = scmp.eq.s32.totalorder %s16, 0
      %p78 = por %p76, %p77
      %p79 = scmp.ne.s32.totalorder %s71, %s73
      %p80 = scmp.eq.s32.totalorder %s21, 1
      %p81 = por %p79, %p80
      %p82 = scmp.ne.s32.totalorder %s73, %s74
      %p83 = scmp.eq.s32.totalorder %s21, 0
      %p84 = por %p82, %p83
      %p85 = scmp.ne.s32.totalorder %s73, %s74
      %p86 = scmp.eq.s32.totalorder %s22, 1
      %p87 = por %p85, %p86
      %p89 = scmp.ne.s32.totalorder %s74, %s88
      %p90 = scmp.eq.s32.totalorder %s22, 0
      %p91 = por %p89, %p90
      %s93 = sadd.s32 %s92, 1
      %p96 = scmp.eq.s32.totalorder %s16, 1
      %p97 = scmp.ne.s32.totalorder %s92, %s94
      %p98 = scmp.eq.s32.totalorder %s16, 0
      %p99 = por %p97, %p98
      %p100 = scmp.ne.s32.totalorder %s92, %s94
      %p101 = scmp.eq.s32.totalorder %s21, 1
      %p102 = por %p100, %p101
      %p103 = scmp.ne.s32.totalorder %s94, %s95
      %p104 = scmp.eq.s32.totalorder %s21, 0
      %p105 = por %p103, %p104
      %p106 = scmp.ne.s32.totalorder %s94, %s95
      %p107 = scmp.eq.s32.totalorder %s22, 1
      %p108 = por %p106, %p107
      %p110 = scmp.ne.s32.totalorder %s95, %s109
      %p111 = scmp.eq.s32.totalorder %s22, 0
      %p112 = por %p110, %p111
      %s114 = sadd.s32 %s113, 1
      %p117 = scmp.eq.s32.totalorder %s16, 1
      %p118 = scmp.ne.s32.totalorder %s113, %s115
      %p119 = scmp.eq.s32.totalorder %s16, 0
      %p120 = por %p118, %p119
      %p121 = scmp.ne.s32.totalorder %s113, %s115
      %p122 = scmp.eq.s32.totalorder %s21, 1
      %p123 = por %p121, %p122
      %p124 = scmp.ne.s32.totalorder %s115, %s116
      %p125 = scmp.eq.s32.totalorder %s21, 0
      %p126 = por %p124, %p125
      %p127 = scmp.ne.s32.totalorder %s115, %s116
      %p128 = scmp.eq.s32.totalorder %s22, 1
      %p129 = por %p127, %p128
      %p131 = scmp.ne.s32.totalorder %s116, %s130
      %p132 = scmp.eq.s32.totalorder %s22, 0
      %p133 = por %p131, %p132
      %s134 = ssub.s32 %s16, %s23
      %p135 = scmp.eq.s32.totalorder %s134, 0
      %s137 = sadd.s32 %s136, 1
      %s138 = scalar_select %p135, %s136, %s137
      %p141 = pneg %p135
      %p142 = scmp.eq.s32.totalorder %s16, 1
      %p143 = por %p141, %p142
      %p144 = scmp.ne.s32.totalorder %s136, %s139
      %p145 = scmp.eq.s32.totalorder %s16, 0
      %p146 = por %p144, %p145
      %p147 = scmp.ne.s32.totalorder %s136, %s139
      %p148 = scmp.eq.s32.totalorder %s21, 1
      %p149 = por %p147, %p148
      %p150 = scmp.ne.s32.totalorder %s139, %s140
      %p151 = scmp.eq.s32.totalorder %s21, 0
      %p152 = por %p150, %p151
      %p153 = scmp.ne.s32.totalorder %s139, %s140
      %p154 = scmp.eq.s32.totalorder %s22, 1
      %p155 = por %p153, %p154
      %p157 = scmp.ne.s32.totalorder %s140, %s156
      %p158 = scmp.eq.s32.totalorder %s22, 0
      %p159 = por %p157, %p158
      %s160 = ssub.s32 %s16, %s23
      %p161 = scmp.eq.s32.totalorder %s160, 0
      %s163 = sadd.s32 %s162, 1
      %s164 = scalar_select %p161, %s162, %s163
      %p167 = pneg %p161
      %p168 = scmp.eq.s32.totalorder %s16, 1
      %p169 = por %p167, %p168
      %p170 = scmp.ne.s32.totalorder %s162, %s165
      %p171 = scmp.eq.s32.totalorder %s16, 0
      %p172 = por %p170, %p171
      %p173 = scmp.ne.s32.totalorder %s162, %s165
      %p174 = scmp.eq.s32.totalorder %s21, 1
      %p175 = por %p173, %p174
      %p176 = scmp.ne.s32.totalorder %s165, %s166
      %p177 = scmp.eq.s32.totalorder %s21, 0
      %p178 = por %p176, %p177
      %p179 = scmp.ne.s32.totalorder %s165, %s166
      %p180 = scmp.eq.s32.totalorder %s22, 1
      %p181 = por %p179, %p180
      %p183 = scmp.ne.s32.totalorder %s166, %s182
      %p184 = scmp.eq.s32.totalorder %s22, 0
      %p185 = por %p183, %p184
      %p186 = scmp.le.s32.totalorder 1, %s16
      %p187 = scmp.lt.s32.totalorder %s16, 3
      %p188 = pnand %p186, %p187
      %p189 = pneg %p188
      // Predicated region
      $region9: #{encoder_forward.1} parent=5 // pred_check
        _
      $region10: #{encoder_forward.1} parent=5 // pred_check_branch
        %191 = sbr.rel (%p188) target = $region12
      $region11: #{encoder_forward.1} parent=5 // pred_region
        %s192 = ssub.s32 %s16, 1
        // Predicated region
        $region13: #{encoder_forward.1} parent=11 // pred_check
          %p193 = pneg %p63
        $region14: #{encoder_forward.1} parent=11 // pred_check_branch
          %195 = sbr.rel (%p193) target = $region16
        $region15: #{encoder_forward.1} parent=11 // pred_region
          _
        $region16: #{encoder_forward.1} parent=11 // pred_fallthru
          _
        // Predicated region
        $region17: #{encoder_forward.1} parent=11 // pred_check
          %p196 = pneg %p84
        $region18: #{encoder_forward.1} parent=11 // pred_check_branch
          %198 = sbr.rel (%p196) target = $region20
        $region19: #{encoder_forward.1} parent=11 // pred_region
          _
        $region20: #{encoder_forward.1} parent=11 // pred_fallthru
          _
        // Predicated region
        $region21: #{encoder_forward.1} parent=11 // pred_check
          %p199 = pneg %p105
        $region22: #{encoder_forward.1} parent=11 // pred_check_branch
          %201 = sbr.rel (%p199) target = $region24
        $region23: #{encoder_forward.1} parent=11 // pred_region
          _
        $region24: #{encoder_forward.1} parent=11 // pred_fallthru
          _
        // Predicated region
        $region25: #{encoder_forward.1} parent=11 // pred_check
          %p202 = pneg %p126
        $region26: #{encoder_forward.1} parent=11 // pred_check_branch
          %204 = sbr.rel (%p202) target = $region28
        $region27: #{encoder_forward.1} parent=11 // pred_region
          _
        $region28: #{encoder_forward.1} parent=11 // pred_fallthru
          _
      $region12: #{encoder_forward.1} parent=5 // pred_fallthru
        _
      %p205 = scmp.lt.s32.totalorder %s16, 2
      // Predicated region
      $region29: #{encoder_forward.1} parent=5 // pred_check
        %p206 = pneg %p205
      $region30: #{encoder_forward.1} parent=5 // pred_check_branch
        %208 = sbr.rel (%p206) target = $region32
      $region31: #{encoder_forward.1} parent=5 // pred_region
        // Predicated region
        $region33: #{encoder_forward.1} parent=31 // pred_check
          %p209 = pneg %p36
        $region34: #{encoder_forward.1} parent=31 // pred_check_branch
          %211 = sbr.rel (%p209) target = $region36
        $region35: #{encoder_forward.1} parent=31 // pred_region
          %p212 = scmp.lt.s32.totalorder %s16, 1
          %s213 = scalar_select %p212, %s16, 1
          %s214 = smul.addr %s213, 32
          %s215 = smul.addr %s214, 8
          %s216 = scalar_lea.vmem %s0, %s215
        $region36: #{encoder_forward.1} parent=31 // pred_fallthru
          _
      $region32: #{encoder_forward.1} parent=5 // pred_fallthru
        _
      %p217 = scmp.le.s32.totalorder 1, %s16
      %p218 = scmp.lt.s32.totalorder %s16, 3
      %p219 = pnand %p217, %p218
      %p220 = pneg %p219
      // Predicated region
      $region37: #{encoder_forward.1} parent=5 // pred_check
        _
      $region38: #{encoder_forward.1} parent=5 // pred_check_branch
        %222 = sbr.rel (%p219) target = $region40
      $region39: #{encoder_forward.1} parent=5 // pred_region
        %s223 = ssub.s32 %s16, 1
        %p224 = scmp.lt.s32.totalorder %s21, 1
        %s225 = scalar_select %p224, %s21, 1
        %s226 = smul.addr %s225, 32
        %s227 = smul.addr %s226, 8
        %s228 = scalar_lea.vmem %s0, %s227
        %p229 = pneg %p42
        %p230 = pneg %p39
        %p231 = pneg %p63
        %p232 = pneg %p60
        %p233 = pneg %p84
        %p234 = pneg %p81
        %p235 = pneg %p105
        %p236 = pneg %p102
        %p237 = pneg %p126
        %p238 = pneg %p123
        %p239 = pneg %p152
        %p240 = pneg %p149
        %p241 = scmp.lt.s32.totalorder %s21, 1
        %s242 = scalar_select %p241, %s21, 1
        %s243 = smul.addr %s242, 32
        %s244 = smul.addr %s243, 8
        %s245 = scalar_lea.vmem %s5, %s244
        %p246 = pneg %p178
        %p247 = pneg %p175
        %s248 = sand.u32 %s165, 1
        %s249 = scalar_lea.sflag [#allocation5], %s248
        %s250 = sand.u32 %s165, 1
        %s251 = smul.addr %s250, 64
        %s252 = scalar_lea.vmem [#allocation4], %s251
        %p253 = scmp.lt.s32.totalorder %s21, 1
        %s254 = scalar_select %p253, %s21, 1
        %s255 = smul.addr %s254, 32
        %s256 = smul.addr %s255, 8
        %s257 = scalar_lea.vmem %s0, %s256
        %p258 = scmp.lt.s32.totalorder %s21, 1
        %s259 = scalar_select %p258, %s21, 1
        %s260 = smul.addr %s259, 32
        %s261 = smul.addr %s260, 8
        %s262 = scalar_lea.vmem %s5, %s261
        %vm263 = vcmask 31744
        %264 = vst.msk [vmem:[#allocation2] sm:$0xff] %vm263, 0.0
        %265 = vst.msk [vmem:[#allocation2 + $0x8] sm:$0xff] %vm263, 0.0
        %vm266 = vcmask 25600
        %267 = vst.msk [vmem:[#allocation2 + $0x10] sm:$0x3] %vm266, 0.0
        %s268 = scalar_lea.vmem [#allocation2], 408
        %269 = vst.msk [vmem:[%s268] sm:$0xff] %vm263, 0.0
        %270 = vst.msk [vmem:[%s268 + $0x8] sm:$0xff] %vm263, 0.0
        %271 = vst.msk [vmem:[%s268 + $0x10] sm:$0x3] %vm266, 0.0
        %vm272 = vcmask 24576
        %273 = vst.msk [vmem:[#allocation2] sm:$0x1] %vm272, 0.0
        %274 = vst.msk [vmem:[#allocation2 + $0x18] sm:$0x1] %vm272, 0.0
        %275 = vst.msk [vmem:[#allocation2 + $0x30] sm:$0x1] %vm272, 0.0
        %276 = vst.msk [vmem:[#allocation2 + $0x48] sm:$0x1] %vm272, 0.0
        %277 = vst.msk [vmem:[#allocation2 + $0x60] sm:$0x1] %vm272, 0.0
        %278 = vst.msk [vmem:[#allocation2 + $0x78] sm:$0x1] %vm272, 0.0
        %279 = vst.msk [vmem:[#allocation2 + $0x90] sm:$0x1] %vm272, 0.0
        %280 = vst.msk [vmem:[#allocation2 + $0xa8] sm:$0x1] %vm272, 0.0
        %281 = vst.msk [vmem:[#allocation2 + $0xc0] sm:$0x1] %vm272, 0.0
        %282 = vst.msk [vmem:[#allocation2 + $0xd8] sm:$0x1] %vm272, 0.0
        %283 = vst.msk [vmem:[#allocation2 + $0xf0] sm:$0x1] %vm272, 0.0
        %284 = vst.msk [vmem:[#allocation2 + $0x108] sm:$0x1] %vm272, 0.0
        %285 = vst.msk [vmem:[#allocation2 + $0x120] sm:$0x1] %vm272, 0.0
        %286 = vst.msk [vmem:[#allocation2 + $0x138] sm:$0x1] %vm272, 0.0
        %287 = vst.msk [vmem:[#allocation2 + $0x150] sm:$0x1] %vm272, 0.0
        %288 = vst.msk [vmem:[#allocation2 + $0x168] sm:$0x1] %vm272, 0.0
        %289 = vst.msk [vmem:[#allocation2 + $0x180] sm:$0x1] %vm272, 0.0
        %290 = vst.msk [vmem:[#allocation2 + $0x198] sm:$0x1] %vm272, 0.0
        %291 = vst.msk [vmem:[#allocation2 + $0x11] sm:$0x1] %vm272, 0.0
        %292 = vst.msk [vmem:[#allocation2 + $0x29] sm:$0x1] %vm272, 0.0
        %293 = vst.msk [vmem:[#allocation2 + $0x41] sm:$0x1] %vm272, 0.0
        %294 = vst.msk [vmem:[#allocation2 + $0x59] sm:$0x1] %vm272, 0.0
        %295 = vst.msk [vmem:[#allocation2 + $0x71] sm:$0x1] %vm272, 0.0
        %296 = vst.msk [vmem:[#allocation2 + $0x89] sm:$0x1] %vm272, 0.0
        %297 = vst.msk [vmem:[#allocation2 + $0xa1] sm:$0x1] %vm272, 0.0
        %298 = vst.msk [vmem:[#allocation2 + $0xb9] sm:$0x1] %vm272, 0.0
        %299 = vst.msk [vmem:[#allocation2 + $0xd1] sm:$0x1] %vm272, 0.0
        %300 = vst.msk [vmem:[#allocation2 + $0xe9] sm:$0x1] %vm272, 0.0
        %301 = vst.msk [vmem:[#allocation2 + $0x101] sm:$0x1] %vm272, 0.0
        %302 = vst.msk [vmem:[#allocation2 + $0x119] sm:$0x1] %vm272, 0.0
        %303 = vst.msk [vmem:[#allocation2 + $0x131] sm:$0x1] %vm272, 0.0
        %304 = vst.msk [vmem:[#allocation2 + $0x149] sm:$0x1] %vm272, 0.0
        %305 = vst.msk [vmem:[#allocation2 + $0x161] sm:$0x1] %vm272, 0.0
        %306 = vst.msk [vmem:[#allocation2 + $0x179] sm:$0x1] %vm272, 0.0
        %307 = vst.msk [vmem:[#allocation2 + $0x191] sm:$0x1] %vm272, 0.0
        %308 = vst.msk [vmem:[#allocation2 + $0x1a9] sm:$0x1] %vm272, 0.0
        %v309 = vld [vmem:[%s257] sm:$0xff]
        %v310 = vld [vmem:[%s257 + $0x8] sm:$0xff]
        %v311 = vld [vmem:[%s257 + $0x10] sm:$0xff]
        %v312 = vld [vmem:[%s257 + $0x18] sm:$0xff]
        %v313 = vld [vmem:[%s257 + $0x20] sm:$0xff]
        %v314 = vld [vmem:[%s257 + $0x28] sm:$0xff]
        %v315 = vld [vmem:[%s257 + $0x30] sm:$0xff]
        %v316 = vld [vmem:[%s257 + $0x38] sm:$0xff]
        %v317 = vld [vmem:[%s257 + $0x40] sm:$0xff]
        %v318 = vld [vmem:[%s257 + $0x48] sm:$0xff]
        %v319 = vld [vmem:[%s257 + $0x50] sm:$0xff]
        %v320 = vld [vmem:[%s257 + $0x58] sm:$0xff]
        %v321 = vld [vmem:[%s257 + $0x60] sm:$0xff]
        %v322 = vld [vmem:[%s257 + $0x68] sm:$0xff]
        %v323 = vld [vmem:[%s257 + $0x70] sm:$0xff]
        %v324 = vld [vmem:[%s257 + $0x78] sm:$0xff]
        %v325 = vld [vmem:[%s257 + $0x80] sm:$0xff]
        %v326 = vld [vmem:[%s257 + $0x88] sm:$0xff]
        %v327 = vld [vmem:[%s257 + $0x90] sm:$0xff]
        %v328 = vld [vmem:[%s257 + $0x98] sm:$0xff]
        %v329 = vld [vmem:[%s257 + $0xa0] sm:$0xff]
        %v330 = vld [vmem:[%s257 + $0xa8] sm:$0xff]
        %v331 = vld [vmem:[%s257 + $0xb0] sm:$0xff]
        %v332 = vld [vmem:[%s257 + $0xb8] sm:$0xff]
        %v333 = vld [vmem:[%s257 + $0xc0] sm:$0xff]
        %v334 = vld [vmem:[%s257 + $0xc8] sm:$0xff]
        %v335 = vld [vmem:[%s257 + $0xd0] sm:$0xff]
        %v336 = vld [vmem:[%s257 + $0xd8] sm:$0xff]
        %v337 = vld [vmem:[%s257 + $0xe0] sm:$0xff]
        %v338 = vld [vmem:[%s257 + $0xe8] sm:$0xff]
        %v339 = vld [vmem:[%s257 + $0xf0] sm:$0xff]
        %v340 = vld [vmem:[%s257 + $0xf8] sm:$0xff]
        %s341 = scalar_lea.vmem [#allocation2], 24
        %342 = vst.msk [vmem:[%s341 + $0x1] sm:$0xff] %vm263, %v309
        %343 = vst.msk [vmem:[%s341 + $0x9] sm:$0xff] %vm263, %v310
        %344 = vst.msk [vmem:[%s341 + $0x19] sm:$0xff] %vm263, %v311
        %345 = vst.msk [vmem:[%s341 + $0x21] sm:$0xff] %vm263, %v312
        %346 = vst.msk [vmem:[%s341 + $0x31] sm:$0xff] %vm263, %v313
        %347 = vst.msk [vmem:[%s341 + $0x39] sm:$0xff] %vm263, %v314
        %348 = vst.msk [vmem:[%s341 + $0x49] sm:$0xff] %vm263, %v315
        %349 = vst.msk [vmem:[%s341 + $0x51] sm:$0xff] %vm263, %v316
        %350 = vst.msk [vmem:[%s341 + $0x61] sm:$0xff] %vm263, %v317
        %351 = vst.msk [vmem:[%s341 + $0x69] sm:$0xff] %vm263, %v318
        %352 = vst.msk [vmem:[%s341 + $0x79] sm:$0xff] %vm263, %v319
        %353 = vst.msk [vmem:[%s341 + $0x81] sm:$0xff] %vm263, %v320
        %354 = vst.msk [vmem:[%s341 + $0x91] sm:$0xff] %vm263, %v321
        %355 = vst.msk [vmem:[%s341 + $0x99] sm:$0xff] %vm263, %v322
        %356 = vst.msk [vmem:[%s341 + $0xa9] sm:$0xff] %vm263, %v323
        %357 = vst.msk [vmem:[%s341 + $0xb1] sm:$0xff] %vm263, %v324
        %358 = vst.msk [vmem:[%s341 + $0xc1] sm:$0xff] %vm263, %v325
        %359 = vst.msk [vmem:[%s341 + $0xc9] sm:$0xff] %vm263, %v326
        %360 = vst.msk [vmem:[%s341 + $0xd9] sm:$0xff] %vm263, %v327
        %361 = vst.msk [vmem:[%s341 + $0xe1] sm:$0xff] %vm263, %v328
        %362 = vst.msk [vmem:[%s341 + $0xf1] sm:$0xff] %vm263, %v329
        %363 = vst.msk [vmem:[%s341 + $0xf9] sm:$0xff] %vm263, %v330
        %364 = vst.msk [vmem:[%s341 + $0x109] sm:$0xff] %vm263, %v331
        %365 = vst.msk [vmem:[%s341 + $0x111] sm:$0xff] %vm263, %v332
        %366 = vst.msk [vmem:[%s341 + $0x121] sm:$0xff] %vm263, %v333
        %367 = vst.msk [vmem:[%s341 + $0x129] sm:$0xff] %vm263, %v334
        %368 = vst.msk [vmem:[%s341 + $0x139] sm:$0xff] %vm263, %v335
        %369 = vst.msk [vmem:[%s341 + $0x141] sm:$0xff] %vm263, %v336
        %370 = vst.msk [vmem:[%s341 + $0x151] sm:$0xff] %vm263, %v337
        %371 = vst.msk [vmem:[%s341 + $0x159] sm:$0xff] %vm263, %v338
        %372 = vst.msk [vmem:[%s341 + $0x169] sm:$0xff] %vm263, %v339
        %373 = vst.msk [vmem:[%s341 + $0x171] sm:$0xff] %vm263, %v340
        %vm374 = vcmask 64512
        %375 = vst.msk [vmem:[#allocation3] sm:$0xff] %vm374, 0.0
        %376 = vst.msk [vmem:[#allocation3 + $0x8] sm:$0xff] %vm374, 0.0
        %vm377 = vcmask 58368
        %378 = vst.msk [vmem:[#allocation3 + $0x10] sm:$0x3] %vm377, 0.0
        %s379 = scalar_lea.vmem [#allocation3], 408
        %380 = vst.msk [vmem:[%s379] sm:$0xff] %vm374, 0.0
        %381 = vst.msk [vmem:[%s379 + $0x8] sm:$0xff] %vm374, 0.0
        %382 = vst.msk [vmem:[%s379 + $0x10] sm:$0x3] %vm377, 0.0
        %vm383 = vcmask 57344
        %384 = vst.msk [vmem:[#allocation3] sm:$0x1] %vm383, 0.0
        %385 = vst.msk [vmem:[#allocation3 + $0x18] sm:$0x1] %vm383, 0.0
        %386 = vst.msk [vmem:[#allocation3 + $0x30] sm:$0x1] %vm383, 0.0
        %387 = vst.msk [vmem:[#allocation3 + $0x48] sm:$0x1] %vm383, 0.0
        %388 = vst.msk [vmem:[#allocation3 + $0x60] sm:$0x1] %vm383, 0.0
        %389 = vst.msk [vmem:[#allocation3 + $0x78] sm:$0x1] %vm383, 0.0
        %390 = vst.msk [vmem:[#allocation3 + $0x90] sm:$0x1] %vm383, 0.0
        %391 = vst.msk [vmem:[#allocation3 + $0xa8] sm:$0x1] %vm383, 0.0
        %392 = vst.msk [vmem:[#allocation3 + $0xc0] sm:$0x1] %vm383, 0.0
        %393 = vst.msk [vmem:[#allocation3 + $0xd8] sm:$0x1] %vm383, 0.0
        %394 = vst.msk [vmem:[#allocation3 + $0xf0] sm:$0x1] %vm383, 0.0
        %395 = vst.msk [vmem:[#allocation3 + $0x108] sm:$0x1] %vm383, 0.0
        %396 = vst.msk [vmem:[#allocation3 + $0x120] sm:$0x1] %vm383, 0.0
        %397 = vst.msk [vmem:[#allocation3 + $0x138] sm:$0x1] %vm383, 0.0
        %398 = vst.msk [vmem:[#allocation3 + $0x150] sm:$0x1] %vm383, 0.0
        %399 = vst.msk [vmem:[#allocation3 + $0x168] sm:$0x1] %vm383, 0.0
        %400 = vst.msk [vmem:[#allocation3 + $0x180] sm:$0x1] %vm383, 0.0
        %401 = vst.msk [vmem:[#allocation3 + $0x198] sm:$0x1] %vm383, 0.0
        %402 = vst.msk [vmem:[#allocation3 + $0x11] sm:$0x1] %vm383, 0.0
        %403 = vst.msk [vmem:[#allocation3 + $0x29] sm:$0x1] %vm383, 0.0
        %404 = vst.msk [vmem:[#allocation3 + $0x41] sm:$0x1] %vm383, 0.0
        %405 = vst.msk [vmem:[#allocation3 + $0x59] sm:$0x1] %vm383, 0.0
        %406 = vst.msk [vmem:[#allocation3 + $0x71] sm:$0x1] %vm383, 0.0
        %407 = vst.msk [vmem:[#allocation3 + $0x89] sm:$0x1] %vm383, 0.0
        %408 = vst.msk [vmem:[#allocation3 + $0xa1] sm:$0x1] %vm383, 0.0
        %409 = vst.msk [vmem:[#allocation3 + $0xb9] sm:$0x1] %vm383, 0.0
        %410 = vst.msk [vmem:[#allocation3 + $0xd1] sm:$0x1] %vm383, 0.0
        %411 = vst.msk [vmem:[#allocation3 + $0xe9] sm:$0x1] %vm383, 0.0
        %412 = vst.msk [vmem:[#allocation3 + $0x101] sm:$0x1] %vm383, 0.0
        %413 = vst.msk [vmem:[#allocation3 + $0x119] sm:$0x1] %vm383, 0.0
        %414 = vst.msk [vmem:[#allocation3 + $0x131] sm:$0x1] %vm383, 0.0
        %415 = vst.msk [vmem:[#allocation3 + $0x149] sm:$0x1] %vm383, 0.0
        %416 = vst.msk [vmem:[#allocation3 + $0x161] sm:$0x1] %vm383, 0.0
        %417 = vst.msk [vmem:[#allocation3 + $0x179] sm:$0x1] %vm383, 0.0
        %418 = vst.msk [vmem:[#allocation3 + $0x191] sm:$0x1] %vm383, 0.0
        %419 = vst.msk [vmem:[#allocation3 + $0x1a9] sm:$0x1] %vm383, 0.0
        %v420 = vld [vmem:[#allocation2] sm:$0xff]
        %v421 = vld [vmem:[#allocation2 + $0x8] sm:$0xff]
        %v422 = vld [vmem:[#allocation2 + $0x18] sm:$0xff]
        %v423 = vld [vmem:[#allocation2 + $0x20] sm:$0xff]
        %v424 = vld [vmem:[#allocation2 + $0x30] sm:$0xff]
        %v425 = vld [vmem:[#allocation2 + $0x38] sm:$0xff]
        %v426 = vld [vmem:[#allocation2 + $0x48] sm:$0xff]
        %v427 = vld [vmem:[#allocation2 + $0x50] sm:$0xff]
        %v428 = vld [vmem:[#allocation2 + $0x60] sm:$0xff]
        %v429 = vld [vmem:[#allocation2 + $0x68] sm:$0xff]
        %v430 = vld [vmem:[#allocation2 + $0x78] sm:$0xff]
        %v431 = vld [vmem:[#allocation2 + $0x80] sm:$0xff]
        %v432 = vld [vmem:[#allocation2 + $0x90] sm:$0xff]
        %v433 = vld [vmem:[#allocation2 + $0x98] sm:$0xff]
        %v434 = vld [vmem:[#allocation2 + $0xa8] sm:$0xff]
        %v435 = vld [vmem:[#allocation2 + $0xb0] sm:$0xff]
        %v436 = vld [vmem:[%s1] sm:$0xf]
        %v437 = vld [vmem:[#allocation2 + $0x1] sm:$0xff]
        %v438 = vld [vmem:[#allocation2 + $0x9] sm:$0xff]
        %v439 = vld [vmem:[#allocation2 + $0x19] sm:$0xff]
        %v440 = vld [vmem:[#allocation2 + $0x21] sm:$0xff]
        %v441 = vld [vmem:[#allocation2 + $0x31] sm:$0xff]
        %v442 = vld [vmem:[#allocation2 + $0x39] sm:$0xff]
        %v443 = vld [vmem:[#allocation2 + $0x49] sm:$0xff]
        %v444 = vld [vmem:[#allocation2 + $0x51] sm:$0xff]
        %v445 = vld [vmem:[#allocation2 + $0x61] sm:$0xff]
        %v446 = vld [vmem:[#allocation2 + $0x69] sm:$0xff]
        %v447 = vld [vmem:[#allocation2 + $0x79] sm:$0xff]
        %v448 = vld [vmem:[#allocation2 + $0x81] sm:$0xff]
        %v449 = vld [vmem:[#allocation2 + $0x91] sm:$0xff]
        %v450 = vld [vmem:[#allocation2 + $0x99] sm:$0xff]
        %v451 = vld [vmem:[#allocation2 + $0xa9] sm:$0xff]
        %v452 = vld [vmem:[#allocation2 + $0xb1] sm:$0xff]
        %s453 = scalar_lea.vmem %s1, 4
        %v454 = vld [vmem:[%s453] sm:$0xf]
        %v456 = vsel %vm263, %v437, 0
        %v459 = vsel %vm263, %v438, 0
        %v462 = vsel %vm263, %v439, 0
        %v465 = vsel %vm263, %v440, 0
        %v468 = vsel %vm263, %v441, 0
        %v471 = vsel %vm263, %v442, 0
        %v474 = vsel %vm263, %v443, 0
        %v477 = vsel %vm263, %v444, 0
        %v480 = vsel %vm263, %v445, 0
        %v483 = vsel %vm263, %v446, 0
        %v486 = vsel %vm263, %v447, 0
        %v489 = vsel %vm263, %v448, 0
        %v492 = vsel %vm263, %v449, 0
        %v495 = vsel %vm263, %v450, 0
        %v498 = vsel %vm263, %v451, 0
        %v501 = vsel %vm263, %v452, 0
        %vm503 = vcmask 1043456
        %v505 = vsel %vm503, %v454, 0
        %507 = vmatpush.msra.mxu0 0.0
        %508 = vmatpush.msra.mxu0 0.0
        %509 = vmatpush.msra.mxu0 0.0
        %510 = vmatpush.msra.mxu0 0.0
        %511 = vmatpush.msra.mxu0 0.0
        %512 = vmatpush.msra.mxu0 0.0
        %513 = vmatpush.msra.mxu0 0.0
        %514 = vmatpush.msra.mxu0 0.0
        %515 = vmatpush.msra.mxu0 0.0
        %516 = vmatpush.msra.mxu0 0.0
        %517 = vmatpush.msra.mxu0 0.0
        %518 = vmatpush.msra.mxu0 0.0
        %519 = vmatpush.msra.mxu0 0.0
        %520 = vmatpush.msra.mxu0 0.0
        %521 = vmatpush.msra.mxu0 0.0
        %522 = vmatpush.msra.mxu0 %v505
        %523 = vmatmul.f32.gmra.mxu0 %v456
        %v524 = vpop.f32.mrf.mxu0
        %v525 = vadd.f32 0.0, %v524
        %526 = vmatmul.f32.gmra.mxu0 %v459
        %v527 = vpop.f32.mrf.mxu0
        %v528 = vadd.f32 0.0, %v527
        %529 = vmatmul.f32.gmra.mxu0 %v462
        %v530 = vpop.f32.mrf.mxu0
        %v531 = vadd.f32 0.0, %v530
        %532 = vmatmul.f32.gmra.mxu0 %v465
        %v533 = vpop.f32.mrf.mxu0
        %v534 = vadd.f32 0.0, %v533
        %535 = vmatmul.f32.gmra.mxu0 %v468
        %v536 = vpop.f32.mrf.mxu0
        %v537 = vadd.f32 0.0, %v536
        %538 = vmatmul.f32.gmra.mxu0 %v471
        %v539 = vpop.f32.mrf.mxu0
        %v540 = vadd.f32 0.0, %v539
        %541 = vmatmul.f32.gmra.mxu0 %v474
        %v542 = vpop.f32.mrf.mxu0
        %v543 = vadd.f32 0.0, %v542
        %544 = vmatmul.f32.gmra.mxu0 %v477
        %v545 = vpop.f32.mrf.mxu0
        %v546 = vadd.f32 0.0, %v545
        %547 = vmatmul.f32.gmra.mxu0 %v480
        %v548 = vpop.f32.mrf.mxu0
        %v549 = vadd.f32 0.0, %v548
        %550 = vmatmul.f32.gmra.mxu0 %v483
        %v551 = vpop.f32.mrf.mxu0
        %v552 = vadd.f32 0.0, %v551
        %553 = vmatmul.f32.gmra.mxu0 %v486
        %v554 = vpop.f32.mrf.mxu0
        %v555 = vadd.f32 0.0, %v554
        %556 = vmatmul.f32.gmra.mxu0 %v489
        %v557 = vpop.f32.mrf.mxu0
        %v558 = vadd.f32 0.0, %v557
        %559 = vmatmul.f32.gmra.mxu0 %v492
        %v560 = vpop.f32.mrf.mxu0
        %v561 = vadd.f32 0.0, %v560
        %562 = vmatmul.f32.gmra.mxu0 %v495
        %v563 = vpop.f32.mrf.mxu0
        %v564 = vadd.f32 0.0, %v563
        %565 = vmatmul.f32.gmra.mxu0 %v498
        %v566 = vpop.f32.mrf.mxu0
        %v567 = vadd.f32 0.0, %v566
        %568 = vmatmul.f32.gmra.mxu0 %v501
        %v569 = vpop.f32.mrf.mxu0
        %v570 = vadd.f32 0.0, %v569
        %571 = vdwg.mxu0
        %v573 = vsel %vm263, %v420, 0
        %v576 = vsel %vm263, %v421, 0
        %v579 = vsel %vm263, %v422, 0
        %v582 = vsel %vm263, %v423, 0
        %v585 = vsel %vm263, %v424, 0
        %v588 = vsel %vm263, %v425, 0
        %v591 = vsel %vm263, %v426, 0
        %v594 = vsel %vm263, %v427, 0
        %v597 = vsel %vm263, %v428, 0
        %v600 = vsel %vm263, %v429, 0
        %v603 = vsel %vm263, %v430, 0
        %v606 = vsel %vm263, %v431, 0
        %v609 = vsel %vm263, %v432, 0
        %v612 = vsel %vm263, %v433, 0
        %v615 = vsel %vm263, %v434, 0
        %v618 = vsel %vm263, %v435, 0
        %v621 = vsel %vm503, %v436, 0
        %623 = vmatpush.msra.mxu0 0.0
        %624 = vmatpush.msra.mxu0 0.0
        %625 = vmatpush.msra.mxu0 0.0
        %626 = vmatpush.msra.mxu0 0.0
        %627 = vmatpush.msra.mxu0 0.0
        %628 = vmatpush.msra.mxu0 0.0
        %629 = vmatpush.msra.mxu0 0.0
        %630 = vmatpush.msra.mxu0 0.0
        %631 = vmatpush.msra.mxu0 0.0
        %632 = vmatpush.msra.mxu0 0.0
        %633 = vmatpush.msra.mxu0 0.0
        %634 = vmatpush.msra.mxu0 0.0
        %635 = vmatpush.msra.mxu0 0.0
        %636 = vmatpush.msra.mxu0 0.0
        %637 = vmatpush.msra.mxu0 0.0
        %638 = vmatpush.msra.mxu0 %v621
        %639 = vmatmul.f32.gmra.mxu0 %v573
        %v640 = vpop.f32.mrf.mxu0
        %v641 = vadd.f32 %v525, %v640
        %642 = vmatmul.f32.gmra.mxu0 %v576
        %v643 = vpop.f32.mrf.mxu0
        %v644 = vadd.f32 %v528, %v643
        %645 = vmatmul.f32.gmra.mxu0 %v579
        %v646 = vpop.f32.mrf.mxu0
        %v647 = vadd.f32 %v531, %v646
        %648 = vmatmul.f32.gmra.mxu0 %v582
        %v649 = vpop.f32.mrf.mxu0
        %v650 = vadd.f32 %v534, %v649
        %651 = vmatmul.f32.gmra.mxu0 %v585
        %v652 = vpop.f32.mrf.mxu0
        %v653 = vadd.f32 %v537, %v652
        %654 = vmatmul.f32.gmra.mxu0 %v588
        %v655 = vpop.f32.mrf.mxu0
        %v656 = vadd.f32 %v540, %v655
        %657 = vmatmul.f32.gmra.mxu0 %v591
        %v658 = vpop.f32.mrf.mxu0
        %v659 = vadd.f32 %v543, %v658
        %660 = vmatmul.f32.gmra.mxu0 %v594
        %v661 = vpop.f32.mrf.mxu0
        %v662 = vadd.f32 %v546, %v661
        %663 = vmatmul.f32.gmra.mxu0 %v597
        %v664 = vpop.f32.mrf.mxu0
        %v665 = vadd.f32 %v549, %v664
        %666 = vmatmul.f32.gmra.mxu0 %v600
        %v667 = vpop.f32.mrf.mxu0
        %v668 = vadd.f32 %v552, %v667
        %669 = vmatmul.f32.gmra.mxu0 %v603
        %v670 = vpop.f32.mrf.mxu0
        %v671 = vadd.f32 %v555, %v670
        %672 = vmatmul.f32.gmra.mxu0 %v606
        %v673 = vpop.f32.mrf.mxu0
        %v674 = vadd.f32 %v558, %v673
        %675 = vmatmul.f32.gmra.mxu0 %v609
        %v676 = vpop.f32.mrf.mxu0
        %v677 = vadd.f32 %v561, %v676
        %678 = vmatmul.f32.gmra.mxu0 %v612
        %v679 = vpop.f32.mrf.mxu0
        %v680 = vadd.f32 %v564, %v679
        %681 = vmatmul.f32.gmra.mxu0 %v615
        %v682 = vpop.f32.mrf.mxu0
        %v683 = vadd.f32 %v567, %v682
        %684 = vmatmul.f32.gmra.mxu0 %v618
        %v685 = vpop.f32.mrf.mxu0
        %v686 = vadd.f32 %v570, %v685
        %687 = vdwg.mxu0
        %v688 = vld [vmem:[#allocation2 + $0x2] sm:$0xff]
        %v689 = vld [vmem:[#allocation2 + $0xa] sm:$0xff]
        %v690 = vld [vmem:[#allocation2 + $0x1a] sm:$0xff]
        %v691 = vld [vmem:[#allocation2 + $0x22] sm:$0xff]
        %v692 = vld [vmem:[#allocation2 + $0x32] sm:$0xff]
        %v693 = vld [vmem:[#allocation2 + $0x3a] sm:$0xff]
        %v694 = vld [vmem:[#allocation2 + $0x4a] sm:$0xff]
        %v695 = vld [vmem:[#allocation2 + $0x52] sm:$0xff]
        %v696 = vld [vmem:[#allocation2 + $0x62] sm:$0xff]
        %v697 = vld [vmem:[#allocation2 + $0x6a] sm:$0xff]
        %v698 = vld [vmem:[#allocation2 + $0x7a] sm:$0xff]
        %v699 = vld [vmem:[#allocation2 + $0x82] sm:$0xff]
        %v700 = vld [vmem:[#allocation2 + $0x92] sm:$0xff]
        %v701 = vld [vmem:[#allocation2 + $0x9a] sm:$0xff]
        %v702 = vld [vmem:[#allocation2 + $0xaa] sm:$0xff]
        %v703 = vld [vmem:[#allocation2 + $0xb2] sm:$0xff]
        %s704 = scalar_lea.vmem %s1, 8
        %v705 = vld [vmem:[%s704] sm:$0xf]
        %v707 = vsel %vm263, %v688, 0
        %v710 = vsel %vm263, %v689, 0
        %v713 = vsel %vm263, %v690, 0
        %v716 = vsel %vm263, %v691, 0
        %v719 = vsel %vm263, %v692, 0
        %v722 = vsel %vm263, %v693, 0
        %v725 = vsel %vm263, %v694, 0
        %v728 = vsel %vm263, %v695, 0
        %v731 = vsel %vm263, %v696, 0
        %v734 = vsel %vm263, %v697, 0
        %v737 = vsel %vm263, %v698, 0
        %v740 = vsel %vm263, %v699, 0
        %v743 = vsel %vm263, %v700, 0
        %v746 = vsel %vm263, %v701, 0
        %v749 = vsel %vm263, %v702, 0
        %v752 = vsel %vm263, %v703, 0
        %v755 = vsel %vm503, %v705, 0
        %757 = vmatpush.msra.mxu0 0.0
        %758 = vmatpush.msra.mxu0 0.0
        %759 = vmatpush.msra.mxu0 0.0
        %760 = vmatpush.msra.mxu0 0.0
        %761 = vmatpush.msra.mxu0 0.0
        %762 = vmatpush.msra.mxu0 0.0
        %763 = vmatpush.msra.mxu0 0.0
        %764 = vmatpush.msra.mxu0 0.0
        %765 = vmatpush.msra.mxu0 0.0
        %766 = vmatpush.msra.mxu0 0.0
        %767 = vmatpush.msra.mxu0 0.0
        %768 = vmatpush.msra.mxu0 0.0
        %769 = vmatpush.msra.mxu0 0.0
        %770 = vmatpush.msra.mxu0 0.0
        %771 = vmatpush.msra.mxu0 0.0
        %772 = vmatpush.msra.mxu0 %v755
        %773 = vmatmul.f32.gmra.mxu0 %v707
        %v774 = vpop.f32.mrf.mxu0
        %v775 = vadd.f32 0.0, %v774
        %776 = vmatmul.f32.gmra.mxu0 %v710
        %v777 = vpop.f32.mrf.mxu0
        %v778 = vadd.f32 0.0, %v777
        %779 = vmatmul.f32.gmra.mxu0 %v713
        %v780 = vpop.f32.mrf.mxu0
        %v781 = vadd.f32 0.0, %v780
        %782 = vmatmul.f32.gmra.mxu0 %v716
        %v783 = vpop.f32.mrf.mxu0
        %v784 = vadd.f32 0.0, %v783
        %785 = vmatmul.f32.gmra.mxu0 %v719
        %v786 = vpop.f32.mrf.mxu0
        %v787 = vadd.f32 0.0, %v786
        %788 = vmatmul.f32.gmra.mxu0 %v722
        %v789 = vpop.f32.mrf.mxu0
        %v790 = vadd.f32 0.0, %v789
        %791 = vmatmul.f32.gmra.mxu0 %v725
        %v792 = vpop.f32.mrf.mxu0
        %v793 = vadd.f32 0.0, %v792
        %794 = vmatmul.f32.gmra.mxu0 %v728
        %v795 = vpop.f32.mrf.mxu0
        %v796 = vadd.f32 0.0, %v795
        %797 = vmatmul.f32.gmra.mxu0 %v731
        %v798 = vpop.f32.mrf.mxu0
        %v799 = vadd.f32 0.0, %v798
        %800 = vmatmul.f32.gmra.mxu0 %v734
        %v801 = vpop.f32.mrf.mxu0
        %v802 = vadd.f32 0.0, %v801
        %803 = vmatmul.f32.gmra.mxu0 %v737
        %v804 = vpop.f32.mrf.mxu0
        %v805 = vadd.f32 0.0, %v804
        %806 = vmatmul.f32.gmra.mxu0 %v740
        %v807 = vpop.f32.mrf.mxu0
        %v808 = vadd.f32 0.0, %v807
        %809 = vmatmul.f32.gmra.mxu0 %v743
        %v810 = vpop.f32.mrf.mxu0
        %v811 = vadd.f32 0.0, %v810
        %812 = vmatmul.f32.gmra.mxu0 %v746
        %v813 = vpop.f32.mrf.mxu0
        %v814 = vadd.f32 0.0, %v813
        %815 = vmatmul.f32.gmra.mxu0 %v749
        %v816 = vpop.f32.mrf.mxu0
        %v817 = vadd.f32 0.0, %v816
        %818 = vmatmul.f32.gmra.mxu0 %v752
        %v819 = vpop.f32.mrf.mxu0
        %v820 = vadd.f32 0.0, %v819
        %821 = vdwg.mxu0
        %v822 = vadd.f32 %v641, %v775
        %v823 = vadd.f32 %v644, %v778
        %v824 = vadd.f32 %v647, %v781
        %v825 = vadd.f32 %v650, %v784
        %v826 = vadd.f32 %v653, %v787
        %v827 = vadd.f32 %v656, %v790
        %v828 = vadd.f32 %v659, %v793
        %v829 = vadd.f32 %v662, %v796
        %v830 = vadd.f32 %v665, %v799
        %v831 = vadd.f32 %v668, %v802
        %v832 = vadd.f32 %v671, %v805
        %v833 = vadd.f32 %v674, %v808
        %v834 = vadd.f32 %v677, %v811
        %v835 = vadd.f32 %v680, %v814
        %v836 = vadd.f32 %v683, %v817
        %v837 = vadd.f32 %v686, %v820
        %v838 = vld [vmem:[%s341] sm:$0xff]
        %v839 = vld [vmem:[%s341 + $0x8] sm:$0xff]
        %v840 = vld [vmem:[%s341 + $0x18] sm:$0xff]
        %v841 = vld [vmem:[%s341 + $0x20] sm:$0xff]
        %v842 = vld [vmem:[%s341 + $0x30] sm:$0xff]
        %v843 = vld [vmem:[%s341 + $0x38] sm:$0xff]
        %v844 = vld [vmem:[%s341 + $0x48] sm:$0xff]
        %v845 = vld [vmem:[%s341 + $0x50] sm:$0xff]
        %v846 = vld [vmem:[%s341 + $0x60] sm:$0xff]
        %v847 = vld [vmem:[%s341 + $0x68] sm:$0xff]
        %v848 = vld [vmem:[%s341 + $0x78] sm:$0xff]
        %v849 = vld [vmem:[%s341 + $0x80] sm:$0xff]
        %v850 = vld [vmem:[%s341 + $0x90] sm:$0xff]
        %v851 = vld [vmem:[%s341 + $0x98] sm:$0xff]
        %v852 = vld [vmem:[%s341 + $0xa8] sm:$0xff]
        %v853 = vld [vmem:[%s341 + $0xb0] sm:$0xff]
        %s854 = scalar_lea.vmem %s1, 12
        %v855 = vld [vmem:[%s854] sm:$0xf]
        %v857 = vsel %vm263, %v838, 0
        %v860 = vsel %vm263, %v839, 0
        %v863 = vsel %vm263, %v840, 0
        %v866 = vsel %vm263, %v841, 0
        %v869 = vsel %vm263, %v842, 0
        %v872 = vsel %vm263, %v843, 0
        %v875 = vsel %vm263, %v844, 0
        %v878 = vsel %vm263, %v845, 0
        %v881 = vsel %vm263, %v846, 0
        %v884 = vsel %vm263, %v847, 0
        %v887 = vsel %vm263, %v848, 0
        %v890 = vsel %vm263, %v849, 0
        %v893 = vsel %vm263, %v850, 0
        %v896 = vsel %vm263, %v851, 0
        %v899 = vsel %vm263, %v852, 0
        %v902 = vsel %vm263, %v853, 0
        %v905 = vsel %vm503, %v855, 0
        %907 = vmatpush.msra.mxu0 0.0
        %908 = vmatpush.msra.mxu0 0.0
        %909 = vmatpush.msra.mxu0 0.0
        %910 = vmatpush.msra.mxu0 0.0
        %911 = vmatpush.msra.mxu0 0.0
        %912 = vmatpush.msra.mxu0 0.0
        %913 = vmatpush.msra.mxu0 0.0
        %914 = vmatpush.msra.mxu0 0.0
        %915 = vmatpush.msra.mxu0 0.0
        %916 = vmatpush.msra.mxu0 0.0
        %917 = vmatpush.msra.mxu0 0.0
        %918 = vmatpush.msra.mxu0 0.0
        %919 = vmatpush.msra.mxu0 0.0
        %920 = vmatpush.msra.mxu0 0.0
        %921 = vmatpush.msra.mxu0 0.0
        %922 = vmatpush.msra.mxu0 %v905
        %923 = vmatmul.f32.gmra.mxu0 %v857
        %v924 = vpop.f32.mrf.mxu0
        %v925 = vadd.f32 0.0, %v924
        %926 = vmatmul.f32.gmra.mxu0 %v860
        %v927 = vpop.f32.mrf.mxu0
        %v928 = vadd.f32 0.0, %v927
        %929 = vmatmul.f32.gmra.mxu0 %v863
        %v930 = vpop.f32.mrf.mxu0
        %v931 = vadd.f32 0.0, %v930
        %932 = vmatmul.f32.gmra.mxu0 %v866
        %v933 = vpop.f32.mrf.mxu0
        %v934 = vadd.f32 0.0, %v933
        %935 = vmatmul.f32.gmra.mxu0 %v869
        %v936 = vpop.f32.mrf.mxu0
        %v937 = vadd.f32 0.0, %v936
        %938 = vmatmul.f32.gmra.mxu0 %v872
        %v939 = vpop.f32.mrf.mxu0
        %v940 = vadd.f32 0.0, %v939
        %941 = vmatmul.f32.gmra.mxu0 %v875
        %v942 = vpop.f32.mrf.mxu0
        %v943 = vadd.f32 0.0, %v942
        %944 = vmatmul.f32.gmra.mxu0 %v878
        %v945 = vpop.f32.mrf.mxu0
        %v946 = vadd.f32 0.0, %v945
        %947 = vmatmul.f32.gmra.mxu0 %v881
        %v948 = vpop.f32.mrf.mxu0
        %v949 = vadd.f32 0.0, %v948
        %950 = vmatmul.f32.gmra.mxu0 %v884
        %v951 = vpop.f32.mrf.mxu0
        %v952 = vadd.f32 0.0, %v951
        %953 = vmatmul.f32.gmra.mxu0 %v887
        %v954 = vpop.f32.mrf.mxu0
        %v955 = vadd.f32 0.0, %v954
        %956 = vmatmul.f32.gmra.mxu0 %v890
        %v957 = vpop.f32.mrf.mxu0
        %v958 = vadd.f32 0.0, %v957
        %959 = vmatmul.f32.gmra.mxu0 %v893
        %v960 = vpop.f32.mrf.mxu0
        %v961 = vadd.f32 0.0, %v960
        %962 = vmatmul.f32.gmra.mxu0 %v896
        %v963 = vpop.f32.mrf.mxu0
        %v964 = vadd.f32 0.0, %v963
        %965 = vmatmul.f32.gmra.mxu0 %v899
        %v966 = vpop.f32.mrf.mxu0
        %v967 = vadd.f32 0.0, %v966
        %968 = vmatmul.f32.gmra.mxu0 %v902
        %v969 = vpop.f32.mrf.mxu0
        %v970 = vadd.f32 0.0, %v969
        %971 = vdwg.mxu0
        %v972 = vadd.f32 %v822, %v925
        %v973 = vadd.f32 %v823, %v928
        %v974 = vadd.f32 %v824, %v931
        %v975 = vadd.f32 %v825, %v934
        %v976 = vadd.f32 %v826, %v937
        %v977 = vadd.f32 %v827, %v940
        %v978 = vadd.f32 %v828, %v943
        %v979 = vadd.f32 %v829, %v946
        %v980 = vadd.f32 %v830, %v949
        %v981 = vadd.f32 %v831, %v952
        %v982 = vadd.f32 %v832, %v955
        %v983 = vadd.f32 %v833, %v958
        %v984 = vadd.f32 %v834, %v961
        %v985 = vadd.f32 %v835, %v964
        %v986 = vadd.f32 %v836, %v967
        %v987 = vadd.f32 %v837, %v970
        %v988 = vld [vmem:[%s341 + $0x1] sm:$0xff]
        %v989 = vld [vmem:[%s341 + $0x9] sm:$0xff]
        %v990 = vld [vmem:[%s341 + $0x19] sm:$0xff]
        %v991 = vld [vmem:[%s341 + $0x21] sm:$0xff]
        %v992 = vld [vmem:[%s341 + $0x31] sm:$0xff]
        %v993 = vld [vmem:[%s341 + $0x39] sm:$0xff]
        %v994 = vld [vmem:[%s341 + $0x49] sm:$0xff]
        %v995 = vld [vmem:[%s341 + $0x51] sm:$0xff]
        %v996 = vld [vmem:[%s341 + $0x61] sm:$0xff]
        %v997 = vld [vmem:[%s341 + $0x69] sm:$0xff]
        %v998 = vld [vmem:[%s341 + $0x79] sm:$0xff]
        %v999 = vld [vmem:[%s341 + $0x81] sm:$0xff]
        %v1000 = vld [vmem:[%s341 + $0x91] sm:$0xff]
        %v1001 = vld [vmem:[%s341 + $0x99] sm:$0xff]
        %v1002 = vld [vmem:[%s341 + $0xa9] sm:$0xff]
        %v1003 = vld [vmem:[%s341 + $0xb1] sm:$0xff]
        %s1004 = scalar_lea.vmem %s1, 16
        %v1005 = vld [vmem:[%s1004] sm:$0xf]
        %v1007 = vsel %vm263, %v988, 0
        %v1010 = vsel %vm263, %v989, 0
        %v1013 = vsel %vm263, %v990, 0
        %v1016 = vsel %vm263, %v991, 0
        %v1019 = vsel %vm263, %v992, 0
        %v1022 = vsel %vm263, %v993, 0
        %v1025 = vsel %vm263, %v994, 0
        %v1028 = vsel %vm263, %v995, 0
        %v1031 = vsel %vm263, %v996, 0
        %v1034 = vsel %vm263, %v997, 0
        %v1037 = vsel %vm263, %v998, 0
        %v1040 = vsel %vm263, %v999, 0
        %v1043 = vsel %vm263, %v1000, 0
        %v1046 = vsel %vm263, %v1001, 0
        %v1049 = vsel %vm263, %v1002, 0
        %v1052 = vsel %vm263, %v1003, 0
        %v1055 = vsel %vm503, %v1005, 0
        %1057 = vmatpush.msra.mxu0 0.0
        %1058 = vmatpush.msra.mxu0 0.0
        %1059 = vmatpush.msra.mxu0 0.0
        %1060 = vmatpush.msra.mxu0 0.0
        %1061 = vmatpush.msra.mxu0 0.0
        %1062 = vmatpush.msra.mxu0 0.0
        %1063 = vmatpush.msra.mxu0 0.0
        %1064 = vmatpush.msra.mxu0 0.0
        %1065 = vmatpush.msra.mxu0 0.0
        %1066 = vmatpush.msra.mxu0 0.0
        %1067 = vmatpush.msra.mxu0 0.0
        %1068 = vmatpush.msra.mxu0 0.0
        %1069 = vmatpush.msra.mxu0 0.0
        %1070 = vmatpush.msra.mxu0 0.0
        %1071 = vmatpush.msra.mxu0 0.0
        %1072 = vmatpush.msra.mxu0 %v1055
        %1073 = vmatmul.f32.gmra.mxu0 %v1007
        %v1074 = vpop.f32.mrf.mxu0
        %v1075 = vadd.f32 0.0, %v1074
        %1076 = vmatmul.f32.gmra.mxu0 %v1010
        %v1077 = vpop.f32.mrf.mxu0
        %v1078 = vadd.f32 0.0, %v1077
        %1079 = vmatmul.f32.gmra.mxu0 %v1013
        %v1080 = vpop.f32.mrf.mxu0
        %v1081 = vadd.f32 0.0, %v1080
        %1082 = vmatmul.f32.gmra.mxu0 %v1016
        %v1083 = vpop.f32.mrf.mxu0
        %v1084 = vadd.f32 0.0, %v1083
        %1085 = vmatmul.f32.gmra.mxu0 %v1019
        %v1086 = vpop.f32.mrf.mxu0
        %v1087 = vadd.f32 0.0, %v1086
        %1088 = vmatmul.f32.gmra.mxu0 %v1022
        %v1089 = vpop.f32.mrf.mxu0
        %v1090 = vadd.f32 0.0, %v1089
        %1091 = vmatmul.f32.gmra.mxu0 %v1025
        %v1092 = vpop.f32.mrf.mxu0
        %v1093 = vadd.f32 0.0, %v1092
        %1094 = vmatmul.f32.gmra.mxu0 %v1028
        %v1095 = vpop.f32.mrf.mxu0
        %v1096 = vadd.f32 0.0, %v1095
        %1097 = vmatmul.f32.gmra.mxu0 %v1031
        %v1098 = vpop.f32.mrf.mxu0
        %v1099 = vadd.f32 0.0, %v1098
        %1100 = vmatmul.f32.gmra.mxu0 %v1034
        %v1101 = vpop.f32.mrf.mxu0
        %v1102 = vadd.f32 0.0, %v1101
        %1103 = vmatmul.f32.gmra.mxu0 %v1037
        %v1104 = vpop.f32.mrf.mxu0
        %v1105 = vadd.f32 0.0, %v1104
        %1106 = vmatmul.f32.gmra.mxu0 %v1040
        %v1107 = vpop.f32.mrf.mxu0
        %v1108 = vadd.f32 0.0, %v1107
        %1109 = vmatmul.f32.gmra.mxu0 %v1043
        %v1110 = vpop.f32.mrf.mxu0
        %v1111 = vadd.f32 0.0, %v1110
        %1112 = vmatmul.f32.gmra.mxu0 %v1046
        %v1113 = vpop.f32.mrf.mxu0
        %v1114 = vadd.f32 0.0, %v1113
        %1115 = vmatmul.f32.gmra.mxu0 %v1049
        %v1116 = vpop.f32.mrf.mxu0
        %v1117 = vadd.f32 0.0, %v1116
        %1118 = vmatmul.f32.gmra.mxu0 %v1052
        %v1119 = vpop.f32.mrf.mxu0
        %v1120 = vadd.f32 0.0, %v1119
        %1121 = vdwg.mxu0
        %v1122 = vadd.f32 %v972, %v1075
        %v1123 = vadd.f32 %v973, %v1078
        %v1124 = vadd.f32 %v974, %v1081
        %v1125 = vadd.f32 %v975, %v1084
        %v1126 = vadd.f32 %v976, %v1087
        %v1127 = vadd.f32 %v977, %v1090
        %v1128 = vadd.f32 %v978, %v1093
        %v1129 = vadd.f32 %v979, %v1096
        %v1130 = vadd.f32 %v980, %v1099
        %v1131 = vadd.f32 %v981, %v1102
        %v1132 = vadd.f32 %v982, %v1105
        %v1133 = vadd.f32 %v983, %v1108
        %v1134 = vadd.f32 %v984, %v1111
        %v1135 = vadd.f32 %v985, %v1114
        %v1136 = vadd.f32 %v986, %v1117
        %v1137 = vadd.f32 %v987, %v1120
        %v1138 = vld [vmem:[%s341 + $0x2] sm:$0xff]
        %v1139 = vld [vmem:[%s341 + $0xa] sm:$0xff]
        %v1140 = vld [vmem:[%s341 + $0x1a] sm:$0xff]
        %v1141 = vld [vmem:[%s341 + $0x22] sm:$0xff]
        %v1142 = vld [vmem:[%s341 + $0x32] sm:$0xff]
        %v1143 = vld [vmem:[%s341 + $0x3a] sm:$0xff]
        %v1144 = vld [vmem:[%s341 + $0x4a] sm:$0xff]
        %v1145 = vld [vmem:[%s341 + $0x52] sm:$0xff]
        %v1146 = vld [vmem:[%s341 + $0x62] sm:$0xff]
        %v1147 = vld [vmem:[%s341 + $0x6a] sm:$0xff]
        %v1148 = vld [vmem:[%s341 + $0x7a] sm:$0xff]
        %v1149 = vld [vmem:[%s341 + $0x82] sm:$0xff]
        %v1150 = vld [vmem:[%s341 + $0x92] sm:$0xff]
        %v1151 = vld [vmem:[%s341 + $0x9a] sm:$0xff]
        %v1152 = vld [vmem:[%s341 + $0xaa] sm:$0xff]
        %v1153 = vld [vmem:[%s341 + $0xb2] sm:$0xff]
        %s1154 = scalar_lea.vmem %s1, 20
        %v1155 = vld [vmem:[%s1154] sm:$0xf]
        %v1157 = vsel %vm263, %v1138, 0
        %v1160 = vsel %vm263, %v1139, 0
        %v1163 = vsel %vm263, %v1140, 0
        %v1166 = vsel %vm263, %v1141, 0
        %v1169 = vsel %vm263, %v1142, 0
        %v1172 = vsel %vm263, %v1143, 0
        %v1175 = vsel %vm263, %v1144, 0
        %v1178 = vsel %vm263, %v1145, 0
        %v1181 = vsel %vm263, %v1146, 0
        %v1184 = vsel %vm263, %v1147, 0
        %v1187 = vsel %vm263, %v1148, 0
        %v1190 = vsel %vm263, %v1149, 0
        %v1193 = vsel %vm263, %v1150, 0
        %v1196 = vsel %vm263, %v1151, 0
        %v1199 = vsel %vm263, %v1152, 0
        %v1202 = vsel %vm263, %v1153, 0
        %v1205 = vsel %vm503, %v1155, 0
        %1207 = vmatpush.msra.mxu0 0.0
        %1208 = vmatpush.msra.mxu0 0.0
        %1209 = vmatpush.msra.mxu0 0.0
        %1210 = vmatpush.msra.mxu0 0.0
        %1211 = vmatpush.msra.mxu0 0.0
        %1212 = vmatpush.msra.mxu0 0.0
        %1213 = vmatpush.msra.mxu0 0.0
        %1214 = vmatpush.msra.mxu0 0.0
        %1215 = vmatpush.msra.mxu0 0.0
        %1216 = vmatpush.msra.mxu0 0.0
        %1217 = vmatpush.msra.mxu0 0.0
        %1218 = vmatpush.msra.mxu0 0.0
        %1219 = vmatpush.msra.mxu0 0.0
        %1220 = vmatpush.msra.mxu0 0.0
        %1221 = vmatpush.msra.mxu0 0.0
        %1222 = vmatpush.msra.mxu0 %v1205
        %1223 = vmatmul.f32.gmra.mxu0 %v1157
        %v1224 = vpop.f32.mrf.mxu0
        %v1225 = vadd.f32 0.0, %v1224
        %1226 = vmatmul.f32.gmra.mxu0 %v1160
        %v1227 = vpop.f32.mrf.mxu0
        %v1228 = vadd.f32 0.0, %v1227
        %1229 = vmatmul.f32.gmra.mxu0 %v1163
        %v1230 = vpop.f32.mrf.mxu0
        %v1231 = vadd.f32 0.0, %v1230
        %1232 = vmatmul.f32.gmra.mxu0 %v1166
        %v1233 = vpop.f32.mrf.mxu0
        %v1234 = vadd.f32 0.0, %v1233
        %1235 = vmatmul.f32.gmra.mxu0 %v1169
        %v1236 = vpop.f32.mrf.mxu0
        %v1237 = vadd.f32 0.0, %v1236
        %1238 = vmatmul.f32.gmra.mxu0 %v1172
        %v1239 = vpop.f32.mrf.mxu0
        %v1240 = vadd.f32 0.0, %v1239
        %1241 = vmatmul.f32.gmra.mxu0 %v1175
        %v1242 = vpop.f32.mrf.mxu0
        %v1243 = vadd.f32 0.0, %v1242
        %1244 = vmatmul.f32.gmra.mxu0 %v1178
        %v1245 = vpop.f32.mrf.mxu0
        %v1246 = vadd.f32 0.0, %v1245
        %1247 = vmatmul.f32.gmra.mxu0 %v1181
        %v1248 = vpop.f32.mrf.mxu0
        %v1249 = vadd.f32 0.0, %v1248
        %1250 = vmatmul.f32.gmra.mxu0 %v1184
        %v1251 = vpop.f32.mrf.mxu0
        %v1252 = vadd.f32 0.0, %v1251
        %1253 = vmatmul.f32.gmra.mxu0 %v1187
        %v1254 = vpop.f32.mrf.mxu0
        %v1255 = vadd.f32 0.0, %v1254
        %1256 = vmatmul.f32.gmra.mxu0 %v1190
        %v1257 = vpop.f32.mrf.mxu0
        %v1258 = vadd.f32 0.0, %v1257
        %1259 = vmatmul.f32.gmra.mxu0 %v1193
        %v1260 = vpop.f32.mrf.mxu0
        %v1261 = vadd.f32 0.0, %v1260
        %1262 = vmatmul.f32.gmra.mxu0 %v1196
        %v1263 = vpop.f32.mrf.mxu0
        %v1264 = vadd.f32 0.0, %v1263
        %1265 = vmatmul.f32.gmra.mxu0 %v1199
        %v1266 = vpop.f32.mrf.mxu0
        %v1267 = vadd.f32 0.0, %v1266
        %1268 = vmatmul.f32.gmra.mxu0 %v1202
        %v1269 = vpop.f32.mrf.mxu0
        %v1270 = vadd.f32 0.0, %v1269
        %1271 = vdwg.mxu0
        %v1272 = vadd.f32 %v1122, %v1225
        %v1273 = vadd.f32 %v1123, %v1228
        %v1274 = vadd.f32 %v1124, %v1231
        %v1275 = vadd.f32 %v1125, %v1234
        %v1276 = vadd.f32 %v1126, %v1237
        %v1277 = vadd.f32 %v1127, %v1240
        %v1278 = vadd.f32 %v1128, %v1243
        %v1279 = vadd.f32 %v1129, %v1246
        %v1280 = vadd.f32 %v1130, %v1249
        %v1281 = vadd.f32 %v1131, %v1252
        %v1282 = vadd.f32 %v1132, %v1255
        %v1283 = vadd.f32 %v1133, %v1258
        %v1284 = vadd.f32 %v1134, %v1261
        %v1285 = vadd.f32 %v1135, %v1264
        %v1286 = vadd.f32 %v1136, %v1267
        %v1287 = vadd.f32 %v1137, %v1270
        %s1288 = scalar_lea.vmem [#allocation2], 48
        %v1289 = vld [vmem:[%s1288] sm:$0xff]
        %v1290 = vld [vmem:[%s1288 + $0x8] sm:$0xff]
        %v1291 = vld [vmem:[%s1288 + $0x18] sm:$0xff]
        %v1292 = vld [vmem:[%s1288 + $0x20] sm:$0xff]
        %v1293 = vld [vmem:[%s1288 + $0x30] sm:$0xff]
        %v1294 = vld [vmem:[%s1288 + $0x38] sm:$0xff]
        %v1295 = vld [vmem:[%s1288 + $0x48] sm:$0xff]
        %v1296 = vld [vmem:[%s1288 + $0x50] sm:$0xff]
        %v1297 = vld [vmem:[%s1288 + $0x60] sm:$0xff]
        %v1298 = vld [vmem:[%s1288 + $0x68] sm:$0xff]
        %v1299 = vld [vmem:[%s1288 + $0x78] sm:$0xff]
        %v1300 = vld [vmem:[%s1288 + $0x80] sm:$0xff]
        %v1301 = vld [vmem:[%s1288 + $0x90] sm:$0xff]
        %v1302 = vld [vmem:[%s1288 + $0x98] sm:$0xff]
        %v1303 = vld [vmem:[%s1288 + $0xa8] sm:$0xff]
        %v1304 = vld [vmem:[%s1288 + $0xb0] sm:$0xff]
        %s1305 = scalar_lea.vmem %s1, 24
        %v1306 = vld [vmem:[%s1305] sm:$0xf]
        %v1308 = vsel %vm263, %v1289, 0
        %v1311 = vsel %vm263, %v1290, 0
        %v1314 = vsel %vm263, %v1291, 0
        %v1317 = vsel %vm263, %v1292, 0
        %v1320 = vsel %vm263, %v1293, 0
        %v1323 = vsel %vm263, %v1294, 0
        %v1326 = vsel %vm263, %v1295, 0
        %v1329 = vsel %vm263, %v1296, 0
        %v1332 = vsel %vm263, %v1297, 0
        %v1335 = vsel %vm263, %v1298, 0
        %v1338 = vsel %vm263, %v1299, 0
        %v1341 = vsel %vm263, %v1300, 0
        %v1344 = vsel %vm263, %v1301, 0
        %v1347 = vsel %vm263, %v1302, 0
        %v1350 = vsel %vm263, %v1303, 0
        %v1353 = vsel %vm263, %v1304, 0
        %v1356 = vsel %vm503, %v1306, 0
        %1358 = vmatpush.msra.mxu0 0.0
        %1359 = vmatpush.msra.mxu0 0.0
        %1360 = vmatpush.msra.mxu0 0.0
        %1361 = vmatpush.msra.mxu0 0.0
        %1362 = vmatpush.msra.mxu0 0.0
        %1363 = vmatpush.msra.mxu0 0.0
        %1364 = vmatpush.msra.mxu0 0.0
        %1365 = vmatpush.msra.mxu0 0.0
        %1366 = vmatpush.msra.mxu0 0.0
        %1367 = vmatpush.msra.mxu0 0.0
        %1368 = vmatpush.msra.mxu0 0.0
        %1369 = vmatpush.msra.mxu0 0.0
        %1370 = vmatpush.msra.mxu0 0.0
        %1371 = vmatpush.msra.mxu0 0.0
        %1372 = vmatpush.msra.mxu0 0.0
        %1373 = vmatpush.msra.mxu0 %v1356
        %1374 = vmatmul.f32.gmra.mxu0 %v1308
        %v1375 = vpop.f32.mrf.mxu0
        %v1376 = vadd.f32 0.0, %v1375
        %1377 = vmatmul.f32.gmra.mxu0 %v1311
        %v1378 = vpop.f32.mrf.mxu0
        %v1379 = vadd.f32 0.0, %v1378
        %1380 = vmatmul.f32.gmra.mxu0 %v1314
        %v1381 = vpop.f32.mrf.mxu0
        %v1382 = vadd.f32 0.0, %v1381
        %1383 = vmatmul.f32.gmra.mxu0 %v1317
        %v1384 = vpop.f32.mrf.mxu0
        %v1385 = vadd.f32 0.0, %v1384
        %1386 = vmatmul.f32.gmra.mxu0 %v1320
        %v1387 = vpop.f32.mrf.mxu0
        %v1388 = vadd.f32 0.0, %v1387
        %1389 = vmatmul.f32.gmra.mxu0 %v1323
        %v1390 = vpop.f32.mrf.mxu0
        %v1391 = vadd.f32 0.0, %v1390
        %1392 = vmatmul.f32.gmra.mxu0 %v1326
        %v1393 = vpop.f32.mrf.mxu0
        %v1394 = vadd.f32 0.0, %v1393
        %1395 = vmatmul.f32.gmra.mxu0 %v1329
        %v1396 = vpop.f32.mrf.mxu0
        %v1397 = vadd.f32 0.0, %v1396
        %1398 = vmatmul.f32.gmra.mxu0 %v1332
        %v1399 = vpop.f32.mrf.mxu0
        %v1400 = vadd.f32 0.0, %v1399
        %1401 = vmatmul.f32.gmra.mxu0 %v1335
        %v1402 = vpop.f32.mrf.mxu0
        %v1403 = vadd.f32 0.0, %v1402
        %1404 = vmatmul.f32.gmra.mxu0 %v1338
        %v1405 = vpop.f32.mrf.mxu0
        %v1406 = vadd.f32 0.0, %v1405
        %1407 = vmatmul.f32.gmra.mxu0 %v1341
        %v1408 = vpop.f32.mrf.mxu0
        %v1409 = vadd.f32 0.0, %v1408
        %1410 = vmatmul.f32.gmra.mxu0 %v1344
        %v1411 = vpop.f32.mrf.mxu0
        %v1412 = vadd.f32 0.0, %v1411
        %1413 = vmatmul.f32.gmra.mxu0 %v1347
        %v1414 = vpop.f32.mrf.mxu0
        %v1415 = vadd.f32 0.0, %v1414
        %1416 = vmatmul.f32.gmra.mxu0 %v1350
        %v1417 = vpop.f32.mrf.mxu0
        %v1418 = vadd.f32 0.0, %v1417
        %1419 = vmatmul.f32.gmra.mxu0 %v1353
        %v1420 = vpop.f32.mrf.mxu0
        %v1421 = vadd.f32 0.0, %v1420
        %1422 = vdwg.mxu0
        %v1423 = vadd.f32 %v1272, %v1376
        %v1424 = vadd.f32 %v1273, %v1379
        %v1425 = vadd.f32 %v1274, %v1382
        %v1426 = vadd.f32 %v1275, %v1385
        %v1427 = vadd.f32 %v1276, %v1388
        %v1428 = vadd.f32 %v1277, %v1391
        %v1429 = vadd.f32 %v1278, %v1394
        %v1430 = vadd.f32 %v1279, %v1397
        %v1431 = vadd.f32 %v1280, %v1400
        %v1432 = vadd.f32 %v1281, %v1403
        %v1433 = vadd.f32 %v1282, %v1406
        %v1434 = vadd.f32 %v1283, %v1409
        %v1435 = vadd.f32 %v1284, %v1412
        %v1436 = vadd.f32 %v1285, %v1415
        %v1437 = vadd.f32 %v1286, %v1418
        %v1438 = vadd.f32 %v1287, %v1421
        %v1439 = vld [vmem:[%s1288 + $0x1] sm:$0xff]
        %v1440 = vld [vmem:[%s1288 + $0x9] sm:$0xff]
        %v1441 = vld [vmem:[%s1288 + $0x19] sm:$0xff]
        %v1442 = vld [vmem:[%s1288 + $0x21] sm:$0xff]
        %v1443 = vld [vmem:[%s1288 + $0x31] sm:$0xff]
        %v1444 = vld [vmem:[%s1288 + $0x39] sm:$0xff]
        %v1445 = vld [vmem:[%s1288 + $0x49] sm:$0xff]
        %v1446 = vld [vmem:[%s1288 + $0x51] sm:$0xff]
        %v1447 = vld [vmem:[%s1288 + $0x61] sm:$0xff]
        %v1448 = vld [vmem:[%s1288 + $0x69] sm:$0xff]
        %v1449 = vld [vmem:[%s1288 + $0x79] sm:$0xff]
        %v1450 = vld [vmem:[%s1288 + $0x81] sm:$0xff]
        %v1451 = vld [vmem:[%s1288 + $0x91] sm:$0xff]
        %v1452 = vld [vmem:[%s1288 + $0x99] sm:$0xff]
        %v1453 = vld [vmem:[%s1288 + $0xa9] sm:$0xff]
        %v1454 = vld [vmem:[%s1288 + $0xb1] sm:$0xff]
        %s1455 = scalar_lea.vmem %s1, 28
        %v1456 = vld [vmem:[%s1455] sm:$0xf]
        %v1458 = vsel %vm263, %v1439, 0
        %v1461 = vsel %vm263, %v1440, 0
        %v1464 = vsel %vm263, %v1441, 0
        %v1467 = vsel %vm263, %v1442, 0
        %v1470 = vsel %vm263, %v1443, 0
        %v1473 = vsel %vm263, %v1444, 0
        %v1476 = vsel %vm263, %v1445, 0
        %v1479 = vsel %vm263, %v1446, 0
        %v1482 = vsel %vm263, %v1447, 0
        %v1485 = vsel %vm263, %v1448, 0
        %v1488 = vsel %vm263, %v1449, 0
        %v1491 = vsel %vm263, %v1450, 0
        %v1494 = vsel %vm263, %v1451, 0
        %v1497 = vsel %vm263, %v1452, 0
        %v1500 = vsel %vm263, %v1453, 0
        %v1503 = vsel %vm263, %v1454, 0
        %v1506 = vsel %vm503, %v1456, 0
        %1508 = vmatpush.msra.mxu0 0.0
        %1509 = vmatpush.msra.mxu0 0.0
        %1510 = vmatpush.msra.mxu0 0.0
        %1511 = vmatpush.msra.mxu0 0.0
        %1512 = vmatpush.msra.mxu0 0.0
        %1513 = vmatpush.msra.mxu0 0.0
        %1514 = vmatpush.msra.mxu0 0.0
        %1515 = vmatpush.msra.mxu0 0.0
        %1516 = vmatpush.msra.mxu0 0.0
        %1517 = vmatpush.msra.mxu0 0.0
        %1518 = vmatpush.msra.mxu0 0.0
        %1519 = vmatpush.msra.mxu0 0.0
        %1520 = vmatpush.msra.mxu0 0.0
        %1521 = vmatpush.msra.mxu0 0.0
        %1522 = vmatpush.msra.mxu0 0.0
        %1523 = vmatpush.msra.mxu0 %v1506
        %1524 = vmatmul.f32.gmra.mxu0 %v1458
        %v1525 = vpop.f32.mrf.mxu0
        %v1526 = vadd.f32 0.0, %v1525
        %1527 = vmatmul.f32.gmra.mxu0 %v1461
        %v1528 = vpop.f32.mrf.mxu0
        %v1529 = vadd.f32 0.0, %v1528
        %1530 = vmatmul.f32.gmra.mxu0 %v1464
        %v1531 = vpop.f32.mrf.mxu0
        %v1532 = vadd.f32 0.0, %v1531
        %1533 = vmatmul.f32.gmra.mxu0 %v1467
        %v1534 = vpop.f32.mrf.mxu0
        %v1535 = vadd.f32 0.0, %v1534
        %1536 = vmatmul.f32.gmra.mxu0 %v1470
        %v1537 = vpop.f32.mrf.mxu0
        %v1538 = vadd.f32 0.0, %v1537
        %1539 = vmatmul.f32.gmra.mxu0 %v1473
        %v1540 = vpop.f32.mrf.mxu0
        %v1541 = vadd.f32 0.0, %v1540
        %1542 = vmatmul.f32.gmra.mxu0 %v1476
        %v1543 = vpop.f32.mrf.mxu0
        %v1544 = vadd.f32 0.0, %v1543
        %1545 = vmatmul.f32.gmra.mxu0 %v1479
        %v1546 = vpop.f32.mrf.mxu0
        %v1547 = vadd.f32 0.0, %v1546
        %1548 = vmatmul.f32.gmra.mxu0 %v1482
        %v1549 = vpop.f32.mrf.mxu0
        %v1550 = vadd.f32 0.0, %v1549
        %1551 = vmatmul.f32.gmra.mxu0 %v1485
        %v1552 = vpop.f32.mrf.mxu0
        %v1553 = vadd.f32 0.0, %v1552
        %1554 = vmatmul.f32.gmra.mxu0 %v1488
        %v1555 = vpop.f32.mrf.mxu0
        %v1556 = vadd.f32 0.0, %v1555
        %1557 = vmatmul.f32.gmra.mxu0 %v1491
        %v1558 = vpop.f32.mrf.mxu0
        %v1559 = vadd.f32 0.0, %v1558
        %1560 = vmatmul.f32.gmra.mxu0 %v1494
        %v1561 = vpop.f32.mrf.mxu0
        %v1562 = vadd.f32 0.0, %v1561
        %1563 = vmatmul.f32.gmra.mxu0 %v1497
        %v1564 = vpop.f32.mrf.mxu0
        %v1565 = vadd.f32 0.0, %v1564
        %1566 = vmatmul.f32.gmra.mxu0 %v1500
        %v1567 = vpop.f32.mrf.mxu0
        %v1568 = vadd.f32 0.0, %v1567
        %1569 = vmatmul.f32.gmra.mxu0 %v1503
        %v1570 = vpop.f32.mrf.mxu0
        %v1571 = vadd.f32 0.0, %v1570
        %1572 = vdwg.mxu0
        %v1573 = vadd.f32 %v1423, %v1526
        %v1574 = vadd.f32 %v1424, %v1529
        %v1575 = vadd.f32 %v1425, %v1532
        %v1576 = vadd.f32 %v1426, %v1535
        %v1577 = vadd.f32 %v1427, %v1538
        %v1578 = vadd.f32 %v1428, %v1541
        %v1579 = vadd.f32 %v1429, %v1544
        %v1580 = vadd.f32 %v1430, %v1547
        %v1581 = vadd.f32 %v1431, %v1550
        %v1582 = vadd.f32 %v1432, %v1553
        %v1583 = vadd.f32 %v1433, %v1556
        %v1584 = vadd.f32 %v1434, %v1559
        %v1585 = vadd.f32 %v1435, %v1562
        %v1586 = vadd.f32 %v1436, %v1565
        %v1587 = vadd.f32 %v1437, %v1568
        %v1588 = vadd.f32 %v1438, %v1571
        %v1589 = vld [vmem:[%s1288 + $0x2] sm:$0xff]
        %v1590 = vld [vmem:[%s1288 + $0xa] sm:$0xff]
        %v1591 = vld [vmem:[%s1288 + $0x1a] sm:$0xff]
        %v1592 = vld [vmem:[%s1288 + $0x22] sm:$0xff]
        %v1593 = vld [vmem:[%s1288 + $0x32] sm:$0xff]
        %v1594 = vld [vmem:[%s1288 + $0x3a] sm:$0xff]
        %v1595 = vld [vmem:[%s1288 + $0x4a] sm:$0xff]
        %v1596 = vld [vmem:[%s1288 + $0x52] sm:$0xff]
        %v1597 = vld [vmem:[%s1288 + $0x62] sm:$0xff]
        %v1598 = vld [vmem:[%s1288 + $0x6a] sm:$0xff]
        %v1599 = vld [vmem:[%s1288 + $0x7a] sm:$0xff]
        %v1600 = vld [vmem:[%s1288 + $0x82] sm:$0xff]
        %v1601 = vld [vmem:[%s1288 + $0x92] sm:$0xff]
        %v1602 = vld [vmem:[%s1288 + $0x9a] sm:$0xff]
        %v1603 = vld [vmem:[%s1288 + $0xaa] sm:$0xff]
        %v1604 = vld [vmem:[%s1288 + $0xb2] sm:$0xff]
        %s1605 = scalar_lea.vmem %s1, 32
        %v1606 = vld [vmem:[%s1605] sm:$0xf]
        %v1608 = vsel %vm263, %v1589, 0
        %v1611 = vsel %vm263, %v1590, 0
        %v1614 = vsel %vm263, %v1591, 0
        %v1617 = vsel %vm263, %v1592, 0
        %v1620 = vsel %vm263, %v1593, 0
        %v1623 = vsel %vm263, %v1594, 0
        %v1626 = vsel %vm263, %v1595, 0
        %v1629 = vsel %vm263, %v1596, 0
        %v1632 = vsel %vm263, %v1597, 0
        %v1635 = vsel %vm263, %v1598, 0
        %v1638 = vsel %vm263, %v1599, 0
        %v1641 = vsel %vm263, %v1600, 0
        %v1644 = vsel %vm263, %v1601, 0
        %v1647 = vsel %vm263, %v1602, 0
        %v1650 = vsel %vm263, %v1603, 0
        %v1653 = vsel %vm263, %v1604, 0
        %v1656 = vsel %vm503, %v1606, 0
        %1658 = vmatpush.msra.mxu0 0.0
        %1659 = vmatpush.msra.mxu0 0.0
        %1660 = vmatpush.msra.mxu0 0.0
        %1661 = vmatpush.msra.mxu0 0.0
        %1662 = vmatpush.msra.mxu0 0.0
        %1663 = vmatpush.msra.mxu0 0.0
        %1664 = vmatpush.msra.mxu0 0.0
        %1665 = vmatpush.msra.mxu0 0.0
        %1666 = vmatpush.msra.mxu0 0.0
        %1667 = vmatpush.msra.mxu0 0.0
        %1668 = vmatpush.msra.mxu0 0.0
        %1669 = vmatpush.msra.mxu0 0.0
        %1670 = vmatpush.msra.mxu0 0.0
        %1671 = vmatpush.msra.mxu0 0.0
        %1672 = vmatpush.msra.mxu0 0.0
        %1673 = vmatpush.msra.mxu0 %v1656
        %1674 = vmatmul.f32.gmra.mxu0 %v1608
        %v1675 = vpop.f32.mrf.mxu0
        %v1676 = vadd.f32 0.0, %v1675
        %1677 = vmatmul.f32.gmra.mxu0 %v1611
        %v1678 = vpop.f32.mrf.mxu0
        %v1679 = vadd.f32 0.0, %v1678
        %1680 = vmatmul.f32.gmra.mxu0 %v1614
        %v1681 = vpop.f32.mrf.mxu0
        %v1682 = vadd.f32 0.0, %v1681
        %1683 = vmatmul.f32.gmra.mxu0 %v1617
        %v1684 = vpop.f32.mrf.mxu0
        %v1685 = vadd.f32 0.0, %v1684
        %1686 = vmatmul.f32.gmra.mxu0 %v1620
        %v1687 = vpop.f32.mrf.mxu0
        %v1688 = vadd.f32 0.0, %v1687
        %1689 = vmatmul.f32.gmra.mxu0 %v1623
        %v1690 = vpop.f32.mrf.mxu0
        %v1691 = vadd.f32 0.0, %v1690
        %1692 = vmatmul.f32.gmra.mxu0 %v1626
        %v1693 = vpop.f32.mrf.mxu0
        %v1694 = vadd.f32 0.0, %v1693
        %1695 = vmatmul.f32.gmra.mxu0 %v1629
        %v1696 = vpop.f32.mrf.mxu0
        %v1697 = vadd.f32 0.0, %v1696
        %1698 = vmatmul.f32.gmra.mxu0 %v1632
        %v1699 = vpop.f32.mrf.mxu0
        %v1700 = vadd.f32 0.0, %v1699
        %1701 = vmatmul.f32.gmra.mxu0 %v1635
        %v1702 = vpop.f32.mrf.mxu0
        %v1703 = vadd.f32 0.0, %v1702
        %1704 = vmatmul.f32.gmra.mxu0 %v1638
        %v1705 = vpop.f32.mrf.mxu0
        %v1706 = vadd.f32 0.0, %v1705
        %1707 = vmatmul.f32.gmra.mxu0 %v1641
        %v1708 = vpop.f32.mrf.mxu0
        %v1709 = vadd.f32 0.0, %v1708
        %1710 = vmatmul.f32.gmra.mxu0 %v1644
        %v1711 = vpop.f32.mrf.mxu0
        %v1712 = vadd.f32 0.0, %v1711
        %1713 = vmatmul.f32.gmra.mxu0 %v1647
        %v1714 = vpop.f32.mrf.mxu0
        %v1715 = vadd.f32 0.0, %v1714
        %1716 = vmatmul.f32.gmra.mxu0 %v1650
        %v1717 = vpop.f32.mrf.mxu0
        %v1718 = vadd.f32 0.0, %v1717
        %1719 = vmatmul.f32.gmra.mxu0 %v1653
        %v1720 = vpop.f32.mrf.mxu0
        %v1721 = vadd.f32 0.0, %v1720
        %1722 = vdwg.mxu0
        %v1723 = vadd.f32 %v1573, %v1676
        %v1724 = vadd.f32 %v1574, %v1679
        %v1725 = vadd.f32 %v1575, %v1682
        %v1726 = vadd.f32 %v1576, %v1685
        %v1727 = vadd.f32 %v1577, %v1688
        %v1728 = vadd.f32 %v1578, %v1691
        %v1729 = vadd.f32 %v1579, %v1694
        %v1730 = vadd.f32 %v1580, %v1697
        %v1731 = vadd.f32 %v1581, %v1700
        %v1732 = vadd.f32 %v1582, %v1703
        %v1733 = vadd.f32 %v1583, %v1706
        %v1734 = vadd.f32 %v1584, %v1709
        %v1735 = vadd.f32 %v1585, %v1712
        %v1736 = vadd.f32 %v1586, %v1715
        %v1737 = vadd.f32 %v1587, %v1718
        %v1738 = vadd.f32 %v1588, %v1721
        %vm1739 = vcmp.ge.f32.partialorder %v1723, 0.0
        %vm1740 = vcmp.ge.f32.partialorder %v1724, 0.0
        %vm1741 = vcmp.ge.f32.partialorder %v1725, 0.0
        %vm1742 = vcmp.ge.f32.partialorder %v1726, 0.0
        %vm1743 = vcmp.ge.f32.partialorder %v1727, 0.0
        %vm1744 = vcmp.ge.f32.partialorder %v1728, 0.0
        %vm1745 = vcmp.ge.f32.partialorder %v1729, 0.0
        %vm1746 = vcmp.ge.f32.partialorder %v1730, 0.0
        %vm1747 = vcmp.ge.f32.partialorder %v1731, 0.0
        %vm1748 = vcmp.ge.f32.partialorder %v1732, 0.0
        %vm1749 = vcmp.ge.f32.partialorder %v1733, 0.0
        %vm1750 = vcmp.ge.f32.partialorder %v1734, 0.0
        %vm1751 = vcmp.ge.f32.partialorder %v1735, 0.0
        %vm1752 = vcmp.ge.f32.partialorder %v1736, 0.0
        %vm1753 = vcmp.ge.f32.partialorder %v1737, 0.0
        %vm1754 = vcmp.ge.f32.partialorder %v1738, 0.0
        %v1755 = vmul.f32 %v1723, 0.01
        %v1756 = vmul.f32 %v1724, 0.01
        %v1757 = vmul.f32 %v1725, 0.01
        %v1758 = vmul.f32 %v1726, 0.01
        %v1759 = vmul.f32 %v1727, 0.01
        %v1760 = vmul.f32 %v1728, 0.01
        %v1761 = vmul.f32 %v1729, 0.01
        %v1762 = vmul.f32 %v1730, 0.01
        %v1763 = vmul.f32 %v1731, 0.01
        %v1764 = vmul.f32 %v1732, 0.01
        %v1765 = vmul.f32 %v1733, 0.01
        %v1766 = vmul.f32 %v1734, 0.01
        %v1767 = vmul.f32 %v1735, 0.01
        %v1768 = vmul.f32 %v1736, 0.01
        %v1769 = vmul.f32 %v1737, 0.01
        %v1770 = vmul.f32 %v1738, 0.01
        %v1771 = vsel %vm1739, %v1723, %v1755
        %v1772 = vsel %vm1740, %v1724, %v1756
        %v1773 = vsel %vm1741, %v1725, %v1757
        %v1774 = vsel %vm1742, %v1726, %v1758
        %v1775 = vsel %vm1743, %v1727, %v1759
        %v1776 = vsel %vm1744, %v1728, %v1760
        %v1777 = vsel %vm1745, %v1729, %v1761
        %v1778 = vsel %vm1746, %v1730, %v1762
        %v1779 = vsel %vm1747, %v1731, %v1763
        %v1780 = vsel %vm1748, %v1732, %v1764
        %v1781 = vsel %vm1749, %v1733, %v1765
        %v1782 = vsel %vm1750, %v1734, %v1766
        %v1783 = vsel %vm1751, %v1735, %v1767
        %v1784 = vsel %vm1752, %v1736, %v1768
        %v1785 = vsel %vm1753, %v1737, %v1769
        %v1786 = vsel %vm1754, %v1738, %v1770
        %s1787 = scalar_lea.vmem [#allocation3], 24
        %1788 = vst.msk [vmem:[%s1787 + $0x1] sm:$0xff] %vm374, %v1771
        %1789 = vst.msk [vmem:[%s1787 + $0x9] sm:$0xff] %vm374, %v1772
        %1790 = vst.msk [vmem:[%s1787 + $0x19] sm:$0xff] %vm374, %v1773
        %1791 = vst.msk [vmem:[%s1787 + $0x21] sm:$0xff] %vm374, %v1774
        %1792 = vst.msk [vmem:[%s1787 + $0x31] sm:$0xff] %vm374, %v1775
        %1793 = vst.msk [vmem:[%s1787 + $0x39] sm:$0xff] %vm374, %v1776
        %1794 = vst.msk [vmem:[%s1787 + $0x49] sm:$0xff] %vm374, %v1777
        %1795 = vst.msk [vmem:[%s1787 + $0x51] sm:$0xff] %vm374, %v1778
        %1796 = vst.msk [vmem:[%s1787 + $0x61] sm:$0xff] %vm374, %v1779
        %1797 = vst.msk [vmem:[%s1787 + $0x69] sm:$0xff] %vm374, %v1780
        %1798 = vst.msk [vmem:[%s1787 + $0x79] sm:$0xff] %vm374, %v1781
        %1799 = vst.msk [vmem:[%s1787 + $0x81] sm:$0xff] %vm374, %v1782
        %1800 = vst.msk [vmem:[%s1787 + $0x91] sm:$0xff] %vm374, %v1783
        %1801 = vst.msk [vmem:[%s1787 + $0x99] sm:$0xff] %vm374, %v1784
        %1802 = vst.msk [vmem:[%s1787 + $0xa9] sm:$0xff] %vm374, %v1785
        %1803 = vst.msk [vmem:[%s1787 + $0xb1] sm:$0xff] %vm374, %v1786
        %s1804 = scalar_lea.vmem [#allocation2], 192
        %v1805 = vld [vmem:[%s1804] sm:$0xff]
        %v1806 = vld [vmem:[%s1804 + $0x8] sm:$0xff]
        %v1807 = vld [vmem:[%s1804 + $0x18] sm:$0xff]
        %v1808 = vld [vmem:[%s1804 + $0x20] sm:$0xff]
        %v1809 = vld [vmem:[%s1804 + $0x30] sm:$0xff]
        %v1810 = vld [vmem:[%s1804 + $0x38] sm:$0xff]
        %v1811 = vld [vmem:[%s1804 + $0x48] sm:$0xff]
        %v1812 = vld [vmem:[%s1804 + $0x50] sm:$0xff]
        %v1813 = vld [vmem:[%s1804 + $0x60] sm:$0xff]
        %v1814 = vld [vmem:[%s1804 + $0x68] sm:$0xff]
        %v1815 = vld [vmem:[%s1804 + $0x78] sm:$0xff]
        %v1816 = vld [vmem:[%s1804 + $0x80] sm:$0xff]
        %v1817 = vld [vmem:[%s1804 + $0x90] sm:$0xff]
        %v1818 = vld [vmem:[%s1804 + $0x98] sm:$0xff]
        %v1819 = vld [vmem:[%s1804 + $0xa8] sm:$0xff]
        %v1820 = vld [vmem:[%s1804 + $0xb0] sm:$0xff]
        %v1821 = vld [vmem:[%s1] sm:$0xf]
        %v1822 = vld [vmem:[%s1804 + $0x1] sm:$0xff]
        %v1823 = vld [vmem:[%s1804 + $0x9] sm:$0xff]
        %v1824 = vld [vmem:[%s1804 + $0x19] sm:$0xff]
        %v1825 = vld [vmem:[%s1804 + $0x21] sm:$0xff]
        %v1826 = vld [vmem:[%s1804 + $0x31] sm:$0xff]
        %v1827 = vld [vmem:[%s1804 + $0x39] sm:$0xff]
        %v1828 = vld [vmem:[%s1804 + $0x49] sm:$0xff]
        %v1829 = vld [vmem:[%s1804 + $0x51] sm:$0xff]
        %v1830 = vld [vmem:[%s1804 + $0x61] sm:$0xff]
        %v1831 = vld [vmem:[%s1804 + $0x69] sm:$0xff]
        %v1832 = vld [vmem:[%s1804 + $0x79] sm:$0xff]
        %v1833 = vld [vmem:[%s1804 + $0x81] sm:$0xff]
        %v1834 = vld [vmem:[%s1804 + $0x91] sm:$0xff]
        %v1835 = vld [vmem:[%s1804 + $0x99] sm:$0xff]
        %v1836 = vld [vmem:[%s1804 + $0xa9] sm:$0xff]
        %v1837 = vld [vmem:[%s1804 + $0xb1] sm:$0xff]
        %v1838 = vld [vmem:[%s453] sm:$0xf]
        %v1840 = vsel %vm263, %v1822, 0
        %v1843 = vsel %vm263, %v1823, 0
        %v1846 = vsel %vm263, %v1824, 0
        %v1849 = vsel %vm263, %v1825, 0
        %v1852 = vsel %vm263, %v1826, 0
        %v1855 = vsel %vm263, %v1827, 0
        %v1858 = vsel %vm263, %v1828, 0
        %v1861 = vsel %vm263, %v1829, 0
        %v1864 = vsel %vm263, %v1830, 0
        %v1867 = vsel %vm263, %v1831, 0
        %v1870 = vsel %vm263, %v1832, 0
        %v1873 = vsel %vm263, %v1833, 0
        %v1876 = vsel %vm263, %v1834, 0
        %v1879 = vsel %vm263, %v1835, 0
        %v1882 = vsel %vm263, %v1836, 0
        %v1885 = vsel %vm263, %v1837, 0
        %v1888 = vsel %vm503, %v1838, 0
        %1890 = vmatpush.msra.mxu0 0.0
        %1891 = vmatpush.msra.mxu0 0.0
        %1892 = vmatpush.msra.mxu0 0.0
        %1893 = vmatpush.msra.mxu0 0.0
        %1894 = vmatpush.msra.mxu0 0.0
        %1895 = vmatpush.msra.mxu0 0.0
        %1896 = vmatpush.msra.mxu0 0.0
        %1897 = vmatpush.msra.mxu0 0.0
        %1898 = vmatpush.msra.mxu0 0.0
        %1899 = vmatpush.msra.mxu0 0.0
        %1900 = vmatpush.msra.mxu0 0.0
        %1901 = vmatpush.msra.mxu0 0.0
        %1902 = vmatpush.msra.mxu0 0.0
        %1903 = vmatpush.msra.mxu0 0.0
        %1904 = vmatpush.msra.mxu0 0.0
        %1905 = vmatpush.msra.mxu0 %v1888
        %1906 = vmatmul.f32.gmra.mxu0 %v1840
        %v1907 = vpop.f32.mrf.mxu0
        %v1908 = vadd.f32 0.0, %v1907
        %1909 = vmatmul.f32.gmra.mxu0 %v1843
        %v1910 = vpop.f32.mrf.mxu0
        %v1911 = vadd.f32 0.0, %v1910
        %1912 = vmatmul.f32.gmra.mxu0 %v1846
        %v1913 = vpop.f32.mrf.mxu0
        %v1914 = vadd.f32 0.0, %v1913
        %1915 = vmatmul.f32.gmra.mxu0 %v1849
        %v1916 = vpop.f32.mrf.mxu0
        %v1917 = vadd.f32 0.0, %v1916
        %1918 = vmatmul.f32.gmra.mxu0 %v1852
        %v1919 = vpop.f32.mrf.mxu0
        %v1920 = vadd.f32 0.0, %v1919
        %1921 = vmatmul.f32.gmra.mxu0 %v1855
        %v1922 = vpop.f32.mrf.mxu0
        %v1923 = vadd.f32 0.0, %v1922
        %1924 = vmatmul.f32.gmra.mxu0 %v1858
        %v1925 = vpop.f32.mrf.mxu0
        %v1926 = vadd.f32 0.0, %v1925
        %1927 = vmatmul.f32.gmra.mxu0 %v1861
        %v1928 = vpop.f32.mrf.mxu0
        %v1929 = vadd.f32 0.0, %v1928
        %1930 = vmatmul.f32.gmra.mxu0 %v1864
        %v1931 = vpop.f32.mrf.mxu0
        %v1932 = vadd.f32 0.0, %v1931
        %1933 = vmatmul.f32.gmra.mxu0 %v1867
        %v1934 = vpop.f32.mrf.mxu0
        %v1935 = vadd.f32 0.0, %v1934
        %1936 = vmatmul.f32.gmra.mxu0 %v1870
        %v1937 = vpop.f32.mrf.mxu0
        %v1938 = vadd.f32 0.0, %v1937
        %1939 = vmatmul.f32.gmra.mxu0 %v1873
        %v1940 = vpop.f32.mrf.mxu0
        %v1941 = vadd.f32 0.0, %v1940
        %1942 = vmatmul.f32.gmra.mxu0 %v1876
        %v1943 = vpop.f32.mrf.mxu0
        %v1944 = vadd.f32 0.0, %v1943
        %1945 = vmatmul.f32.gmra.mxu0 %v1879
        %v1946 = vpop.f32.mrf.mxu0
        %v1947 = vadd.f32 0.0, %v1946
        %1948 = vmatmul.f32.gmra.mxu0 %v1882
        %v1949 = vpop.f32.mrf.mxu0
        %v1950 = vadd.f32 0.0, %v1949
        %1951 = vmatmul.f32.gmra.mxu0 %v1885
        %v1952 = vpop.f32.mrf.mxu0
        %v1953 = vadd.f32 0.0, %v1952
        %1954 = vdwg.mxu0
        %v1956 = vsel %vm263, %v1805, 0
        %v1959 = vsel %vm263, %v1806, 0
        %v1962 = vsel %vm263, %v1807, 0
        %v1965 = vsel %vm263, %v1808, 0
        %v1968 = vsel %vm263, %v1809, 0
        %v1971 = vsel %vm263, %v1810, 0
        %v1974 = vsel %vm263, %v1811, 0
        %v1977 = vsel %vm263, %v1812, 0
        %v1980 = vsel %vm263, %v1813, 0
        %v1983 = vsel %vm263, %v1814, 0
        %v1986 = vsel %vm263, %v1815, 0
        %v1989 = vsel %vm263, %v1816, 0
        %v1992 = vsel %vm263, %v1817, 0
        %v1995 = vsel %vm263, %v1818, 0
        %v1998 = vsel %vm263, %v1819, 0
        %v2001 = vsel %vm263, %v1820, 0
        %v2004 = vsel %vm503, %v1821, 0
        %2006 = vmatpush.msra.mxu0 0.0
        %2007 = vmatpush.msra.mxu0 0.0
        %2008 = vmatpush.msra.mxu0 0.0
        %2009 = vmatpush.msra.mxu0 0.0
        %2010 = vmatpush.msra.mxu0 0.0
        %2011 = vmatpush.msra.mxu0 0.0
        %2012 = vmatpush.msra.mxu0 0.0
        %2013 = vmatpush.msra.mxu0 0.0
        %2014 = vmatpush.msra.mxu0 0.0
        %2015 = vmatpush.msra.mxu0 0.0
        %2016 = vmatpush.msra.mxu0 0.0
        %2017 = vmatpush.msra.mxu0 0.0
        %2018 = vmatpush.msra.mxu0 0.0
        %2019 = vmatpush.msra.mxu0 0.0
        %2020 = vmatpush.msra.mxu0 0.0
        %2021 = vmatpush.msra.mxu0 %v2004
        %2022 = vmatmul.f32.gmra.mxu0 %v1956
        %v2023 = vpop.f32.mrf.mxu0
        %v2024 = vadd.f32 %v1908, %v2023
        %2025 = vmatmul.f32.gmra.mxu0 %v1959
        %v2026 = vpop.f32.mrf.mxu0
        %v2027 = vadd.f32 %v1911, %v2026
        %2028 = vmatmul.f32.gmra.mxu0 %v1962
        %v2029 = vpop.f32.mrf.mxu0
        %v2030 = vadd.f32 %v1914, %v2029
        %2031 = vmatmul.f32.gmra.mxu0 %v1965
        %v2032 = vpop.f32.mrf.mxu0
        %v2033 = vadd.f32 %v1917, %v2032
        %2034 = vmatmul.f32.gmra.mxu0 %v1968
        %v2035 = vpop.f32.mrf.mxu0
        %v2036 = vadd.f32 %v1920, %v2035
        %2037 = vmatmul.f32.gmra.mxu0 %v1971
        %v2038 = vpop.f32.mrf.mxu0
        %v2039 = vadd.f32 %v1923, %v2038
        %2040 = vmatmul.f32.gmra.mxu0 %v1974
        %v2041 = vpop.f32.mrf.mxu0
        %v2042 = vadd.f32 %v1926, %v2041
        %2043 = vmatmul.f32.gmra.mxu0 %v1977
        %v2044 = vpop.f32.mrf.mxu0
        %v2045 = vadd.f32 %v1929, %v2044
        %2046 = vmatmul.f32.gmra.mxu0 %v1980
        %v2047 = vpop.f32.mrf.mxu0
        %v2048 = vadd.f32 %v1932, %v2047
        %2049 = vmatmul.f32.gmra.mxu0 %v1983
        %v2050 = vpop.f32.mrf.mxu0
        %v2051 = vadd.f32 %v1935, %v2050
        %2052 = vmatmul.f32.gmra.mxu0 %v1986
        %v2053 = vpop.f32.mrf.mxu0
        %v2054 = vadd.f32 %v1938, %v2053
        %2055 = vmatmul.f32.gmra.mxu0 %v1989
        %v2056 = vpop.f32.mrf.mxu0
        %v2057 = vadd.f32 %v1941, %v2056
        %2058 = vmatmul.f32.gmra.mxu0 %v1992
        %v2059 = vpop.f32.mrf.mxu0
        %v2060 = vadd.f32 %v1944, %v2059
        %2061 = vmatmul.f32.gmra.mxu0 %v1995
        %v2062 = vpop.f32.mrf.mxu0
        %v2063 = vadd.f32 %v1947, %v2062
        %2064 = vmatmul.f32.gmra.mxu0 %v1998
        %v2065 = vpop.f32.mrf.mxu0
        %v2066 = vadd.f32 %v1950, %v2065
        %2067 = vmatmul.f32.gmra.mxu0 %v2001
        %v2068 = vpop.f32.mrf.mxu0
        %v2069 = vadd.f32 %v1953, %v2068
        %2070 = vdwg.mxu0
        %v2071 = vld [vmem:[%s1804 + $0x2] sm:$0xff]
        %v2072 = vld [vmem:[%s1804 + $0xa] sm:$0xff]
        %v2073 = vld [vmem:[%s1804 + $0x1a] sm:$0xff]
        %v2074 = vld [vmem:[%s1804 + $0x22] sm:$0xff]
        %v2075 = vld [vmem:[%s1804 + $0x32] sm:$0xff]
        %v2076 = vld [vmem:[%s1804 + $0x3a] sm:$0xff]
        %v2077 = vld [vmem:[%s1804 + $0x4a] sm:$0xff]
        %v2078 = vld [vmem:[%s1804 + $0x52] sm:$0xff]
        %v2079 = vld [vmem:[%s1804 + $0x62] sm:$0xff]
        %v2080 = vld [vmem:[%s1804 + $0x6a] sm:$0xff]
        %v2081 = vld [vmem:[%s1804 + $0x7a] sm:$0xff]
        %v2082 = vld [vmem:[%s1804 + $0x82] sm:$0xff]
        %v2083 = vld [vmem:[%s1804 + $0x92] sm:$0xff]
        %v2084 = vld [vmem:[%s1804 + $0x9a] sm:$0xff]
        %v2085 = vld [vmem:[%s1804 + $0xaa] sm:$0xff]
        %v2086 = vld [vmem:[%s1804 + $0xb2] sm:$0xff]
        %v2087 = vld [vmem:[%s704] sm:$0xf]
        %v2089 = vsel %vm263, %v2071, 0
        %v2092 = vsel %vm263, %v2072, 0
        %v2095 = vsel %vm263, %v2073, 0
        %v2098 = vsel %vm263, %v2074, 0
        %v2101 = vsel %vm263, %v2075, 0
        %v2104 = vsel %vm263, %v2076, 0
        %v2107 = vsel %vm263, %v2077, 0
        %v2110 = vsel %vm263, %v2078, 0
        %v2113 = vsel %vm263, %v2079, 0
        %v2116 = vsel %vm263, %v2080, 0
        %v2119 = vsel %vm263, %v2081, 0
        %v2122 = vsel %vm263, %v2082, 0
        %v2125 = vsel %vm263, %v2083, 0
        %v2128 = vsel %vm263, %v2084, 0
        %v2131 = vsel %vm263, %v2085, 0
        %v2134 = vsel %vm263, %v2086, 0
        %v2137 = vsel %vm503, %v2087, 0
        %2139 = vmatpush.msra.mxu0 0.0
        %2140 = vmatpush.msra.mxu0 0.0
        %2141 = vmatpush.msra.mxu0 0.0
        %2142 = vmatpush.msra.mxu0 0.0
        %2143 = vmatpush.msra.mxu0 0.0
        %2144 = vmatpush.msra.mxu0 0.0
        %2145 = vmatpush.msra.mxu0 0.0
        %2146 = vmatpush.msra.mxu0 0.0
        %2147 = vmatpush.msra.mxu0 0.0
        %2148 = vmatpush.msra.mxu0 0.0
        %2149 = vmatpush.msra.mxu0 0.0
        %2150 = vmatpush.msra.mxu0 0.0
        %2151 = vmatpush.msra.mxu0 0.0
        %2152 = vmatpush.msra.mxu0 0.0
        %2153 = vmatpush.msra.mxu0 0.0
        %2154 = vmatpush.msra.mxu0 %v2137
        %2155 = vmatmul.f32.gmra.mxu0 %v2089
        %v2156 = vpop.f32.mrf.mxu0
        %v2157 = vadd.f32 0.0, %v2156
        %2158 = vmatmul.f32.gmra.mxu0 %v2092
        %v2159 = vpop.f32.mrf.mxu0
        %v2160 = vadd.f32 0.0, %v2159
        %2161 = vmatmul.f32.gmra.mxu0 %v2095
        %v2162 = vpop.f32.mrf.mxu0
        %v2163 = vadd.f32 0.0, %v2162
        %2164 = vmatmul.f32.gmra.mxu0 %v2098
        %v2165 = vpop.f32.mrf.mxu0
        %v2166 = vadd.f32 0.0, %v2165
        %2167 = vmatmul.f32.gmra.mxu0 %v2101
        %v2168 = vpop.f32.mrf.mxu0
        %v2169 = vadd.f32 0.0, %v2168
        %2170 = vmatmul.f32.gmra.mxu0 %v2104
        %v2171 = vpop.f32.mrf.mxu0
        %v2172 = vadd.f32 0.0, %v2171
        %2173 = vmatmul.f32.gmra.mxu0 %v2107
        %v2174 = vpop.f32.mrf.mxu0
        %v2175 = vadd.f32 0.0, %v2174
        %2176 = vmatmul.f32.gmra.mxu0 %v2110
        %v2177 = vpop.f32.mrf.mxu0
        %v2178 = vadd.f32 0.0, %v2177
        %2179 = vmatmul.f32.gmra.mxu0 %v2113
        %v2180 = vpop.f32.mrf.mxu0
        %v2181 = vadd.f32 0.0, %v2180
        %2182 = vmatmul.f32.gmra.mxu0 %v2116
        %v2183 = vpop.f32.mrf.mxu0
        %v2184 = vadd.f32 0.0, %v2183
        %2185 = vmatmul.f32.gmra.mxu0 %v2119
        %v2186 = vpop.f32.mrf.mxu0
        %v2187 = vadd.f32 0.0, %v2186
        %2188 = vmatmul.f32.gmra.mxu0 %v2122
        %v2189 = vpop.f32.mrf.mxu0
        %v2190 = vadd.f32 0.0, %v2189
        %2191 = vmatmul.f32.gmra.mxu0 %v2125
        %v2192 = vpop.f32.mrf.mxu0
        %v2193 = vadd.f32 0.0, %v2192
        %2194 = vmatmul.f32.gmra.mxu0 %v2128
        %v2195 = vpop.f32.mrf.mxu0
        %v2196 = vadd.f32 0.0, %v2195
        %2197 = vmatmul.f32.gmra.mxu0 %v2131
        %v2198 = vpop.f32.mrf.mxu0
        %v2199 = vadd.f32 0.0, %v2198
        %2200 = vmatmul.f32.gmra.mxu0 %v2134
        %v2201 = vpop.f32.mrf.mxu0
        %v2202 = vadd.f32 0.0, %v2201
        %2203 = vdwg.mxu0
        %v2204 = vadd.f32 %v2024, %v2157
        %v2205 = vadd.f32 %v2027, %v2160
        %v2206 = vadd.f32 %v2030, %v2163
        %v2207 = vadd.f32 %v2033, %v2166
        %v2208 = vadd.f32 %v2036, %v2169
        %v2209 = vadd.f32 %v2039, %v2172
        %v2210 = vadd.f32 %v2042, %v2175
        %v2211 = vadd.f32 %v2045, %v2178
        %v2212 = vadd.f32 %v2048, %v2181
        %v2213 = vadd.f32 %v2051, %v2184
        %v2214 = vadd.f32 %v2054, %v2187
        %v2215 = vadd.f32 %v2057, %v2190
        %v2216 = vadd.f32 %v2060, %v2193
        %v2217 = vadd.f32 %v2063, %v2196
        %v2218 = vadd.f32 %v2066, %v2199
        %v2219 = vadd.f32 %v2069, %v2202
        %s2220 = scalar_lea.vmem [#allocation2], 216
        %v2221 = vld [vmem:[%s2220] sm:$0xff]
        %v2222 = vld [vmem:[%s2220 + $0x8] sm:$0xff]
        %v2223 = vld [vmem:[%s2220 + $0x18] sm:$0xff]
        %v2224 = vld [vmem:[%s2220 + $0x20] sm:$0xff]
        %v2225 = vld [vmem:[%s2220 + $0x30] sm:$0xff]
        %v2226 = vld [vmem:[%s2220 + $0x38] sm:$0xff]
        %v2227 = vld [vmem:[%s2220 + $0x48] sm:$0xff]
        %v2228 = vld [vmem:[%s2220 + $0x50] sm:$0xff]
        %v2229 = vld [vmem:[%s2220 + $0x60] sm:$0xff]
        %v2230 = vld [vmem:[%s2220 + $0x68] sm:$0xff]
        %v2231 = vld [vmem:[%s2220 + $0x78] sm:$0xff]
        %v2232 = vld [vmem:[%s2220 + $0x80] sm:$0xff]
        %v2233 = vld [vmem:[%s2220 + $0x90] sm:$0xff]
        %v2234 = vld [vmem:[%s2220 + $0x98] sm:$0xff]
        %v2235 = vld [vmem:[%s2220 + $0xa8] sm:$0xff]
        %v2236 = vld [vmem:[%s2220 + $0xb0] sm:$0xff]
        %v2237 = vld [vmem:[%s854] sm:$0xf]
        %v2239 = vsel %vm263, %v2221, 0
        %v2242 = vsel %vm263, %v2222, 0
        %v2245 = vsel %vm263, %v2223, 0
        %v2248 = vsel %vm263, %v2224, 0
        %v2251 = vsel %vm263, %v2225, 0
        %v2254 = vsel %vm263, %v2226, 0
        %v2257 = vsel %vm263, %v2227, 0
        %v2260 = vsel %vm263, %v2228, 0
        %v2263 = vsel %vm263, %v2229, 0
        %v2266 = vsel %vm263, %v2230, 0
        %v2269 = vsel %vm263, %v2231, 0
        %v2272 = vsel %vm263, %v2232, 0
        %v2275 = vsel %vm263, %v2233, 0
        %v2278 = vsel %vm263, %v2234, 0
        %v2281 = vsel %vm263, %v2235, 0
        %v2284 = vsel %vm263, %v2236, 0
        %v2287 = vsel %vm503, %v2237, 0
        %2289 = vmatpush.msra.mxu0 0.0
        %2290 = vmatpush.msra.mxu0 0.0
        %2291 = vmatpush.msra.mxu0 0.0
        %2292 = vmatpush.msra.mxu0 0.0
        %2293 = vmatpush.msra.mxu0 0.0
        %2294 = vmatpush.msra.mxu0 0.0
        %2295 = vmatpush.msra.mxu0 0.0
        %2296 = vmatpush.msra.mxu0 0.0
        %2297 = vmatpush.msra.mxu0 0.0
        %2298 = vmatpush.msra.mxu0 0.0
        %2299 = vmatpush.msra.mxu0 0.0
        %2300 = vmatpush.msra.mxu0 0.0
        %2301 = vmatpush.msra.mxu0 0.0
        %2302 = vmatpush.msra.mxu0 0.0
        %2303 = vmatpush.msra.mxu0 0.0
        %2304 = vmatpush.msra.mxu0 %v2287
        %2305 = vmatmul.f32.gmra.mxu0 %v2239
        %v2306 = vpop.f32.mrf.mxu0
        %v2307 = vadd.f32 0.0, %v2306
        %2308 = vmatmul.f32.gmra.mxu0 %v2242
        %v2309 = vpop.f32.mrf.mxu0
        %v2310 = vadd.f32 0.0, %v2309
        %2311 = vmatmul.f32.gmra.mxu0 %v2245
        %v2312 = vpop.f32.mrf.mxu0
        %v2313 = vadd.f32 0.0, %v2312
        %2314 = vmatmul.f32.gmra.mxu0 %v2248
        %v2315 = vpop.f32.mrf.mxu0
        %v2316 = vadd.f32 0.0, %v2315
        %2317 = vmatmul.f32.gmra.mxu0 %v2251
        %v2318 = vpop.f32.mrf.mxu0
        %v2319 = vadd.f32 0.0, %v2318
        %2320 = vmatmul.f32.gmra.mxu0 %v2254
        %v2321 = vpop.f32.mrf.mxu0
        %v2322 = vadd.f32 0.0, %v2321
        %2323 = vmatmul.f32.gmra.mxu0 %v2257
        %v2324 = vpop.f32.mrf.mxu0
        %v2325 = vadd.f32 0.0, %v2324
        %2326 = vmatmul.f32.gmra.mxu0 %v2260
        %v2327 = vpop.f32.mrf.mxu0
        %v2328 = vadd.f32 0.0, %v2327
        %2329 = vmatmul.f32.gmra.mxu0 %v2263
        %v2330 = vpop.f32.mrf.mxu0
        %v2331 = vadd.f32 0.0, %v2330
        %2332 = vmatmul.f32.gmra.mxu0 %v2266
        %v2333 = vpop.f32.mrf.mxu0
        %v2334 = vadd.f32 0.0, %v2333
        %2335 = vmatmul.f32.gmra.mxu0 %v2269
        %v2336 = vpop.f32.mrf.mxu0
        %v2337 = vadd.f32 0.0, %v2336
        %2338 = vmatmul.f32.gmra.mxu0 %v2272
        %v2339 = vpop.f32.mrf.mxu0
        %v2340 = vadd.f32 0.0, %v2339
        %2341 = vmatmul.f32.gmra.mxu0 %v2275
        %v2342 = vpop.f32.mrf.mxu0
        %v2343 = vadd.f32 0.0, %v2342
        %2344 = vmatmul.f32.gmra.mxu0 %v2278
        %v2345 = vpop.f32.mrf.mxu0
        %v2346 = vadd.f32 0.0, %v2345
        %2347 = vmatmul.f32.gmra.mxu0 %v2281
        %v2348 = vpop.f32.mrf.mxu0
        %v2349 = vadd.f32 0.0, %v2348
        %2350 = vmatmul.f32.gmra.mxu0 %v2284
        %v2351 = vpop.f32.mrf.mxu0
        %v2352 = vadd.f32 0.0, %v2351
        %2353 = vdwg.mxu0
        %v2354 = vadd.f32 %v2204, %v2307
        %v2355 = vadd.f32 %v2205, %v2310
        %v2356 = vadd.f32 %v2206, %v2313
        %v2357 = vadd.f32 %v2207, %v2316
        %v2358 = vadd.f32 %v2208, %v2319
        %v2359 = vadd.f32 %v2209, %v2322
        %v2360 = vadd.f32 %v2210, %v2325
        %v2361 = vadd.f32 %v2211, %v2328
        %v2362 = vadd.f32 %v2212, %v2331
        %v2363 = vadd.f32 %v2213, %v2334
        %v2364 = vadd.f32 %v2214, %v2337
        %v2365 = vadd.f32 %v2215, %v2340
        %v2366 = vadd.f32 %v2216, %v2343
        %v2367 = vadd.f32 %v2217, %v2346
        %v2368 = vadd.f32 %v2218, %v2349
        %v2369 = vadd.f32 %v2219, %v2352
        %v2370 = vld [vmem:[%s2220 + $0x1] sm:$0xff]
        %v2371 = vld [vmem:[%s2220 + $0x9] sm:$0xff]
        %v2372 = vld [vmem:[%s2220 + $0x19] sm:$0xff]
        %v2373 = vld [vmem:[%s2220 + $0x21] sm:$0xff]
        %v2374 = vld [vmem:[%s2220 + $0x31] sm:$0xff]
        %v2375 = vld [vmem:[%s2220 + $0x39] sm:$0xff]
        %v2376 = vld [vmem:[%s2220 + $0x49] sm:$0xff]
        %v2377 = vld [vmem:[%s2220 + $0x51] sm:$0xff]
        %v2378 = vld [vmem:[%s2220 + $0x61] sm:$0xff]
        %v2379 = vld [vmem:[%s2220 + $0x69] sm:$0xff]
        %v2380 = vld [vmem:[%s2220 + $0x79] sm:$0xff]
        %v2381 = vld [vmem:[%s2220 + $0x81] sm:$0xff]
        %v2382 = vld [vmem:[%s2220 + $0x91] sm:$0xff]
        %v2383 = vld [vmem:[%s2220 + $0x99] sm:$0xff]
        %v2384 = vld [vmem:[%s2220 + $0xa9] sm:$0xff]
        %v2385 = vld [vmem:[%s2220 + $0xb1] sm:$0xff]
        %v2386 = vld [vmem:[%s1004] sm:$0xf]
        %v2388 = vsel %vm263, %v2370, 0
        %v2391 = vsel %vm263, %v2371, 0
        %v2394 = vsel %vm263, %v2372, 0
        %v2397 = vsel %vm263, %v2373, 0
        %v2400 = vsel %vm263, %v2374, 0
        %v2403 = vsel %vm263, %v2375, 0
        %v2406 = vsel %vm263, %v2376, 0
        %v2409 = vsel %vm263, %v2377, 0
        %v2412 = vsel %vm263, %v2378, 0
        %v2415 = vsel %vm263, %v2379, 0
        %v2418 = vsel %vm263, %v2380, 0
        %v2421 = vsel %vm263, %v2381, 0
        %v2424 = vsel %vm263, %v2382, 0
        %v2427 = vsel %vm263, %v2383, 0
        %v2430 = vsel %vm263, %v2384, 0
        %v2433 = vsel %vm263, %v2385, 0
        %v2436 = vsel %vm503, %v2386, 0
        %2438 = vmatpush.msra.mxu0 0.0
        %2439 = vmatpush.msra.mxu0 0.0
        %2440 = vmatpush.msra.mxu0 0.0
        %2441 = vmatpush.msra.mxu0 0.0
        %2442 = vmatpush.msra.mxu0 0.0
        %2443 = vmatpush.msra.mxu0 0.0
        %2444 = vmatpush.msra.mxu0 0.0
        %2445 = vmatpush.msra.mxu0 0.0
        %2446 = vmatpush.msra.mxu0 0.0
        %2447 = vmatpush.msra.mxu0 0.0
        %2448 = vmatpush.msra.mxu0 0.0
        %2449 = vmatpush.msra.mxu0 0.0
        %2450 = vmatpush.msra.mxu0 0.0
        %2451 = vmatpush.msra.mxu0 0.0
        %2452 = vmatpush.msra.mxu0 0.0
        %2453 = vmatpush.msra.mxu0 %v2436
        %2454 = vmatmul.f32.gmra.mxu0 %v2388
        %v2455 = vpop.f32.mrf.mxu0
        %v2456 = vadd.f32 0.0, %v2455
        %2457 = vmatmul.f32.gmra.mxu0 %v2391
        %v2458 = vpop.f32.mrf.mxu0
        %v2459 = vadd.f32 0.0, %v2458
        %2460 = vmatmul.f32.gmra.mxu0 %v2394
        %v2461 = vpop.f32.mrf.mxu0
        %v2462 = vadd.f32 0.0, %v2461
        %2463 = vmatmul.f32.gmra.mxu0 %v2397
        %v2464 = vpop.f32.mrf.mxu0
        %v2465 = vadd.f32 0.0, %v2464
        %2466 = vmatmul.f32.gmra.mxu0 %v2400
        %v2467 = vpop.f32.mrf.mxu0
        %v2468 = vadd.f32 0.0, %v2467
        %2469 = vmatmul.f32.gmra.mxu0 %v2403
        %v2470 = vpop.f32.mrf.mxu0
        %v2471 = vadd.f32 0.0, %v2470
        %2472 = vmatmul.f32.gmra.mxu0 %v2406
        %v2473 = vpop.f32.mrf.mxu0
        %v2474 = vadd.f32 0.0, %v2473
        %2475 = vmatmul.f32.gmra.mxu0 %v2409
        %v2476 = vpop.f32.mrf.mxu0
        %v2477 = vadd.f32 0.0, %v2476
        %2478 = vmatmul.f32.gmra.mxu0 %v2412
        %v2479 = vpop.f32.mrf.mxu0
        %v2480 = vadd.f32 0.0, %v2479
        %2481 = vmatmul.f32.gmra.mxu0 %v2415
        %v2482 = vpop.f32.mrf.mxu0
        %v2483 = vadd.f32 0.0, %v2482
        %2484 = vmatmul.f32.gmra.mxu0 %v2418
        %v2485 = vpop.f32.mrf.mxu0
        %v2486 = vadd.f32 0.0, %v2485
        %2487 = vmatmul.f32.gmra.mxu0 %v2421
        %v2488 = vpop.f32.mrf.mxu0
        %v2489 = vadd.f32 0.0, %v2488
        %2490 = vmatmul.f32.gmra.mxu0 %v2424
        %v2491 = vpop.f32.mrf.mxu0
        %v2492 = vadd.f32 0.0, %v2491
        %2493 = vmatmul.f32.gmra.mxu0 %v2427
        %v2494 = vpop.f32.mrf.mxu0
        %v2495 = vadd.f32 0.0, %v2494
        %2496 = vmatmul.f32.gmra.mxu0 %v2430
        %v2497 = vpop.f32.mrf.mxu0
        %v2498 = vadd.f32 0.0, %v2497
        %2499 = vmatmul.f32.gmra.mxu0 %v2433
        %v2500 = vpop.f32.mrf.mxu0
        %v2501 = vadd.f32 0.0, %v2500
        %2502 = vdwg.mxu0
        %v2503 = vadd.f32 %v2354, %v2456
        %v2504 = vadd.f32 %v2355, %v2459
        %v2505 = vadd.f32 %v2356, %v2462
        %v2506 = vadd.f32 %v2357, %v2465
        %v2507 = vadd.f32 %v2358, %v2468
        %v2508 = vadd.f32 %v2359, %v2471
        %v2509 = vadd.f32 %v2360, %v2474
        %v2510 = vadd.f32 %v2361, %v2477
        %v2511 = vadd.f32 %v2362, %v2480
        %v2512 = vadd.f32 %v2363, %v2483
        %v2513 = vadd.f32 %v2364, %v2486
        %v2514 = vadd.f32 %v2365, %v2489
        %v2515 = vadd.f32 %v2366, %v2492
        %v2516 = vadd.f32 %v2367, %v2495
        %v2517 = vadd.f32 %v2368, %v2498
        %v2518 = vadd.f32 %v2369, %v2501
        %v2519 = vld [vmem:[%s2220 + $0x2] sm:$0xff]
        %v2520 = vld [vmem:[%s2220 + $0xa] sm:$0xff]
        %v2521 = vld [vmem:[%s2220 + $0x1a] sm:$0xff]
        %v2522 = vld [vmem:[%s2220 + $0x22] sm:$0xff]
        %v2523 = vld [vmem:[%s2220 + $0x32] sm:$0xff]
        %v2524 = vld [vmem:[%s2220 + $0x3a] sm:$0xff]
        %v2525 = vld [vmem:[%s2220 + $0x4a] sm:$0xff]
        %v2526 = vld [vmem:[%s2220 + $0x52] sm:$0xff]
        %v2527 = vld [vmem:[%s2220 + $0x62] sm:$0xff]
        %v2528 = vld [vmem:[%s2220 + $0x6a] sm:$0xff]
        %v2529 = vld [vmem:[%s2220 + $0x7a] sm:$0xff]
        %v2530 = vld [vmem:[%s2220 + $0x82] sm:$0xff]
        %v2531 = vld [vmem:[%s2220 + $0x92] sm:$0xff]
        %v2532 = vld [vmem:[%s2220 + $0x9a] sm:$0xff]
        %v2533 = vld [vmem:[%s2220 + $0xaa] sm:$0xff]
        %v2534 = vld [vmem:[%s2220 + $0xb2] sm:$0xff]
        %v2535 = vld [vmem:[%s1154] sm:$0xf]
        %v2537 = vsel %vm263, %v2519, 0
        %v2540 = vsel %vm263, %v2520, 0
        %v2543 = vsel %vm263, %v2521, 0
        %v2546 = vsel %vm263, %v2522, 0
        %v2549 = vsel %vm263, %v2523, 0
        %v2552 = vsel %vm263, %v2524, 0
        %v2555 = vsel %vm263, %v2525, 0
        %v2558 = vsel %vm263, %v2526, 0
        %v2561 = vsel %vm263, %v2527, 0
        %v2564 = vsel %vm263, %v2528, 0
        %v2567 = vsel %vm263, %v2529, 0
        %v2570 = vsel %vm263, %v2530, 0
        %v2573 = vsel %vm263, %v2531, 0
        %v2576 = vsel %vm263, %v2532, 0
        %v2579 = vsel %vm263, %v2533, 0
        %v2582 = vsel %vm263, %v2534, 0
        %v2585 = vsel %vm503, %v2535, 0
        %2587 = vmatpush.msra.mxu0 0.0
        %2588 = vmatpush.msra.mxu0 0.0
        %2589 = vmatpush.msra.mxu0 0.0
        %2590 = vmatpush.msra.mxu0 0.0
        %2591 = vmatpush.msra.mxu0 0.0
        %2592 = vmatpush.msra.mxu0 0.0
        %2593 = vmatpush.msra.mxu0 0.0
        %2594 = vmatpush.msra.mxu0 0.0
        %2595 = vmatpush.msra.mxu0 0.0
        %2596 = vmatpush.msra.mxu0 0.0
        %2597 = vmatpush.msra.mxu0 0.0
        %2598 = vmatpush.msra.mxu0 0.0
        %2599 = vmatpush.msra.mxu0 0.0
        %2600 = vmatpush.msra.mxu0 0.0
        %2601 = vmatpush.msra.mxu0 0.0
        %2602 = vmatpush.msra.mxu0 %v2585
        %2603 = vmatmul.f32.gmra.mxu0 %v2537
        %v2604 = vpop.f32.mrf.mxu0
        %v2605 = vadd.f32 0.0, %v2604
        %2606 = vmatmul.f32.gmra.mxu0 %v2540
        %v2607 = vpop.f32.mrf.mxu0
        %v2608 = vadd.f32 0.0, %v2607
        %2609 = vmatmul.f32.gmra.mxu0 %v2543
        %v2610 = vpop.f32.mrf.mxu0
        %v2611 = vadd.f32 0.0, %v2610
        %2612 = vmatmul.f32.gmra.mxu0 %v2546
        %v2613 = vpop.f32.mrf.mxu0
        %v2614 = vadd.f32 0.0, %v2613
        %2615 = vmatmul.f32.gmra.mxu0 %v2549
        %v2616 = vpop.f32.mrf.mxu0
        %v2617 = vadd.f32 0.0, %v2616
        %2618 = vmatmul.f32.gmra.mxu0 %v2552
        %v2619 = vpop.f32.mrf.mxu0
        %v2620 = vadd.f32 0.0, %v2619
        %2621 = vmatmul.f32.gmra.mxu0 %v2555
        %v2622 = vpop.f32.mrf.mxu0
        %v2623 = vadd.f32 0.0, %v2622
        %2624 = vmatmul.f32.gmra.mxu0 %v2558
        %v2625 = vpop.f32.mrf.mxu0
        %v2626 = vadd.f32 0.0, %v2625
        %2627 = vmatmul.f32.gmra.mxu0 %v2561
        %v2628 = vpop.f32.mrf.mxu0
        %v2629 = vadd.f32 0.0, %v2628
        %2630 = vmatmul.f32.gmra.mxu0 %v2564
        %v2631 = vpop.f32.mrf.mxu0
        %v2632 = vadd.f32 0.0, %v2631
        %2633 = vmatmul.f32.gmra.mxu0 %v2567
        %v2634 = vpop.f32.mrf.mxu0
        %v2635 = vadd.f32 0.0, %v2634
        %2636 = vmatmul.f32.gmra.mxu0 %v2570
        %v2637 = vpop.f32.mrf.mxu0
        %v2638 = vadd.f32 0.0, %v2637
        %2639 = vmatmul.f32.gmra.mxu0 %v2573
        %v2640 = vpop.f32.mrf.mxu0
        %v2641 = vadd.f32 0.0, %v2640
        %2642 = vmatmul.f32.gmra.mxu0 %v2576
        %v2643 = vpop.f32.mrf.mxu0
        %v2644 = vadd.f32 0.0, %v2643
        %2645 = vmatmul.f32.gmra.mxu0 %v2579
        %v2646 = vpop.f32.mrf.mxu0
        %v2647 = vadd.f32 0.0, %v2646
        %2648 = vmatmul.f32.gmra.mxu0 %v2582
        %v2649 = vpop.f32.mrf.mxu0
        %v2650 = vadd.f32 0.0, %v2649
        %2651 = vdwg.mxu0
        %v2652 = vadd.f32 %v2503, %v2605
        %v2653 = vadd.f32 %v2504, %v2608
        %v2654 = vadd.f32 %v2505, %v2611
        %v2655 = vadd.f32 %v2506, %v2614
        %v2656 = vadd.f32 %v2507, %v2617
        %v2657 = vadd.f32 %v2508, %v2620
        %v2658 = vadd.f32 %v2509, %v2623
        %v2659 = vadd.f32 %v2510, %v2626
        %v2660 = vadd.f32 %v2511, %v2629
        %v2661 = vadd.f32 %v2512, %v2632
        %v2662 = vadd.f32 %v2513, %v2635
        %v2663 = vadd.f32 %v2514, %v2638
        %v2664 = vadd.f32 %v2515, %v2641
        %v2665 = vadd.f32 %v2516, %v2644
        %v2666 = vadd.f32 %v2517, %v2647
        %v2667 = vadd.f32 %v2518, %v2650
        %s2668 = scalar_lea.vmem [#allocation2], 240
        %v2669 = vld [vmem:[%s2668] sm:$0xff]
        %v2670 = vld [vmem:[%s2668 + $0x8] sm:$0xff]
        %v2671 = vld [vmem:[%s2668 + $0x18] sm:$0xff]
        %v2672 = vld [vmem:[%s2668 + $0x20] sm:$0xff]
        %v2673 = vld [vmem:[%s2668 + $0x30] sm:$0xff]
        %v2674 = vld [vmem:[%s2668 + $0x38] sm:$0xff]
        %v2675 = vld [vmem:[%s2668 + $0x48] sm:$0xff]
        %v2676 = vld [vmem:[%s2668 + $0x50] sm:$0xff]
        %v2677 = vld [vmem:[%s2668 + $0x60] sm:$0xff]
        %v2678 = vld [vmem:[%s2668 + $0x68] sm:$0xff]
        %v2679 = vld [vmem:[%s2668 + $0x78] sm:$0xff]
        %v2680 = vld [vmem:[%s2668 + $0x80] sm:$0xff]
        %v2681 = vld [vmem:[%s2668 + $0x90] sm:$0xff]
        %v2682 = vld [vmem:[%s2668 + $0x98] sm:$0xff]
        %v2683 = vld [vmem:[%s2668 + $0xa8] sm:$0xff]
        %v2684 = vld [vmem:[%s2668 + $0xb0] sm:$0xff]
        %v2685 = vld [vmem:[%s1305] sm:$0xf]
        %v2687 = vsel %vm263, %v2669, 0
        %v2690 = vsel %vm263, %v2670, 0
        %v2693 = vsel %vm263, %v2671, 0
        %v2696 = vsel %vm263, %v2672, 0
        %v2699 = vsel %vm263, %v2673, 0
        %v2702 = vsel %vm263, %v2674, 0
        %v2705 = vsel %vm263, %v2675, 0
        %v2708 = vsel %vm263, %v2676, 0
        %v2711 = vsel %vm263, %v2677, 0
        %v2714 = vsel %vm263, %v2678, 0
        %v2717 = vsel %vm263, %v2679, 0
        %v2720 = vsel %vm263, %v2680, 0
        %v2723 = vsel %vm263, %v2681, 0
        %v2726 = vsel %vm263, %v2682, 0
        %v2729 = vsel %vm263, %v2683, 0
        %v2732 = vsel %vm263, %v2684, 0
        %v2735 = vsel %vm503, %v2685, 0
        %2737 = vmatpush.msra.mxu0 0.0
        %2738 = vmatpush.msra.mxu0 0.0
        %2739 = vmatpush.msra.mxu0 0.0
        %2740 = vmatpush.msra.mxu0 0.0
        %2741 = vmatpush.msra.mxu0 0.0
        %2742 = vmatpush.msra.mxu0 0.0
        %2743 = vmatpush.msra.mxu0 0.0
        %2744 = vmatpush.msra.mxu0 0.0
        %2745 = vmatpush.msra.mxu0 0.0
        %2746 = vmatpush.msra.mxu0 0.0
        %2747 = vmatpush.msra.mxu0 0.0
        %2748 = vmatpush.msra.mxu0 0.0
        %2749 = vmatpush.msra.mxu0 0.0
        %2750 = vmatpush.msra.mxu0 0.0
        %2751 = vmatpush.msra.mxu0 0.0
        %2752 = vmatpush.msra.mxu0 %v2735
        %2753 = vmatmul.f32.gmra.mxu0 %v2687
        %v2754 = vpop.f32.mrf.mxu0
        %v2755 = vadd.f32 0.0, %v2754
        %2756 = vmatmul.f32.gmra.mxu0 %v2690
        %v2757 = vpop.f32.mrf.mxu0
        %v2758 = vadd.f32 0.0, %v2757
        %2759 = vmatmul.f32.gmra.mxu0 %v2693
        %v2760 = vpop.f32.mrf.mxu0
        %v2761 = vadd.f32 0.0, %v2760
        %2762 = vmatmul.f32.gmra.mxu0 %v2696
        %v2763 = vpop.f32.mrf.mxu0
        %v2764 = vadd.f32 0.0, %v2763
        %2765 = vmatmul.f32.gmra.mxu0 %v2699
        %v2766 = vpop.f32.mrf.mxu0
        %v2767 = vadd.f32 0.0, %v2766
        %2768 = vmatmul.f32.gmra.mxu0 %v2702
        %v2769 = vpop.f32.mrf.mxu0
        %v2770 = vadd.f32 0.0, %v2769
        %2771 = vmatmul.f32.gmra.mxu0 %v2705
        %v2772 = vpop.f32.mrf.mxu0
        %v2773 = vadd.f32 0.0, %v2772
        %2774 = vmatmul.f32.gmra.mxu0 %v2708
        %v2775 = vpop.f32.mrf.mxu0
        %v2776 = vadd.f32 0.0, %v2775
        %2777 = vmatmul.f32.gmra.mxu0 %v2711
        %v2778 = vpop.f32.mrf.mxu0
        %v2779 = vadd.f32 0.0, %v2778
        %2780 = vmatmul.f32.gmra.mxu0 %v2714
        %v2781 = vpop.f32.mrf.mxu0
        %v2782 = vadd.f32 0.0, %v2781
        %2783 = vmatmul.f32.gmra.mxu0 %v2717
        %v2784 = vpop.f32.mrf.mxu0
        %v2785 = vadd.f32 0.0, %v2784
        %2786 = vmatmul.f32.gmra.mxu0 %v2720
        %v2787 = vpop.f32.mrf.mxu0
        %v2788 = vadd.f32 0.0, %v2787
        %2789 = vmatmul.f32.gmra.mxu0 %v2723
        %v2790 = vpop.f32.mrf.mxu0
        %v2791 = vadd.f32 0.0, %v2790
        %2792 = vmatmul.f32.gmra.mxu0 %v2726
        %v2793 = vpop.f32.mrf.mxu0
        %v2794 = vadd.f32 0.0, %v2793
        %2795 = vmatmul.f32.gmra.mxu0 %v2729
        %v2796 = vpop.f32.mrf.mxu0
        %v2797 = vadd.f32 0.0, %v2796
        %2798 = vmatmul.f32.gmra.mxu0 %v2732
        %v2799 = vpop.f32.mrf.mxu0
        %v2800 = vadd.f32 0.0, %v2799
        %2801 = vdwg.mxu0
        %v2802 = vadd.f32 %v2652, %v2755
        %v2803 = vadd.f32 %v2653, %v2758
        %v2804 = vadd.f32 %v2654, %v2761
        %v2805 = vadd.f32 %v2655, %v2764
        %v2806 = vadd.f32 %v2656, %v2767
        %v2807 = vadd.f32 %v2657, %v2770
        %v2808 = vadd.f32 %v2658, %v2773
        %v2809 = vadd.f32 %v2659, %v2776
        %v2810 = vadd.f32 %v2660, %v2779
        %v2811 = vadd.f32 %v2661, %v2782
        %v2812 = vadd.f32 %v2662, %v2785
        %v2813 = vadd.f32 %v2663, %v2788
        %v2814 = vadd.f32 %v2664, %v2791
        %v2815 = vadd.f32 %v2665, %v2794
        %v2816 = vadd.f32 %v2666, %v2797
        %v2817 = vadd.f32 %v2667, %v2800
        %v2818 = vld [vmem:[%s2668 + $0x1] sm:$0xff]
        %v2819 = vld [vmem:[%s2668 + $0x9] sm:$0xff]
        %v2820 = vld [vmem:[%s2668 + $0x19] sm:$0xff]
        %v2821 = vld [vmem:[%s2668 + $0x21] sm:$0xff]
        %v2822 = vld [vmem:[%s2668 + $0x31] sm:$0xff]
        %v2823 = vld [vmem:[%s2668 + $0x39] sm:$0xff]
        %v2824 = vld [vmem:[%s2668 + $0x49] sm:$0xff]
        %v2825 = vld [vmem:[%s2668 + $0x51] sm:$0xff]
        %v2826 = vld [vmem:[%s2668 + $0x61] sm:$0xff]
        %v2827 = vld [vmem:[%s2668 + $0x69] sm:$0xff]
        %v2828 = vld [vmem:[%s2668 + $0x79] sm:$0xff]
        %v2829 = vld [vmem:[%s2668 + $0x81] sm:$0xff]
        %v2830 = vld [vmem:[%s2668 + $0x91] sm:$0xff]
        %v2831 = vld [vmem:[%s2668 + $0x99] sm:$0xff]
        %v2832 = vld [vmem:[%s2668 + $0xa9] sm:$0xff]
        %v2833 = vld [vmem:[%s2668 + $0xb1] sm:$0xff]
        %v2834 = vld [vmem:[%s1455] sm:$0xf]
        %v2836 = vsel %vm263, %v2818, 0
        %v2839 = vsel %vm263, %v2819, 0
        %v2842 = vsel %vm263, %v2820, 0
        %v2845 = vsel %vm263, %v2821, 0
        %v2848 = vsel %vm263, %v2822, 0
        %v2851 = vsel %vm263, %v2823, 0
        %v2854 = vsel %vm263, %v2824, 0
        %v2857 = vsel %vm263, %v2825, 0
        %v2860 = vsel %vm263, %v2826, 0
        %v2863 = vsel %vm263, %v2827, 0
        %v2866 = vsel %vm263, %v2828, 0
        %v2869 = vsel %vm263, %v2829, 0
        %v2872 = vsel %vm263, %v2830, 0
        %v2875 = vsel %vm263, %v2831, 0
        %v2878 = vsel %vm263, %v2832, 0
        %v2881 = vsel %vm263, %v2833, 0
        %v2884 = vsel %vm503, %v2834, 0
        %2886 = vmatpush.msra.mxu0 0.0
        %2887 = vmatpush.msra.mxu0 0.0
        %2888 = vmatpush.msra.mxu0 0.0
        %2889 = vmatpush.msra.mxu0 0.0
        %2890 = vmatpush.msra.mxu0 0.0
        %2891 = vmatpush.msra.mxu0 0.0
        %2892 = vmatpush.msra.mxu0 0.0
        %2893 = vmatpush.msra.mxu0 0.0
        %2894 = vmatpush.msra.mxu0 0.0
        %2895 = vmatpush.msra.mxu0 0.0
        %2896 = vmatpush.msra.mxu0 0.0
        %2897 = vmatpush.msra.mxu0 0.0
        %2898 = vmatpush.msra.mxu0 0.0
        %2899 = vmatpush.msra.mxu0 0.0
        %2900 = vmatpush.msra.mxu0 0.0
        %2901 = vmatpush.msra.mxu0 %v2884
        %2902 = vmatmul.f32.gmra.mxu0 %v2836
        %v2903 = vpop.f32.mrf.mxu0
        %v2904 = vadd.f32 0.0, %v2903
        %2905 = vmatmul.f32.gmra.mxu0 %v2839
        %v2906 = vpop.f32.mrf.mxu0
        %v2907 = vadd.f32 0.0, %v2906
        %2908 = vmatmul.f32.gmra.mxu0 %v2842
        %v2909 = vpop.f32.mrf.mxu0
        %v2910 = vadd.f32 0.0, %v2909
        %2911 = vmatmul.f32.gmra.mxu0 %v2845
        %v2912 = vpop.f32.mrf.mxu0
        %v2913 = vadd.f32 0.0, %v2912
        %2914 = vmatmul.f32.gmra.mxu0 %v2848
        %v2915 = vpop.f32.mrf.mxu0
        %v2916 = vadd.f32 0.0, %v2915
        %2917 = vmatmul.f32.gmra.mxu0 %v2851
        %v2918 = vpop.f32.mrf.mxu0
        %v2919 = vadd.f32 0.0, %v2918
        %2920 = vmatmul.f32.gmra.mxu0 %v2854
        %v2921 = vpop.f32.mrf.mxu0
        %v2922 = vadd.f32 0.0, %v2921
        %2923 = vmatmul.f32.gmra.mxu0 %v2857
        %v2924 = vpop.f32.mrf.mxu0
        %v2925 = vadd.f32 0.0, %v2924
        %2926 = vmatmul.f32.gmra.mxu0 %v2860
        %v2927 = vpop.f32.mrf.mxu0
        %v2928 = vadd.f32 0.0, %v2927
        %2929 = vmatmul.f32.gmra.mxu0 %v2863
        %v2930 = vpop.f32.mrf.mxu0
        %v2931 = vadd.f32 0.0, %v2930
        %2932 = vmatmul.f32.gmra.mxu0 %v2866
        %v2933 = vpop.f32.mrf.mxu0
        %v2934 = vadd.f32 0.0, %v2933
        %2935 = vmatmul.f32.gmra.mxu0 %v2869
        %v2936 = vpop.f32.mrf.mxu0
        %v2937 = vadd.f32 0.0, %v2936
        %2938 = vmatmul.f32.gmra.mxu0 %v2872
        %v2939 = vpop.f32.mrf.mxu0
        %v2940 = vadd.f32 0.0, %v2939
        %2941 = vmatmul.f32.gmra.mxu0 %v2875
        %v2942 = vpop.f32.mrf.mxu0
        %v2943 = vadd.f32 0.0, %v2942
        %2944 = vmatmul.f32.gmra.mxu0 %v2878
        %v2945 = vpop.f32.mrf.mxu0
        %v2946 = vadd.f32 0.0, %v2945
        %2947 = vmatmul.f32.gmra.mxu0 %v2881
        %v2948 = vpop.f32.mrf.mxu0
        %v2949 = vadd.f32 0.0, %v2948
        %2950 = vdwg.mxu0
        %v2951 = vadd.f32 %v2802, %v2904
        %v2952 = vadd.f32 %v2803, %v2907
        %v2953 = vadd.f32 %v2804, %v2910
        %v2954 = vadd.f32 %v2805, %v2913
        %v2955 = vadd.f32 %v2806, %v2916
        %v2956 = vadd.f32 %v2807, %v2919
        %v2957 = vadd.f32 %v2808, %v2922
        %v2958 = vadd.f32 %v2809, %v2925
        %v2959 = vadd.f32 %v2810, %v2928
        %v2960 = vadd.f32 %v2811, %v2931
        %v2961 = vadd.f32 %v2812, %v2934
        %v2962 = vadd.f32 %v2813, %v2937
        %v2963 = vadd.f32 %v2814, %v2940
        %v2964 = vadd.f32 %v2815, %v2943
        %v2965 = vadd.f32 %v2816, %v2946
        %v2966 = vadd.f32 %v2817, %v2949
        %v2967 = vld [vmem:[%s2668 + $0x2] sm:$0xff]
        %v2968 = vld [vmem:[%s2668 + $0xa] sm:$0xff]
        %v2969 = vld [vmem:[%s2668 + $0x1a] sm:$0xff]
        %v2970 = vld [vmem:[%s2668 + $0x22] sm:$0xff]
        %v2971 = vld [vmem:[%s2668 + $0x32] sm:$0xff]
        %v2972 = vld [vmem:[%s2668 + $0x3a] sm:$0xff]
        %v2973 = vld [vmem:[%s2668 + $0x4a] sm:$0xff]
        %v2974 = vld [vmem:[%s2668 + $0x52] sm:$0xff]
        %v2975 = vld [vmem:[%s2668 + $0x62] sm:$0xff]
        %v2976 = vld [vmem:[%s2668 + $0x6a] sm:$0xff]
        %v2977 = vld [vmem:[%s2668 + $0x7a] sm:$0xff]
        %v2978 = vld [vmem:[%s2668 + $0x82] sm:$0xff]
        %v2979 = vld [vmem:[%s2668 + $0x92] sm:$0xff]
        %v2980 = vld [vmem:[%s2668 + $0x9a] sm:$0xff]
        %v2981 = vld [vmem:[%s2668 + $0xaa] sm:$0xff]
        %v2982 = vld [vmem:[%s2668 + $0xb2] sm:$0xff]
        %v2983 = vld [vmem:[%s1605] sm:$0xf]
        %v2985 = vsel %vm263, %v2967, 0
        %v2988 = vsel %vm263, %v2968, 0
        %v2991 = vsel %vm263, %v2969, 0
        %v2994 = vsel %vm263, %v2970, 0
        %v2997 = vsel %vm263, %v2971, 0
        %v3000 = vsel %vm263, %v2972, 0
        %v3003 = vsel %vm263, %v2973, 0
        %v3006 = vsel %vm263, %v2974, 0
        %v3009 = vsel %vm263, %v2975, 0
        %v3012 = vsel %vm263, %v2976, 0
        %v3015 = vsel %vm263, %v2977, 0
        %v3018 = vsel %vm263, %v2978, 0
        %v3021 = vsel %vm263, %v2979, 0
        %v3024 = vsel %vm263, %v2980, 0
        %v3027 = vsel %vm263, %v2981, 0
        %v3030 = vsel %vm263, %v2982, 0
        %v3033 = vsel %vm503, %v2983, 0
        %3035 = vmatpush.msra.mxu0 0.0
        %3036 = vmatpush.msra.mxu0 0.0
        %3037 = vmatpush.msra.mxu0 0.0
        %3038 = vmatpush.msra.mxu0 0.0
        %3039 = vmatpush.msra.mxu0 0.0
        %3040 = vmatpush.msra.mxu0 0.0
        %3041 = vmatpush.msra.mxu0 0.0
        %3042 = vmatpush.msra.mxu0 0.0
        %3043 = vmatpush.msra.mxu0 0.0
        %3044 = vmatpush.msra.mxu0 0.0
        %3045 = vmatpush.msra.mxu0 0.0
        %3046 = vmatpush.msra.mxu0 0.0
        %3047 = vmatpush.msra.mxu0 0.0
        %3048 = vmatpush.msra.mxu0 0.0
        %3049 = vmatpush.msra.mxu0 0.0
        %3050 = vmatpush.msra.mxu0 %v3033
        %3051 = vmatmul.f32.gmra.mxu0 %v2985
        %v3052 = vpop.f32.mrf.mxu0
        %v3053 = vadd.f32 0.0, %v3052
        %3054 = vmatmul.f32.gmra.mxu0 %v2988
        %v3055 = vpop.f32.mrf.mxu0
        %v3056 = vadd.f32 0.0, %v3055
        %3057 = vmatmul.f32.gmra.mxu0 %v2991
        %v3058 = vpop.f32.mrf.mxu0
        %v3059 = vadd.f32 0.0, %v3058
        %3060 = vmatmul.f32.gmra.mxu0 %v2994
        %v3061 = vpop.f32.mrf.mxu0
        %v3062 = vadd.f32 0.0, %v3061
        %3063 = vmatmul.f32.gmra.mxu0 %v2997
        %v3064 = vpop.f32.mrf.mxu0
        %v3065 = vadd.f32 0.0, %v3064
        %3066 = vmatmul.f32.gmra.mxu0 %v3000
        %v3067 = vpop.f32.mrf.mxu0
        %v3068 = vadd.f32 0.0, %v3067
        %3069 = vmatmul.f32.gmra.mxu0 %v3003
        %v3070 = vpop.f32.mrf.mxu0
        %v3071 = vadd.f32 0.0, %v3070
        %3072 = vmatmul.f32.gmra.mxu0 %v3006
        %v3073 = vpop.f32.mrf.mxu0
        %v3074 = vadd.f32 0.0, %v3073
        %3075 = vmatmul.f32.gmra.mxu0 %v3009
        %v3076 = vpop.f32.mrf.mxu0
        %v3077 = vadd.f32 0.0, %v3076
        %3078 = vmatmul.f32.gmra.mxu0 %v3012
        %v3079 = vpop.f32.mrf.mxu0
        %v3080 = vadd.f32 0.0, %v3079
        %3081 = vmatmul.f32.gmra.mxu0 %v3015
        %v3082 = vpop.f32.mrf.mxu0
        %v3083 = vadd.f32 0.0, %v3082
        %3084 = vmatmul.f32.gmra.mxu0 %v3018
        %v3085 = vpop.f32.mrf.mxu0
        %v3086 = vadd.f32 0.0, %v3085
        %3087 = vmatmul.f32.gmra.mxu0 %v3021
        %v3088 = vpop.f32.mrf.mxu0
        %v3089 = vadd.f32 0.0, %v3088
        %3090 = vmatmul.f32.gmra.mxu0 %v3024
        %v3091 = vpop.f32.mrf.mxu0
        %v3092 = vadd.f32 0.0, %v3091
        %3093 = vmatmul.f32.gmra.mxu0 %v3027
        %v3094 = vpop.f32.mrf.mxu0
        %v3095 = vadd.f32 0.0, %v3094
        %3096 = vmatmul.f32.gmra.mxu0 %v3030
        %v3097 = vpop.f32.mrf.mxu0
        %v3098 = vadd.f32 0.0, %v3097
        %3099 = vdwg.mxu0
        %v3100 = vadd.f32 %v2951, %v3053
        %v3101 = vadd.f32 %v2952, %v3056
        %v3102 = vadd.f32 %v2953, %v3059
        %v3103 = vadd.f32 %v2954, %v3062
        %v3104 = vadd.f32 %v2955, %v3065
        %v3105 = vadd.f32 %v2956, %v3068
        %v3106 = vadd.f32 %v2957, %v3071
        %v3107 = vadd.f32 %v2958, %v3074
        %v3108 = vadd.f32 %v2959, %v3077
        %v3109 = vadd.f32 %v2960, %v3080
        %v3110 = vadd.f32 %v2961, %v3083
        %v3111 = vadd.f32 %v2962, %v3086
        %v3112 = vadd.f32 %v2963, %v3089
        %v3113 = vadd.f32 %v2964, %v3092
        %v3114 = vadd.f32 %v2965, %v3095
        %v3115 = vadd.f32 %v2966, %v3098
        %vm3116 = vcmp.ge.f32.partialorder %v3100, 0.0
        %vm3117 = vcmp.ge.f32.partialorder %v3101, 0.0
        %vm3118 = vcmp.ge.f32.partialorder %v3102, 0.0
        %vm3119 = vcmp.ge.f32.partialorder %v3103, 0.0
        %vm3120 = vcmp.ge.f32.partialorder %v3104, 0.0
        %vm3121 = vcmp.ge.f32.partialorder %v3105, 0.0
        %vm3122 = vcmp.ge.f32.partialorder %v3106, 0.0
        %vm3123 = vcmp.ge.f32.partialorder %v3107, 0.0
        %vm3124 = vcmp.ge.f32.partialorder %v3108, 0.0
        %vm3125 = vcmp.ge.f32.partialorder %v3109, 0.0
        %vm3126 = vcmp.ge.f32.partialorder %v3110, 0.0
        %vm3127 = vcmp.ge.f32.partialorder %v3111, 0.0
        %vm3128 = vcmp.ge.f32.partialorder %v3112, 0.0
        %vm3129 = vcmp.ge.f32.partialorder %v3113, 0.0
        %vm3130 = vcmp.ge.f32.partialorder %v3114, 0.0
        %vm3131 = vcmp.ge.f32.partialorder %v3115, 0.0
        %v3132 = vmul.f32 %v3100, 0.01
        %v3133 = vmul.f32 %v3101, 0.01
        %v3134 = vmul.f32 %v3102, 0.01
        %v3135 = vmul.f32 %v3103, 0.01
        %v3136 = vmul.f32 %v3104, 0.01
        %v3137 = vmul.f32 %v3105, 0.01
        %v3138 = vmul.f32 %v3106, 0.01
        %v3139 = vmul.f32 %v3107, 0.01
        %v3140 = vmul.f32 %v3108, 0.01
        %v3141 = vmul.f32 %v3109, 0.01
        %v3142 = vmul.f32 %v3110, 0.01
        %v3143 = vmul.f32 %v3111, 0.01
        %v3144 = vmul.f32 %v3112, 0.01
        %v3145 = vmul.f32 %v3113, 0.01
        %v3146 = vmul.f32 %v3114, 0.01
        %v3147 = vmul.f32 %v3115, 0.01
        %v3148 = vsel %vm3116, %v3100, %v3132
        %v3149 = vsel %vm3117, %v3101, %v3133
        %v3150 = vsel %vm3118, %v3102, %v3134
        %v3151 = vsel %vm3119, %v3103, %v3135
        %v3152 = vsel %vm3120, %v3104, %v3136
        %v3153 = vsel %vm3121, %v3105, %v3137
        %v3154 = vsel %vm3122, %v3106, %v3138
        %v3155 = vsel %vm3123, %v3107, %v3139
        %v3156 = vsel %vm3124, %v3108, %v3140
        %v3157 = vsel %vm3125, %v3109, %v3141
        %v3158 = vsel %vm3126, %v3110, %v3142
        %v3159 = vsel %vm3127, %v3111, %v3143
        %v3160 = vsel %vm3128, %v3112, %v3144
        %v3161 = vsel %vm3129, %v3113, %v3145
        %v3162 = vsel %vm3130, %v3114, %v3146
        %v3163 = vsel %vm3131, %v3115, %v3147
        %s3164 = scalar_lea.vmem [#allocation3], 216
        %3165 = vst.msk [vmem:[%s3164 + $0x1] sm:$0xff] %vm374, %v3148
        %3166 = vst.msk [vmem:[%s3164 + $0x9] sm:$0xff] %vm374, %v3149
        %3167 = vst.msk [vmem:[%s3164 + $0x19] sm:$0xff] %vm374, %v3150
        %3168 = vst.msk [vmem:[%s3164 + $0x21] sm:$0xff] %vm374, %v3151
        %3169 = vst.msk [vmem:[%s3164 + $0x31] sm:$0xff] %vm374, %v3152
        %3170 = vst.msk [vmem:[%s3164 + $0x39] sm:$0xff] %vm374, %v3153
        %3171 = vst.msk [vmem:[%s3164 + $0x49] sm:$0xff] %vm374, %v3154
        %3172 = vst.msk [vmem:[%s3164 + $0x51] sm:$0xff] %vm374, %v3155
        %3173 = vst.msk [vmem:[%s3164 + $0x61] sm:$0xff] %vm374, %v3156
        %3174 = vst.msk [vmem:[%s3164 + $0x69] sm:$0xff] %vm374, %v3157
        %3175 = vst.msk [vmem:[%s3164 + $0x79] sm:$0xff] %vm374, %v3158
        %3176 = vst.msk [vmem:[%s3164 + $0x81] sm:$0xff] %vm374, %v3159
        %3177 = vst.msk [vmem:[%s3164 + $0x91] sm:$0xff] %vm374, %v3160
        %3178 = vst.msk [vmem:[%s3164 + $0x99] sm:$0xff] %vm374, %v3161
        %3179 = vst.msk [vmem:[%s3164 + $0xa9] sm:$0xff] %vm374, %v3162
        %3180 = vst.msk [vmem:[%s3164 + $0xb1] sm:$0xff] %vm374, %v3163
        %v3181 = vld [vmem:[#allocation3] sm:$0xff]
        %v3182 = vld [vmem:[#allocation3 + $0x8] sm:$0xff]
        %v3183 = vld [vmem:[#allocation3 + $0x18] sm:$0xff]
        %v3184 = vld [vmem:[#allocation3 + $0x20] sm:$0xff]
        %v3185 = vld [vmem:[#allocation3 + $0x30] sm:$0xff]
        %v3186 = vld [vmem:[#allocation3 + $0x38] sm:$0xff]
        %v3187 = vld [vmem:[#allocation3 + $0x48] sm:$0xff]
        %v3188 = vld [vmem:[#allocation3 + $0x50] sm:$0xff]
        %v3189 = vld [vmem:[#allocation3 + $0x60] sm:$0xff]
        %v3190 = vld [vmem:[#allocation3 + $0x68] sm:$0xff]
        %v3191 = vld [vmem:[#allocation3 + $0x78] sm:$0xff]
        %v3192 = vld [vmem:[#allocation3 + $0x80] sm:$0xff]
        %v3193 = vld [vmem:[#allocation3 + $0x90] sm:$0xff]
        %v3194 = vld [vmem:[#allocation3 + $0x98] sm:$0xff]
        %v3195 = vld [vmem:[#allocation3 + $0xa8] sm:$0xff]
        %v3196 = vld [vmem:[#allocation3 + $0xb0] sm:$0xff]
        %v3197 = vld [vmem:[%s2] sm:$0xff]
        %v3198 = vld [vmem:[#allocation3 + $0x1] sm:$0xff]
        %v3199 = vld [vmem:[#allocation3 + $0x9] sm:$0xff]
        %v3200 = vld [vmem:[#allocation3 + $0x19] sm:$0xff]
        %v3201 = vld [vmem:[#allocation3 + $0x21] sm:$0xff]
        %v3202 = vld [vmem:[#allocation3 + $0x31] sm:$0xff]
        %v3203 = vld [vmem:[#allocation3 + $0x39] sm:$0xff]
        %v3204 = vld [vmem:[#allocation3 + $0x49] sm:$0xff]
        %v3205 = vld [vmem:[#allocation3 + $0x51] sm:$0xff]
        %v3206 = vld [vmem:[#allocation3 + $0x61] sm:$0xff]
        %v3207 = vld [vmem:[#allocation3 + $0x69] sm:$0xff]
        %v3208 = vld [vmem:[#allocation3 + $0x79] sm:$0xff]
        %v3209 = vld [vmem:[#allocation3 + $0x81] sm:$0xff]
        %v3210 = vld [vmem:[#allocation3 + $0x91] sm:$0xff]
        %v3211 = vld [vmem:[#allocation3 + $0x99] sm:$0xff]
        %v3212 = vld [vmem:[#allocation3 + $0xa9] sm:$0xff]
        %v3213 = vld [vmem:[#allocation3 + $0xb1] sm:$0xff]
        %s3214 = scalar_lea.vmem %s2, 8
        %v3215 = vld [vmem:[%s3214] sm:$0xff]
        %v3217 = vsel %vm374, %v3198, 0
        %v3220 = vsel %vm374, %v3199, 0
        %v3223 = vsel %vm374, %v3200, 0
        %v3226 = vsel %vm374, %v3201, 0
        %v3229 = vsel %vm374, %v3202, 0
        %v3232 = vsel %vm374, %v3203, 0
        %v3235 = vsel %vm374, %v3204, 0
        %v3238 = vsel %vm374, %v3205, 0
        %v3241 = vsel %vm374, %v3206, 0
        %v3244 = vsel %vm374, %v3207, 0
        %v3247 = vsel %vm374, %v3208, 0
        %v3250 = vsel %vm374, %v3209, 0
        %v3253 = vsel %vm374, %v3210, 0
        %v3256 = vsel %vm374, %v3211, 0
        %v3259 = vsel %vm374, %v3212, 0
        %v3262 = vsel %vm374, %v3213, 0
        %3264 = vmatpush.msra.mxu0 0.0
        %3265 = vmatpush.msra.mxu0 0.0
        %3266 = vmatpush.msra.mxu0 0.0
        %3267 = vmatpush.msra.mxu0 0.0
        %3268 = vmatpush.msra.mxu0 0.0
        %3269 = vmatpush.msra.mxu0 0.0
        %3270 = vmatpush.msra.mxu0 0.0
        %3271 = vmatpush.msra.mxu0 0.0
        %3272 = vmatpush.msra.mxu0 0.0
        %3273 = vmatpush.msra.mxu0 0.0
        %3274 = vmatpush.msra.mxu0 0.0
        %3275 = vmatpush.msra.mxu0 0.0
        %3276 = vmatpush.msra.mxu0 0.0
        %3277 = vmatpush.msra.mxu0 0.0
        %3278 = vmatpush.msra.mxu0 0.0
        %3279 = vmatpush.msra.mxu0 %v3215
        %3280 = vmatmul.f32.gmra.mxu0 %v3217
        %v3281 = vpop.f32.mrf.mxu0
        %v3282 = vadd.f32 0.0, %v3281
        %3283 = vmatmul.f32.gmra.mxu0 %v3220
        %v3284 = vpop.f32.mrf.mxu0
        %v3285 = vadd.f32 0.0, %v3284
        %3286 = vmatmul.f32.gmra.mxu0 %v3223
        %v3287 = vpop.f32.mrf.mxu0
        %v3288 = vadd.f32 0.0, %v3287
        %3289 = vmatmul.f32.gmra.mxu0 %v3226
        %v3290 = vpop.f32.mrf.mxu0
        %v3291 = vadd.f32 0.0, %v3290
        %3292 = vmatmul.f32.gmra.mxu0 %v3229
        %v3293 = vpop.f32.mrf.mxu0
        %v3294 = vadd.f32 0.0, %v3293
        %3295 = vmatmul.f32.gmra.mxu0 %v3232
        %v3296 = vpop.f32.mrf.mxu0
        %v3297 = vadd.f32 0.0, %v3296
        %3298 = vmatmul.f32.gmra.mxu0 %v3235
        %v3299 = vpop.f32.mrf.mxu0
        %v3300 = vadd.f32 0.0, %v3299
        %3301 = vmatmul.f32.gmra.mxu0 %v3238
        %v3302 = vpop.f32.mrf.mxu0
        %v3303 = vadd.f32 0.0, %v3302
        %3304 = vmatmul.f32.gmra.mxu0 %v3241
        %v3305 = vpop.f32.mrf.mxu0
        %v3306 = vadd.f32 0.0, %v3305
        %3307 = vmatmul.f32.gmra.mxu0 %v3244
        %v3308 = vpop.f32.mrf.mxu0
        %v3309 = vadd.f32 0.0, %v3308
        %3310 = vmatmul.f32.gmra.mxu0 %v3247
        %v3311 = vpop.f32.mrf.mxu0
        %v3312 = vadd.f32 0.0, %v3311
        %3313 = vmatmul.f32.gmra.mxu0 %v3250
        %v3314 = vpop.f32.mrf.mxu0
        %v3315 = vadd.f32 0.0, %v3314
        %3316 = vmatmul.f32.gmra.mxu0 %v3253
        %v3317 = vpop.f32.mrf.mxu0
        %v3318 = vadd.f32 0.0, %v3317
        %3319 = vmatmul.f32.gmra.mxu0 %v3256
        %v3320 = vpop.f32.mrf.mxu0
        %v3321 = vadd.f32 0.0, %v3320
        %3322 = vmatmul.f32.gmra.mxu0 %v3259
        %v3323 = vpop.f32.mrf.mxu0
        %v3324 = vadd.f32 0.0, %v3323
        %3325 = vmatmul.f32.gmra.mxu0 %v3262
        %v3326 = vpop.f32.mrf.mxu0
        %v3327 = vadd.f32 0.0, %v3326
        %3328 = vdwg.mxu0
        %v3330 = vsel %vm374, %v3181, 0
        %v3333 = vsel %vm374, %v3182, 0
        %v3336 = vsel %vm374, %v3183, 0
        %v3339 = vsel %vm374, %v3184, 0
        %v3342 = vsel %vm374, %v3185, 0
        %v3345 = vsel %vm374, %v3186, 0
        %v3348 = vsel %vm374, %v3187, 0
        %v3351 = vsel %vm374, %v3188, 0
        %v3354 = vsel %vm374, %v3189, 0
        %v3357 = vsel %vm374, %v3190, 0
        %v3360 = vsel %vm374, %v3191, 0
        %v3363 = vsel %vm374, %v3192, 0
        %v3366 = vsel %vm374, %v3193, 0
        %v3369 = vsel %vm374, %v3194, 0
        %v3372 = vsel %vm374, %v3195, 0
        %v3375 = vsel %vm374, %v3196, 0
        %3377 = vmatpush.msra.mxu0 0.0
        %3378 = vmatpush.msra.mxu0 0.0
        %3379 = vmatpush.msra.mxu0 0.0
        %3380 = vmatpush.msra.mxu0 0.0
        %3381 = vmatpush.msra.mxu0 0.0
        %3382 = vmatpush.msra.mxu0 0.0
        %3383 = vmatpush.msra.mxu0 0.0
        %3384 = vmatpush.msra.mxu0 0.0
        %3385 = vmatpush.msra.mxu0 0.0
        %3386 = vmatpush.msra.mxu0 0.0
        %3387 = vmatpush.msra.mxu0 0.0
        %3388 = vmatpush.msra.mxu0 0.0
        %3389 = vmatpush.msra.mxu0 0.0
        %3390 = vmatpush.msra.mxu0 0.0
        %3391 = vmatpush.msra.mxu0 0.0
        %3392 = vmatpush.msra.mxu0 %v3197
        %3393 = vmatmul.f32.gmra.mxu0 %v3330
        %v3394 = vpop.f32.mrf.mxu0
        %v3395 = vadd.f32 %v3282, %v3394
        %3396 = vmatmul.f32.gmra.mxu0 %v3333
        %v3397 = vpop.f32.mrf.mxu0
        %v3398 = vadd.f32 %v3285, %v3397
        %3399 = vmatmul.f32.gmra.mxu0 %v3336
        %v3400 = vpop.f32.mrf.mxu0
        %v3401 = vadd.f32 %v3288, %v3400
        %3402 = vmatmul.f32.gmra.mxu0 %v3339
        %v3403 = vpop.f32.mrf.mxu0
        %v3404 = vadd.f32 %v3291, %v3403
        %3405 = vmatmul.f32.gmra.mxu0 %v3342
        %v3406 = vpop.f32.mrf.mxu0
        %v3407 = vadd.f32 %v3294, %v3406
        %3408 = vmatmul.f32.gmra.mxu0 %v3345
        %v3409 = vpop.f32.mrf.mxu0
        %v3410 = vadd.f32 %v3297, %v3409
        %3411 = vmatmul.f32.gmra.mxu0 %v3348
        %v3412 = vpop.f32.mrf.mxu0
        %v3413 = vadd.f32 %v3300, %v3412
        %3414 = vmatmul.f32.gmra.mxu0 %v3351
        %v3415 = vpop.f32.mrf.mxu0
        %v3416 = vadd.f32 %v3303, %v3415
        %3417 = vmatmul.f32.gmra.mxu0 %v3354
        %v3418 = vpop.f32.mrf.mxu0
        %v3419 = vadd.f32 %v3306, %v3418
        %3420 = vmatmul.f32.gmra.mxu0 %v3357
        %v3421 = vpop.f32.mrf.mxu0
        %v3422 = vadd.f32 %v3309, %v3421
        %3423 = vmatmul.f32.gmra.mxu0 %v3360
        %v3424 = vpop.f32.mrf.mxu0
        %v3425 = vadd.f32 %v3312, %v3424
        %3426 = vmatmul.f32.gmra.mxu0 %v3363
        %v3427 = vpop.f32.mrf.mxu0
        %v3428 = vadd.f32 %v3315, %v3427
        %3429 = vmatmul.f32.gmra.mxu0 %v3366
        %v3430 = vpop.f32.mrf.mxu0
        %v3431 = vadd.f32 %v3318, %v3430
        %3432 = vmatmul.f32.gmra.mxu0 %v3369
        %v3433 = vpop.f32.mrf.mxu0
        %v3434 = vadd.f32 %v3321, %v3433
        %3435 = vmatmul.f32.gmra.mxu0 %v3372
        %v3436 = vpop.f32.mrf.mxu0
        %v3437 = vadd.f32 %v3324, %v3436
        %3438 = vmatmul.f32.gmra.mxu0 %v3375
        %v3439 = vpop.f32.mrf.mxu0
        %v3440 = vadd.f32 %v3327, %v3439
        %3441 = vdwg.mxu0
        %v3442 = vld [vmem:[#allocation3 + $0x2] sm:$0xff]
        %v3443 = vld [vmem:[#allocation3 + $0xa] sm:$0xff]
        %v3444 = vld [vmem:[#allocation3 + $0x1a] sm:$0xff]
        %v3445 = vld [vmem:[#allocation3 + $0x22] sm:$0xff]
        %v3446 = vld [vmem:[#allocation3 + $0x32] sm:$0xff]
        %v3447 = vld [vmem:[#allocation3 + $0x3a] sm:$0xff]
        %v3448 = vld [vmem:[#allocation3 + $0x4a] sm:$0xff]
        %v3449 = vld [vmem:[#allocation3 + $0x52] sm:$0xff]
        %v3450 = vld [vmem:[#allocation3 + $0x62] sm:$0xff]
        %v3451 = vld [vmem:[#allocation3 + $0x6a] sm:$0xff]
        %v3452 = vld [vmem:[#allocation3 + $0x7a] sm:$0xff]
        %v3453 = vld [vmem:[#allocation3 + $0x82] sm:$0xff]
        %v3454 = vld [vmem:[#allocation3 + $0x92] sm:$0xff]
        %v3455 = vld [vmem:[#allocation3 + $0x9a] sm:$0xff]
        %v3456 = vld [vmem:[#allocation3 + $0xaa] sm:$0xff]
        %v3457 = vld [vmem:[#allocation3 + $0xb2] sm:$0xff]
        %s3458 = scalar_lea.vmem %s2, 16
        %v3459 = vld [vmem:[%s3458] sm:$0xff]
        %v3461 = vsel %vm374, %v3442, 0
        %v3464 = vsel %vm374, %v3443, 0
        %v3467 = vsel %vm374, %v3444, 0
        %v3470 = vsel %vm374, %v3445, 0
        %v3473 = vsel %vm374, %v3446, 0
        %v3476 = vsel %vm374, %v3447, 0
        %v3479 = vsel %vm374, %v3448, 0
        %v3482 = vsel %vm374, %v3449, 0
        %v3485 = vsel %vm374, %v3450, 0
        %v3488 = vsel %vm374, %v3451, 0
        %v3491 = vsel %vm374, %v3452, 0
        %v3494 = vsel %vm374, %v3453, 0
        %v3497 = vsel %vm374, %v3454, 0
        %v3500 = vsel %vm374, %v3455, 0
        %v3503 = vsel %vm374, %v3456, 0
        %v3506 = vsel %vm374, %v3457, 0
        %3508 = vmatpush.msra.mxu0 0.0
        %3509 = vmatpush.msra.mxu0 0.0
        %3510 = vmatpush.msra.mxu0 0.0
        %3511 = vmatpush.msra.mxu0 0.0
        %3512 = vmatpush.msra.mxu0 0.0
        %3513 = vmatpush.msra.mxu0 0.0
        %3514 = vmatpush.msra.mxu0 0.0
        %3515 = vmatpush.msra.mxu0 0.0
        %3516 = vmatpush.msra.mxu0 0.0
        %3517 = vmatpush.msra.mxu0 0.0
        %3518 = vmatpush.msra.mxu0 0.0
        %3519 = vmatpush.msra.mxu0 0.0
        %3520 = vmatpush.msra.mxu0 0.0
        %3521 = vmatpush.msra.mxu0 0.0
        %3522 = vmatpush.msra.mxu0 0.0
        %3523 = vmatpush.msra.mxu0 %v3459
        %3524 = vmatmul.f32.gmra.mxu0 %v3461
        %v3525 = vpop.f32.mrf.mxu0
        %v3526 = vadd.f32 0.0, %v3525
        %3527 = vmatmul.f32.gmra.mxu0 %v3464
        %v3528 = vpop.f32.mrf.mxu0
        %v3529 = vadd.f32 0.0, %v3528
        %3530 = vmatmul.f32.gmra.mxu0 %v3467
        %v3531 = vpop.f32.mrf.mxu0
        %v3532 = vadd.f32 0.0, %v3531
        %3533 = vmatmul.f32.gmra.mxu0 %v3470
        %v3534 = vpop.f32.mrf.mxu0
        %v3535 = vadd.f32 0.0, %v3534
        %3536 = vmatmul.f32.gmra.mxu0 %v3473
        %v3537 = vpop.f32.mrf.mxu0
        %v3538 = vadd.f32 0.0, %v3537
        %3539 = vmatmul.f32.gmra.mxu0 %v3476
        %v3540 = vpop.f32.mrf.mxu0
        %v3541 = vadd.f32 0.0, %v3540
        %3542 = vmatmul.f32.gmra.mxu0 %v3479
        %v3543 = vpop.f32.mrf.mxu0
        %v3544 = vadd.f32 0.0, %v3543
        %3545 = vmatmul.f32.gmra.mxu0 %v3482
        %v3546 = vpop.f32.mrf.mxu0
        %v3547 = vadd.f32 0.0, %v3546
        %3548 = vmatmul.f32.gmra.mxu0 %v3485
        %v3549 = vpop.f32.mrf.mxu0
        %v3550 = vadd.f32 0.0, %v3549
        %3551 = vmatmul.f32.gmra.mxu0 %v3488
        %v3552 = vpop.f32.mrf.mxu0
        %v3553 = vadd.f32 0.0, %v3552
        %3554 = vmatmul.f32.gmra.mxu0 %v3491
        %v3555 = vpop.f32.mrf.mxu0
        %v3556 = vadd.f32 0.0, %v3555
        %3557 = vmatmul.f32.gmra.mxu0 %v3494
        %v3558 = vpop.f32.mrf.mxu0
        %v3559 = vadd.f32 0.0, %v3558
        %3560 = vmatmul.f32.gmra.mxu0 %v3497
        %v3561 = vpop.f32.mrf.mxu0
        %v3562 = vadd.f32 0.0, %v3561
        %3563 = vmatmul.f32.gmra.mxu0 %v3500
        %v3564 = vpop.f32.mrf.mxu0
        %v3565 = vadd.f32 0.0, %v3564
        %3566 = vmatmul.f32.gmra.mxu0 %v3503
        %v3567 = vpop.f32.mrf.mxu0
        %v3568 = vadd.f32 0.0, %v3567
        %3569 = vmatmul.f32.gmra.mxu0 %v3506
        %v3570 = vpop.f32.mrf.mxu0
        %v3571 = vadd.f32 0.0, %v3570
        %3572 = vdwg.mxu0
        %v3573 = vadd.f32 %v3395, %v3526
        %v3574 = vadd.f32 %v3398, %v3529
        %v3575 = vadd.f32 %v3401, %v3532
        %v3576 = vadd.f32 %v3404, %v3535
        %v3577 = vadd.f32 %v3407, %v3538
        %v3578 = vadd.f32 %v3410, %v3541
        %v3579 = vadd.f32 %v3413, %v3544
        %v3580 = vadd.f32 %v3416, %v3547
        %v3581 = vadd.f32 %v3419, %v3550
        %v3582 = vadd.f32 %v3422, %v3553
        %v3583 = vadd.f32 %v3425, %v3556
        %v3584 = vadd.f32 %v3428, %v3559
        %v3585 = vadd.f32 %v3431, %v3562
        %v3586 = vadd.f32 %v3434, %v3565
        %v3587 = vadd.f32 %v3437, %v3568
        %v3588 = vadd.f32 %v3440, %v3571
        %v3589 = vld [vmem:[%s1787] sm:$0xff]
        %v3590 = vld [vmem:[%s1787 + $0x8] sm:$0xff]
        %v3591 = vld [vmem:[%s1787 + $0x18] sm:$0xff]
        %v3592 = vld [vmem:[%s1787 + $0x20] sm:$0xff]
        %v3593 = vld [vmem:[%s1787 + $0x30] sm:$0xff]
        %v3594 = vld [vmem:[%s1787 + $0x38] sm:$0xff]
        %v3595 = vld [vmem:[%s1787 + $0x48] sm:$0xff]
        %v3596 = vld [vmem:[%s1787 + $0x50] sm:$0xff]
        %v3597 = vld [vmem:[%s1787 + $0x60] sm:$0xff]
        %v3598 = vld [vmem:[%s1787 + $0x68] sm:$0xff]
        %v3599 = vld [vmem:[%s1787 + $0x78] sm:$0xff]
        %v3600 = vld [vmem:[%s1787 + $0x80] sm:$0xff]
        %v3601 = vld [vmem:[%s1787 + $0x90] sm:$0xff]
        %v3602 = vld [vmem:[%s1787 + $0x98] sm:$0xff]
        %v3603 = vld [vmem:[%s1787 + $0xa8] sm:$0xff]
        %v3604 = vld [vmem:[%s1787 + $0xb0] sm:$0xff]
        %s3605 = scalar_lea.vmem %s2, 24
        %v3606 = vld [vmem:[%s3605] sm:$0xff]
        %v3608 = vsel %vm374, %v3589, 0
        %v3611 = vsel %vm374, %v3590, 0
        %v3614 = vsel %vm374, %v3591, 0
        %v3617 = vsel %vm374, %v3592, 0
        %v3620 = vsel %vm374, %v3593, 0
        %v3623 = vsel %vm374, %v3594, 0
        %v3626 = vsel %vm374, %v3595, 0
        %v3629 = vsel %vm374, %v3596, 0
        %v3632 = vsel %vm374, %v3597, 0
        %v3635 = vsel %vm374, %v3598, 0
        %v3638 = vsel %vm374, %v3599, 0
        %v3641 = vsel %vm374, %v3600, 0
        %v3644 = vsel %vm374, %v3601, 0
        %v3647 = vsel %vm374, %v3602, 0
        %v3650 = vsel %vm374, %v3603, 0
        %v3653 = vsel %vm374, %v3604, 0
        %3655 = vmatpush.msra.mxu0 0.0
        %3656 = vmatpush.msra.mxu0 0.0
        %3657 = vmatpush.msra.mxu0 0.0
        %3658 = vmatpush.msra.mxu0 0.0
        %3659 = vmatpush.msra.mxu0 0.0
        %3660 = vmatpush.msra.mxu0 0.0
        %3661 = vmatpush.msra.mxu0 0.0
        %3662 = vmatpush.msra.mxu0 0.0
        %3663 = vmatpush.msra.mxu0 0.0
        %3664 = vmatpush.msra.mxu0 0.0
        %3665 = vmatpush.msra.mxu0 0.0
        %3666 = vmatpush.msra.mxu0 0.0
        %3667 = vmatpush.msra.mxu0 0.0
        %3668 = vmatpush.msra.mxu0 0.0
        %3669 = vmatpush.msra.mxu0 0.0
        %3670 = vmatpush.msra.mxu0 %v3606
        %3671 = vmatmul.f32.gmra.mxu0 %v3608
        %v3672 = vpop.f32.mrf.mxu0
        %v3673 = vadd.f32 0.0, %v3672
        %3674 = vmatmul.f32.gmra.mxu0 %v3611
        %v3675 = vpop.f32.mrf.mxu0
        %v3676 = vadd.f32 0.0, %v3675
        %3677 = vmatmul.f32.gmra.mxu0 %v3614
        %v3678 = vpop.f32.mrf.mxu0
        %v3679 = vadd.f32 0.0, %v3678
        %3680 = vmatmul.f32.gmra.mxu0 %v3617
        %v3681 = vpop.f32.mrf.mxu0
        %v3682 = vadd.f32 0.0, %v3681
        %3683 = vmatmul.f32.gmra.mxu0 %v3620
        %v3684 = vpop.f32.mrf.mxu0
        %v3685 = vadd.f32 0.0, %v3684
        %3686 = vmatmul.f32.gmra.mxu0 %v3623
        %v3687 = vpop.f32.mrf.mxu0
        %v3688 = vadd.f32 0.0, %v3687
        %3689 = vmatmul.f32.gmra.mxu0 %v3626
        %v3690 = vpop.f32.mrf.mxu0
        %v3691 = vadd.f32 0.0, %v3690
        %3692 = vmatmul.f32.gmra.mxu0 %v3629
        %v3693 = vpop.f32.mrf.mxu0
        %v3694 = vadd.f32 0.0, %v3693
        %3695 = vmatmul.f32.gmra.mxu0 %v3632
        %v3696 = vpop.f32.mrf.mxu0
        %v3697 = vadd.f32 0.0, %v3696
        %3698 = vmatmul.f32.gmra.mxu0 %v3635
        %v3699 = vpop.f32.mrf.mxu0
        %v3700 = vadd.f32 0.0, %v3699
        %3701 = vmatmul.f32.gmra.mxu0 %v3638
        %v3702 = vpop.f32.mrf.mxu0
        %v3703 = vadd.f32 0.0, %v3702
        %3704 = vmatmul.f32.gmra.mxu0 %v3641
        %v3705 = vpop.f32.mrf.mxu0
        %v3706 = vadd.f32 0.0, %v3705
        %3707 = vmatmul.f32.gmra.mxu0 %v3644
        %v3708 = vpop.f32.mrf.mxu0
        %v3709 = vadd.f32 0.0, %v3708
        %3710 = vmatmul.f32.gmra.mxu0 %v3647
        %v3711 = vpop.f32.mrf.mxu0
        %v3712 = vadd.f32 0.0, %v3711
        %3713 = vmatmul.f32.gmra.mxu0 %v3650
        %v3714 = vpop.f32.mrf.mxu0
        %v3715 = vadd.f32 0.0, %v3714
        %3716 = vmatmul.f32.gmra.mxu0 %v3653
        %v3717 = vpop.f32.mrf.mxu0
        %v3718 = vadd.f32 0.0, %v3717
        %3719 = vdwg.mxu0
        %v3720 = vadd.f32 %v3573, %v3673
        %v3721 = vadd.f32 %v3574, %v3676
        %v3722 = vadd.f32 %v3575, %v3679
        %v3723 = vadd.f32 %v3576, %v3682
        %v3724 = vadd.f32 %v3577, %v3685
        %v3725 = vadd.f32 %v3578, %v3688
        %v3726 = vadd.f32 %v3579, %v3691
        %v3727 = vadd.f32 %v3580, %v3694
        %v3728 = vadd.f32 %v3581, %v3697
        %v3729 = vadd.f32 %v3582, %v3700
        %v3730 = vadd.f32 %v3583, %v3703
        %v3731 = vadd.f32 %v3584, %v3706
        %v3732 = vadd.f32 %v3585, %v3709
        %v3733 = vadd.f32 %v3586, %v3712
        %v3734 = vadd.f32 %v3587, %v3715
        %v3735 = vadd.f32 %v3588, %v3718
        %v3736 = vld [vmem:[%s1787 + $0x1] sm:$0xff]
        %v3737 = vld [vmem:[%s1787 + $0x9] sm:$0xff]
        %v3738 = vld [vmem:[%s1787 + $0x19] sm:$0xff]
        %v3739 = vld [vmem:[%s1787 + $0x21] sm:$0xff]
        %v3740 = vld [vmem:[%s1787 + $0x31] sm:$0xff]
        %v3741 = vld [vmem:[%s1787 + $0x39] sm:$0xff]
        %v3742 = vld [vmem:[%s1787 + $0x49] sm:$0xff]
        %v3743 = vld [vmem:[%s1787 + $0x51] sm:$0xff]
        %v3744 = vld [vmem:[%s1787 + $0x61] sm:$0xff]
        %v3745 = vld [vmem:[%s1787 + $0x69] sm:$0xff]
        %v3746 = vld [vmem:[%s1787 + $0x79] sm:$0xff]
        %v3747 = vld [vmem:[%s1787 + $0x81] sm:$0xff]
        %v3748 = vld [vmem:[%s1787 + $0x91] sm:$0xff]
        %v3749 = vld [vmem:[%s1787 + $0x99] sm:$0xff]
        %v3750 = vld [vmem:[%s1787 + $0xa9] sm:$0xff]
        %v3751 = vld [vmem:[%s1787 + $0xb1] sm:$0xff]
        %s3752 = scalar_lea.vmem %s2, 32
        %v3753 = vld [vmem:[%s3752] sm:$0xff]
        %v3755 = vsel %vm374, %v3736, 0
        %v3758 = vsel %vm374, %v3737, 0
        %v3761 = vsel %vm374, %v3738, 0
        %v3764 = vsel %vm374, %v3739, 0
        %v3767 = vsel %vm374, %v3740, 0
        %v3770 = vsel %vm374, %v3741, 0
        %v3773 = vsel %vm374, %v3742, 0
        %v3776 = vsel %vm374, %v3743, 0
        %v3779 = vsel %vm374, %v3744, 0
        %v3782 = vsel %vm374, %v3745, 0
        %v3785 = vsel %vm374, %v3746, 0
        %v3788 = vsel %vm374, %v3747, 0
        %v3791 = vsel %vm374, %v3748, 0
        %v3794 = vsel %vm374, %v3749, 0
        %v3797 = vsel %vm374, %v3750, 0
        %v3800 = vsel %vm374, %v3751, 0
        %3802 = vmatpush.msra.mxu0 0.0
        %3803 = vmatpush.msra.mxu0 0.0
        %3804 = vmatpush.msra.mxu0 0.0
        %3805 = vmatpush.msra.mxu0 0.0
        %3806 = vmatpush.msra.mxu0 0.0
        %3807 = vmatpush.msra.mxu0 0.0
        %3808 = vmatpush.msra.mxu0 0.0
        %3809 = vmatpush.msra.mxu0 0.0
        %3810 = vmatpush.msra.mxu0 0.0
        %3811 = vmatpush.msra.mxu0 0.0
        %3812 = vmatpush.msra.mxu0 0.0
        %3813 = vmatpush.msra.mxu0 0.0
        %3814 = vmatpush.msra.mxu0 0.0
        %3815 = vmatpush.msra.mxu0 0.0
        %3816 = vmatpush.msra.mxu0 0.0
        %3817 = vmatpush.msra.mxu0 %v3753
        %3818 = vmatmul.f32.gmra.mxu0 %v3755
        %v3819 = vpop.f32.mrf.mxu0
        %v3820 = vadd.f32 0.0, %v3819
        %3821 = vmatmul.f32.gmra.mxu0 %v3758
        %v3822 = vpop.f32.mrf.mxu0
        %v3823 = vadd.f32 0.0, %v3822
        %3824 = vmatmul.f32.gmra.mxu0 %v3761
        %v3825 = vpop.f32.mrf.mxu0
        %v3826 = vadd.f32 0.0, %v3825
        %3827 = vmatmul.f32.gmra.mxu0 %v3764
        %v3828 = vpop.f32.mrf.mxu0
        %v3829 = vadd.f32 0.0, %v3828
        %3830 = vmatmul.f32.gmra.mxu0 %v3767
        %v3831 = vpop.f32.mrf.mxu0
        %v3832 = vadd.f32 0.0, %v3831
        %3833 = vmatmul.f32.gmra.mxu0 %v3770
        %v3834 = vpop.f32.mrf.mxu0
        %v3835 = vadd.f32 0.0, %v3834
        %3836 = vmatmul.f32.gmra.mxu0 %v3773
        %v3837 = vpop.f32.mrf.mxu0
        %v3838 = vadd.f32 0.0, %v3837
        %3839 = vmatmul.f32.gmra.mxu0 %v3776
        %v3840 = vpop.f32.mrf.mxu0
        %v3841 = vadd.f32 0.0, %v3840
        %3842 = vmatmul.f32.gmra.mxu0 %v3779
        %v3843 = vpop.f32.mrf.mxu0
        %v3844 = vadd.f32 0.0, %v3843
        %3845 = vmatmul.f32.gmra.mxu0 %v3782
        %v3846 = vpop.f32.mrf.mxu0
        %v3847 = vadd.f32 0.0, %v3846
        %3848 = vmatmul.f32.gmra.mxu0 %v3785
        %v3849 = vpop.f32.mrf.mxu0
        %v3850 = vadd.f32 0.0, %v3849
        %3851 = vmatmul.f32.gmra.mxu0 %v3788
        %v3852 = vpop.f32.mrf.mxu0
        %v3853 = vadd.f32 0.0, %v3852
        %3854 = vmatmul.f32.gmra.mxu0 %v3791
        %v3855 = vpop.f32.mrf.mxu0
        %v3856 = vadd.f32 0.0, %v3855
        %3857 = vmatmul.f32.gmra.mxu0 %v3794
        %v3858 = vpop.f32.mrf.mxu0
        %v3859 = vadd.f32 0.0, %v3858
        %3860 = vmatmul.f32.gmra.mxu0 %v3797
        %v3861 = vpop.f32.mrf.mxu0
        %v3862 = vadd.f32 0.0, %v3861
        %3863 = vmatmul.f32.gmra.mxu0 %v3800
        %v3864 = vpop.f32.mrf.mxu0
        %v3865 = vadd.f32 0.0, %v3864
        %3866 = vdwg.mxu0
        %v3867 = vadd.f32 %v3720, %v3820
        %v3868 = vadd.f32 %v3721, %v3823
        %v3869 = vadd.f32 %v3722, %v3826
        %v3870 = vadd.f32 %v3723, %v3829
        %v3871 = vadd.f32 %v3724, %v3832
        %v3872 = vadd.f32 %v3725, %v3835
        %v3873 = vadd.f32 %v3726, %v3838
        %v3874 = vadd.f32 %v3727, %v3841
        %v3875 = vadd.f32 %v3728, %v3844
        %v3876 = vadd.f32 %v3729, %v3847
        %v3877 = vadd.f32 %v3730, %v3850
        %v3878 = vadd.f32 %v3731, %v3853
        %v3879 = vadd.f32 %v3732, %v3856
        %v3880 = vadd.f32 %v3733, %v3859
        %v3881 = vadd.f32 %v3734, %v3862
        %v3882 = vadd.f32 %v3735, %v3865
        %v3883 = vld [vmem:[%s1787 + $0x2] sm:$0xff]
        %v3884 = vld [vmem:[%s1787 + $0xa] sm:$0xff]
        %v3885 = vld [vmem:[%s1787 + $0x1a] sm:$0xff]
        %v3886 = vld [vmem:[%s1787 + $0x22] sm:$0xff]
        %v3887 = vld [vmem:[%s1787 + $0x32] sm:$0xff]
        %v3888 = vld [vmem:[%s1787 + $0x3a] sm:$0xff]
        %v3889 = vld [vmem:[%s1787 + $0x4a] sm:$0xff]
        %v3890 = vld [vmem:[%s1787 + $0x52] sm:$0xff]
        %v3891 = vld [vmem:[%s1787 + $0x62] sm:$0xff]
        %v3892 = vld [vmem:[%s1787 + $0x6a] sm:$0xff]
        %v3893 = vld [vmem:[%s1787 + $0x7a] sm:$0xff]
        %v3894 = vld [vmem:[%s1787 + $0x82] sm:$0xff]
        %v3895 = vld [vmem:[%s1787 + $0x92] sm:$0xff]
        %v3896 = vld [vmem:[%s1787 + $0x9a] sm:$0xff]
        %v3897 = vld [vmem:[%s1787 + $0xaa] sm:$0xff]
        %v3898 = vld [vmem:[%s1787 + $0xb2] sm:$0xff]
        %s3899 = scalar_lea.vmem %s2, 40
        %v3900 = vld [vmem:[%s3899] sm:$0xff]
        %v3902 = vsel %vm374, %v3883, 0
        %v3905 = vsel %vm374, %v3884, 0
        %v3908 = vsel %vm374, %v3885, 0
        %v3911 = vsel %vm374, %v3886, 0
        %v3914 = vsel %vm374, %v3887, 0
        %v3917 = vsel %vm374, %v3888, 0
        %v3920 = vsel %vm374, %v3889, 0
        %v3923 = vsel %vm374, %v3890, 0
        %v3926 = vsel %vm374, %v3891, 0
        %v3929 = vsel %vm374, %v3892, 0
        %v3932 = vsel %vm374, %v3893, 0
        %v3935 = vsel %vm374, %v3894, 0
        %v3938 = vsel %vm374, %v3895, 0
        %v3941 = vsel %vm374, %v3896, 0
        %v3944 = vsel %vm374, %v3897, 0
        %v3947 = vsel %vm374, %v3898, 0
        %3949 = vmatpush.msra.mxu0 0.0
        %3950 = vmatpush.msra.mxu0 0.0
        %3951 = vmatpush.msra.mxu0 0.0
        %3952 = vmatpush.msra.mxu0 0.0
        %3953 = vmatpush.msra.mxu0 0.0
        %3954 = vmatpush.msra.mxu0 0.0
        %3955 = vmatpush.msra.mxu0 0.0
        %3956 = vmatpush.msra.mxu0 0.0
        %3957 = vmatpush.msra.mxu0 0.0
        %3958 = vmatpush.msra.mxu0 0.0
        %3959 = vmatpush.msra.mxu0 0.0
        %3960 = vmatpush.msra.mxu0 0.0
        %3961 = vmatpush.msra.mxu0 0.0
        %3962 = vmatpush.msra.mxu0 0.0
        %3963 = vmatpush.msra.mxu0 0.0
        %3964 = vmatpush.msra.mxu0 %v3900
        %3965 = vmatmul.f32.gmra.mxu0 %v3902
        %v3966 = vpop.f32.mrf.mxu0
        %v3967 = vadd.f32 0.0, %v3966
        %3968 = vmatmul.f32.gmra.mxu0 %v3905
        %v3969 = vpop.f32.mrf.mxu0
        %v3970 = vadd.f32 0.0, %v3969
        %3971 = vmatmul.f32.gmra.mxu0 %v3908
        %v3972 = vpop.f32.mrf.mxu0
        %v3973 = vadd.f32 0.0, %v3972
        %3974 = vmatmul.f32.gmra.mxu0 %v3911
        %v3975 = vpop.f32.mrf.mxu0
        %v3976 = vadd.f32 0.0, %v3975
        %3977 = vmatmul.f32.gmra.mxu0 %v3914
        %v3978 = vpop.f32.mrf.mxu0
        %v3979 = vadd.f32 0.0, %v3978
        %3980 = vmatmul.f32.gmra.mxu0 %v3917
        %v3981 = vpop.f32.mrf.mxu0
        %v3982 = vadd.f32 0.0, %v3981
        %3983 = vmatmul.f32.gmra.mxu0 %v3920
        %v3984 = vpop.f32.mrf.mxu0
        %v3985 = vadd.f32 0.0, %v3984
        %3986 = vmatmul.f32.gmra.mxu0 %v3923
        %v3987 = vpop.f32.mrf.mxu0
        %v3988 = vadd.f32 0.0, %v3987
        %3989 = vmatmul.f32.gmra.mxu0 %v3926
        %v3990 = vpop.f32.mrf.mxu0
        %v3991 = vadd.f32 0.0, %v3990
        %3992 = vmatmul.f32.gmra.mxu0 %v3929
        %v3993 = vpop.f32.mrf.mxu0
        %v3994 = vadd.f32 0.0, %v3993
        %3995 = vmatmul.f32.gmra.mxu0 %v3932
        %v3996 = vpop.f32.mrf.mxu0
        %v3997 = vadd.f32 0.0, %v3996
        %3998 = vmatmul.f32.gmra.mxu0 %v3935
        %v3999 = vpop.f32.mrf.mxu0
        %v4000 = vadd.f32 0.0, %v3999
        %4001 = vmatmul.f32.gmra.mxu0 %v3938
        %v4002 = vpop.f32.mrf.mxu0
        %v4003 = vadd.f32 0.0, %v4002
        %4004 = vmatmul.f32.gmra.mxu0 %v3941
        %v4005 = vpop.f32.mrf.mxu0
        %v4006 = vadd.f32 0.0, %v4005
        %4007 = vmatmul.f32.gmra.mxu0 %v3944
        %v4008 = vpop.f32.mrf.mxu0
        %v4009 = vadd.f32 0.0, %v4008
        %4010 = vmatmul.f32.gmra.mxu0 %v3947
        %v4011 = vpop.f32.mrf.mxu0
        %v4012 = vadd.f32 0.0, %v4011
        %4013 = vdwg.mxu0
        %v4014 = vadd.f32 %v3867, %v3967
        %v4015 = vadd.f32 %v3868, %v3970
        %v4016 = vadd.f32 %v3869, %v3973
        %v4017 = vadd.f32 %v3870, %v3976
        %v4018 = vadd.f32 %v3871, %v3979
        %v4019 = vadd.f32 %v3872, %v3982
        %v4020 = vadd.f32 %v3873, %v3985
        %v4021 = vadd.f32 %v3874, %v3988
        %v4022 = vadd.f32 %v3875, %v3991
        %v4023 = vadd.f32 %v3876, %v3994
        %v4024 = vadd.f32 %v3877, %v3997
        %v4025 = vadd.f32 %v3878, %v4000
        %v4026 = vadd.f32 %v3879, %v4003
        %v4027 = vadd.f32 %v3880, %v4006
        %v4028 = vadd.f32 %v3881, %v4009
        %v4029 = vadd.f32 %v3882, %v4012
        %s4030 = scalar_lea.vmem [#allocation3], 48
        %v4031 = vld [vmem:[%s4030] sm:$0xff]
        %v4032 = vld [vmem:[%s4030 + $0x8] sm:$0xff]
        %v4033 = vld [vmem:[%s4030 + $0x18] sm:$0xff]
        %v4034 = vld [vmem:[%s4030 + $0x20] sm:$0xff]
        %v4035 = vld [vmem:[%s4030 + $0x30] sm:$0xff]
        %v4036 = vld [vmem:[%s4030 + $0x38] sm:$0xff]
        %v4037 = vld [vmem:[%s4030 + $0x48] sm:$0xff]
        %v4038 = vld [vmem:[%s4030 + $0x50] sm:$0xff]
        %v4039 = vld [vmem:[%s4030 + $0x60] sm:$0xff]
        %v4040 = vld [vmem:[%s4030 + $0x68] sm:$0xff]
        %v4041 = vld [vmem:[%s4030 + $0x78] sm:$0xff]
        %v4042 = vld [vmem:[%s4030 + $0x80] sm:$0xff]
        %v4043 = vld [vmem:[%s4030 + $0x90] sm:$0xff]
        %v4044 = vld [vmem:[%s4030 + $0x98] sm:$0xff]
        %v4045 = vld [vmem:[%s4030 + $0xa8] sm:$0xff]
        %v4046 = vld [vmem:[%s4030 + $0xb0] sm:$0xff]
        %s4047 = scalar_lea.vmem %s2, 48
        %v4048 = vld [vmem:[%s4047] sm:$0xff]
        %v4050 = vsel %vm374, %v4031, 0
        %v4053 = vsel %vm374, %v4032, 0
        %v4056 = vsel %vm374, %v4033, 0
        %v4059 = vsel %vm374, %v4034, 0
        %v4062 = vsel %vm374, %v4035, 0
        %v4065 = vsel %vm374, %v4036, 0
        %v4068 = vsel %vm374, %v4037, 0
        %v4071 = vsel %vm374, %v4038, 0
        %v4074 = vsel %vm374, %v4039, 0
        %v4077 = vsel %vm374, %v4040, 0
        %v4080 = vsel %vm374, %v4041, 0
        %v4083 = vsel %vm374, %v4042, 0
        %v4086 = vsel %vm374, %v4043, 0
        %v4089 = vsel %vm374, %v4044, 0
        %v4092 = vsel %vm374, %v4045, 0
        %v4095 = vsel %vm374, %v4046, 0
        %4097 = vmatpush.msra.mxu0 0.0
        %4098 = vmatpush.msra.mxu0 0.0
        %4099 = vmatpush.msra.mxu0 0.0
        %4100 = vmatpush.msra.mxu0 0.0
        %4101 = vmatpush.msra.mxu0 0.0
        %4102 = vmatpush.msra.mxu0 0.0
        %4103 = vmatpush.msra.mxu0 0.0
        %4104 = vmatpush.msra.mxu0 0.0
        %4105 = vmatpush.msra.mxu0 0.0
        %4106 = vmatpush.msra.mxu0 0.0
        %4107 = vmatpush.msra.mxu0 0.0
        %4108 = vmatpush.msra.mxu0 0.0
        %4109 = vmatpush.msra.mxu0 0.0
        %4110 = vmatpush.msra.mxu0 0.0
        %4111 = vmatpush.msra.mxu0 0.0
        %4112 = vmatpush.msra.mxu0 %v4048
        %4113 = vmatmul.f32.gmra.mxu0 %v4050
        %v4114 = vpop.f32.mrf.mxu0
        %v4115 = vadd.f32 0.0, %v4114
        %4116 = vmatmul.f32.gmra.mxu0 %v4053
        %v4117 = vpop.f32.mrf.mxu0
        %v4118 = vadd.f32 0.0, %v4117
        %4119 = vmatmul.f32.gmra.mxu0 %v4056
        %v4120 = vpop.f32.mrf.mxu0
        %v4121 = vadd.f32 0.0, %v4120
        %4122 = vmatmul.f32.gmra.mxu0 %v4059
        %v4123 = vpop.f32.mrf.mxu0
        %v4124 = vadd.f32 0.0, %v4123
        %4125 = vmatmul.f32.gmra.mxu0 %v4062
        %v4126 = vpop.f32.mrf.mxu0
        %v4127 = vadd.f32 0.0, %v4126
        %4128 = vmatmul.f32.gmra.mxu0 %v4065
        %v4129 = vpop.f32.mrf.mxu0
        %v4130 = vadd.f32 0.0, %v4129
        %4131 = vmatmul.f32.gmra.mxu0 %v4068
        %v4132 = vpop.f32.mrf.mxu0
        %v4133 = vadd.f32 0.0, %v4132
        %4134 = vmatmul.f32.gmra.mxu0 %v4071
        %v4135 = vpop.f32.mrf.mxu0
        %v4136 = vadd.f32 0.0, %v4135
        %4137 = vmatmul.f32.gmra.mxu0 %v4074
        %v4138 = vpop.f32.mrf.mxu0
        %v4139 = vadd.f32 0.0, %v4138
        %4140 = vmatmul.f32.gmra.mxu0 %v4077
        %v4141 = vpop.f32.mrf.mxu0
        %v4142 = vadd.f32 0.0, %v4141
        %4143 = vmatmul.f32.gmra.mxu0 %v4080
        %v4144 = vpop.f32.mrf.mxu0
        %v4145 = vadd.f32 0.0, %v4144
        %4146 = vmatmul.f32.gmra.mxu0 %v4083
        %v4147 = vpop.f32.mrf.mxu0
        %v4148 = vadd.f32 0.0, %v4147
        %4149 = vmatmul.f32.gmra.mxu0 %v4086
        %v4150 = vpop.f32.mrf.mxu0
        %v4151 = vadd.f32 0.0, %v4150
        %4152 = vmatmul.f32.gmra.mxu0 %v4089
        %v4153 = vpop.f32.mrf.mxu0
        %v4154 = vadd.f32 0.0, %v4153
        %4155 = vmatmul.f32.gmra.mxu0 %v4092
        %v4156 = vpop.f32.mrf.mxu0
        %v4157 = vadd.f32 0.0, %v4156
        %4158 = vmatmul.f32.gmra.mxu0 %v4095
        %v4159 = vpop.f32.mrf.mxu0
        %v4160 = vadd.f32 0.0, %v4159
        %4161 = vdwg.mxu0
        %v4162 = vadd.f32 %v4014, %v4115
        %v4163 = vadd.f32 %v4015, %v4118
        %v4164 = vadd.f32 %v4016, %v4121
        %v4165 = vadd.f32 %v4017, %v4124
        %v4166 = vadd.f32 %v4018, %v4127
        %v4167 = vadd.f32 %v4019, %v4130
        %v4168 = vadd.f32 %v4020, %v4133
        %v4169 = vadd.f32 %v4021, %v4136
        %v4170 = vadd.f32 %v4022, %v4139
        %v4171 = vadd.f32 %v4023, %v4142
        %v4172 = vadd.f32 %v4024, %v4145
        %v4173 = vadd.f32 %v4025, %v4148
        %v4174 = vadd.f32 %v4026, %v4151
        %v4175 = vadd.f32 %v4027, %v4154
        %v4176 = vadd.f32 %v4028, %v4157
        %v4177 = vadd.f32 %v4029, %v4160
        %v4178 = vld [vmem:[%s4030 + $0x1] sm:$0xff]
        %v4179 = vld [vmem:[%s4030 + $0x9] sm:$0xff]
        %v4180 = vld [vmem:[%s4030 + $0x19] sm:$0xff]
        %v4181 = vld [vmem:[%s4030 + $0x21] sm:$0xff]
        %v4182 = vld [vmem:[%s4030 + $0x31] sm:$0xff]
        %v4183 = vld [vmem:[%s4030 + $0x39] sm:$0xff]
        %v4184 = vld [vmem:[%s4030 + $0x49] sm:$0xff]
        %v4185 = vld [vmem:[%s4030 + $0x51] sm:$0xff]
        %v4186 = vld [vmem:[%s4030 + $0x61] sm:$0xff]
        %v4187 = vld [vmem:[%s4030 + $0x69] sm:$0xff]
        %v4188 = vld [vmem:[%s4030 + $0x79] sm:$0xff]
        %v4189 = vld [vmem:[%s4030 + $0x81] sm:$0xff]
        %v4190 = vld [vmem:[%s4030 + $0x91] sm:$0xff]
        %v4191 = vld [vmem:[%s4030 + $0x99] sm:$0xff]
        %v4192 = vld [vmem:[%s4030 + $0xa9] sm:$0xff]
        %v4193 = vld [vmem:[%s4030 + $0xb1] sm:$0xff]
        %s4194 = scalar_lea.vmem %s2, 56
        %v4195 = vld [vmem:[%s4194] sm:$0xff]
        %v4197 = vsel %vm374, %v4178, 0
        %v4200 = vsel %vm374, %v4179, 0
        %v4203 = vsel %vm374, %v4180, 0
        %v4206 = vsel %vm374, %v4181, 0
        %v4209 = vsel %vm374, %v4182, 0
        %v4212 = vsel %vm374, %v4183, 0
        %v4215 = vsel %vm374, %v4184, 0
        %v4218 = vsel %vm374, %v4185, 0
        %v4221 = vsel %vm374, %v4186, 0
        %v4224 = vsel %vm374, %v4187, 0
        %v4227 = vsel %vm374, %v4188, 0
        %v4230 = vsel %vm374, %v4189, 0
        %v4233 = vsel %vm374, %v4190, 0
        %v4236 = vsel %vm374, %v4191, 0
        %v4239 = vsel %vm374, %v4192, 0
        %v4242 = vsel %vm374, %v4193, 0
        %4244 = vmatpush.msra.mxu0 0.0
        %4245 = vmatpush.msra.mxu0 0.0
        %4246 = vmatpush.msra.mxu0 0.0
        %4247 = vmatpush.msra.mxu0 0.0
        %4248 = vmatpush.msra.mxu0 0.0
        %4249 = vmatpush.msra.mxu0 0.0
        %4250 = vmatpush.msra.mxu0 0.0
        %4251 = vmatpush.msra.mxu0 0.0
        %4252 = vmatpush.msra.mxu0 0.0
        %4253 = vmatpush.msra.mxu0 0.0
        %4254 = vmatpush.msra.mxu0 0.0
        %4255 = vmatpush.msra.mxu0 0.0
        %4256 = vmatpush.msra.mxu0 0.0
        %4257 = vmatpush.msra.mxu0 0.0
        %4258 = vmatpush.msra.mxu0 0.0
        %4259 = vmatpush.msra.mxu0 %v4195
        %4260 = vmatmul.f32.gmra.mxu0 %v4197
        %v4261 = vpop.f32.mrf.mxu0
        %v4262 = vadd.f32 0.0, %v4261
        %4263 = vmatmul.f32.gmra.mxu0 %v4200
        %v4264 = vpop.f32.mrf.mxu0
        %v4265 = vadd.f32 0.0, %v4264
        %4266 = vmatmul.f32.gmra.mxu0 %v4203
        %v4267 = vpop.f32.mrf.mxu0
        %v4268 = vadd.f32 0.0, %v4267
        %4269 = vmatmul.f32.gmra.mxu0 %v4206
        %v4270 = vpop.f32.mrf.mxu0
        %v4271 = vadd.f32 0.0, %v4270
        %4272 = vmatmul.f32.gmra.mxu0 %v4209
        %v4273 = vpop.f32.mrf.mxu0
        %v4274 = vadd.f32 0.0, %v4273
        %4275 = vmatmul.f32.gmra.mxu0 %v4212
        %v4276 = vpop.f32.mrf.mxu0
        %v4277 = vadd.f32 0.0, %v4276
        %4278 = vmatmul.f32.gmra.mxu0 %v4215
        %v4279 = vpop.f32.mrf.mxu0
        %v4280 = vadd.f32 0.0, %v4279
        %4281 = vmatmul.f32.gmra.mxu0 %v4218
        %v4282 = vpop.f32.mrf.mxu0
        %v4283 = vadd.f32 0.0, %v4282
        %4284 = vmatmul.f32.gmra.mxu0 %v4221
        %v4285 = vpop.f32.mrf.mxu0
        %v4286 = vadd.f32 0.0, %v4285
        %4287 = vmatmul.f32.gmra.mxu0 %v4224
        %v4288 = vpop.f32.mrf.mxu0
        %v4289 = vadd.f32 0.0, %v4288
        %4290 = vmatmul.f32.gmra.mxu0 %v4227
        %v4291 = vpop.f32.mrf.mxu0
        %v4292 = vadd.f32 0.0, %v4291
        %4293 = vmatmul.f32.gmra.mxu0 %v4230
        %v4294 = vpop.f32.mrf.mxu0
        %v4295 = vadd.f32 0.0, %v4294
        %4296 = vmatmul.f32.gmra.mxu0 %v4233
        %v4297 = vpop.f32.mrf.mxu0
        %v4298 = vadd.f32 0.0, %v4297
        %4299 = vmatmul.f32.gmra.mxu0 %v4236
        %v4300 = vpop.f32.mrf.mxu0
        %v4301 = vadd.f32 0.0, %v4300
        %4302 = vmatmul.f32.gmra.mxu0 %v4239
        %v4303 = vpop.f32.mrf.mxu0
        %v4304 = vadd.f32 0.0, %v4303
        %4305 = vmatmul.f32.gmra.mxu0 %v4242
        %v4306 = vpop.f32.mrf.mxu0
        %v4307 = vadd.f32 0.0, %v4306
        %4308 = vdwg.mxu0
        %v4309 = vadd.f32 %v4162, %v4262
        %v4310 = vadd.f32 %v4163, %v4265
        %v4311 = vadd.f32 %v4164, %v4268
        %v4312 = vadd.f32 %v4165, %v4271
        %v4313 = vadd.f32 %v4166, %v4274
        %v4314 = vadd.f32 %v4167, %v4277
        %v4315 = vadd.f32 %v4168, %v4280
        %v4316 = vadd.f32 %v4169, %v4283
        %v4317 = vadd.f32 %v4170, %v4286
        %v4318 = vadd.f32 %v4171, %v4289
        %v4319 = vadd.f32 %v4172, %v4292
        %v4320 = vadd.f32 %v4173, %v4295
        %v4321 = vadd.f32 %v4174, %v4298
        %v4322 = vadd.f32 %v4175, %v4301
        %v4323 = vadd.f32 %v4176, %v4304
        %v4324 = vadd.f32 %v4177, %v4307
        %v4325 = vld [vmem:[%s4030 + $0x2] sm:$0xff]
        %v4326 = vld [vmem:[%s4030 + $0xa] sm:$0xff]
        %v4327 = vld [vmem:[%s4030 + $0x1a] sm:$0xff]
        %v4328 = vld [vmem:[%s4030 + $0x22] sm:$0xff]
        %v4329 = vld [vmem:[%s4030 + $0x32] sm:$0xff]
        %v4330 = vld [vmem:[%s4030 + $0x3a] sm:$0xff]
        %v4331 = vld [vmem:[%s4030 + $0x4a] sm:$0xff]
        %v4332 = vld [vmem:[%s4030 + $0x52] sm:$0xff]
        %v4333 = vld [vmem:[%s4030 + $0x62] sm:$0xff]
        %v4334 = vld [vmem:[%s4030 + $0x6a] sm:$0xff]
        %v4335 = vld [vmem:[%s4030 + $0x7a] sm:$0xff]
        %v4336 = vld [vmem:[%s4030 + $0x82] sm:$0xff]
        %v4337 = vld [vmem:[%s4030 + $0x92] sm:$0xff]
        %v4338 = vld [vmem:[%s4030 + $0x9a] sm:$0xff]
        %v4339 = vld [vmem:[%s4030 + $0xaa] sm:$0xff]
        %v4340 = vld [vmem:[%s4030 + $0xb2] sm:$0xff]
        %s4341 = scalar_lea.vmem %s2, 64
        %v4342 = vld [vmem:[%s4341] sm:$0xff]
        %v4344 = vsel %vm374, %v4325, 0
        %v4347 = vsel %vm374, %v4326, 0
        %v4350 = vsel %vm374, %v4327, 0
        %v4353 = vsel %vm374, %v4328, 0
        %v4356 = vsel %vm374, %v4329, 0
        %v4359 = vsel %vm374, %v4330, 0
        %v4362 = vsel %vm374, %v4331, 0
        %v4365 = vsel %vm374, %v4332, 0
        %v4368 = vsel %vm374, %v4333, 0
        %v4371 = vsel %vm374, %v4334, 0
        %v4374 = vsel %vm374, %v4335, 0
        %v4377 = vsel %vm374, %v4336, 0
        %v4380 = vsel %vm374, %v4337, 0
        %v4383 = vsel %vm374, %v4338, 0
        %v4386 = vsel %vm374, %v4339, 0
        %v4389 = vsel %vm374, %v4340, 0
        %4391 = vmatpush.msra.mxu0 0.0
        %4392 = vmatpush.msra.mxu0 0.0
        %4393 = vmatpush.msra.mxu0 0.0
        %4394 = vmatpush.msra.mxu0 0.0
        %4395 = vmatpush.msra.mxu0 0.0
        %4396 = vmatpush.msra.mxu0 0.0
        %4397 = vmatpush.msra.mxu0 0.0
        %4398 = vmatpush.msra.mxu0 0.0
        %4399 = vmatpush.msra.mxu0 0.0
        %4400 = vmatpush.msra.mxu0 0.0
        %4401 = vmatpush.msra.mxu0 0.0
        %4402 = vmatpush.msra.mxu0 0.0
        %4403 = vmatpush.msra.mxu0 0.0
        %4404 = vmatpush.msra.mxu0 0.0
        %4405 = vmatpush.msra.mxu0 0.0
        %4406 = vmatpush.msra.mxu0 %v4342
        %4407 = vmatmul.f32.gmra.mxu0 %v4344
        %v4408 = vpop.f32.mrf.mxu0
        %v4409 = vadd.f32 0.0, %v4408
        %4410 = vmatmul.f32.gmra.mxu0 %v4347
        %v4411 = vpop.f32.mrf.mxu0
        %v4412 = vadd.f32 0.0, %v4411
        %4413 = vmatmul.f32.gmra.mxu0 %v4350
        %v4414 = vpop.f32.mrf.mxu0
        %v4415 = vadd.f32 0.0, %v4414
        %4416 = vmatmul.f32.gmra.mxu0 %v4353
        %v4417 = vpop.f32.mrf.mxu0
        %v4418 = vadd.f32 0.0, %v4417
        %4419 = vmatmul.f32.gmra.mxu0 %v4356
        %v4420 = vpop.f32.mrf.mxu0
        %v4421 = vadd.f32 0.0, %v4420
        %4422 = vmatmul.f32.gmra.mxu0 %v4359
        %v4423 = vpop.f32.mrf.mxu0
        %v4424 = vadd.f32 0.0, %v4423
        %4425 = vmatmul.f32.gmra.mxu0 %v4362
        %v4426 = vpop.f32.mrf.mxu0
        %v4427 = vadd.f32 0.0, %v4426
        %4428 = vmatmul.f32.gmra.mxu0 %v4365
        %v4429 = vpop.f32.mrf.mxu0
        %v4430 = vadd.f32 0.0, %v4429
        %4431 = vmatmul.f32.gmra.mxu0 %v4368
        %v4432 = vpop.f32.mrf.mxu0
        %v4433 = vadd.f32 0.0, %v4432
        %4434 = vmatmul.f32.gmra.mxu0 %v4371
        %v4435 = vpop.f32.mrf.mxu0
        %v4436 = vadd.f32 0.0, %v4435
        %4437 = vmatmul.f32.gmra.mxu0 %v4374
        %v4438 = vpop.f32.mrf.mxu0
        %v4439 = vadd.f32 0.0, %v4438
        %4440 = vmatmul.f32.gmra.mxu0 %v4377
        %v4441 = vpop.f32.mrf.mxu0
        %v4442 = vadd.f32 0.0, %v4441
        %4443 = vmatmul.f32.gmra.mxu0 %v4380
        %v4444 = vpop.f32.mrf.mxu0
        %v4445 = vadd.f32 0.0, %v4444
        %4446 = vmatmul.f32.gmra.mxu0 %v4383
        %v4447 = vpop.f32.mrf.mxu0
        %v4448 = vadd.f32 0.0, %v4447
        %4449 = vmatmul.f32.gmra.mxu0 %v4386
        %v4450 = vpop.f32.mrf.mxu0
        %v4451 = vadd.f32 0.0, %v4450
        %4452 = vmatmul.f32.gmra.mxu0 %v4389
        %v4453 = vpop.f32.mrf.mxu0
        %v4454 = vadd.f32 0.0, %v4453
        %4455 = vdwg.mxu0
        %v4456 = vadd.f32 %v4309, %v4409
        %v4457 = vadd.f32 %v4310, %v4412
        %v4458 = vadd.f32 %v4311, %v4415
        %v4459 = vadd.f32 %v4312, %v4418
        %v4460 = vadd.f32 %v4313, %v4421
        %v4461 = vadd.f32 %v4314, %v4424
        %v4462 = vadd.f32 %v4315, %v4427
        %v4463 = vadd.f32 %v4316, %v4430
        %v4464 = vadd.f32 %v4317, %v4433
        %v4465 = vadd.f32 %v4318, %v4436
        %v4466 = vadd.f32 %v4319, %v4439
        %v4467 = vadd.f32 %v4320, %v4442
        %v4468 = vadd.f32 %v4321, %v4445
        %v4469 = vadd.f32 %v4322, %v4448
        %v4470 = vadd.f32 %v4323, %v4451
        %v4471 = vadd.f32 %v4324, %v4454
        %vm4472 = vcmp.ge.f32.partialorder %v4456, 0.0
        %vm4473 = vcmp.ge.f32.partialorder %v4457, 0.0
        %vm4474 = vcmp.ge.f32.partialorder %v4458, 0.0
        %vm4475 = vcmp.ge.f32.partialorder %v4459, 0.0
        %vm4476 = vcmp.ge.f32.partialorder %v4460, 0.0
        %vm4477 = vcmp.ge.f32.partialorder %v4461, 0.0
        %vm4478 = vcmp.ge.f32.partialorder %v4462, 0.0
        %vm4479 = vcmp.ge.f32.partialorder %v4463, 0.0
        %vm4480 = vcmp.ge.f32.partialorder %v4464, 0.0
        %vm4481 = vcmp.ge.f32.partialorder %v4465, 0.0
        %vm4482 = vcmp.ge.f32.partialorder %v4466, 0.0
        %vm4483 = vcmp.ge.f32.partialorder %v4467, 0.0
        %vm4484 = vcmp.ge.f32.partialorder %v4468, 0.0
        %vm4485 = vcmp.ge.f32.partialorder %v4469, 0.0
        %vm4486 = vcmp.ge.f32.partialorder %v4470, 0.0
        %vm4487 = vcmp.ge.f32.partialorder %v4471, 0.0
        %v4488 = vmul.f32 %v4456, 0.01
        %v4489 = vmul.f32 %v4457, 0.01
        %v4490 = vmul.f32 %v4458, 0.01
        %v4491 = vmul.f32 %v4459, 0.01
        %v4492 = vmul.f32 %v4460, 0.01
        %v4493 = vmul.f32 %v4461, 0.01
        %v4494 = vmul.f32 %v4462, 0.01
        %v4495 = vmul.f32 %v4463, 0.01
        %v4496 = vmul.f32 %v4464, 0.01
        %v4497 = vmul.f32 %v4465, 0.01
        %v4498 = vmul.f32 %v4466, 0.01
        %v4499 = vmul.f32 %v4467, 0.01
        %v4500 = vmul.f32 %v4468, 0.01
        %v4501 = vmul.f32 %v4469, 0.01
        %v4502 = vmul.f32 %v4470, 0.01
        %v4503 = vmul.f32 %v4471, 0.01
        %v4504 = vsel %vm4472, %v4456, %v4488
        %v4505 = vsel %vm4473, %v4457, %v4489
        %v4506 = vsel %vm4474, %v4458, %v4490
        %v4507 = vsel %vm4475, %v4459, %v4491
        %v4508 = vsel %vm4476, %v4460, %v4492
        %v4509 = vsel %vm4477, %v4461, %v4493
        %v4510 = vsel %vm4478, %v4462, %v4494
        %v4511 = vsel %vm4479, %v4463, %v4495
        %v4512 = vsel %vm4480, %v4464, %v4496
        %v4513 = vsel %vm4481, %v4465, %v4497
        %v4514 = vsel %vm4482, %v4466, %v4498
        %v4515 = vsel %vm4483, %v4467, %v4499
        %v4516 = vsel %vm4484, %v4468, %v4500
        %v4517 = vsel %vm4485, %v4469, %v4501
        %v4518 = vsel %vm4486, %v4470, %v4502
        %v4519 = vsel %vm4487, %v4471, %v4503
        %4520 = vst.msk [vmem:[%s262] sm:$0xff] %vm374, %v4504
        %4521 = vst.msk [vmem:[%s262 + $0x8] sm:$0xff] %vm374, %v4505
        %4522 = vst.msk [vmem:[%s262 + $0x10] sm:$0xff] %vm374, %v4506
        %4523 = vst.msk [vmem:[%s262 + $0x18] sm:$0xff] %vm374, %v4507
        %4524 = vst.msk [vmem:[%s262 + $0x20] sm:$0xff] %vm374, %v4508
        %4525 = vst.msk [vmem:[%s262 + $0x28] sm:$0xff] %vm374, %v4509
        %4526 = vst.msk [vmem:[%s262 + $0x30] sm:$0xff] %vm374, %v4510
        %4527 = vst.msk [vmem:[%s262 + $0x38] sm:$0xff] %vm374, %v4511
        %4528 = vst.msk [vmem:[%s262 + $0x40] sm:$0xff] %vm374, %v4512
        %4529 = vst.msk [vmem:[%s262 + $0x48] sm:$0xff] %vm374, %v4513
        %4530 = vst.msk [vmem:[%s262 + $0x50] sm:$0xff] %vm374, %v4514
        %4531 = vst.msk [vmem:[%s262 + $0x58] sm:$0xff] %vm374, %v4515
        %4532 = vst.msk [vmem:[%s262 + $0x60] sm:$0xff] %vm374, %v4516
        %4533 = vst.msk [vmem:[%s262 + $0x68] sm:$0xff] %vm374, %v4517
        %4534 = vst.msk [vmem:[%s262 + $0x70] sm:$0xff] %vm374, %v4518
        %4535 = vst.msk [vmem:[%s262 + $0x78] sm:$0xff] %vm374, %v4519
        %s4536 = scalar_lea.vmem [#allocation3], 192
        %v4537 = vld [vmem:[%s4536] sm:$0xff]
        %v4538 = vld [vmem:[%s4536 + $0x8] sm:$0xff]
        %v4539 = vld [vmem:[%s4536 + $0x18] sm:$0xff]
        %v4540 = vld [vmem:[%s4536 + $0x20] sm:$0xff]
        %v4541 = vld [vmem:[%s4536 + $0x30] sm:$0xff]
        %v4542 = vld [vmem:[%s4536 + $0x38] sm:$0xff]
        %v4543 = vld [vmem:[%s4536 + $0x48] sm:$0xff]
        %v4544 = vld [vmem:[%s4536 + $0x50] sm:$0xff]
        %v4545 = vld [vmem:[%s4536 + $0x60] sm:$0xff]
        %v4546 = vld [vmem:[%s4536 + $0x68] sm:$0xff]
        %v4547 = vld [vmem:[%s4536 + $0x78] sm:$0xff]
        %v4548 = vld [vmem:[%s4536 + $0x80] sm:$0xff]
        %v4549 = vld [vmem:[%s4536 + $0x90] sm:$0xff]
        %v4550 = vld [vmem:[%s4536 + $0x98] sm:$0xff]
        %v4551 = vld [vmem:[%s4536 + $0xa8] sm:$0xff]
        %v4552 = vld [vmem:[%s4536 + $0xb0] sm:$0xff]
        %v4553 = vld [vmem:[%s2] sm:$0xff]
        %v4554 = vld [vmem:[%s4536 + $0x1] sm:$0xff]
        %v4555 = vld [vmem:[%s4536 + $0x9] sm:$0xff]
        %v4556 = vld [vmem:[%s4536 + $0x19] sm:$0xff]
        %v4557 = vld [vmem:[%s4536 + $0x21] sm:$0xff]
        %v4558 = vld [vmem:[%s4536 + $0x31] sm:$0xff]
        %v4559 = vld [vmem:[%s4536 + $0x39] sm:$0xff]
        %v4560 = vld [vmem:[%s4536 + $0x49] sm:$0xff]
        %v4561 = vld [vmem:[%s4536 + $0x51] sm:$0xff]
        %v4562 = vld [vmem:[%s4536 + $0x61] sm:$0xff]
        %v4563 = vld [vmem:[%s4536 + $0x69] sm:$0xff]
        %v4564 = vld [vmem:[%s4536 + $0x79] sm:$0xff]
        %v4565 = vld [vmem:[%s4536 + $0x81] sm:$0xff]
        %v4566 = vld [vmem:[%s4536 + $0x91] sm:$0xff]
        %v4567 = vld [vmem:[%s4536 + $0x99] sm:$0xff]
        %v4568 = vld [vmem:[%s4536 + $0xa9] sm:$0xff]
        %v4569 = vld [vmem:[%s4536 + $0xb1] sm:$0xff]
        %v4570 = vld [vmem:[%s3214] sm:$0xff]
        %v4572 = vsel %vm374, %v4554, 0
        %v4575 = vsel %vm374, %v4555, 0
        %v4578 = vsel %vm374, %v4556, 0
        %v4581 = vsel %vm374, %v4557, 0
        %v4584 = vsel %vm374, %v4558, 0
        %v4587 = vsel %vm374, %v4559, 0
        %v4590 = vsel %vm374, %v4560, 0
        %v4593 = vsel %vm374, %v4561, 0
        %v4596 = vsel %vm374, %v4562, 0
        %v4599 = vsel %vm374, %v4563, 0
        %v4602 = vsel %vm374, %v4564, 0
        %v4605 = vsel %vm374, %v4565, 0
        %v4608 = vsel %vm374, %v4566, 0
        %v4611 = vsel %vm374, %v4567, 0
        %v4614 = vsel %vm374, %v4568, 0
        %v4617 = vsel %vm374, %v4569, 0
        %4619 = vmatpush.msra.mxu0 0.0
        %4620 = vmatpush.msra.mxu0 0.0
        %4621 = vmatpush.msra.mxu0 0.0
        %4622 = vmatpush.msra.mxu0 0.0
        %4623 = vmatpush.msra.mxu0 0.0
        %4624 = vmatpush.msra.mxu0 0.0
        %4625 = vmatpush.msra.mxu0 0.0
        %4626 = vmatpush.msra.mxu0 0.0
        %4627 = vmatpush.msra.mxu0 0.0
        %4628 = vmatpush.msra.mxu0 0.0
        %4629 = vmatpush.msra.mxu0 0.0
        %4630 = vmatpush.msra.mxu0 0.0
        %4631 = vmatpush.msra.mxu0 0.0
        %4632 = vmatpush.msra.mxu0 0.0
        %4633 = vmatpush.msra.mxu0 0.0
        %4634 = vmatpush.msra.mxu0 %v4570
        %4635 = vmatmul.f32.gmra.mxu0 %v4572
        %v4636 = vpop.f32.mrf.mxu0
        %v4637 = vadd.f32 0.0, %v4636
        %4638 = vmatmul.f32.gmra.mxu0 %v4575
        %v4639 = vpop.f32.mrf.mxu0
        %v4640 = vadd.f32 0.0, %v4639
        %4641 = vmatmul.f32.gmra.mxu0 %v4578
        %v4642 = vpop.f32.mrf.mxu0
        %v4643 = vadd.f32 0.0, %v4642
        %4644 = vmatmul.f32.gmra.mxu0 %v4581
        %v4645 = vpop.f32.mrf.mxu0
        %v4646 = vadd.f32 0.0, %v4645
        %4647 = vmatmul.f32.gmra.mxu0 %v4584
        %v4648 = vpop.f32.mrf.mxu0
        %v4649 = vadd.f32 0.0, %v4648
        %4650 = vmatmul.f32.gmra.mxu0 %v4587
        %v4651 = vpop.f32.mrf.mxu0
        %v4652 = vadd.f32 0.0, %v4651
        %4653 = vmatmul.f32.gmra.mxu0 %v4590
        %v4654 = vpop.f32.mrf.mxu0
        %v4655 = vadd.f32 0.0, %v4654
        %4656 = vmatmul.f32.gmra.mxu0 %v4593
        %v4657 = vpop.f32.mrf.mxu0
        %v4658 = vadd.f32 0.0, %v4657
        %4659 = vmatmul.f32.gmra.mxu0 %v4596
        %v4660 = vpop.f32.mrf.mxu0
        %v4661 = vadd.f32 0.0, %v4660
        %4662 = vmatmul.f32.gmra.mxu0 %v4599
        %v4663 = vpop.f32.mrf.mxu0
        %v4664 = vadd.f32 0.0, %v4663
        %4665 = vmatmul.f32.gmra.mxu0 %v4602
        %v4666 = vpop.f32.mrf.mxu0
        %v4667 = vadd.f32 0.0, %v4666
        %4668 = vmatmul.f32.gmra.mxu0 %v4605
        %v4669 = vpop.f32.mrf.mxu0
        %v4670 = vadd.f32 0.0, %v4669
        %4671 = vmatmul.f32.gmra.mxu0 %v4608
        %v4672 = vpop.f32.mrf.mxu0
        %v4673 = vadd.f32 0.0, %v4672
        %4674 = vmatmul.f32.gmra.mxu0 %v4611
        %v4675 = vpop.f32.mrf.mxu0
        %v4676 = vadd.f32 0.0, %v4675
        %4677 = vmatmul.f32.gmra.mxu0 %v4614
        %v4678 = vpop.f32.mrf.mxu0
        %v4679 = vadd.f32 0.0, %v4678
        %4680 = vmatmul.f32.gmra.mxu0 %v4617
        %v4681 = vpop.f32.mrf.mxu0
        %v4682 = vadd.f32 0.0, %v4681
        %4683 = vdwg.mxu0
        %v4685 = vsel %vm374, %v4537, 0
        %v4688 = vsel %vm374, %v4538, 0
        %v4691 = vsel %vm374, %v4539, 0
        %v4694 = vsel %vm374, %v4540, 0
        %v4697 = vsel %vm374, %v4541, 0
        %v4700 = vsel %vm374, %v4542, 0
        %v4703 = vsel %vm374, %v4543, 0
        %v4706 = vsel %vm374, %v4544, 0
        %v4709 = vsel %vm374, %v4545, 0
        %v4712 = vsel %vm374, %v4546, 0
        %v4715 = vsel %vm374, %v4547, 0
        %v4718 = vsel %vm374, %v4548, 0
        %v4721 = vsel %vm374, %v4549, 0
        %v4724 = vsel %vm374, %v4550, 0
        %v4727 = vsel %vm374, %v4551, 0
        %v4730 = vsel %vm374, %v4552, 0
        %4732 = vmatpush.msra.mxu0 0.0
        %4733 = vmatpush.msra.mxu0 0.0
        %4734 = vmatpush.msra.mxu0 0.0
        %4735 = vmatpush.msra.mxu0 0.0
        %4736 = vmatpush.msra.mxu0 0.0
        %4737 = vmatpush.msra.mxu0 0.0
        %4738 = vmatpush.msra.mxu0 0.0
        %4739 = vmatpush.msra.mxu0 0.0
        %4740 = vmatpush.msra.mxu0 0.0
        %4741 = vmatpush.msra.mxu0 0.0
        %4742 = vmatpush.msra.mxu0 0.0
        %4743 = vmatpush.msra.mxu0 0.0
        %4744 = vmatpush.msra.mxu0 0.0
        %4745 = vmatpush.msra.mxu0 0.0
        %4746 = vmatpush.msra.mxu0 0.0
        %4747 = vmatpush.msra.mxu0 %v4553
        %4748 = vmatmul.f32.gmra.mxu0 %v4685
        %v4749 = vpop.f32.mrf.mxu0
        %v4750 = vadd.f32 %v4637, %v4749
        %4751 = vmatmul.f32.gmra.mxu0 %v4688
        %v4752 = vpop.f32.mrf.mxu0
        %v4753 = vadd.f32 %v4640, %v4752
        %4754 = vmatmul.f32.gmra.mxu0 %v4691
        %v4755 = vpop.f32.mrf.mxu0
        %v4756 = vadd.f32 %v4643, %v4755
        %4757 = vmatmul.f32.gmra.mxu0 %v4694
        %v4758 = vpop.f32.mrf.mxu0
        %v4759 = vadd.f32 %v4646, %v4758
        %4760 = vmatmul.f32.gmra.mxu0 %v4697
        %v4761 = vpop.f32.mrf.mxu0
        %v4762 = vadd.f32 %v4649, %v4761
        %4763 = vmatmul.f32.gmra.mxu0 %v4700
        %v4764 = vpop.f32.mrf.mxu0
        %v4765 = vadd.f32 %v4652, %v4764
        %4766 = vmatmul.f32.gmra.mxu0 %v4703
        %v4767 = vpop.f32.mrf.mxu0
        %v4768 = vadd.f32 %v4655, %v4767
        %4769 = vmatmul.f32.gmra.mxu0 %v4706
        %v4770 = vpop.f32.mrf.mxu0
        %v4771 = vadd.f32 %v4658, %v4770
        %4772 = vmatmul.f32.gmra.mxu0 %v4709
        %v4773 = vpop.f32.mrf.mxu0
        %v4774 = vadd.f32 %v4661, %v4773
        %4775 = vmatmul.f32.gmra.mxu0 %v4712
        %v4776 = vpop.f32.mrf.mxu0
        %v4777 = vadd.f32 %v4664, %v4776
        %4778 = vmatmul.f32.gmra.mxu0 %v4715
        %v4779 = vpop.f32.mrf.mxu0
        %v4780 = vadd.f32 %v4667, %v4779
        %4781 = vmatmul.f32.gmra.mxu0 %v4718
        %v4782 = vpop.f32.mrf.mxu0
        %v4783 = vadd.f32 %v4670, %v4782
        %4784 = vmatmul.f32.gmra.mxu0 %v4721
        %v4785 = vpop.f32.mrf.mxu0
        %v4786 = vadd.f32 %v4673, %v4785
        %4787 = vmatmul.f32.gmra.mxu0 %v4724
        %v4788 = vpop.f32.mrf.mxu0
        %v4789 = vadd.f32 %v4676, %v4788
        %4790 = vmatmul.f32.gmra.mxu0 %v4727
        %v4791 = vpop.f32.mrf.mxu0
        %v4792 = vadd.f32 %v4679, %v4791
        %4793 = vmatmul.f32.gmra.mxu0 %v4730
        %v4794 = vpop.f32.mrf.mxu0
        %v4795 = vadd.f32 %v4682, %v4794
        %4796 = vdwg.mxu0
        %v4797 = vld [vmem:[%s4536 + $0x2] sm:$0xff]
        %v4798 = vld [vmem:[%s4536 + $0xa] sm:$0xff]
        %v4799 = vld [vmem:[%s4536 + $0x1a] sm:$0xff]
        %v4800 = vld [vmem:[%s4536 + $0x22] sm:$0xff]
        %v4801 = vld [vmem:[%s4536 + $0x32] sm:$0xff]
        %v4802 = vld [vmem:[%s4536 + $0x3a] sm:$0xff]
        %v4803 = vld [vmem:[%s4536 + $0x4a] sm:$0xff]
        %v4804 = vld [vmem:[%s4536 + $0x52] sm:$0xff]
        %v4805 = vld [vmem:[%s4536 + $0x62] sm:$0xff]
        %v4806 = vld [vmem:[%s4536 + $0x6a] sm:$0xff]
        %v4807 = vld [vmem:[%s4536 + $0x7a] sm:$0xff]
        %v4808 = vld [vmem:[%s4536 + $0x82] sm:$0xff]
        %v4809 = vld [vmem:[%s4536 + $0x92] sm:$0xff]
        %v4810 = vld [vmem:[%s4536 + $0x9a] sm:$0xff]
        %v4811 = vld [vmem:[%s4536 + $0xaa] sm:$0xff]
        %v4812 = vld [vmem:[%s4536 + $0xb2] sm:$0xff]
        %v4813 = vld [vmem:[%s3458] sm:$0xff]
        %v4815 = vsel %vm374, %v4797, 0
        %v4818 = vsel %vm374, %v4798, 0
        %v4821 = vsel %vm374, %v4799, 0
        %v4824 = vsel %vm374, %v4800, 0
        %v4827 = vsel %vm374, %v4801, 0
        %v4830 = vsel %vm374, %v4802, 0
        %v4833 = vsel %vm374, %v4803, 0
        %v4836 = vsel %vm374, %v4804, 0
        %v4839 = vsel %vm374, %v4805, 0
        %v4842 = vsel %vm374, %v4806, 0
        %v4845 = vsel %vm374, %v4807, 0
        %v4848 = vsel %vm374, %v4808, 0
        %v4851 = vsel %vm374, %v4809, 0
        %v4854 = vsel %vm374, %v4810, 0
        %v4857 = vsel %vm374, %v4811, 0
        %v4860 = vsel %vm374, %v4812, 0
        %4862 = vmatpush.msra.mxu0 0.0
        %4863 = vmatpush.msra.mxu0 0.0
        %4864 = vmatpush.msra.mxu0 0.0
        %4865 = vmatpush.msra.mxu0 0.0
        %4866 = vmatpush.msra.mxu0 0.0
        %4867 = vmatpush.msra.mxu0 0.0
        %4868 = vmatpush.msra.mxu0 0.0
        %4869 = vmatpush.msra.mxu0 0.0
        %4870 = vmatpush.msra.mxu0 0.0
        %4871 = vmatpush.msra.mxu0 0.0
        %4872 = vmatpush.msra.mxu0 0.0
        %4873 = vmatpush.msra.mxu0 0.0
        %4874 = vmatpush.msra.mxu0 0.0
        %4875 = vmatpush.msra.mxu0 0.0
        %4876 = vmatpush.msra.mxu0 0.0
        %4877 = vmatpush.msra.mxu0 %v4813
        %4878 = vmatmul.f32.gmra.mxu0 %v4815
        %v4879 = vpop.f32.mrf.mxu0
        %v4880 = vadd.f32 0.0, %v4879
        %4881 = vmatmul.f32.gmra.mxu0 %v4818
        %v4882 = vpop.f32.mrf.mxu0
        %v4883 = vadd.f32 0.0, %v4882
        %4884 = vmatmul.f32.gmra.mxu0 %v4821
        %v4885 = vpop.f32.mrf.mxu0
        %v4886 = vadd.f32 0.0, %v4885
        %4887 = vmatmul.f32.gmra.mxu0 %v4824
        %v4888 = vpop.f32.mrf.mxu0
        %v4889 = vadd.f32 0.0, %v4888
        %4890 = vmatmul.f32.gmra.mxu0 %v4827
        %v4891 = vpop.f32.mrf.mxu0
        %v4892 = vadd.f32 0.0, %v4891
        %4893 = vmatmul.f32.gmra.mxu0 %v4830
        %v4894 = vpop.f32.mrf.mxu0
        %v4895 = vadd.f32 0.0, %v4894
        %4896 = vmatmul.f32.gmra.mxu0 %v4833
        %v4897 = vpop.f32.mrf.mxu0
        %v4898 = vadd.f32 0.0, %v4897
        %4899 = vmatmul.f32.gmra.mxu0 %v4836
        %v4900 = vpop.f32.mrf.mxu0
        %v4901 = vadd.f32 0.0, %v4900
        %4902 = vmatmul.f32.gmra.mxu0 %v4839
        %v4903 = vpop.f32.mrf.mxu0
        %v4904 = vadd.f32 0.0, %v4903
        %4905 = vmatmul.f32.gmra.mxu0 %v4842
        %v4906 = vpop.f32.mrf.mxu0
        %v4907 = vadd.f32 0.0, %v4906
        %4908 = vmatmul.f32.gmra.mxu0 %v4845
        %v4909 = vpop.f32.mrf.mxu0
        %v4910 = vadd.f32 0.0, %v4909
        %4911 = vmatmul.f32.gmra.mxu0 %v4848
        %v4912 = vpop.f32.mrf.mxu0
        %v4913 = vadd.f32 0.0, %v4912
        %4914 = vmatmul.f32.gmra.mxu0 %v4851
        %v4915 = vpop.f32.mrf.mxu0
        %v4916 = vadd.f32 0.0, %v4915
        %4917 = vmatmul.f32.gmra.mxu0 %v4854
        %v4918 = vpop.f32.mrf.mxu0
        %v4919 = vadd.f32 0.0, %v4918
        %4920 = vmatmul.f32.gmra.mxu0 %v4857
        %v4921 = vpop.f32.mrf.mxu0
        %v4922 = vadd.f32 0.0, %v4921
        %4923 = vmatmul.f32.gmra.mxu0 %v4860
        %v4924 = vpop.f32.mrf.mxu0
        %v4925 = vadd.f32 0.0, %v4924
        %4926 = vdwg.mxu0
        %v4927 = vadd.f32 %v4750, %v4880
        %v4928 = vadd.f32 %v4753, %v4883
        %v4929 = vadd.f32 %v4756, %v4886
        %v4930 = vadd.f32 %v4759, %v4889
        %v4931 = vadd.f32 %v4762, %v4892
        %v4932 = vadd.f32 %v4765, %v4895
        %v4933 = vadd.f32 %v4768, %v4898
        %v4934 = vadd.f32 %v4771, %v4901
        %v4935 = vadd.f32 %v4774, %v4904
        %v4936 = vadd.f32 %v4777, %v4907
        %v4937 = vadd.f32 %v4780, %v4910
        %v4938 = vadd.f32 %v4783, %v4913
        %v4939 = vadd.f32 %v4786, %v4916
        %v4940 = vadd.f32 %v4789, %v4919
        %v4941 = vadd.f32 %v4792, %v4922
        %v4942 = vadd.f32 %v4795, %v4925
        %v4943 = vld [vmem:[%s3164] sm:$0xff]
        %v4944 = vld [vmem:[%s3164 + $0x8] sm:$0xff]
        %v4945 = vld [vmem:[%s3164 + $0x18] sm:$0xff]
        %v4946 = vld [vmem:[%s3164 + $0x20] sm:$0xff]
        %v4947 = vld [vmem:[%s3164 + $0x30] sm:$0xff]
        %v4948 = vld [vmem:[%s3164 + $0x38] sm:$0xff]
        %v4949 = vld [vmem:[%s3164 + $0x48] sm:$0xff]
        %v4950 = vld [vmem:[%s3164 + $0x50] sm:$0xff]
        %v4951 = vld [vmem:[%s3164 + $0x60] sm:$0xff]
        %v4952 = vld [vmem:[%s3164 + $0x68] sm:$0xff]
        %v4953 = vld [vmem:[%s3164 + $0x78] sm:$0xff]
        %v4954 = vld [vmem:[%s3164 + $0x80] sm:$0xff]
        %v4955 = vld [vmem:[%s3164 + $0x90] sm:$0xff]
        %v4956 = vld [vmem:[%s3164 + $0x98] sm:$0xff]
        %v4957 = vld [vmem:[%s3164 + $0xa8] sm:$0xff]
        %v4958 = vld [vmem:[%s3164 + $0xb0] sm:$0xff]
        %v4959 = vld [vmem:[%s3605] sm:$0xff]
        %v4961 = vsel %vm374, %v4943, 0
        %v4964 = vsel %vm374, %v4944, 0
        %v4967 = vsel %vm374, %v4945, 0
        %v4970 = vsel %vm374, %v4946, 0
        %v4973 = vsel %vm374, %v4947, 0
        %v4976 = vsel %vm374, %v4948, 0
        %v4979 = vsel %vm374, %v4949, 0
        %v4982 = vsel %vm374, %v4950, 0
        %v4985 = vsel %vm374, %v4951, 0
        %v4988 = vsel %vm374, %v4952, 0
        %v4991 = vsel %vm374, %v4953, 0
        %v4994 = vsel %vm374, %v4954, 0
        %v4997 = vsel %vm374, %v4955, 0
        %v5000 = vsel %vm374, %v4956, 0
        %v5003 = vsel %vm374, %v4957, 0
        %v5006 = vsel %vm374, %v4958, 0
        %5008 = vmatpush.msra.mxu0 0.0
        %5009 = vmatpush.msra.mxu0 0.0
        %5010 = vmatpush.msra.mxu0 0.0
        %5011 = vmatpush.msra.mxu0 0.0
        %5012 = vmatpush.msra.mxu0 0.0
        %5013 = vmatpush.msra.mxu0 0.0
        %5014 = vmatpush.msra.mxu0 0.0
        %5015 = vmatpush.msra.mxu0 0.0
        %5016 = vmatpush.msra.mxu0 0.0
        %5017 = vmatpush.msra.mxu0 0.0
        %5018 = vmatpush.msra.mxu0 0.0
        %5019 = vmatpush.msra.mxu0 0.0
        %5020 = vmatpush.msra.mxu0 0.0
        %5021 = vmatpush.msra.mxu0 0.0
        %5022 = vmatpush.msra.mxu0 0.0
        %5023 = vmatpush.msra.mxu0 %v4959
        %5024 = vmatmul.f32.gmra.mxu0 %v4961
        %v5025 = vpop.f32.mrf.mxu0
        %v5026 = vadd.f32 0.0, %v5025
        %5027 = vmatmul.f32.gmra.mxu0 %v4964
        %v5028 = vpop.f32.mrf.mxu0
        %v5029 = vadd.f32 0.0, %v5028
        %5030 = vmatmul.f32.gmra.mxu0 %v4967
        %v5031 = vpop.f32.mrf.mxu0
        %v5032 = vadd.f32 0.0, %v5031
        %5033 = vmatmul.f32.gmra.mxu0 %v4970
        %v5034 = vpop.f32.mrf.mxu0
        %v5035 = vadd.f32 0.0, %v5034
        %5036 = vmatmul.f32.gmra.mxu0 %v4973
        %v5037 = vpop.f32.mrf.mxu0
        %v5038 = vadd.f32 0.0, %v5037
        %5039 = vmatmul.f32.gmra.mxu0 %v4976
        %v5040 = vpop.f32.mrf.mxu0
        %v5041 = vadd.f32 0.0, %v5040
        %5042 = vmatmul.f32.gmra.mxu0 %v4979
        %v5043 = vpop.f32.mrf.mxu0
        %v5044 = vadd.f32 0.0, %v5043
        %5045 = vmatmul.f32.gmra.mxu0 %v4982
        %v5046 = vpop.f32.mrf.mxu0
        %v5047 = vadd.f32 0.0, %v5046
        %5048 = vmatmul.f32.gmra.mxu0 %v4985
        %v5049 = vpop.f32.mrf.mxu0
        %v5050 = vadd.f32 0.0, %v5049
        %5051 = vmatmul.f32.gmra.mxu0 %v4988
        %v5052 = vpop.f32.mrf.mxu0
        %v5053 = vadd.f32 0.0, %v5052
        %5054 = vmatmul.f32.gmra.mxu0 %v4991
        %v5055 = vpop.f32.mrf.mxu0
        %v5056 = vadd.f32 0.0, %v5055
        %5057 = vmatmul.f32.gmra.mxu0 %v4994
        %v5058 = vpop.f32.mrf.mxu0
        %v5059 = vadd.f32 0.0, %v5058
        %5060 = vmatmul.f32.gmra.mxu0 %v4997
        %v5061 = vpop.f32.mrf.mxu0
        %v5062 = vadd.f32 0.0, %v5061
        %5063 = vmatmul.f32.gmra.mxu0 %v5000
        %v5064 = vpop.f32.mrf.mxu0
        %v5065 = vadd.f32 0.0, %v5064
        %5066 = vmatmul.f32.gmra.mxu0 %v5003
        %v5067 = vpop.f32.mrf.mxu0
        %v5068 = vadd.f32 0.0, %v5067
        %5069 = vmatmul.f32.gmra.mxu0 %v5006
        %v5070 = vpop.f32.mrf.mxu0
        %v5071 = vadd.f32 0.0, %v5070
        %5072 = vdwg.mxu0
        %v5073 = vadd.f32 %v4927, %v5026
        %v5074 = vadd.f32 %v4928, %v5029
        %v5075 = vadd.f32 %v4929, %v5032
        %v5076 = vadd.f32 %v4930, %v5035
        %v5077 = vadd.f32 %v4931, %v5038
        %v5078 = vadd.f32 %v4932, %v5041
        %v5079 = vadd.f32 %v4933, %v5044
        %v5080 = vadd.f32 %v4934, %v5047
        %v5081 = vadd.f32 %v4935, %v5050
        %v5082 = vadd.f32 %v4936, %v5053
        %v5083 = vadd.f32 %v4937, %v5056
        %v5084 = vadd.f32 %v4938, %v5059
        %v5085 = vadd.f32 %v4939, %v5062
        %v5086 = vadd.f32 %v4940, %v5065
        %v5087 = vadd.f32 %v4941, %v5068
        %v5088 = vadd.f32 %v4942, %v5071
        %v5089 = vld [vmem:[%s3164 + $0x1] sm:$0xff]
        %v5090 = vld [vmem:[%s3164 + $0x9] sm:$0xff]
        %v5091 = vld [vmem:[%s3164 + $0x19] sm:$0xff]
        %v5092 = vld [vmem:[%s3164 + $0x21] sm:$0xff]
        %v5093 = vld [vmem:[%s3164 + $0x31] sm:$0xff]
        %v5094 = vld [vmem:[%s3164 + $0x39] sm:$0xff]
        %v5095 = vld [vmem:[%s3164 + $0x49] sm:$0xff]
        %v5096 = vld [vmem:[%s3164 + $0x51] sm:$0xff]
        %v5097 = vld [vmem:[%s3164 + $0x61] sm:$0xff]
        %v5098 = vld [vmem:[%s3164 + $0x69] sm:$0xff]
        %v5099 = vld [vmem:[%s3164 + $0x79] sm:$0xff]
        %v5100 = vld [vmem:[%s3164 + $0x81] sm:$0xff]
        %v5101 = vld [vmem:[%s3164 + $0x91] sm:$0xff]
        %v5102 = vld [vmem:[%s3164 + $0x99] sm:$0xff]
        %v5103 = vld [vmem:[%s3164 + $0xa9] sm:$0xff]
        %v5104 = vld [vmem:[%s3164 + $0xb1] sm:$0xff]
        %v5105 = vld [vmem:[%s3752] sm:$0xff]
        %v5107 = vsel %vm374, %v5089, 0
        %v5110 = vsel %vm374, %v5090, 0
        %v5113 = vsel %vm374, %v5091, 0
        %v5116 = vsel %vm374, %v5092, 0
        %v5119 = vsel %vm374, %v5093, 0
        %v5122 = vsel %vm374, %v5094, 0
        %v5125 = vsel %vm374, %v5095, 0
        %v5128 = vsel %vm374, %v5096, 0
        %v5131 = vsel %vm374, %v5097, 0
        %v5134 = vsel %vm374, %v5098, 0
        %v5137 = vsel %vm374, %v5099, 0
        %v5140 = vsel %vm374, %v5100, 0
        %v5143 = vsel %vm374, %v5101, 0
        %v5146 = vsel %vm374, %v5102, 0
        %v5149 = vsel %vm374, %v5103, 0
        %v5152 = vsel %vm374, %v5104, 0
        %5154 = vmatpush.msra.mxu0 0.0
        %5155 = vmatpush.msra.mxu0 0.0
        %5156 = vmatpush.msra.mxu0 0.0
        %5157 = vmatpush.msra.mxu0 0.0
        %5158 = vmatpush.msra.mxu0 0.0
        %5159 = vmatpush.msra.mxu0 0.0
        %5160 = vmatpush.msra.mxu0 0.0
        %5161 = vmatpush.msra.mxu0 0.0
        %5162 = vmatpush.msra.mxu0 0.0
        %5163 = vmatpush.msra.mxu0 0.0
        %5164 = vmatpush.msra.mxu0 0.0
        %5165 = vmatpush.msra.mxu0 0.0
        %5166 = vmatpush.msra.mxu0 0.0
        %5167 = vmatpush.msra.mxu0 0.0
        %5168 = vmatpush.msra.mxu0 0.0
        %5169 = vmatpush.msra.mxu0 %v5105
        %5170 = vmatmul.f32.gmra.mxu0 %v5107
        %v5171 = vpop.f32.mrf.mxu0
        %v5172 = vadd.f32 0.0, %v5171
        %5173 = vmatmul.f32.gmra.mxu0 %v5110
        %v5174 = vpop.f32.mrf.mxu0
        %v5175 = vadd.f32 0.0, %v5174
        %5176 = vmatmul.f32.gmra.mxu0 %v5113
        %v5177 = vpop.f32.mrf.mxu0
        %v5178 = vadd.f32 0.0, %v5177
        %5179 = vmatmul.f32.gmra.mxu0 %v5116
        %v5180 = vpop.f32.mrf.mxu0
        %v5181 = vadd.f32 0.0, %v5180
        %5182 = vmatmul.f32.gmra.mxu0 %v5119
        %v5183 = vpop.f32.mrf.mxu0
        %v5184 = vadd.f32 0.0, %v5183
        %5185 = vmatmul.f32.gmra.mxu0 %v5122
        %v5186 = vpop.f32.mrf.mxu0
        %v5187 = vadd.f32 0.0, %v5186
        %5188 = vmatmul.f32.gmra.mxu0 %v5125
        %v5189 = vpop.f32.mrf.mxu0
        %v5190 = vadd.f32 0.0, %v5189
        %5191 = vmatmul.f32.gmra.mxu0 %v5128
        %v5192 = vpop.f32.mrf.mxu0
        %v5193 = vadd.f32 0.0, %v5192
        %5194 = vmatmul.f32.gmra.mxu0 %v5131
        %v5195 = vpop.f32.mrf.mxu0
        %v5196 = vadd.f32 0.0, %v5195
        %5197 = vmatmul.f32.gmra.mxu0 %v5134
        %v5198 = vpop.f32.mrf.mxu0
        %v5199 = vadd.f32 0.0, %v5198
        %5200 = vmatmul.f32.gmra.mxu0 %v5137
        %v5201 = vpop.f32.mrf.mxu0
        %v5202 = vadd.f32 0.0, %v5201
        %5203 = vmatmul.f32.gmra.mxu0 %v5140
        %v5204 = vpop.f32.mrf.mxu0
        %v5205 = vadd.f32 0.0, %v5204
        %5206 = vmatmul.f32.gmra.mxu0 %v5143
        %v5207 = vpop.f32.mrf.mxu0
        %v5208 = vadd.f32 0.0, %v5207
        %5209 = vmatmul.f32.gmra.mxu0 %v5146
        %v5210 = vpop.f32.mrf.mxu0
        %v5211 = vadd.f32 0.0, %v5210
        %5212 = vmatmul.f32.gmra.mxu0 %v5149
        %v5213 = vpop.f32.mrf.mxu0
        %v5214 = vadd.f32 0.0, %v5213
        %5215 = vmatmul.f32.gmra.mxu0 %v5152
        %v5216 = vpop.f32.mrf.mxu0
        %v5217 = vadd.f32 0.0, %v5216
        %5218 = vdwg.mxu0
        %v5219 = vadd.f32 %v5073, %v5172
        %v5220 = vadd.f32 %v5074, %v5175
        %v5221 = vadd.f32 %v5075, %v5178
        %v5222 = vadd.f32 %v5076, %v5181
        %v5223 = vadd.f32 %v5077, %v5184
        %v5224 = vadd.f32 %v5078, %v5187
        %v5225 = vadd.f32 %v5079, %v5190
        %v5226 = vadd.f32 %v5080, %v5193
        %v5227 = vadd.f32 %v5081, %v5196
        %v5228 = vadd.f32 %v5082, %v5199
        %v5229 = vadd.f32 %v5083, %v5202
        %v5230 = vadd.f32 %v5084, %v5205
        %v5231 = vadd.f32 %v5085, %v5208
        %v5232 = vadd.f32 %v5086, %v5211
        %v5233 = vadd.f32 %v5087, %v5214
        %v5234 = vadd.f32 %v5088, %v5217
        %v5235 = vld [vmem:[%s3164 + $0x2] sm:$0xff]
        %v5236 = vld [vmem:[%s3164 + $0xa] sm:$0xff]
        %v5237 = vld [vmem:[%s3164 + $0x1a] sm:$0xff]
        %v5238 = vld [vmem:[%s3164 + $0x22] sm:$0xff]
        %v5239 = vld [vmem:[%s3164 + $0x32] sm:$0xff]
        %v5240 = vld [vmem:[%s3164 + $0x3a] sm:$0xff]
        %v5241 = vld [vmem:[%s3164 + $0x4a] sm:$0xff]
        %v5242 = vld [vmem:[%s3164 + $0x52] sm:$0xff]
        %v5243 = vld [vmem:[%s3164 + $0x62] sm:$0xff]
        %v5244 = vld [vmem:[%s3164 + $0x6a] sm:$0xff]
        %v5245 = vld [vmem:[%s3164 + $0x7a] sm:$0xff]
        %v5246 = vld [vmem:[%s3164 + $0x82] sm:$0xff]
        %v5247 = vld [vmem:[%s3164 + $0x92] sm:$0xff]
        %v5248 = vld [vmem:[%s3164 + $0x9a] sm:$0xff]
        %v5249 = vld [vmem:[%s3164 + $0xaa] sm:$0xff]
        %v5250 = vld [vmem:[%s3164 + $0xb2] sm:$0xff]
        %v5251 = vld [vmem:[%s3899] sm:$0xff]
        %v5253 = vsel %vm374, %v5235, 0
        %v5256 = vsel %vm374, %v5236, 0
        %v5259 = vsel %vm374, %v5237, 0
        %v5262 = vsel %vm374, %v5238, 0
        %v5265 = vsel %vm374, %v5239, 0
        %v5268 = vsel %vm374, %v5240, 0
        %v5271 = vsel %vm374, %v5241, 0
        %v5274 = vsel %vm374, %v5242, 0
        %v5277 = vsel %vm374, %v5243, 0
        %v5280 = vsel %vm374, %v5244, 0
        %v5283 = vsel %vm374, %v5245, 0
        %v5286 = vsel %vm374, %v5246, 0
        %v5289 = vsel %vm374, %v5247, 0
        %v5292 = vsel %vm374, %v5248, 0
        %v5295 = vsel %vm374, %v5249, 0
        %v5298 = vsel %vm374, %v5250, 0
        %5300 = vmatpush.msra.mxu0 0.0
        %5301 = vmatpush.msra.mxu0 0.0
        %5302 = vmatpush.msra.mxu0 0.0
        %5303 = vmatpush.msra.mxu0 0.0
        %5304 = vmatpush.msra.mxu0 0.0
        %5305 = vmatpush.msra.mxu0 0.0
        %5306 = vmatpush.msra.mxu0 0.0
        %5307 = vmatpush.msra.mxu0 0.0
        %5308 = vmatpush.msra.mxu0 0.0
        %5309 = vmatpush.msra.mxu0 0.0
        %5310 = vmatpush.msra.mxu0 0.0
        %5311 = vmatpush.msra.mxu0 0.0
        %5312 = vmatpush.msra.mxu0 0.0
        %5313 = vmatpush.msra.mxu0 0.0
        %5314 = vmatpush.msra.mxu0 0.0
        %5315 = vmatpush.msra.mxu0 %v5251
        %5316 = vmatmul.f32.gmra.mxu0 %v5253
        %v5317 = vpop.f32.mrf.mxu0
        %v5318 = vadd.f32 0.0, %v5317
        %5319 = vmatmul.f32.gmra.mxu0 %v5256
        %v5320 = vpop.f32.mrf.mxu0
        %v5321 = vadd.f32 0.0, %v5320
        %5322 = vmatmul.f32.gmra.mxu0 %v5259
        %v5323 = vpop.f32.mrf.mxu0
        %v5324 = vadd.f32 0.0, %v5323
        %5325 = vmatmul.f32.gmra.mxu0 %v5262
        %v5326 = vpop.f32.mrf.mxu0
        %v5327 = vadd.f32 0.0, %v5326
        %5328 = vmatmul.f32.gmra.mxu0 %v5265
        %v5329 = vpop.f32.mrf.mxu0
        %v5330 = vadd.f32 0.0, %v5329
        %5331 = vmatmul.f32.gmra.mxu0 %v5268
        %v5332 = vpop.f32.mrf.mxu0
        %v5333 = vadd.f32 0.0, %v5332
        %5334 = vmatmul.f32.gmra.mxu0 %v5271
        %v5335 = vpop.f32.mrf.mxu0
        %v5336 = vadd.f32 0.0, %v5335
        %5337 = vmatmul.f32.gmra.mxu0 %v5274
        %v5338 = vpop.f32.mrf.mxu0
        %v5339 = vadd.f32 0.0, %v5338
        %5340 = vmatmul.f32.gmra.mxu0 %v5277
        %v5341 = vpop.f32.mrf.mxu0
        %v5342 = vadd.f32 0.0, %v5341
        %5343 = vmatmul.f32.gmra.mxu0 %v5280
        %v5344 = vpop.f32.mrf.mxu0
        %v5345 = vadd.f32 0.0, %v5344
        %5346 = vmatmul.f32.gmra.mxu0 %v5283
        %v5347 = vpop.f32.mrf.mxu0
        %v5348 = vadd.f32 0.0, %v5347
        %5349 = vmatmul.f32.gmra.mxu0 %v5286
        %v5350 = vpop.f32.mrf.mxu0
        %v5351 = vadd.f32 0.0, %v5350
        %5352 = vmatmul.f32.gmra.mxu0 %v5289
        %v5353 = vpop.f32.mrf.mxu0
        %v5354 = vadd.f32 0.0, %v5353
        %5355 = vmatmul.f32.gmra.mxu0 %v5292
        %v5356 = vpop.f32.mrf.mxu0
        %v5357 = vadd.f32 0.0, %v5356
        %5358 = vmatmul.f32.gmra.mxu0 %v5295
        %v5359 = vpop.f32.mrf.mxu0
        %v5360 = vadd.f32 0.0, %v5359
        %5361 = vmatmul.f32.gmra.mxu0 %v5298
        %v5362 = vpop.f32.mrf.mxu0
        %v5363 = vadd.f32 0.0, %v5362
        %5364 = vdwg.mxu0
        %v5365 = vadd.f32 %v5219, %v5318
        %v5366 = vadd.f32 %v5220, %v5321
        %v5367 = vadd.f32 %v5221, %v5324
        %v5368 = vadd.f32 %v5222, %v5327
        %v5369 = vadd.f32 %v5223, %v5330
        %v5370 = vadd.f32 %v5224, %v5333
        %v5371 = vadd.f32 %v5225, %v5336
        %v5372 = vadd.f32 %v5226, %v5339
        %v5373 = vadd.f32 %v5227, %v5342
        %v5374 = vadd.f32 %v5228, %v5345
        %v5375 = vadd.f32 %v5229, %v5348
        %v5376 = vadd.f32 %v5230, %v5351
        %v5377 = vadd.f32 %v5231, %v5354
        %v5378 = vadd.f32 %v5232, %v5357
        %v5379 = vadd.f32 %v5233, %v5360
        %v5380 = vadd.f32 %v5234, %v5363
        %s5381 = scalar_lea.vmem [#allocation3], 240
        %v5382 = vld [vmem:[%s5381] sm:$0xff]
        %v5383 = vld [vmem:[%s5381 + $0x8] sm:$0xff]
        %v5384 = vld [vmem:[%s5381 + $0x18] sm:$0xff]
        %v5385 = vld [vmem:[%s5381 + $0x20] sm:$0xff]
        %v5386 = vld [vmem:[%s5381 + $0x30] sm:$0xff]
        %v5387 = vld [vmem:[%s5381 + $0x38] sm:$0xff]
        %v5388 = vld [vmem:[%s5381 + $0x48] sm:$0xff]
        %v5389 = vld [vmem:[%s5381 + $0x50] sm:$0xff]
        %v5390 = vld [vmem:[%s5381 + $0x60] sm:$0xff]
        %v5391 = vld [vmem:[%s5381 + $0x68] sm:$0xff]
        %v5392 = vld [vmem:[%s5381 + $0x78] sm:$0xff]
        %v5393 = vld [vmem:[%s5381 + $0x80] sm:$0xff]
        %v5394 = vld [vmem:[%s5381 + $0x90] sm:$0xff]
        %v5395 = vld [vmem:[%s5381 + $0x98] sm:$0xff]
        %v5396 = vld [vmem:[%s5381 + $0xa8] sm:$0xff]
        %v5397 = vld [vmem:[%s5381 + $0xb0] sm:$0xff]
        %v5398 = vld [vmem:[%s4047] sm:$0xff]
        %v5400 = vsel %vm374, %v5382, 0
        %v5403 = vsel %vm374, %v5383, 0
        %v5406 = vsel %vm374, %v5384, 0
        %v5409 = vsel %vm374, %v5385, 0
        %v5412 = vsel %vm374, %v5386, 0
        %v5415 = vsel %vm374, %v5387, 0
        %v5418 = vsel %vm374, %v5388, 0
        %v5421 = vsel %vm374, %v5389, 0
        %v5424 = vsel %vm374, %v5390, 0
        %v5427 = vsel %vm374, %v5391, 0
        %v5430 = vsel %vm374, %v5392, 0
        %v5433 = vsel %vm374, %v5393, 0
        %v5436 = vsel %vm374, %v5394, 0
        %v5439 = vsel %vm374, %v5395, 0
        %v5442 = vsel %vm374, %v5396, 0
        %v5445 = vsel %vm374, %v5397, 0
        %5447 = vmatpush.msra.mxu0 0.0
        %5448 = vmatpush.msra.mxu0 0.0
        %5449 = vmatpush.msra.mxu0 0.0
        %5450 = vmatpush.msra.mxu0 0.0
        %5451 = vmatpush.msra.mxu0 0.0
        %5452 = vmatpush.msra.mxu0 0.0
        %5453 = vmatpush.msra.mxu0 0.0
        %5454 = vmatpush.msra.mxu0 0.0
        %5455 = vmatpush.msra.mxu0 0.0
        %5456 = vmatpush.msra.mxu0 0.0
        %5457 = vmatpush.msra.mxu0 0.0
        %5458 = vmatpush.msra.mxu0 0.0
        %5459 = vmatpush.msra.mxu0 0.0
        %5460 = vmatpush.msra.mxu0 0.0
        %5461 = vmatpush.msra.mxu0 0.0
        %5462 = vmatpush.msra.mxu0 %v5398
        %5463 = vmatmul.f32.gmra.mxu0 %v5400
        %v5464 = vpop.f32.mrf.mxu0
        %v5465 = vadd.f32 0.0, %v5464
        %5466 = vmatmul.f32.gmra.mxu0 %v5403
        %v5467 = vpop.f32.mrf.mxu0
        %v5468 = vadd.f32 0.0, %v5467
        %5469 = vmatmul.f32.gmra.mxu0 %v5406
        %v5470 = vpop.f32.mrf.mxu0
        %v5471 = vadd.f32 0.0, %v5470
        %5472 = vmatmul.f32.gmra.mxu0 %v5409
        %v5473 = vpop.f32.mrf.mxu0
        %v5474 = vadd.f32 0.0, %v5473
        %5475 = vmatmul.f32.gmra.mxu0 %v5412
        %v5476 = vpop.f32.mrf.mxu0
        %v5477 = vadd.f32 0.0, %v5476
        %5478 = vmatmul.f32.gmra.mxu0 %v5415
        %v5479 = vpop.f32.mrf.mxu0
        %v5480 = vadd.f32 0.0, %v5479
        %5481 = vmatmul.f32.gmra.mxu0 %v5418
        %v5482 = vpop.f32.mrf.mxu0
        %v5483 = vadd.f32 0.0, %v5482
        %5484 = vmatmul.f32.gmra.mxu0 %v5421
        %v5485 = vpop.f32.mrf.mxu0
        %v5486 = vadd.f32 0.0, %v5485
        %5487 = vmatmul.f32.gmra.mxu0 %v5424
        %v5488 = vpop.f32.mrf.mxu0
        %v5489 = vadd.f32 0.0, %v5488
        %5490 = vmatmul.f32.gmra.mxu0 %v5427
        %v5491 = vpop.f32.mrf.mxu0
        %v5492 = vadd.f32 0.0, %v5491
        %5493 = vmatmul.f32.gmra.mxu0 %v5430
        %v5494 = vpop.f32.mrf.mxu0
        %v5495 = vadd.f32 0.0, %v5494
        %5496 = vmatmul.f32.gmra.mxu0 %v5433
        %v5497 = vpop.f32.mrf.mxu0
        %v5498 = vadd.f32 0.0, %v5497
        %5499 = vmatmul.f32.gmra.mxu0 %v5436
        %v5500 = vpop.f32.mrf.mxu0
        %v5501 = vadd.f32 0.0, %v5500
        %5502 = vmatmul.f32.gmra.mxu0 %v5439
        %v5503 = vpop.f32.mrf.mxu0
        %v5504 = vadd.f32 0.0, %v5503
        %5505 = vmatmul.f32.gmra.mxu0 %v5442
        %v5506 = vpop.f32.mrf.mxu0
        %v5507 = vadd.f32 0.0, %v5506
        %5508 = vmatmul.f32.gmra.mxu0 %v5445
        %v5509 = vpop.f32.mrf.mxu0
        %v5510 = vadd.f32 0.0, %v5509
        %5511 = vdwg.mxu0
        %v5512 = vadd.f32 %v5365, %v5465
        %v5513 = vadd.f32 %v5366, %v5468
        %v5514 = vadd.f32 %v5367, %v5471
        %v5515 = vadd.f32 %v5368, %v5474
        %v5516 = vadd.f32 %v5369, %v5477
        %v5517 = vadd.f32 %v5370, %v5480
        %v5518 = vadd.f32 %v5371, %v5483
        %v5519 = vadd.f32 %v5372, %v5486
        %v5520 = vadd.f32 %v5373, %v5489
        %v5521 = vadd.f32 %v5374, %v5492
        %v5522 = vadd.f32 %v5375, %v5495
        %v5523 = vadd.f32 %v5376, %v5498
        %v5524 = vadd.f32 %v5377, %v5501
        %v5525 = vadd.f32 %v5378, %v5504
        %v5526 = vadd.f32 %v5379, %v5507
        %v5527 = vadd.f32 %v5380, %v5510
        %v5528 = vld [vmem:[%s5381 + $0x1] sm:$0xff]
        %v5529 = vld [vmem:[%s5381 + $0x9] sm:$0xff]
        %v5530 = vld [vmem:[%s5381 + $0x19] sm:$0xff]
        %v5531 = vld [vmem:[%s5381 + $0x21] sm:$0xff]
        %v5532 = vld [vmem:[%s5381 + $0x31] sm:$0xff]
        %v5533 = vld [vmem:[%s5381 + $0x39] sm:$0xff]
        %v5534 = vld [vmem:[%s5381 + $0x49] sm:$0xff]
        %v5535 = vld [vmem:[%s5381 + $0x51] sm:$0xff]
        %v5536 = vld [vmem:[%s5381 + $0x61] sm:$0xff]
        %v5537 = vld [vmem:[%s5381 + $0x69] sm:$0xff]
        %v5538 = vld [vmem:[%s5381 + $0x79] sm:$0xff]
        %v5539 = vld [vmem:[%s5381 + $0x81] sm:$0xff]
        %v5540 = vld [vmem:[%s5381 + $0x91] sm:$0xff]
        %v5541 = vld [vmem:[%s5381 + $0x99] sm:$0xff]
        %v5542 = vld [vmem:[%s5381 + $0xa9] sm:$0xff]
        %v5543 = vld [vmem:[%s5381 + $0xb1] sm:$0xff]
        %v5544 = vld [vmem:[%s4194] sm:$0xff]
        %v5546 = vsel %vm374, %v5528, 0
        %v5549 = vsel %vm374, %v5529, 0
        %v5552 = vsel %vm374, %v5530, 0
        %v5555 = vsel %vm374, %v5531, 0
        %v5558 = vsel %vm374, %v5532, 0
        %v5561 = vsel %vm374, %v5533, 0
        %v5564 = vsel %vm374, %v5534, 0
        %v5567 = vsel %vm374, %v5535, 0
        %v5570 = vsel %vm374, %v5536, 0
        %v5573 = vsel %vm374, %v5537, 0
        %v5576 = vsel %vm374, %v5538, 0
        %v5579 = vsel %vm374, %v5539, 0
        %v5582 = vsel %vm374, %v5540, 0
        %v5585 = vsel %vm374, %v5541, 0
        %v5588 = vsel %vm374, %v5542, 0
        %v5591 = vsel %vm374, %v5543, 0
        %5593 = vmatpush.msra.mxu0 0.0
        %5594 = vmatpush.msra.mxu0 0.0
        %5595 = vmatpush.msra.mxu0 0.0
        %5596 = vmatpush.msra.mxu0 0.0
        %5597 = vmatpush.msra.mxu0 0.0
        %5598 = vmatpush.msra.mxu0 0.0
        %5599 = vmatpush.msra.mxu0 0.0
        %5600 = vmatpush.msra.mxu0 0.0
        %5601 = vmatpush.msra.mxu0 0.0
        %5602 = vmatpush.msra.mxu0 0.0
        %5603 = vmatpush.msra.mxu0 0.0
        %5604 = vmatpush.msra.mxu0 0.0
        %5605 = vmatpush.msra.mxu0 0.0
        %5606 = vmatpush.msra.mxu0 0.0
        %5607 = vmatpush.msra.mxu0 0.0
        %5608 = vmatpush.msra.mxu0 %v5544
        %5609 = vmatmul.f32.gmra.mxu0 %v5546
        %v5610 = vpop.f32.mrf.mxu0
        %v5611 = vadd.f32 0.0, %v5610
        %5612 = vmatmul.f32.gmra.mxu0 %v5549
        %v5613 = vpop.f32.mrf.mxu0
        %v5614 = vadd.f32 0.0, %v5613
        %5615 = vmatmul.f32.gmra.mxu0 %v5552
        %v5616 = vpop.f32.mrf.mxu0
        %v5617 = vadd.f32 0.0, %v5616
        %5618 = vmatmul.f32.gmra.mxu0 %v5555
        %v5619 = vpop.f32.mrf.mxu0
        %v5620 = vadd.f32 0.0, %v5619
        %5621 = vmatmul.f32.gmra.mxu0 %v5558
        %v5622 = vpop.f32.mrf.mxu0
        %v5623 = vadd.f32 0.0, %v5622
        %5624 = vmatmul.f32.gmra.mxu0 %v5561
        %v5625 = vpop.f32.mrf.mxu0
        %v5626 = vadd.f32 0.0, %v5625
        %5627 = vmatmul.f32.gmra.mxu0 %v5564
        %v5628 = vpop.f32.mrf.mxu0
        %v5629 = vadd.f32 0.0, %v5628
        %5630 = vmatmul.f32.gmra.mxu0 %v5567
        %v5631 = vpop.f32.mrf.mxu0
        %v5632 = vadd.f32 0.0, %v5631
        %5633 = vmatmul.f32.gmra.mxu0 %v5570
        %v5634 = vpop.f32.mrf.mxu0
        %v5635 = vadd.f32 0.0, %v5634
        %5636 = vmatmul.f32.gmra.mxu0 %v5573
        %v5637 = vpop.f32.mrf.mxu0
        %v5638 = vadd.f32 0.0, %v5637
        %5639 = vmatmul.f32.gmra.mxu0 %v5576
        %v5640 = vpop.f32.mrf.mxu0
        %v5641 = vadd.f32 0.0, %v5640
        %5642 = vmatmul.f32.gmra.mxu0 %v5579
        %v5643 = vpop.f32.mrf.mxu0
        %v5644 = vadd.f32 0.0, %v5643
        %5645 = vmatmul.f32.gmra.mxu0 %v5582
        %v5646 = vpop.f32.mrf.mxu0
        %v5647 = vadd.f32 0.0, %v5646
        %5648 = vmatmul.f32.gmra.mxu0 %v5585
        %v5649 = vpop.f32.mrf.mxu0
        %v5650 = vadd.f32 0.0, %v5649
        %5651 = vmatmul.f32.gmra.mxu0 %v5588
        %v5652 = vpop.f32.mrf.mxu0
        %v5653 = vadd.f32 0.0, %v5652
        %5654 = vmatmul.f32.gmra.mxu0 %v5591
        %v5655 = vpop.f32.mrf.mxu0
        %v5656 = vadd.f32 0.0, %v5655
        %5657 = vdwg.mxu0
        %v5658 = vadd.f32 %v5512, %v5611
        %v5659 = vadd.f32 %v5513, %v5614
        %v5660 = vadd.f32 %v5514, %v5617
        %v5661 = vadd.f32 %v5515, %v5620
        %v5662 = vadd.f32 %v5516, %v5623
        %v5663 = vadd.f32 %v5517, %v5626
        %v5664 = vadd.f32 %v5518, %v5629
        %v5665 = vadd.f32 %v5519, %v5632
        %v5666 = vadd.f32 %v5520, %v5635
        %v5667 = vadd.f32 %v5521, %v5638
        %v5668 = vadd.f32 %v5522, %v5641
        %v5669 = vadd.f32 %v5523, %v5644
        %v5670 = vadd.f32 %v5524, %v5647
        %v5671 = vadd.f32 %v5525, %v5650
        %v5672 = vadd.f32 %v5526, %v5653
        %v5673 = vadd.f32 %v5527, %v5656
        %v5674 = vld [vmem:[%s5381 + $0x2] sm:$0xff]
        %v5675 = vld [vmem:[%s5381 + $0xa] sm:$0xff]
        %v5676 = vld [vmem:[%s5381 + $0x1a] sm:$0xff]
        %v5677 = vld [vmem:[%s5381 + $0x22] sm:$0xff]
        %v5678 = vld [vmem:[%s5381 + $0x32] sm:$0xff]
        %v5679 = vld [vmem:[%s5381 + $0x3a] sm:$0xff]
        %v5680 = vld [vmem:[%s5381 + $0x4a] sm:$0xff]
        %v5681 = vld [vmem:[%s5381 + $0x52] sm:$0xff]
        %v5682 = vld [vmem:[%s5381 + $0x62] sm:$0xff]
        %v5683 = vld [vmem:[%s5381 + $0x6a] sm:$0xff]
        %v5684 = vld [vmem:[%s5381 + $0x7a] sm:$0xff]
        %v5685 = vld [vmem:[%s5381 + $0x82] sm:$0xff]
        %v5686 = vld [vmem:[%s5381 + $0x92] sm:$0xff]
        %v5687 = vld [vmem:[%s5381 + $0x9a] sm:$0xff]
        %v5688 = vld [vmem:[%s5381 + $0xaa] sm:$0xff]
        %v5689 = vld [vmem:[%s5381 + $0xb2] sm:$0xff]
        %v5690 = vld [vmem:[%s4341] sm:$0xff]
        %v5692 = vsel %vm374, %v5674, 0
        %v5695 = vsel %vm374, %v5675, 0
        %v5698 = vsel %vm374, %v5676, 0
        %v5701 = vsel %vm374, %v5677, 0
        %v5704 = vsel %vm374, %v5678, 0
        %v5707 = vsel %vm374, %v5679, 0
        %v5710 = vsel %vm374, %v5680, 0
        %v5713 = vsel %vm374, %v5681, 0
        %v5716 = vsel %vm374, %v5682, 0
        %v5719 = vsel %vm374, %v5683, 0
        %v5722 = vsel %vm374, %v5684, 0
        %v5725 = vsel %vm374, %v5685, 0
        %v5728 = vsel %vm374, %v5686, 0
        %v5731 = vsel %vm374, %v5687, 0
        %v5734 = vsel %vm374, %v5688, 0
        %v5737 = vsel %vm374, %v5689, 0
        %5739 = vmatpush.msra.mxu0 0.0
        %5740 = vmatpush.msra.mxu0 0.0
        %5741 = vmatpush.msra.mxu0 0.0
        %5742 = vmatpush.msra.mxu0 0.0
        %5743 = vmatpush.msra.mxu0 0.0
        %5744 = vmatpush.msra.mxu0 0.0
        %5745 = vmatpush.msra.mxu0 0.0
        %5746 = vmatpush.msra.mxu0 0.0
        %5747 = vmatpush.msra.mxu0 0.0
        %5748 = vmatpush.msra.mxu0 0.0
        %5749 = vmatpush.msra.mxu0 0.0
        %5750 = vmatpush.msra.mxu0 0.0
        %5751 = vmatpush.msra.mxu0 0.0
        %5752 = vmatpush.msra.mxu0 0.0
        %5753 = vmatpush.msra.mxu0 0.0
        %5754 = vmatpush.msra.mxu0 %v5690
        %5755 = vmatmul.f32.gmra.mxu0 %v5692
        %v5756 = vpop.f32.mrf.mxu0
        %v5757 = vadd.f32 0.0, %v5756
        %5758 = vmatmul.f32.gmra.mxu0 %v5695
        %v5759 = vpop.f32.mrf.mxu0
        %v5760 = vadd.f32 0.0, %v5759
        %5761 = vmatmul.f32.gmra.mxu0 %v5698
        %v5762 = vpop.f32.mrf.mxu0
        %v5763 = vadd.f32 0.0, %v5762
        %5764 = vmatmul.f32.gmra.mxu0 %v5701
        %v5765 = vpop.f32.mrf.mxu0
        %v5766 = vadd.f32 0.0, %v5765
        %5767 = vmatmul.f32.gmra.mxu0 %v5704
        %v5768 = vpop.f32.mrf.mxu0
        %v5769 = vadd.f32 0.0, %v5768
        %5770 = vmatmul.f32.gmra.mxu0 %v5707
        %v5771 = vpop.f32.mrf.mxu0
        %v5772 = vadd.f32 0.0, %v5771
        %5773 = vmatmul.f32.gmra.mxu0 %v5710
        %v5774 = vpop.f32.mrf.mxu0
        %v5775 = vadd.f32 0.0, %v5774
        %5776 = vmatmul.f32.gmra.mxu0 %v5713
        %v5777 = vpop.f32.mrf.mxu0
        %v5778 = vadd.f32 0.0, %v5777
        %5779 = vmatmul.f32.gmra.mxu0 %v5716
        %v5780 = vpop.f32.mrf.mxu0
        %v5781 = vadd.f32 0.0, %v5780
        %5782 = vmatmul.f32.gmra.mxu0 %v5719
        %v5783 = vpop.f32.mrf.mxu0
        %v5784 = vadd.f32 0.0, %v5783
        %5785 = vmatmul.f32.gmra.mxu0 %v5722
        %v5786 = vpop.f32.mrf.mxu0
        %v5787 = vadd.f32 0.0, %v5786
        %5788 = vmatmul.f32.gmra.mxu0 %v5725
        %v5789 = vpop.f32.mrf.mxu0
        %v5790 = vadd.f32 0.0, %v5789
        %5791 = vmatmul.f32.gmra.mxu0 %v5728
        %v5792 = vpop.f32.mrf.mxu0
        %v5793 = vadd.f32 0.0, %v5792
        %5794 = vmatmul.f32.gmra.mxu0 %v5731
        %v5795 = vpop.f32.mrf.mxu0
        %v5796 = vadd.f32 0.0, %v5795
        %5797 = vmatmul.f32.gmra.mxu0 %v5734
        %v5798 = vpop.f32.mrf.mxu0
        %v5799 = vadd.f32 0.0, %v5798
        %5800 = vmatmul.f32.gmra.mxu0 %v5737
        %v5801 = vpop.f32.mrf.mxu0
        %v5802 = vadd.f32 0.0, %v5801
        %5803 = vdwg.mxu0
        %v5804 = vadd.f32 %v5658, %v5757
        %v5805 = vadd.f32 %v5659, %v5760
        %v5806 = vadd.f32 %v5660, %v5763
        %v5807 = vadd.f32 %v5661, %v5766
        %v5808 = vadd.f32 %v5662, %v5769
        %v5809 = vadd.f32 %v5663, %v5772
        %v5810 = vadd.f32 %v5664, %v5775
        %v5811 = vadd.f32 %v5665, %v5778
        %v5812 = vadd.f32 %v5666, %v5781
        %v5813 = vadd.f32 %v5667, %v5784
        %v5814 = vadd.f32 %v5668, %v5787
        %v5815 = vadd.f32 %v5669, %v5790
        %v5816 = vadd.f32 %v5670, %v5793
        %v5817 = vadd.f32 %v5671, %v5796
        %v5818 = vadd.f32 %v5672, %v5799
        %v5819 = vadd.f32 %v5673, %v5802
        %vm5820 = vcmp.ge.f32.partialorder %v5804, 0.0
        %vm5821 = vcmp.ge.f32.partialorder %v5805, 0.0
        %vm5822 = vcmp.ge.f32.partialorder %v5806, 0.0
        %vm5823 = vcmp.ge.f32.partialorder %v5807, 0.0
        %vm5824 = vcmp.ge.f32.partialorder %v5808, 0.0
        %vm5825 = vcmp.ge.f32.partialorder %v5809, 0.0
        %vm5826 = vcmp.ge.f32.partialorder %v5810, 0.0
        %vm5827 = vcmp.ge.f32.partialorder %v5811, 0.0
        %vm5828 = vcmp.ge.f32.partialorder %v5812, 0.0
        %vm5829 = vcmp.ge.f32.partialorder %v5813, 0.0
        %vm5830 = vcmp.ge.f32.partialorder %v5814, 0.0
        %vm5831 = vcmp.ge.f32.partialorder %v5815, 0.0
        %vm5832 = vcmp.ge.f32.partialorder %v5816, 0.0
        %vm5833 = vcmp.ge.f32.partialorder %v5817, 0.0
        %vm5834 = vcmp.ge.f32.partialorder %v5818, 0.0
        %vm5835 = vcmp.ge.f32.partialorder %v5819, 0.0
        %v5836 = vmul.f32 %v5804, 0.01
        %v5837 = vmul.f32 %v5805, 0.01
        %v5838 = vmul.f32 %v5806, 0.01
        %v5839 = vmul.f32 %v5807, 0.01
        %v5840 = vmul.f32 %v5808, 0.01
        %v5841 = vmul.f32 %v5809, 0.01
        %v5842 = vmul.f32 %v5810, 0.01
        %v5843 = vmul.f32 %v5811, 0.01
        %v5844 = vmul.f32 %v5812, 0.01
        %v5845 = vmul.f32 %v5813, 0.01
        %v5846 = vmul.f32 %v5814, 0.01
        %v5847 = vmul.f32 %v5815, 0.01
        %v5848 = vmul.f32 %v5816, 0.01
        %v5849 = vmul.f32 %v5817, 0.01
        %v5850 = vmul.f32 %v5818, 0.01
        %v5851 = vmul.f32 %v5819, 0.01
        %v5852 = vsel %vm5820, %v5804, %v5836
        %v5853 = vsel %vm5821, %v5805, %v5837
        %v5854 = vsel %vm5822, %v5806, %v5838
        %v5855 = vsel %vm5823, %v5807, %v5839
        %v5856 = vsel %vm5824, %v5808, %v5840
        %v5857 = vsel %vm5825, %v5809, %v5841
        %v5858 = vsel %vm5826, %v5810, %v5842
        %v5859 = vsel %vm5827, %v5811, %v5843
        %v5860 = vsel %vm5828, %v5812, %v5844
        %v5861 = vsel %vm5829, %v5813, %v5845
        %v5862 = vsel %vm5830, %v5814, %v5846
        %v5863 = vsel %vm5831, %v5815, %v5847
        %v5864 = vsel %vm5832, %v5816, %v5848
        %v5865 = vsel %vm5833, %v5817, %v5849
        %v5866 = vsel %vm5834, %v5818, %v5850
        %v5867 = vsel %vm5835, %v5819, %v5851
        %s5868 = scalar_lea.vmem %s262, 128
        %5869 = vst.msk [vmem:[%s5868] sm:$0xff] %vm374, %v5852
        %5870 = vst.msk [vmem:[%s5868 + $0x8] sm:$0xff] %vm374, %v5853
        %5871 = vst.msk [vmem:[%s5868 + $0x10] sm:$0xff] %vm374, %v5854
        %5872 = vst.msk [vmem:[%s5868 + $0x18] sm:$0xff] %vm374, %v5855
        %5873 = vst.msk [vmem:[%s5868 + $0x20] sm:$0xff] %vm374, %v5856
        %5874 = vst.msk [vmem:[%s5868 + $0x28] sm:$0xff] %vm374, %v5857
        %5875 = vst.msk [vmem:[%s5868 + $0x30] sm:$0xff] %vm374, %v5858
        %5876 = vst.msk [vmem:[%s5868 + $0x38] sm:$0xff] %vm374, %v5859
        %5877 = vst.msk [vmem:[%s5868 + $0x40] sm:$0xff] %vm374, %v5860
        %5878 = vst.msk [vmem:[%s5868 + $0x48] sm:$0xff] %vm374, %v5861
        %5879 = vst.msk [vmem:[%s5868 + $0x50] sm:$0xff] %vm374, %v5862
        %5880 = vst.msk [vmem:[%s5868 + $0x58] sm:$0xff] %vm374, %v5863
        %5881 = vst.msk [vmem:[%s5868 + $0x60] sm:$0xff] %vm374, %v5864
        %5882 = vst.msk [vmem:[%s5868 + $0x68] sm:$0xff] %vm374, %v5865
        %5883 = vst.msk [vmem:[%s5868 + $0x70] sm:$0xff] %vm374, %v5866
        %5884 = vst.msk [vmem:[%s5868 + $0x78] sm:$0xff] %vm374, %v5867
        %v5885 = vld [vmem:[%s262] sm:$0xff]
        %v5886 = vld [vmem:[%s262 + $0x8] sm:$0xff]
        %v5887 = vld [vmem:[%s262 + $0x10] sm:$0xff]
        %v5888 = vld [vmem:[%s262 + $0x18] sm:$0xff]
        %v5889 = vld [vmem:[%s262 + $0x20] sm:$0xff]
        %v5890 = vld [vmem:[%s262 + $0x28] sm:$0xff]
        %v5891 = vld [vmem:[%s262 + $0x30] sm:$0xff]
        %v5892 = vld [vmem:[%s262 + $0x38] sm:$0xff]
        %v5893 = vld [vmem:[%s262 + $0x40] sm:$0xff]
        %v5894 = vld [vmem:[%s262 + $0x48] sm:$0xff]
        %v5895 = vld [vmem:[%s262 + $0x50] sm:$0xff]
        %v5896 = vld [vmem:[%s262 + $0x58] sm:$0xff]
        %v5897 = vld [vmem:[%s262 + $0x60] sm:$0xff]
        %v5898 = vld [vmem:[%s262 + $0x68] sm:$0xff]
        %v5899 = vld [vmem:[%s262 + $0x70] sm:$0xff]
        %v5900 = vld [vmem:[%s262 + $0x78] sm:$0xff]
        %v5901 = vld [vmem:[%s262 + $0x80] sm:$0xff]
        %v5902 = vld [vmem:[%s262 + $0x88] sm:$0xff]
        %v5903 = vld [vmem:[%s262 + $0x90] sm:$0xff]
        %v5904 = vld [vmem:[%s262 + $0x98] sm:$0xff]
        %v5905 = vld [vmem:[%s262 + $0xa0] sm:$0xff]
        %v5906 = vld [vmem:[%s262 + $0xa8] sm:$0xff]
        %v5907 = vld [vmem:[%s262 + $0xb0] sm:$0xff]
        %v5908 = vld [vmem:[%s262 + $0xb8] sm:$0xff]
        %v5909 = vld [vmem:[%s262 + $0xc0] sm:$0xff]
        %v5910 = vld [vmem:[%s262 + $0xc8] sm:$0xff]
        %v5911 = vld [vmem:[%s262 + $0xd0] sm:$0xff]
        %v5912 = vld [vmem:[%s262 + $0xd8] sm:$0xff]
        %v5913 = vld [vmem:[%s262 + $0xe0] sm:$0xff]
        %v5914 = vld [vmem:[%s262 + $0xe8] sm:$0xff]
        %v5915 = vld [vmem:[%s262 + $0xf0] sm:$0xff]
        %v5916 = vld [vmem:[%s262 + $0xf8] sm:$0xff]
        %v5917 = vsel %vm374, %v5885, -inf
        %v5918 = vsel %vm374, %v5887, -inf
        %v5919 = vmax.f32 %v5917, %v5918
        %v5920 = vsel %vm374, %v5886, -inf
        %v5921 = vsel %vm374, %v5888, -inf
        %v5922 = vmax.f32 %v5920, %v5921
        %v5923 = vsel %vm374, %v5889, -inf
        %v5924 = vsel %vm374, %v5891, -inf
        %v5925 = vmax.f32 %v5923, %v5924
        %v5926 = vsel %vm374, %v5890, -inf
        %v5927 = vsel %vm374, %v5892, -inf
        %v5928 = vmax.f32 %v5926, %v5927
        %v5929 = vsel %vm374, %v5893, -inf
        %v5930 = vsel %vm374, %v5895, -inf
        %v5931 = vmax.f32 %v5929, %v5930
        %v5932 = vsel %vm374, %v5894, -inf
        %v5933 = vsel %vm374, %v5896, -inf
        %v5934 = vmax.f32 %v5932, %v5933
        %v5935 = vsel %vm374, %v5897, -inf
        %v5936 = vsel %vm374, %v5899, -inf
        %v5937 = vmax.f32 %v5935, %v5936
        %v5938 = vsel %vm374, %v5898, -inf
        %v5939 = vsel %vm374, %v5900, -inf
        %v5940 = vmax.f32 %v5938, %v5939
        %v5941 = vsel %vm374, %v5901, -inf
        %v5942 = vsel %vm374, %v5903, -inf
        %v5943 = vmax.f32 %v5941, %v5942
        %v5944 = vsel %vm374, %v5902, -inf
        %v5945 = vsel %vm374, %v5904, -inf
        %v5946 = vmax.f32 %v5944, %v5945
        %v5947 = vsel %vm374, %v5905, -inf
        %v5948 = vsel %vm374, %v5907, -inf
        %v5949 = vmax.f32 %v5947, %v5948
        %v5950 = vsel %vm374, %v5906, -inf
        %v5951 = vsel %vm374, %v5908, -inf
        %v5952 = vmax.f32 %v5950, %v5951
        %v5953 = vsel %vm374, %v5909, -inf
        %v5954 = vsel %vm374, %v5911, -inf
        %v5955 = vmax.f32 %v5953, %v5954
        %v5956 = vsel %vm374, %v5910, -inf
        %v5957 = vsel %vm374, %v5912, -inf
        %v5958 = vmax.f32 %v5956, %v5957
        %v5959 = vsel %vm374, %v5913, -inf
        %v5960 = vsel %vm374, %v5915, -inf
        %v5961 = vmax.f32 %v5959, %v5960
        %v5962 = vsel %vm374, %v5914, -inf
        %v5963 = vsel %vm374, %v5916, -inf
        %v5964 = vmax.f32 %v5962, %v5963
        %5965 = vst.msk [vmem:[#allocation3] sm:$0xff] %vm374, %v5919
        %5966 = vst.msk [vmem:[#allocation3 + $0x8] sm:$0xff] %vm374, %v5922
        %5967 = vst.msk [vmem:[#allocation3 + $0x18] sm:$0xff] %vm374, %v5925
        %5968 = vst.msk [vmem:[#allocation3 + $0x20] sm:$0xff] %vm374, %v5928
        %5969 = vst.msk [vmem:[#allocation3 + $0x30] sm:$0xff] %vm374, %v5931
        %5970 = vst.msk [vmem:[#allocation3 + $0x38] sm:$0xff] %vm374, %v5934
        %5971 = vst.msk [vmem:[#allocation3 + $0x48] sm:$0xff] %vm374, %v5937
        %5972 = vst.msk [vmem:[#allocation3 + $0x50] sm:$0xff] %vm374, %v5940
        %5973 = vst.msk [vmem:[#allocation3 + $0x60] sm:$0xff] %vm374, %v5943
        %5974 = vst.msk [vmem:[#allocation3 + $0x68] sm:$0xff] %vm374, %v5946
        %5975 = vst.msk [vmem:[#allocation3 + $0x78] sm:$0xff] %vm374, %v5949
        %5976 = vst.msk [vmem:[#allocation3 + $0x80] sm:$0xff] %vm374, %v5952
        %5977 = vst.msk [vmem:[#allocation3 + $0x90] sm:$0xff] %vm374, %v5955
        %5978 = vst.msk [vmem:[#allocation3 + $0x98] sm:$0xff] %vm374, %v5958
        %5979 = vst.msk [vmem:[#allocation3 + $0xa8] sm:$0xff] %vm374, %v5961
        %5980 = vst.msk [vmem:[#allocation3 + $0xb0] sm:$0xff] %vm374, %v5964
        %v5981 = vld [vmem:[#allocation3] ss:$2 sm:$0xff]
        %s5982 = scalar_lea.vmem [#allocation3], 24
        %v5983 = vld [vmem:[%s5982] ss:$2 sm:$0xff]
        %s5984 = scalar_lea.vmem [#allocation3], 48
        %v5985 = vld [vmem:[%s5984] ss:$2 sm:$0xff]
        %s5986 = scalar_lea.vmem [#allocation3], 72
        %v5987 = vld [vmem:[%s5986] ss:$2 sm:$0xff]
        %s5988 = scalar_lea.vmem [#allocation3], 96
        %v5989 = vld [vmem:[%s5988] ss:$2 sm:$0xff]
        %s5990 = scalar_lea.vmem [#allocation3], 120
        %v5991 = vld [vmem:[%s5990] ss:$2 sm:$0xff]
        %s5992 = scalar_lea.vmem [#allocation3], 144
        %v5993 = vld [vmem:[%s5992] ss:$2 sm:$0xff]
        %s5994 = scalar_lea.vmem [#allocation3], 168
        %v5995 = vld [vmem:[%s5994] ss:$2 sm:$0xff]
        %s5996 = scalar_lea.vmem [#allocation3], 1
        %v5997 = vld [vmem:[%s5996] ss:$2 sm:$0xff]
        %s5998 = scalar_lea.vmem [#allocation3], 25
        %v5999 = vld [vmem:[%s5998] ss:$2 sm:$0xff]
        %s6000 = scalar_lea.vmem [#allocation3], 49
        %v6001 = vld [vmem:[%s6000] ss:$2 sm:$0xff]
        %s6002 = scalar_lea.vmem [#allocation3], 73
        %v6003 = vld [vmem:[%s6002] ss:$2 sm:$0xff]
        %s6004 = scalar_lea.vmem [#allocation3], 97
        %v6005 = vld [vmem:[%s6004] ss:$2 sm:$0xff]
        %s6006 = scalar_lea.vmem [#allocation3], 121
        %v6007 = vld [vmem:[%s6006] ss:$2 sm:$0xff]
        %s6008 = scalar_lea.vmem [#allocation3], 145
        %v6009 = vld [vmem:[%s6008] ss:$2 sm:$0xff]
        %s6010 = scalar_lea.vmem [#allocation3], 169
        %v6011 = vld [vmem:[%s6010] ss:$2 sm:$0xff]
        %v6012 = vmax.f32 %v5981, %v5997
        %v6013 = vmax.f32 %v5983, %v5999
        %v6014 = vmax.f32 %v5985, %v6001
        %v6015 = vmax.f32 %v5987, %v6003
        %v6016 = vmax.f32 %v5989, %v6005
        %v6017 = vmax.f32 %v5991, %v6007
        %v6018 = vmax.f32 %v5993, %v6009
        %v6019 = vmax.f32 %v5995, %v6011
        %6020 = vst.msk [vmem:[#allocation2] sm:$0xff] %vm374, 0.0
        %6021 = vst.msk [vmem:[#allocation2 + $0x8] sm:$0x3] %vm377, 0.0
        %6022 = vst.msk [vmem:[%s2220] sm:$0xff] %vm374, 0.0
        %6023 = vst.msk [vmem:[%s2220 + $0x8] sm:$0x3] %vm377, 0.0
        %6024 = vst.msk [vmem:[#allocation2] sm:$0x1] %vm383, 0.0
        %6025 = vst.msk [vmem:[#allocation2 + $0x18] sm:$0x1] %vm383, 0.0
        %6026 = vst.msk [vmem:[#allocation2 + $0x30] sm:$0x1] %vm383, 0.0
        %6027 = vst.msk [vmem:[#allocation2 + $0x48] sm:$0x1] %vm383, 0.0
        %6028 = vst.msk [vmem:[#allocation2 + $0x60] sm:$0x1] %vm383, 0.0
        %6029 = vst.msk [vmem:[#allocation2 + $0x78] sm:$0x1] %vm383, 0.0
        %6030 = vst.msk [vmem:[#allocation2 + $0x90] sm:$0x1] %vm383, 0.0
        %6031 = vst.msk [vmem:[#allocation2 + $0xa8] sm:$0x1] %vm383, 0.0
        %6032 = vst.msk [vmem:[#allocation2 + $0xc0] sm:$0x1] %vm383, 0.0
        %6033 = vst.msk [vmem:[#allocation2 + $0xd8] sm:$0x1] %vm383, 0.0
        %6034 = vst.msk [vmem:[#allocation2 + $0x9] sm:$0x1] %vm383, 0.0
        %6035 = vst.msk [vmem:[#allocation2 + $0x21] sm:$0x1] %vm383, 0.0
        %6036 = vst.msk [vmem:[#allocation2 + $0x39] sm:$0x1] %vm383, 0.0
        %6037 = vst.msk [vmem:[#allocation2 + $0x51] sm:$0x1] %vm383, 0.0
        %6038 = vst.msk [vmem:[#allocation2 + $0x69] sm:$0x1] %vm383, 0.0
        %6039 = vst.msk [vmem:[#allocation2 + $0x81] sm:$0x1] %vm383, 0.0
        %6040 = vst.msk [vmem:[#allocation2 + $0x99] sm:$0x1] %vm383, 0.0
        %6041 = vst.msk [vmem:[#allocation2 + $0xb1] sm:$0x1] %vm383, 0.0
        %6042 = vst.msk [vmem:[#allocation2 + $0xc9] sm:$0x1] %vm383, 0.0
        %6043 = vst.msk [vmem:[#allocation2 + $0xe1] sm:$0x1] %vm383, 0.0
        %6044 = vst.msk [vmem:[%s341 + $0x1] sm:$0xff] %vm374, %v6012
        %6045 = vst.msk [vmem:[%s341 + $0x19] sm:$0xff] %vm374, %v6013
        %6046 = vst.msk [vmem:[%s341 + $0x31] sm:$0xff] %vm374, %v6014
        %6047 = vst.msk [vmem:[%s341 + $0x49] sm:$0xff] %vm374, %v6015
        %6048 = vst.msk [vmem:[%s341 + $0x61] sm:$0xff] %vm374, %v6016
        %6049 = vst.msk [vmem:[%s341 + $0x79] sm:$0xff] %vm374, %v6017
        %6050 = vst.msk [vmem:[%s341 + $0x91] sm:$0xff] %vm374, %v6018
        %6051 = vst.msk [vmem:[%s341 + $0xa9] sm:$0xff] %vm374, %v6019
        %vm6052 = vcmask 130048
        %6053 = vst.msk [vmem:[#allocation3] sm:$0xff] %vm6052, 0.0
        %vm6054 = vcmask 123904
        %6055 = vst.msk [vmem:[#allocation3 + $0x8] sm:$0x3] %vm6054, 0.0
        %6056 = vst.msk [vmem:[%s3164] sm:$0xff] %vm6052, 0.0
        %6057 = vst.msk [vmem:[%s3164 + $0x8] sm:$0x3] %vm6054, 0.0
        %vm6058 = vcmask 122880
        %6059 = vst.msk [vmem:[#allocation3] sm:$0x1] %vm6058, 0.0
        %6060 = vst.msk [vmem:[#allocation3 + $0x18] sm:$0x1] %vm6058, 0.0
        %6061 = vst.msk [vmem:[#allocation3 + $0x30] sm:$0x1] %vm6058, 0.0
        %6062 = vst.msk [vmem:[#allocation3 + $0x48] sm:$0x1] %vm6058, 0.0
        %6063 = vst.msk [vmem:[#allocation3 + $0x60] sm:$0x1] %vm6058, 0.0
        %6064 = vst.msk [vmem:[#allocation3 + $0x78] sm:$0x1] %vm6058, 0.0
        %6065 = vst.msk [vmem:[#allocation3 + $0x90] sm:$0x1] %vm6058, 0.0
        %6066 = vst.msk [vmem:[#allocation3 + $0xa8] sm:$0x1] %vm6058, 0.0
        %6067 = vst.msk [vmem:[#allocation3 + $0xc0] sm:$0x1] %vm6058, 0.0
        %6068 = vst.msk [vmem:[#allocation3 + $0xd8] sm:$0x1] %vm6058, 0.0
        %6069 = vst.msk [vmem:[#allocation3 + $0x9] sm:$0x1] %vm6058, 0.0
        %6070 = vst.msk [vmem:[#allocation3 + $0x21] sm:$0x1] %vm6058, 0.0
        %6071 = vst.msk [vmem:[#allocation3 + $0x39] sm:$0x1] %vm6058, 0.0
        %6072 = vst.msk [vmem:[#allocation3 + $0x51] sm:$0x1] %vm6058, 0.0
        %6073 = vst.msk [vmem:[#allocation3 + $0x69] sm:$0x1] %vm6058, 0.0
        %6074 = vst.msk [vmem:[#allocation3 + $0x81] sm:$0x1] %vm6058, 0.0
        %6075 = vst.msk [vmem:[#allocation3 + $0x99] sm:$0x1] %vm6058, 0.0
        %6076 = vst.msk [vmem:[#allocation3 + $0xb1] sm:$0x1] %vm6058, 0.0
        %6077 = vst.msk [vmem:[#allocation3 + $0xc9] sm:$0x1] %vm6058, 0.0
        %6078 = vst.msk [vmem:[#allocation3 + $0xe1] sm:$0x1] %vm6058, 0.0
        %v6079 = vld [vmem:[#allocation2] sm:$0xff]
        %v6080 = vld [vmem:[#allocation2 + $0x18] sm:$0xff]
        %v6081 = vld [vmem:[#allocation2 + $0x30] sm:$0xff]
        %v6082 = vld [vmem:[#allocation2 + $0x48] sm:$0xff]
        %v6083 = vld [vmem:[#allocation2 + $0x60] sm:$0xff]
        %v6084 = vld [vmem:[#allocation2 + $0x78] sm:$0xff]
        %v6085 = vld [vmem:[#allocation2 + $0x90] sm:$0xff]
        %v6086 = vld [vmem:[#allocation2 + $0xa8] sm:$0xff]
        %v6087 = vld [vmem:[%s3] sm:$0xff]
        %v6088 = vld [vmem:[#allocation2 + $0x1] sm:$0xff]
        %v6089 = vld [vmem:[#allocation2 + $0x19] sm:$0xff]
        %v6090 = vld [vmem:[#allocation2 + $0x31] sm:$0xff]
        %v6091 = vld [vmem:[#allocation2 + $0x49] sm:$0xff]
        %v6092 = vld [vmem:[#allocation2 + $0x61] sm:$0xff]
        %v6093 = vld [vmem:[#allocation2 + $0x79] sm:$0xff]
        %v6094 = vld [vmem:[#allocation2 + $0x91] sm:$0xff]
        %v6095 = vld [vmem:[#allocation2 + $0xa9] sm:$0xff]
        %s6096 = scalar_lea.vmem %s3, 8
        %v6097 = vld [vmem:[%s6096] sm:$0xff]
        %v6099 = vsel %vm374, %v6088, 0
        %v6102 = vsel %vm374, %v6089, 0
        %v6105 = vsel %vm374, %v6090, 0
        %v6108 = vsel %vm374, %v6091, 0
        %v6111 = vsel %vm374, %v6092, 0
        %v6114 = vsel %vm374, %v6093, 0
        %v6117 = vsel %vm374, %v6094, 0
        %v6120 = vsel %vm374, %v6095, 0
        %6122 = vmatpush.msra.mxu0 0.0
        %6123 = vmatpush.msra.mxu0 0.0
        %6124 = vmatpush.msra.mxu0 0.0
        %6125 = vmatpush.msra.mxu0 0.0
        %6126 = vmatpush.msra.mxu0 0.0
        %6127 = vmatpush.msra.mxu0 0.0
        %6128 = vmatpush.msra.mxu0 0.0
        %6129 = vmatpush.msra.mxu0 0.0
        %6130 = vmatpush.msra.mxu0 0.0
        %6131 = vmatpush.msra.mxu0 0.0
        %6132 = vmatpush.msra.mxu0 0.0
        %6133 = vmatpush.msra.mxu0 0.0
        %6134 = vmatpush.msra.mxu0 0.0
        %6135 = vmatpush.msra.mxu0 0.0
        %6136 = vmatpush.msra.mxu0 0.0
        %6137 = vmatpush.msra.mxu0 %v6097
        %6138 = vmatmul.f32.gmra.mxu0 %v6099
        %v6139 = vpop.f32.mrf.mxu0
        %v6140 = vadd.f32 0.0, %v6139
        %6141 = vmatmul.f32.gmra.mxu0 %v6102
        %v6142 = vpop.f32.mrf.mxu0
        %v6143 = vadd.f32 0.0, %v6142
        %6144 = vmatmul.f32.gmra.mxu0 %v6105
        %v6145 = vpop.f32.mrf.mxu0
        %v6146 = vadd.f32 0.0, %v6145
        %6147 = vmatmul.f32.gmra.mxu0 %v6108
        %v6148 = vpop.f32.mrf.mxu0
        %v6149 = vadd.f32 0.0, %v6148
        %6150 = vmatmul.f32.gmra.mxu0 %v6111
        %v6151 = vpop.f32.mrf.mxu0
        %v6152 = vadd.f32 0.0, %v6151
        %6153 = vmatmul.f32.gmra.mxu0 %v6114
        %v6154 = vpop.f32.mrf.mxu0
        %v6155 = vadd.f32 0.0, %v6154
        %6156 = vmatmul.f32.gmra.mxu0 %v6117
        %v6157 = vpop.f32.mrf.mxu0
        %v6158 = vadd.f32 0.0, %v6157
        %6159 = vmatmul.f32.gmra.mxu0 %v6120
        %v6160 = vpop.f32.mrf.mxu0
        %v6161 = vadd.f32 0.0, %v6160
        %6162 = vdwg.mxu0
        %v6164 = vsel %vm374, %v6079, 0
        %v6167 = vsel %vm374, %v6080, 0
        %v6170 = vsel %vm374, %v6081, 0
        %v6173 = vsel %vm374, %v6082, 0
        %v6176 = vsel %vm374, %v6083, 0
        %v6179 = vsel %vm374, %v6084, 0
        %v6182 = vsel %vm374, %v6085, 0
        %v6185 = vsel %vm374, %v6086, 0
        %6187 = vmatpush.msra.mxu0 0.0
        %6188 = vmatpush.msra.mxu0 0.0
        %6189 = vmatpush.msra.mxu0 0.0
        %6190 = vmatpush.msra.mxu0 0.0
        %6191 = vmatpush.msra.mxu0 0.0
        %6192 = vmatpush.msra.mxu0 0.0
        %6193 = vmatpush.msra.mxu0 0.0
        %6194 = vmatpush.msra.mxu0 0.0
        %6195 = vmatpush.msra.mxu0 0.0
        %6196 = vmatpush.msra.mxu0 0.0
        %6197 = vmatpush.msra.mxu0 0.0
        %6198 = vmatpush.msra.mxu0 0.0
        %6199 = vmatpush.msra.mxu0 0.0
        %6200 = vmatpush.msra.mxu0 0.0
        %6201 = vmatpush.msra.mxu0 0.0
        %6202 = vmatpush.msra.mxu0 %v6087
        %6203 = vmatmul.f32.gmra.mxu0 %v6164
        %v6204 = vpop.f32.mrf.mxu0
        %v6205 = vadd.f32 %v6140, %v6204
        %6206 = vmatmul.f32.gmra.mxu0 %v6167
        %v6207 = vpop.f32.mrf.mxu0
        %v6208 = vadd.f32 %v6143, %v6207
        %6209 = vmatmul.f32.gmra.mxu0 %v6170
        %v6210 = vpop.f32.mrf.mxu0
        %v6211 = vadd.f32 %v6146, %v6210
        %6212 = vmatmul.f32.gmra.mxu0 %v6173
        %v6213 = vpop.f32.mrf.mxu0
        %v6214 = vadd.f32 %v6149, %v6213
        %6215 = vmatmul.f32.gmra.mxu0 %v6176
        %v6216 = vpop.f32.mrf.mxu0
        %v6217 = vadd.f32 %v6152, %v6216
        %6218 = vmatmul.f32.gmra.mxu0 %v6179
        %v6219 = vpop.f32.mrf.mxu0
        %v6220 = vadd.f32 %v6155, %v6219
        %6221 = vmatmul.f32.gmra.mxu0 %v6182
        %v6222 = vpop.f32.mrf.mxu0
        %v6223 = vadd.f32 %v6158, %v6222
        %6224 = vmatmul.f32.gmra.mxu0 %v6185
        %v6225 = vpop.f32.mrf.mxu0
        %v6226 = vadd.f32 %v6161, %v6225
        %6227 = vdwg.mxu0
        %v6228 = vld [vmem:[#allocation2 + $0x2] sm:$0xff]
        %v6229 = vld [vmem:[#allocation2 + $0x1a] sm:$0xff]
        %v6230 = vld [vmem:[#allocation2 + $0x32] sm:$0xff]
        %v6231 = vld [vmem:[#allocation2 + $0x4a] sm:$0xff]
        %v6232 = vld [vmem:[#allocation2 + $0x62] sm:$0xff]
        %v6233 = vld [vmem:[#allocation2 + $0x7a] sm:$0xff]
        %v6234 = vld [vmem:[#allocation2 + $0x92] sm:$0xff]
        %v6235 = vld [vmem:[#allocation2 + $0xaa] sm:$0xff]
        %s6236 = scalar_lea.vmem %s3, 16
        %v6237 = vld [vmem:[%s6236] sm:$0xff]
        %v6239 = vsel %vm374, %v6228, 0
        %v6242 = vsel %vm374, %v6229, 0
        %v6245 = vsel %vm374, %v6230, 0
        %v6248 = vsel %vm374, %v6231, 0
        %v6251 = vsel %vm374, %v6232, 0
        %v6254 = vsel %vm374, %v6233, 0
        %v6257 = vsel %vm374, %v6234, 0
        %v6260 = vsel %vm374, %v6235, 0
        %6262 = vmatpush.msra.mxu0 0.0
        %6263 = vmatpush.msra.mxu0 0.0
        %6264 = vmatpush.msra.mxu0 0.0
        %6265 = vmatpush.msra.mxu0 0.0
        %6266 = vmatpush.msra.mxu0 0.0
        %6267 = vmatpush.msra.mxu0 0.0
        %6268 = vmatpush.msra.mxu0 0.0
        %6269 = vmatpush.msra.mxu0 0.0
        %6270 = vmatpush.msra.mxu0 0.0
        %6271 = vmatpush.msra.mxu0 0.0
        %6272 = vmatpush.msra.mxu0 0.0
        %6273 = vmatpush.msra.mxu0 0.0
        %6274 = vmatpush.msra.mxu0 0.0
        %6275 = vmatpush.msra.mxu0 0.0
        %6276 = vmatpush.msra.mxu0 0.0
        %6277 = vmatpush.msra.mxu0 %v6237
        %6278 = vmatmul.f32.gmra.mxu0 %v6239
        %v6279 = vpop.f32.mrf.mxu0
        %v6280 = vadd.f32 0.0, %v6279
        %6281 = vmatmul.f32.gmra.mxu0 %v6242
        %v6282 = vpop.f32.mrf.mxu0
        %v6283 = vadd.f32 0.0, %v6282
        %6284 = vmatmul.f32.gmra.mxu0 %v6245
        %v6285 = vpop.f32.mrf.mxu0
        %v6286 = vadd.f32 0.0, %v6285
        %6287 = vmatmul.f32.gmra.mxu0 %v6248
        %v6288 = vpop.f32.mrf.mxu0
        %v6289 = vadd.f32 0.0, %v6288
        %6290 = vmatmul.f32.gmra.mxu0 %v6251
        %v6291 = vpop.f32.mrf.mxu0
        %v6292 = vadd.f32 0.0, %v6291
        %6293 = vmatmul.f32.gmra.mxu0 %v6254
        %v6294 = vpop.f32.mrf.mxu0
        %v6295 = vadd.f32 0.0, %v6294
        %6296 = vmatmul.f32.gmra.mxu0 %v6257
        %v6297 = vpop.f32.mrf.mxu0
        %v6298 = vadd.f32 0.0, %v6297
        %6299 = vmatmul.f32.gmra.mxu0 %v6260
        %v6300 = vpop.f32.mrf.mxu0
        %v6301 = vadd.f32 0.0, %v6300
        %6302 = vdwg.mxu0
        %v6303 = vadd.f32 %v6205, %v6280
        %v6304 = vadd.f32 %v6208, %v6283
        %v6305 = vadd.f32 %v6211, %v6286
        %v6306 = vadd.f32 %v6214, %v6289
        %v6307 = vadd.f32 %v6217, %v6292
        %v6308 = vadd.f32 %v6220, %v6295
        %v6309 = vadd.f32 %v6223, %v6298
        %v6310 = vadd.f32 %v6226, %v6301
        %v6311 = vld [vmem:[%s341] sm:$0xff]
        %v6312 = vld [vmem:[%s341 + $0x18] sm:$0xff]
        %v6313 = vld [vmem:[%s341 + $0x30] sm:$0xff]
        %v6314 = vld [vmem:[%s341 + $0x48] sm:$0xff]
        %v6315 = vld [vmem:[%s341 + $0x60] sm:$0xff]
        %v6316 = vld [vmem:[%s341 + $0x78] sm:$0xff]
        %v6317 = vld [vmem:[%s341 + $0x90] sm:$0xff]
        %v6318 = vld [vmem:[%s341 + $0xa8] sm:$0xff]
        %s6319 = scalar_lea.vmem %s3, 24
        %v6320 = vld [vmem:[%s6319] sm:$0xff]
        %v6322 = vsel %vm374, %v6311, 0
        %v6325 = vsel %vm374, %v6312, 0
        %v6328 = vsel %vm374, %v6313, 0
        %v6331 = vsel %vm374, %v6314, 0
        %v6334 = vsel %vm374, %v6315, 0
        %v6337 = vsel %vm374, %v6316, 0
        %v6340 = vsel %vm374, %v6317, 0
        %v6343 = vsel %vm374, %v6318, 0
        %6345 = vmatpush.msra.mxu0 0.0
        %6346 = vmatpush.msra.mxu0 0.0
        %6347 = vmatpush.msra.mxu0 0.0
        %6348 = vmatpush.msra.mxu0 0.0
        %6349 = vmatpush.msra.mxu0 0.0
        %6350 = vmatpush.msra.mxu0 0.0
        %6351 = vmatpush.msra.mxu0 0.0
        %6352 = vmatpush.msra.mxu0 0.0
        %6353 = vmatpush.msra.mxu0 0.0
        %6354 = vmatpush.msra.mxu0 0.0
        %6355 = vmatpush.msra.mxu0 0.0
        %6356 = vmatpush.msra.mxu0 0.0
        %6357 = vmatpush.msra.mxu0 0.0
        %6358 = vmatpush.msra.mxu0 0.0
        %6359 = vmatpush.msra.mxu0 0.0
        %6360 = vmatpush.msra.mxu0 %v6320
        %6361 = vmatmul.f32.gmra.mxu0 %v6322
        %v6362 = vpop.f32.mrf.mxu0
        %v6363 = vadd.f32 0.0, %v6362
        %6364 = vmatmul.f32.gmra.mxu0 %v6325
        %v6365 = vpop.f32.mrf.mxu0
        %v6366 = vadd.f32 0.0, %v6365
        %6367 = vmatmul.f32.gmra.mxu0 %v6328
        %v6368 = vpop.f32.mrf.mxu0
        %v6369 = vadd.f32 0.0, %v6368
        %6370 = vmatmul.f32.gmra.mxu0 %v6331
        %v6371 = vpop.f32.mrf.mxu0
        %v6372 = vadd.f32 0.0, %v6371
        %6373 = vmatmul.f32.gmra.mxu0 %v6334
        %v6374 = vpop.f32.mrf.mxu0
        %v6375 = vadd.f32 0.0, %v6374
        %6376 = vmatmul.f32.gmra.mxu0 %v6337
        %v6377 = vpop.f32.mrf.mxu0
        %v6378 = vadd.f32 0.0, %v6377
        %6379 = vmatmul.f32.gmra.mxu0 %v6340
        %v6380 = vpop.f32.mrf.mxu0
        %v6381 = vadd.f32 0.0, %v6380
        %6382 = vmatmul.f32.gmra.mxu0 %v6343
        %v6383 = vpop.f32.mrf.mxu0
        %v6384 = vadd.f32 0.0, %v6383
        %6385 = vdwg.mxu0
        %v6386 = vadd.f32 %v6303, %v6363
        %v6387 = vadd.f32 %v6304, %v6366
        %v6388 = vadd.f32 %v6305, %v6369
        %v6389 = vadd.f32 %v6306, %v6372
        %v6390 = vadd.f32 %v6307, %v6375
        %v6391 = vadd.f32 %v6308, %v6378
        %v6392 = vadd.f32 %v6309, %v6381
        %v6393 = vadd.f32 %v6310, %v6384
        %v6394 = vld [vmem:[%s341 + $0x1] sm:$0xff]
        %v6395 = vld [vmem:[%s341 + $0x19] sm:$0xff]
        %v6396 = vld [vmem:[%s341 + $0x31] sm:$0xff]
        %v6397 = vld [vmem:[%s341 + $0x49] sm:$0xff]
        %v6398 = vld [vmem:[%s341 + $0x61] sm:$0xff]
        %v6399 = vld [vmem:[%s341 + $0x79] sm:$0xff]
        %v6400 = vld [vmem:[%s341 + $0x91] sm:$0xff]
        %v6401 = vld [vmem:[%s341 + $0xa9] sm:$0xff]
        %s6402 = scalar_lea.vmem %s3, 32
        %v6403 = vld [vmem:[%s6402] sm:$0xff]
        %v6405 = vsel %vm374, %v6394, 0
        %v6408 = vsel %vm374, %v6395, 0
        %v6411 = vsel %vm374, %v6396, 0
        %v6414 = vsel %vm374, %v6397, 0
        %v6417 = vsel %vm374, %v6398, 0
        %v6420 = vsel %vm374, %v6399, 0
        %v6423 = vsel %vm374, %v6400, 0
        %v6426 = vsel %vm374, %v6401, 0
        %6428 = vmatpush.msra.mxu0 0.0
        %6429 = vmatpush.msra.mxu0 0.0
        %6430 = vmatpush.msra.mxu0 0.0
        %6431 = vmatpush.msra.mxu0 0.0
        %6432 = vmatpush.msra.mxu0 0.0
        %6433 = vmatpush.msra.mxu0 0.0
        %6434 = vmatpush.msra.mxu0 0.0
        %6435 = vmatpush.msra.mxu0 0.0
        %6436 = vmatpush.msra.mxu0 0.0
        %6437 = vmatpush.msra.mxu0 0.0
        %6438 = vmatpush.msra.mxu0 0.0
        %6439 = vmatpush.msra.mxu0 0.0
        %6440 = vmatpush.msra.mxu0 0.0
        %6441 = vmatpush.msra.mxu0 0.0
        %6442 = vmatpush.msra.mxu0 0.0
        %6443 = vmatpush.msra.mxu0 %v6403
        %6444 = vmatmul.f32.gmra.mxu0 %v6405
        %v6445 = vpop.f32.mrf.mxu0
        %v6446 = vadd.f32 0.0, %v6445
        %6447 = vmatmul.f32.gmra.mxu0 %v6408
        %v6448 = vpop.f32.mrf.mxu0
        %v6449 = vadd.f32 0.0, %v6448
        %6450 = vmatmul.f32.gmra.mxu0 %v6411
        %v6451 = vpop.f32.mrf.mxu0
        %v6452 = vadd.f32 0.0, %v6451
        %6453 = vmatmul.f32.gmra.mxu0 %v6414
        %v6454 = vpop.f32.mrf.mxu0
        %v6455 = vadd.f32 0.0, %v6454
        %6456 = vmatmul.f32.gmra.mxu0 %v6417
        %v6457 = vpop.f32.mrf.mxu0
        %v6458 = vadd.f32 0.0, %v6457
        %6459 = vmatmul.f32.gmra.mxu0 %v6420
        %v6460 = vpop.f32.mrf.mxu0
        %v6461 = vadd.f32 0.0, %v6460
        %6462 = vmatmul.f32.gmra.mxu0 %v6423
        %v6463 = vpop.f32.mrf.mxu0
        %v6464 = vadd.f32 0.0, %v6463
        %6465 = vmatmul.f32.gmra.mxu0 %v6426
        %v6466 = vpop.f32.mrf.mxu0
        %v6467 = vadd.f32 0.0, %v6466
        %6468 = vdwg.mxu0
        %v6469 = vadd.f32 %v6386, %v6446
        %v6470 = vadd.f32 %v6387, %v6449
        %v6471 = vadd.f32 %v6388, %v6452
        %v6472 = vadd.f32 %v6389, %v6455
        %v6473 = vadd.f32 %v6390, %v6458
        %v6474 = vadd.f32 %v6391, %v6461
        %v6475 = vadd.f32 %v6392, %v6464
        %v6476 = vadd.f32 %v6393, %v6467
        %v6477 = vld [vmem:[%s341 + $0x2] sm:$0xff]
        %v6478 = vld [vmem:[%s341 + $0x1a] sm:$0xff]
        %v6479 = vld [vmem:[%s341 + $0x32] sm:$0xff]
        %v6480 = vld [vmem:[%s341 + $0x4a] sm:$0xff]
        %v6481 = vld [vmem:[%s341 + $0x62] sm:$0xff]
        %v6482 = vld [vmem:[%s341 + $0x7a] sm:$0xff]
        %v6483 = vld [vmem:[%s341 + $0x92] sm:$0xff]
        %v6484 = vld [vmem:[%s341 + $0xaa] sm:$0xff]
        %s6485 = scalar_lea.vmem %s3, 40
        %v6486 = vld [vmem:[%s6485] sm:$0xff]
        %v6488 = vsel %vm374, %v6477, 0
        %v6491 = vsel %vm374, %v6478, 0
        %v6494 = vsel %vm374, %v6479, 0
        %v6497 = vsel %vm374, %v6480, 0
        %v6500 = vsel %vm374, %v6481, 0
        %v6503 = vsel %vm374, %v6482, 0
        %v6506 = vsel %vm374, %v6483, 0
        %v6509 = vsel %vm374, %v6484, 0
        %6511 = vmatpush.msra.mxu0 0.0
        %6512 = vmatpush.msra.mxu0 0.0
        %6513 = vmatpush.msra.mxu0 0.0
        %6514 = vmatpush.msra.mxu0 0.0
        %6515 = vmatpush.msra.mxu0 0.0
        %6516 = vmatpush.msra.mxu0 0.0
        %6517 = vmatpush.msra.mxu0 0.0
        %6518 = vmatpush.msra.mxu0 0.0
        %6519 = vmatpush.msra.mxu0 0.0
        %6520 = vmatpush.msra.mxu0 0.0
        %6521 = vmatpush.msra.mxu0 0.0
        %6522 = vmatpush.msra.mxu0 0.0
        %6523 = vmatpush.msra.mxu0 0.0
        %6524 = vmatpush.msra.mxu0 0.0
        %6525 = vmatpush.msra.mxu0 0.0
        %6526 = vmatpush.msra.mxu0 %v6486
        %6527 = vmatmul.f32.gmra.mxu0 %v6488
        %v6528 = vpop.f32.mrf.mxu0
        %v6529 = vadd.f32 0.0, %v6528
        %6530 = vmatmul.f32.gmra.mxu0 %v6491
        %v6531 = vpop.f32.mrf.mxu0
        %v6532 = vadd.f32 0.0, %v6531
        %6533 = vmatmul.f32.gmra.mxu0 %v6494
        %v6534 = vpop.f32.mrf.mxu0
        %v6535 = vadd.f32 0.0, %v6534
        %6536 = vmatmul.f32.gmra.mxu0 %v6497
        %v6537 = vpop.f32.mrf.mxu0
        %v6538 = vadd.f32 0.0, %v6537
        %6539 = vmatmul.f32.gmra.mxu0 %v6500
        %v6540 = vpop.f32.mrf.mxu0
        %v6541 = vadd.f32 0.0, %v6540
        %6542 = vmatmul.f32.gmra.mxu0 %v6503
        %v6543 = vpop.f32.mrf.mxu0
        %v6544 = vadd.f32 0.0, %v6543
        %6545 = vmatmul.f32.gmra.mxu0 %v6506
        %v6546 = vpop.f32.mrf.mxu0
        %v6547 = vadd.f32 0.0, %v6546
        %6548 = vmatmul.f32.gmra.mxu0 %v6509
        %v6549 = vpop.f32.mrf.mxu0
        %v6550 = vadd.f32 0.0, %v6549
        %6551 = vdwg.mxu0
        %v6552 = vadd.f32 %v6469, %v6529
        %v6553 = vadd.f32 %v6470, %v6532
        %v6554 = vadd.f32 %v6471, %v6535
        %v6555 = vadd.f32 %v6472, %v6538
        %v6556 = vadd.f32 %v6473, %v6541
        %v6557 = vadd.f32 %v6474, %v6544
        %v6558 = vadd.f32 %v6475, %v6547
        %v6559 = vadd.f32 %v6476, %v6550
        %v6560 = vld [vmem:[%s1288] sm:$0xff]
        %v6561 = vld [vmem:[%s1288 + $0x18] sm:$0xff]
        %v6562 = vld [vmem:[%s1288 + $0x30] sm:$0xff]
        %v6563 = vld [vmem:[%s1288 + $0x48] sm:$0xff]
        %v6564 = vld [vmem:[%s1288 + $0x60] sm:$0xff]
        %v6565 = vld [vmem:[%s1288 + $0x78] sm:$0xff]
        %v6566 = vld [vmem:[%s1288 + $0x90] sm:$0xff]
        %v6567 = vld [vmem:[%s1288 + $0xa8] sm:$0xff]
        %s6568 = scalar_lea.vmem %s3, 48
        %v6569 = vld [vmem:[%s6568] sm:$0xff]
        %v6571 = vsel %vm374, %v6560, 0
        %v6574 = vsel %vm374, %v6561, 0
        %v6577 = vsel %vm374, %v6562, 0
        %v6580 = vsel %vm374, %v6563, 0
        %v6583 = vsel %vm374, %v6564, 0
        %v6586 = vsel %vm374, %v6565, 0
        %v6589 = vsel %vm374, %v6566, 0
        %v6592 = vsel %vm374, %v6567, 0
        %6594 = vmatpush.msra.mxu0 0.0
        %6595 = vmatpush.msra.mxu0 0.0
        %6596 = vmatpush.msra.mxu0 0.0
        %6597 = vmatpush.msra.mxu0 0.0
        %6598 = vmatpush.msra.mxu0 0.0
        %6599 = vmatpush.msra.mxu0 0.0
        %6600 = vmatpush.msra.mxu0 0.0
        %6601 = vmatpush.msra.mxu0 0.0
        %6602 = vmatpush.msra.mxu0 0.0
        %6603 = vmatpush.msra.mxu0 0.0
        %6604 = vmatpush.msra.mxu0 0.0
        %6605 = vmatpush.msra.mxu0 0.0
        %6606 = vmatpush.msra.mxu0 0.0
        %6607 = vmatpush.msra.mxu0 0.0
        %6608 = vmatpush.msra.mxu0 0.0
        %6609 = vmatpush.msra.mxu0 %v6569
        %6610 = vmatmul.f32.gmra.mxu0 %v6571
        %v6611 = vpop.f32.mrf.mxu0
        %v6612 = vadd.f32 0.0, %v6611
        %6613 = vmatmul.f32.gmra.mxu0 %v6574
        %v6614 = vpop.f32.mrf.mxu0
        %v6615 = vadd.f32 0.0, %v6614
        %6616 = vmatmul.f32.gmra.mxu0 %v6577
        %v6617 = vpop.f32.mrf.mxu0
        %v6618 = vadd.f32 0.0, %v6617
        %6619 = vmatmul.f32.gmra.mxu0 %v6580
        %v6620 = vpop.f32.mrf.mxu0
        %v6621 = vadd.f32 0.0, %v6620
        %6622 = vmatmul.f32.gmra.mxu0 %v6583
        %v6623 = vpop.f32.mrf.mxu0
        %v6624 = vadd.f32 0.0, %v6623
        %6625 = vmatmul.f32.gmra.mxu0 %v6586
        %v6626 = vpop.f32.mrf.mxu0
        %v6627 = vadd.f32 0.0, %v6626
        %6628 = vmatmul.f32.gmra.mxu0 %v6589
        %v6629 = vpop.f32.mrf.mxu0
        %v6630 = vadd.f32 0.0, %v6629
        %6631 = vmatmul.f32.gmra.mxu0 %v6592
        %v6632 = vpop.f32.mrf.mxu0
        %v6633 = vadd.f32 0.0, %v6632
        %6634 = vdwg.mxu0
        %v6635 = vadd.f32 %v6552, %v6612
        %v6636 = vadd.f32 %v6553, %v6615
        %v6637 = vadd.f32 %v6554, %v6618
        %v6638 = vadd.f32 %v6555, %v6621
        %v6639 = vadd.f32 %v6556, %v6624
        %v6640 = vadd.f32 %v6557, %v6627
        %v6641 = vadd.f32 %v6558, %v6630
        %v6642 = vadd.f32 %v6559, %v6633
        %v6643 = vld [vmem:[%s1288 + $0x1] sm:$0xff]
        %v6644 = vld [vmem:[%s1288 + $0x19] sm:$0xff]
        %v6645 = vld [vmem:[%s1288 + $0x31] sm:$0xff]
        %v6646 = vld [vmem:[%s1288 + $0x49] sm:$0xff]
        %v6647 = vld [vmem:[%s1288 + $0x61] sm:$0xff]
        %v6648 = vld [vmem:[%s1288 + $0x79] sm:$0xff]
        %v6649 = vld [vmem:[%s1288 + $0x91] sm:$0xff]
        %v6650 = vld [vmem:[%s1288 + $0xa9] sm:$0xff]
        %s6651 = scalar_lea.vmem %s3, 56
        %v6652 = vld [vmem:[%s6651] sm:$0xff]
        %v6654 = vsel %vm374, %v6643, 0
        %v6657 = vsel %vm374, %v6644, 0
        %v6660 = vsel %vm374, %v6645, 0
        %v6663 = vsel %vm374, %v6646, 0
        %v6666 = vsel %vm374, %v6647, 0
        %v6669 = vsel %vm374, %v6648, 0
        %v6672 = vsel %vm374, %v6649, 0
        %v6675 = vsel %vm374, %v6650, 0
        %6677 = vmatpush.msra.mxu0 0.0
        %6678 = vmatpush.msra.mxu0 0.0
        %6679 = vmatpush.msra.mxu0 0.0
        %6680 = vmatpush.msra.mxu0 0.0
        %6681 = vmatpush.msra.mxu0 0.0
        %6682 = vmatpush.msra.mxu0 0.0
        %6683 = vmatpush.msra.mxu0 0.0
        %6684 = vmatpush.msra.mxu0 0.0
        %6685 = vmatpush.msra.mxu0 0.0
        %6686 = vmatpush.msra.mxu0 0.0
        %6687 = vmatpush.msra.mxu0 0.0
        %6688 = vmatpush.msra.mxu0 0.0
        %6689 = vmatpush.msra.mxu0 0.0
        %6690 = vmatpush.msra.mxu0 0.0
        %6691 = vmatpush.msra.mxu0 0.0
        %6692 = vmatpush.msra.mxu0 %v6652
        %6693 = vmatmul.f32.gmra.mxu0 %v6654
        %v6694 = vpop.f32.mrf.mxu0
        %v6695 = vadd.f32 0.0, %v6694
        %6696 = vmatmul.f32.gmra.mxu0 %v6657
        %v6697 = vpop.f32.mrf.mxu0
        %v6698 = vadd.f32 0.0, %v6697
        %6699 = vmatmul.f32.gmra.mxu0 %v6660
        %v6700 = vpop.f32.mrf.mxu0
        %v6701 = vadd.f32 0.0, %v6700
        %6702 = vmatmul.f32.gmra.mxu0 %v6663
        %v6703 = vpop.f32.mrf.mxu0
        %v6704 = vadd.f32 0.0, %v6703
        %6705 = vmatmul.f32.gmra.mxu0 %v6666
        %v6706 = vpop.f32.mrf.mxu0
        %v6707 = vadd.f32 0.0, %v6706
        %6708 = vmatmul.f32.gmra.mxu0 %v6669
        %v6709 = vpop.f32.mrf.mxu0
        %v6710 = vadd.f32 0.0, %v6709
        %6711 = vmatmul.f32.gmra.mxu0 %v6672
        %v6712 = vpop.f32.mrf.mxu0
        %v6713 = vadd.f32 0.0, %v6712
        %6714 = vmatmul.f32.gmra.mxu0 %v6675
        %v6715 = vpop.f32.mrf.mxu0
        %v6716 = vadd.f32 0.0, %v6715
        %6717 = vdwg.mxu0
        %v6718 = vadd.f32 %v6635, %v6695
        %v6719 = vadd.f32 %v6636, %v6698
        %v6720 = vadd.f32 %v6637, %v6701
        %v6721 = vadd.f32 %v6638, %v6704
        %v6722 = vadd.f32 %v6639, %v6707
        %v6723 = vadd.f32 %v6640, %v6710
        %v6724 = vadd.f32 %v6641, %v6713
        %v6725 = vadd.f32 %v6642, %v6716
        %v6726 = vld [vmem:[%s1288 + $0x2] sm:$0xff]
        %v6727 = vld [vmem:[%s1288 + $0x1a] sm:$0xff]
        %v6728 = vld [vmem:[%s1288 + $0x32] sm:$0xff]
        %v6729 = vld [vmem:[%s1288 + $0x4a] sm:$0xff]
        %v6730 = vld [vmem:[%s1288 + $0x62] sm:$0xff]
        %v6731 = vld [vmem:[%s1288 + $0x7a] sm:$0xff]
        %v6732 = vld [vmem:[%s1288 + $0x92] sm:$0xff]
        %v6733 = vld [vmem:[%s1288 + $0xaa] sm:$0xff]
        %s6734 = scalar_lea.vmem %s3, 64
        %v6735 = vld [vmem:[%s6734] sm:$0xff]
        %v6737 = vsel %vm374, %v6726, 0
        %v6740 = vsel %vm374, %v6727, 0
        %v6743 = vsel %vm374, %v6728, 0
        %v6746 = vsel %vm374, %v6729, 0
        %v6749 = vsel %vm374, %v6730, 0
        %v6752 = vsel %vm374, %v6731, 0
        %v6755 = vsel %vm374, %v6732, 0
        %v6758 = vsel %vm374, %v6733, 0
        %6760 = vmatpush.msra.mxu0 0.0
        %6761 = vmatpush.msra.mxu0 0.0
        %6762 = vmatpush.msra.mxu0 0.0
        %6763 = vmatpush.msra.mxu0 0.0
        %6764 = vmatpush.msra.mxu0 0.0
        %6765 = vmatpush.msra.mxu0 0.0
        %6766 = vmatpush.msra.mxu0 0.0
        %6767 = vmatpush.msra.mxu0 0.0
        %6768 = vmatpush.msra.mxu0 0.0
        %6769 = vmatpush.msra.mxu0 0.0
        %6770 = vmatpush.msra.mxu0 0.0
        %6771 = vmatpush.msra.mxu0 0.0
        %6772 = vmatpush.msra.mxu0 0.0
        %6773 = vmatpush.msra.mxu0 0.0
        %6774 = vmatpush.msra.mxu0 0.0
        %6775 = vmatpush.msra.mxu0 %v6735
        %6776 = vmatmul.f32.gmra.mxu0 %v6737
        %v6777 = vpop.f32.mrf.mxu0
        %v6778 = vadd.f32 0.0, %v6777
        %6779 = vmatmul.f32.gmra.mxu0 %v6740
        %v6780 = vpop.f32.mrf.mxu0
        %v6781 = vadd.f32 0.0, %v6780
        %6782 = vmatmul.f32.gmra.mxu0 %v6743
        %v6783 = vpop.f32.mrf.mxu0
        %v6784 = vadd.f32 0.0, %v6783
        %6785 = vmatmul.f32.gmra.mxu0 %v6746
        %v6786 = vpop.f32.mrf.mxu0
        %v6787 = vadd.f32 0.0, %v6786
        %6788 = vmatmul.f32.gmra.mxu0 %v6749
        %v6789 = vpop.f32.mrf.mxu0
        %v6790 = vadd.f32 0.0, %v6789
        %6791 = vmatmul.f32.gmra.mxu0 %v6752
        %v6792 = vpop.f32.mrf.mxu0
        %v6793 = vadd.f32 0.0, %v6792
        %6794 = vmatmul.f32.gmra.mxu0 %v6755
        %v6795 = vpop.f32.mrf.mxu0
        %v6796 = vadd.f32 0.0, %v6795
        %6797 = vmatmul.f32.gmra.mxu0 %v6758
        %v6798 = vpop.f32.mrf.mxu0
        %v6799 = vadd.f32 0.0, %v6798
        %6800 = vdwg.mxu0
        %v6801 = vadd.f32 %v6718, %v6778
        %v6802 = vadd.f32 %v6719, %v6781
        %v6803 = vadd.f32 %v6720, %v6784
        %v6804 = vadd.f32 %v6721, %v6787
        %v6805 = vadd.f32 %v6722, %v6790
        %v6806 = vadd.f32 %v6723, %v6793
        %v6807 = vadd.f32 %v6724, %v6796
        %v6808 = vadd.f32 %v6725, %v6799
        %vm6809 = vcmp.ge.f32.partialorder %v6801, 0.0
        %vm6810 = vcmp.ge.f32.partialorder %v6802, 0.0
        %vm6811 = vcmp.ge.f32.partialorder %v6803, 0.0
        %vm6812 = vcmp.ge.f32.partialorder %v6804, 0.0
        %vm6813 = vcmp.ge.f32.partialorder %v6805, 0.0
        %vm6814 = vcmp.ge.f32.partialorder %v6806, 0.0
        %vm6815 = vcmp.ge.f32.partialorder %v6807, 0.0
        %vm6816 = vcmp.ge.f32.partialorder %v6808, 0.0
        %v6817 = vmul.f32 %v6801, 0.01
        %v6818 = vmul.f32 %v6802, 0.01
        %v6819 = vmul.f32 %v6803, 0.01
        %v6820 = vmul.f32 %v6804, 0.01
        %v6821 = vmul.f32 %v6805, 0.01
        %v6822 = vmul.f32 %v6806, 0.01
        %v6823 = vmul.f32 %v6807, 0.01
        %v6824 = vmul.f32 %v6808, 0.01
        %v6825 = vsel %vm6809, %v6801, %v6817
        %v6826 = vsel %vm6810, %v6802, %v6818
        %v6827 = vsel %vm6811, %v6803, %v6819
        %v6828 = vsel %vm6812, %v6804, %v6820
        %v6829 = vsel %vm6813, %v6805, %v6821
        %v6830 = vsel %vm6814, %v6806, %v6822
        %v6831 = vsel %vm6815, %v6807, %v6823
        %v6832 = vsel %vm6816, %v6808, %v6824
        %6833 = vst.msk [vmem:[%s1787 + $0x1] sm:$0xff] %vm6052, %v6825
        %6834 = vst.msk [vmem:[%s1787 + $0x19] sm:$0xff] %vm6052, %v6826
        %6835 = vst.msk [vmem:[%s1787 + $0x31] sm:$0xff] %vm6052, %v6827
        %6836 = vst.msk [vmem:[%s1787 + $0x49] sm:$0xff] %vm6052, %v6828
        %6837 = vst.msk [vmem:[%s1787 + $0x61] sm:$0xff] %vm6052, %v6829
        %6838 = vst.msk [vmem:[%s1787 + $0x79] sm:$0xff] %vm6052, %v6830
        %6839 = vst.msk [vmem:[%s1787 + $0x91] sm:$0xff] %vm6052, %v6831
        %6840 = vst.msk [vmem:[%s1787 + $0xa9] sm:$0xff] %vm6052, %v6832
        %v6841 = vld [vmem:[#allocation3] sm:$0xff]
        %v6842 = vld [vmem:[#allocation3 + $0x18] sm:$0xff]
        %v6843 = vld [vmem:[#allocation3 + $0x30] sm:$0xff]
        %v6844 = vld [vmem:[#allocation3 + $0x48] sm:$0xff]
        %v6845 = vld [vmem:[#allocation3 + $0x60] sm:$0xff]
        %v6846 = vld [vmem:[#allocation3 + $0x78] sm:$0xff]
        %v6847 = vld [vmem:[#allocation3 + $0x90] sm:$0xff]
        %v6848 = vld [vmem:[#allocation3 + $0xa8] sm:$0xff]
        %v6849 = vld [vmem:[%s4] sm:$0xff]
        %v6850 = vld [vmem:[%s4 + $0x8] sm:$0xff]
        %v6851 = vld [vmem:[#allocation3 + $0x1] sm:$0xff]
        %v6852 = vld [vmem:[#allocation3 + $0x19] sm:$0xff]
        %v6853 = vld [vmem:[#allocation3 + $0x31] sm:$0xff]
        %v6854 = vld [vmem:[#allocation3 + $0x49] sm:$0xff]
        %v6855 = vld [vmem:[#allocation3 + $0x61] sm:$0xff]
        %v6856 = vld [vmem:[#allocation3 + $0x79] sm:$0xff]
        %v6857 = vld [vmem:[#allocation3 + $0x91] sm:$0xff]
        %v6858 = vld [vmem:[#allocation3 + $0xa9] sm:$0xff]
        %s6859 = scalar_lea.vmem %s4, 16
        %v6860 = vld [vmem:[%s6859] sm:$0xff]
        %v6861 = vld [vmem:[%s6859 + $0x8] sm:$0xff]
        %v6863 = vsel %vm6052, %v6851, 0
        %v6866 = vsel %vm6052, %v6852, 0
        %v6869 = vsel %vm6052, %v6853, 0
        %v6872 = vsel %vm6052, %v6854, 0
        %v6875 = vsel %vm6052, %v6855, 0
        %v6878 = vsel %vm6052, %v6856, 0
        %v6881 = vsel %vm6052, %v6857, 0
        %v6884 = vsel %vm6052, %v6858, 0
        %6886 = vmatpush.msra.mxu0 0.0
        %6887 = vmatpush.msra.mxu0 0.0
        %6888 = vmatpush.msra.mxu0 0.0
        %6889 = vmatpush.msra.mxu0 0.0
        %6890 = vmatpush.msra.mxu0 0.0
        %6891 = vmatpush.msra.mxu0 0.0
        %6892 = vmatpush.msra.mxu0 0.0
        %6893 = vmatpush.msra.mxu0 0.0
        %6894 = vmatpush.msra.mxu0 0.0
        %6895 = vmatpush.msra.mxu0 0.0
        %6896 = vmatpush.msra.mxu0 0.0
        %6897 = vmatpush.msra.mxu0 0.0
        %6898 = vmatpush.msra.mxu0 0.0
        %6899 = vmatpush.msra.mxu0 0.0
        %6900 = vmatpush.msra.mxu0 %v6861
        %6901 = vmatpush.msra.mxu0 %v6860
        %6902 = vmatmul.f32.gmra.mxu0 %v6863
        %v6903 = vpop.f32.mrf.mxu0
        %v6904 = vadd.f32 0.0, %v6903
        %6905 = vmatmul.f32.gmra.mxu0 %v6866
        %v6906 = vpop.f32.mrf.mxu0
        %v6907 = vadd.f32 0.0, %v6906
        %6908 = vmatmul.f32.gmra.mxu0 %v6869
        %v6909 = vpop.f32.mrf.mxu0
        %v6910 = vadd.f32 0.0, %v6909
        %6911 = vmatmul.f32.gmra.mxu0 %v6872
        %v6912 = vpop.f32.mrf.mxu0
        %v6913 = vadd.f32 0.0, %v6912
        %6914 = vmatmul.f32.gmra.mxu0 %v6875
        %v6915 = vpop.f32.mrf.mxu0
        %v6916 = vadd.f32 0.0, %v6915
        %6917 = vmatmul.f32.gmra.mxu0 %v6878
        %v6918 = vpop.f32.mrf.mxu0
        %v6919 = vadd.f32 0.0, %v6918
        %6920 = vmatmul.f32.gmra.mxu0 %v6881
        %v6921 = vpop.f32.mrf.mxu0
        %v6922 = vadd.f32 0.0, %v6921
        %6923 = vmatmul.f32.gmra.mxu0 %v6884
        %v6924 = vpop.f32.mrf.mxu0
        %v6925 = vadd.f32 0.0, %v6924
        %6926 = vdwg.mxu0
        %v6928 = vsel %vm6052, %v6841, 0
        %v6931 = vsel %vm6052, %v6842, 0
        %v6934 = vsel %vm6052, %v6843, 0
        %v6937 = vsel %vm6052, %v6844, 0
        %v6940 = vsel %vm6052, %v6845, 0
        %v6943 = vsel %vm6052, %v6846, 0
        %v6946 = vsel %vm6052, %v6847, 0
        %v6949 = vsel %vm6052, %v6848, 0
        %6951 = vmatpush.msra.mxu0 0.0
        %6952 = vmatpush.msra.mxu0 0.0
        %6953 = vmatpush.msra.mxu0 0.0
        %6954 = vmatpush.msra.mxu0 0.0
        %6955 = vmatpush.msra.mxu0 0.0
        %6956 = vmatpush.msra.mxu0 0.0
        %6957 = vmatpush.msra.mxu0 0.0
        %6958 = vmatpush.msra.mxu0 0.0
        %6959 = vmatpush.msra.mxu0 0.0
        %6960 = vmatpush.msra.mxu0 0.0
        %6961 = vmatpush.msra.mxu0 0.0
        %6962 = vmatpush.msra.mxu0 0.0
        %6963 = vmatpush.msra.mxu0 0.0
        %6964 = vmatpush.msra.mxu0 0.0
        %6965 = vmatpush.msra.mxu0 %v6850
        %6966 = vmatpush.msra.mxu0 %v6849
        %6967 = vmatmul.f32.gmra.mxu0 %v6928
        %v6968 = vpop.f32.mrf.mxu0
        %v6969 = vadd.f32 %v6904, %v6968
        %6970 = vmatmul.f32.gmra.mxu0 %v6931
        %v6971 = vpop.f32.mrf.mxu0
        %v6972 = vadd.f32 %v6907, %v6971
        %6973 = vmatmul.f32.gmra.mxu0 %v6934
        %v6974 = vpop.f32.mrf.mxu0
        %v6975 = vadd.f32 %v6910, %v6974
        %6976 = vmatmul.f32.gmra.mxu0 %v6937
        %v6977 = vpop.f32.mrf.mxu0
        %v6978 = vadd.f32 %v6913, %v6977
        %6979 = vmatmul.f32.gmra.mxu0 %v6940
        %v6980 = vpop.f32.mrf.mxu0
        %v6981 = vadd.f32 %v6916, %v6980
        %6982 = vmatmul.f32.gmra.mxu0 %v6943
        %v6983 = vpop.f32.mrf.mxu0
        %v6984 = vadd.f32 %v6919, %v6983
        %6985 = vmatmul.f32.gmra.mxu0 %v6946
        %v6986 = vpop.f32.mrf.mxu0
        %v6987 = vadd.f32 %v6922, %v6986
        %6988 = vmatmul.f32.gmra.mxu0 %v6949
        %v6989 = vpop.f32.mrf.mxu0
        %v6990 = vadd.f32 %v6925, %v6989
        %6991 = vdwg.mxu0
        %v6992 = vld [vmem:[#allocation3 + $0x2] sm:$0xff]
        %v6993 = vld [vmem:[#allocation3 + $0x1a] sm:$0xff]
        %v6994 = vld [vmem:[#allocation3 + $0x32] sm:$0xff]
        %v6995 = vld [vmem:[#allocation3 + $0x4a] sm:$0xff]
        %v6996 = vld [vmem:[#allocation3 + $0x62] sm:$0xff]
        %v6997 = vld [vmem:[#allocation3 + $0x7a] sm:$0xff]
        %v6998 = vld [vmem:[#allocation3 + $0x92] sm:$0xff]
        %v6999 = vld [vmem:[#allocation3 + $0xaa] sm:$0xff]
        %s7000 = scalar_lea.vmem %s4, 32
        %v7001 = vld [vmem:[%s7000] sm:$0xff]
        %v7002 = vld [vmem:[%s7000 + $0x8] sm:$0xff]
        %v7004 = vsel %vm6052, %v6992, 0
        %v7007 = vsel %vm6052, %v6993, 0
        %v7010 = vsel %vm6052, %v6994, 0
        %v7013 = vsel %vm6052, %v6995, 0
        %v7016 = vsel %vm6052, %v6996, 0
        %v7019 = vsel %vm6052, %v6997, 0
        %v7022 = vsel %vm6052, %v6998, 0
        %v7025 = vsel %vm6052, %v6999, 0
        %7027 = vmatpush.msra.mxu0 0.0
        %7028 = vmatpush.msra.mxu0 0.0
        %7029 = vmatpush.msra.mxu0 0.0
        %7030 = vmatpush.msra.mxu0 0.0
        %7031 = vmatpush.msra.mxu0 0.0
        %7032 = vmatpush.msra.mxu0 0.0
        %7033 = vmatpush.msra.mxu0 0.0
        %7034 = vmatpush.msra.mxu0 0.0
        %7035 = vmatpush.msra.mxu0 0.0
        %7036 = vmatpush.msra.mxu0 0.0
        %7037 = vmatpush.msra.mxu0 0.0
        %7038 = vmatpush.msra.mxu0 0.0
        %7039 = vmatpush.msra.mxu0 0.0
        %7040 = vmatpush.msra.mxu0 0.0
        %7041 = vmatpush.msra.mxu0 %v7002
        %7042 = vmatpush.msra.mxu0 %v7001
        %7043 = vmatmul.f32.gmra.mxu0 %v7004
        %v7044 = vpop.f32.mrf.mxu0
        %v7045 = vadd.f32 0.0, %v7044
        %7046 = vmatmul.f32.gmra.mxu0 %v7007
        %v7047 = vpop.f32.mrf.mxu0
        %v7048 = vadd.f32 0.0, %v7047
        %7049 = vmatmul.f32.gmra.mxu0 %v7010
        %v7050 = vpop.f32.mrf.mxu0
        %v7051 = vadd.f32 0.0, %v7050
        %7052 = vmatmul.f32.gmra.mxu0 %v7013
        %v7053 = vpop.f32.mrf.mxu0
        %v7054 = vadd.f32 0.0, %v7053
        %7055 = vmatmul.f32.gmra.mxu0 %v7016
        %v7056 = vpop.f32.mrf.mxu0
        %v7057 = vadd.f32 0.0, %v7056
        %7058 = vmatmul.f32.gmra.mxu0 %v7019
        %v7059 = vpop.f32.mrf.mxu0
        %v7060 = vadd.f32 0.0, %v7059
        %7061 = vmatmul.f32.gmra.mxu0 %v7022
        %v7062 = vpop.f32.mrf.mxu0
        %v7063 = vadd.f32 0.0, %v7062
        %7064 = vmatmul.f32.gmra.mxu0 %v7025
        %v7065 = vpop.f32.mrf.mxu0
        %v7066 = vadd.f32 0.0, %v7065
        %7067 = vdwg.mxu0
        %v7068 = vadd.f32 %v6969, %v7045
        %v7069 = vadd.f32 %v6972, %v7048
        %v7070 = vadd.f32 %v6975, %v7051
        %v7071 = vadd.f32 %v6978, %v7054
        %v7072 = vadd.f32 %v6981, %v7057
        %v7073 = vadd.f32 %v6984, %v7060
        %v7074 = vadd.f32 %v6987, %v7063
        %v7075 = vadd.f32 %v6990, %v7066
        %v7076 = vld [vmem:[%s1787] sm:$0xff]
        %v7077 = vld [vmem:[%s1787 + $0x18] sm:$0xff]
        %v7078 = vld [vmem:[%s1787 + $0x30] sm:$0xff]
        %v7079 = vld [vmem:[%s1787 + $0x48] sm:$0xff]
        %v7080 = vld [vmem:[%s1787 + $0x60] sm:$0xff]
        %v7081 = vld [vmem:[%s1787 + $0x78] sm:$0xff]
        %v7082 = vld [vmem:[%s1787 + $0x90] sm:$0xff]
        %v7083 = vld [vmem:[%s1787 + $0xa8] sm:$0xff]
        %s7084 = scalar_lea.vmem %s4, 48
        %v7085 = vld [vmem:[%s7084] sm:$0xff]
        %v7086 = vld [vmem:[%s7084 + $0x8] sm:$0xff]
        %v7088 = vsel %vm6052, %v7076, 0
        %v7091 = vsel %vm6052, %v7077, 0
        %v7094 = vsel %vm6052, %v7078, 0
        %v7097 = vsel %vm6052, %v7079, 0
        %v7100 = vsel %vm6052, %v7080, 0
        %v7103 = vsel %vm6052, %v7081, 0
        %v7106 = vsel %vm6052, %v7082, 0
        %v7109 = vsel %vm6052, %v7083, 0
        %7111 = vmatpush.msra.mxu0 0.0
        %7112 = vmatpush.msra.mxu0 0.0
        %7113 = vmatpush.msra.mxu0 0.0
        %7114 = vmatpush.msra.mxu0 0.0
        %7115 = vmatpush.msra.mxu0 0.0
        %7116 = vmatpush.msra.mxu0 0.0
        %7117 = vmatpush.msra.mxu0 0.0
        %7118 = vmatpush.msra.mxu0 0.0
        %7119 = vmatpush.msra.mxu0 0.0
        %7120 = vmatpush.msra.mxu0 0.0
        %7121 = vmatpush.msra.mxu0 0.0
        %7122 = vmatpush.msra.mxu0 0.0
        %7123 = vmatpush.msra.mxu0 0.0
        %7124 = vmatpush.msra.mxu0 0.0
        %7125 = vmatpush.msra.mxu0 %v7086
        %7126 = vmatpush.msra.mxu0 %v7085
        %7127 = vmatmul.f32.gmra.mxu0 %v7088
        %v7128 = vpop.f32.mrf.mxu0
        %v7129 = vadd.f32 0.0, %v7128
        %7130 = vmatmul.f32.gmra.mxu0 %v7091
        %v7131 = vpop.f32.mrf.mxu0
        %v7132 = vadd.f32 0.0, %v7131
        %7133 = vmatmul.f32.gmra.mxu0 %v7094
        %v7134 = vpop.f32.mrf.mxu0
        %v7135 = vadd.f32 0.0, %v7134
        %7136 = vmatmul.f32.gmra.mxu0 %v7097
        %v7137 = vpop.f32.mrf.mxu0
        %v7138 = vadd.f32 0.0, %v7137
        %7139 = vmatmul.f32.gmra.mxu0 %v7100
        %v7140 = vpop.f32.mrf.mxu0
        %v7141 = vadd.f32 0.0, %v7140
        %7142 = vmatmul.f32.gmra.mxu0 %v7103
        %v7143 = vpop.f32.mrf.mxu0
        %v7144 = vadd.f32 0.0, %v7143
        %7145 = vmatmul.f32.gmra.mxu0 %v7106
        %v7146 = vpop.f32.mrf.mxu0
        %v7147 = vadd.f32 0.0, %v7146
        %7148 = vmatmul.f32.gmra.mxu0 %v7109
        %v7149 = vpop.f32.mrf.mxu0
        %v7150 = vadd.f32 0.0, %v7149
        %7151 = vdwg.mxu0
        %v7152 = vadd.f32 %v7068, %v7129
        %v7153 = vadd.f32 %v7069, %v7132
        %v7154 = vadd.f32 %v7070, %v7135
        %v7155 = vadd.f32 %v7071, %v7138
        %v7156 = vadd.f32 %v7072, %v7141
        %v7157 = vadd.f32 %v7073, %v7144
        %v7158 = vadd.f32 %v7074, %v7147
        %v7159 = vadd.f32 %v7075, %v7150
        %v7160 = vld [vmem:[%s1787 + $0x1] sm:$0xff]
        %v7161 = vld [vmem:[%s1787 + $0x19] sm:$0xff]
        %v7162 = vld [vmem:[%s1787 + $0x31] sm:$0xff]
        %v7163 = vld [vmem:[%s1787 + $0x49] sm:$0xff]
        %v7164 = vld [vmem:[%s1787 + $0x61] sm:$0xff]
        %v7165 = vld [vmem:[%s1787 + $0x79] sm:$0xff]
        %v7166 = vld [vmem:[%s1787 + $0x91] sm:$0xff]
        %v7167 = vld [vmem:[%s1787 + $0xa9] sm:$0xff]
        %s7168 = scalar_lea.vmem %s4, 64
        %v7169 = vld [vmem:[%s7168] sm:$0xff]
        %v7170 = vld [vmem:[%s7168 + $0x8] sm:$0xff]
        %v7172 = vsel %vm6052, %v7160, 0
        %v7175 = vsel %vm6052, %v7161, 0
        %v7178 = vsel %vm6052, %v7162, 0
        %v7181 = vsel %vm6052, %v7163, 0
        %v7184 = vsel %vm6052, %v7164, 0
        %v7187 = vsel %vm6052, %v7165, 0
        %v7190 = vsel %vm6052, %v7166, 0
        %v7193 = vsel %vm6052, %v7167, 0
        %7195 = vmatpush.msra.mxu0 0.0
        %7196 = vmatpush.msra.mxu0 0.0
        %7197 = vmatpush.msra.mxu0 0.0
        %7198 = vmatpush.msra.mxu0 0.0
        %7199 = vmatpush.msra.mxu0 0.0
        %7200 = vmatpush.msra.mxu0 0.0
        %7201 = vmatpush.msra.mxu0 0.0
        %7202 = vmatpush.msra.mxu0 0.0
        %7203 = vmatpush.msra.mxu0 0.0
        %7204 = vmatpush.msra.mxu0 0.0
        %7205 = vmatpush.msra.mxu0 0.0
        %7206 = vmatpush.msra.mxu0 0.0
        %7207 = vmatpush.msra.mxu0 0.0
        %7208 = vmatpush.msra.mxu0 0.0
        %7209 = vmatpush.msra.mxu0 %v7170
        %7210 = vmatpush.msra.mxu0 %v7169
        %7211 = vmatmul.f32.gmra.mxu0 %v7172
        %v7212 = vpop.f32.mrf.mxu0
        %v7213 = vadd.f32 0.0, %v7212
        %7214 = vmatmul.f32.gmra.mxu0 %v7175
        %v7215 = vpop.f32.mrf.mxu0
        %v7216 = vadd.f32 0.0, %v7215
        %7217 = vmatmul.f32.gmra.mxu0 %v7178
        %v7218 = vpop.f32.mrf.mxu0
        %v7219 = vadd.f32 0.0, %v7218
        %7220 = vmatmul.f32.gmra.mxu0 %v7181
        %v7221 = vpop.f32.mrf.mxu0
        %v7222 = vadd.f32 0.0, %v7221
        %7223 = vmatmul.f32.gmra.mxu0 %v7184
        %v7224 = vpop.f32.mrf.mxu0
        %v7225 = vadd.f32 0.0, %v7224
        %7226 = vmatmul.f32.gmra.mxu0 %v7187
        %v7227 = vpop.f32.mrf.mxu0
        %v7228 = vadd.f32 0.0, %v7227
        %7229 = vmatmul.f32.gmra.mxu0 %v7190
        %v7230 = vpop.f32.mrf.mxu0
        %v7231 = vadd.f32 0.0, %v7230
        %7232 = vmatmul.f32.gmra.mxu0 %v7193
        %v7233 = vpop.f32.mrf.mxu0
        %v7234 = vadd.f32 0.0, %v7233
        %7235 = vdwg.mxu0
        %v7236 = vadd.f32 %v7152, %v7213
        %v7237 = vadd.f32 %v7153, %v7216
        %v7238 = vadd.f32 %v7154, %v7219
        %v7239 = vadd.f32 %v7155, %v7222
        %v7240 = vadd.f32 %v7156, %v7225
        %v7241 = vadd.f32 %v7157, %v7228
        %v7242 = vadd.f32 %v7158, %v7231
        %v7243 = vadd.f32 %v7159, %v7234
        %v7244 = vld [vmem:[%s1787 + $0x2] sm:$0xff]
        %v7245 = vld [vmem:[%s1787 + $0x1a] sm:$0xff]
        %v7246 = vld [vmem:[%s1787 + $0x32] sm:$0xff]
        %v7247 = vld [vmem:[%s1787 + $0x4a] sm:$0xff]
        %v7248 = vld [vmem:[%s1787 + $0x62] sm:$0xff]
        %v7249 = vld [vmem:[%s1787 + $0x7a] sm:$0xff]
        %v7250 = vld [vmem:[%s1787 + $0x92] sm:$0xff]
        %v7251 = vld [vmem:[%s1787 + $0xaa] sm:$0xff]
        %s7252 = scalar_lea.vmem %s4, 80
        %v7253 = vld [vmem:[%s7252] sm:$0xff]
        %v7254 = vld [vmem:[%s7252 + $0x8] sm:$0xff]
        %v7256 = vsel %vm6052, %v7244, 0
        %v7259 = vsel %vm6052, %v7245, 0
        %v7262 = vsel %vm6052, %v7246, 0
        %v7265 = vsel %vm6052, %v7247, 0
        %v7268 = vsel %vm6052, %v7248, 0
        %v7271 = vsel %vm6052, %v7249, 0
        %v7274 = vsel %vm6052, %v7250, 0
        %v7277 = vsel %vm6052, %v7251, 0
        %7279 = vmatpush.msra.mxu0 0.0
        %7280 = vmatpush.msra.mxu0 0.0
        %7281 = vmatpush.msra.mxu0 0.0
        %7282 = vmatpush.msra.mxu0 0.0
        %7283 = vmatpush.msra.mxu0 0.0
        %7284 = vmatpush.msra.mxu0 0.0
        %7285 = vmatpush.msra.mxu0 0.0
        %7286 = vmatpush.msra.mxu0 0.0
        %7287 = vmatpush.msra.mxu0 0.0
        %7288 = vmatpush.msra.mxu0 0.0
        %7289 = vmatpush.msra.mxu0 0.0
        %7290 = vmatpush.msra.mxu0 0.0
        %7291 = vmatpush.msra.mxu0 0.0
        %7292 = vmatpush.msra.mxu0 0.0
        %7293 = vmatpush.msra.mxu0 %v7254
        %7294 = vmatpush.msra.mxu0 %v7253
        %7295 = vmatmul.f32.gmra.mxu0 %v7256
        %v7296 = vpop.f32.mrf.mxu0
        %v7297 = vadd.f32 0.0, %v7296
        %7298 = vmatmul.f32.gmra.mxu0 %v7259
        %v7299 = vpop.f32.mrf.mxu0
        %v7300 = vadd.f32 0.0, %v7299
        %7301 = vmatmul.f32.gmra.mxu0 %v7262
        %v7302 = vpop.f32.mrf.mxu0
        %v7303 = vadd.f32 0.0, %v7302
        %7304 = vmatmul.f32.gmra.mxu0 %v7265
        %v7305 = vpop.f32.mrf.mxu0
        %v7306 = vadd.f32 0.0, %v7305
        %7307 = vmatmul.f32.gmra.mxu0 %v7268
        %v7308 = vpop.f32.mrf.mxu0
        %v7309 = vadd.f32 0.0, %v7308
        %7310 = vmatmul.f32.gmra.mxu0 %v7271
        %v7311 = vpop.f32.mrf.mxu0
        %v7312 = vadd.f32 0.0, %v7311
        %7313 = vmatmul.f32.gmra.mxu0 %v7274
        %v7314 = vpop.f32.mrf.mxu0
        %v7315 = vadd.f32 0.0, %v7314
        %7316 = vmatmul.f32.gmra.mxu0 %v7277
        %v7317 = vpop.f32.mrf.mxu0
        %v7318 = vadd.f32 0.0, %v7317
        %7319 = vdwg.mxu0
        %v7320 = vadd.f32 %v7236, %v7297
        %v7321 = vadd.f32 %v7237, %v7300
        %v7322 = vadd.f32 %v7238, %v7303
        %v7323 = vadd.f32 %v7239, %v7306
        %v7324 = vadd.f32 %v7240, %v7309
        %v7325 = vadd.f32 %v7241, %v7312
        %v7326 = vadd.f32 %v7242, %v7315
        %v7327 = vadd.f32 %v7243, %v7318
        %v7328 = vld [vmem:[%s4030] sm:$0xff]
        %v7329 = vld [vmem:[%s4030 + $0x18] sm:$0xff]
        %v7330 = vld [vmem:[%s4030 + $0x30] sm:$0xff]
        %v7331 = vld [vmem:[%s4030 + $0x48] sm:$0xff]
        %v7332 = vld [vmem:[%s4030 + $0x60] sm:$0xff]
        %v7333 = vld [vmem:[%s4030 + $0x78] sm:$0xff]
        %v7334 = vld [vmem:[%s4030 + $0x90] sm:$0xff]
        %v7335 = vld [vmem:[%s4030 + $0xa8] sm:$0xff]
        %s7336 = scalar_lea.vmem %s4, 96
        %v7337 = vld [vmem:[%s7336] sm:$0xff]
        %v7338 = vld [vmem:[%s7336 + $0x8] sm:$0xff]
        %v7340 = vsel %vm6052, %v7328, 0
        %v7343 = vsel %vm6052, %v7329, 0
        %v7346 = vsel %vm6052, %v7330, 0
        %v7349 = vsel %vm6052, %v7331, 0
        %v7352 = vsel %vm6052, %v7332, 0
        %v7355 = vsel %vm6052, %v7333, 0
        %v7358 = vsel %vm6052, %v7334, 0
        %v7361 = vsel %vm6052, %v7335, 0
        %7363 = vmatpush.msra.mxu0 0.0
        %7364 = vmatpush.msra.mxu0 0.0
        %7365 = vmatpush.msra.mxu0 0.0
        %7366 = vmatpush.msra.mxu0 0.0
        %7367 = vmatpush.msra.mxu0 0.0
        %7368 = vmatpush.msra.mxu0 0.0
        %7369 = vmatpush.msra.mxu0 0.0
        %7370 = vmatpush.msra.mxu0 0.0
        %7371 = vmatpush.msra.mxu0 0.0
        %7372 = vmatpush.msra.mxu0 0.0
        %7373 = vmatpush.msra.mxu0 0.0
        %7374 = vmatpush.msra.mxu0 0.0
        %7375 = vmatpush.msra.mxu0 0.0
        %7376 = vmatpush.msra.mxu0 0.0
        %7377 = vmatpush.msra.mxu0 %v7338
        %7378 = vmatpush.msra.mxu0 %v7337
        %7379 = vmatmul.f32.gmra.mxu0 %v7340
        %v7380 = vpop.f32.mrf.mxu0
        %v7381 = vadd.f32 0.0, %v7380
        %7382 = vmatmul.f32.gmra.mxu0 %v7343
        %v7383 = vpop.f32.mrf.mxu0
        %v7384 = vadd.f32 0.0, %v7383
        %7385 = vmatmul.f32.gmra.mxu0 %v7346
        %v7386 = vpop.f32.mrf.mxu0
        %v7387 = vadd.f32 0.0, %v7386
        %7388 = vmatmul.f32.gmra.mxu0 %v7349
        %v7389 = vpop.f32.mrf.mxu0
        %v7390 = vadd.f32 0.0, %v7389
        %7391 = vmatmul.f32.gmra.mxu0 %v7352
        %v7392 = vpop.f32.mrf.mxu0
        %v7393 = vadd.f32 0.0, %v7392
        %7394 = vmatmul.f32.gmra.mxu0 %v7355
        %v7395 = vpop.f32.mrf.mxu0
        %v7396 = vadd.f32 0.0, %v7395
        %7397 = vmatmul.f32.gmra.mxu0 %v7358
        %v7398 = vpop.f32.mrf.mxu0
        %v7399 = vadd.f32 0.0, %v7398
        %7400 = vmatmul.f32.gmra.mxu0 %v7361
        %v7401 = vpop.f32.mrf.mxu0
        %v7402 = vadd.f32 0.0, %v7401
        %7403 = vdwg.mxu0
        %v7404 = vadd.f32 %v7320, %v7381
        %v7405 = vadd.f32 %v7321, %v7384
        %v7406 = vadd.f32 %v7322, %v7387
        %v7407 = vadd.f32 %v7323, %v7390
        %v7408 = vadd.f32 %v7324, %v7393
        %v7409 = vadd.f32 %v7325, %v7396
        %v7410 = vadd.f32 %v7326, %v7399
        %v7411 = vadd.f32 %v7327, %v7402
        %v7412 = vld [vmem:[%s4030 + $0x1] sm:$0xff]
        %v7413 = vld [vmem:[%s4030 + $0x19] sm:$0xff]
        %v7414 = vld [vmem:[%s4030 + $0x31] sm:$0xff]
        %v7415 = vld [vmem:[%s4030 + $0x49] sm:$0xff]
        %v7416 = vld [vmem:[%s4030 + $0x61] sm:$0xff]
        %v7417 = vld [vmem:[%s4030 + $0x79] sm:$0xff]
        %v7418 = vld [vmem:[%s4030 + $0x91] sm:$0xff]
        %v7419 = vld [vmem:[%s4030 + $0xa9] sm:$0xff]
        %s7420 = scalar_lea.vmem %s4, 112
        %v7421 = vld [vmem:[%s7420] sm:$0xff]
        %v7422 = vld [vmem:[%s7420 + $0x8] sm:$0xff]
        %v7424 = vsel %vm6052, %v7412, 0
        %v7427 = vsel %vm6052, %v7413, 0
        %v7430 = vsel %vm6052, %v7414, 0
        %v7433 = vsel %vm6052, %v7415, 0
        %v7436 = vsel %vm6052, %v7416, 0
        %v7439 = vsel %vm6052, %v7417, 0
        %v7442 = vsel %vm6052, %v7418, 0
        %v7445 = vsel %vm6052, %v7419, 0
        %7447 = vmatpush.msra.mxu0 0.0
        %7448 = vmatpush.msra.mxu0 0.0
        %7449 = vmatpush.msra.mxu0 0.0
        %7450 = vmatpush.msra.mxu0 0.0
        %7451 = vmatpush.msra.mxu0 0.0
        %7452 = vmatpush.msra.mxu0 0.0
        %7453 = vmatpush.msra.mxu0 0.0
        %7454 = vmatpush.msra.mxu0 0.0
        %7455 = vmatpush.msra.mxu0 0.0
        %7456 = vmatpush.msra.mxu0 0.0
        %7457 = vmatpush.msra.mxu0 0.0
        %7458 = vmatpush.msra.mxu0 0.0
        %7459 = vmatpush.msra.mxu0 0.0
        %7460 = vmatpush.msra.mxu0 0.0
        %7461 = vmatpush.msra.mxu0 %v7422
        %7462 = vmatpush.msra.mxu0 %v7421
        %7463 = vmatmul.f32.gmra.mxu0 %v7424
        %v7464 = vpop.f32.mrf.mxu0
        %v7465 = vadd.f32 0.0, %v7464
        %7466 = vmatmul.f32.gmra.mxu0 %v7427
        %v7467 = vpop.f32.mrf.mxu0
        %v7468 = vadd.f32 0.0, %v7467
        %7469 = vmatmul.f32.gmra.mxu0 %v7430
        %v7470 = vpop.f32.mrf.mxu0
        %v7471 = vadd.f32 0.0, %v7470
        %7472 = vmatmul.f32.gmra.mxu0 %v7433
        %v7473 = vpop.f32.mrf.mxu0
        %v7474 = vadd.f32 0.0, %v7473
        %7475 = vmatmul.f32.gmra.mxu0 %v7436
        %v7476 = vpop.f32.mrf.mxu0
        %v7477 = vadd.f32 0.0, %v7476
        %7478 = vmatmul.f32.gmra.mxu0 %v7439
        %v7479 = vpop.f32.mrf.mxu0
        %v7480 = vadd.f32 0.0, %v7479
        %7481 = vmatmul.f32.gmra.mxu0 %v7442
        %v7482 = vpop.f32.mrf.mxu0
        %v7483 = vadd.f32 0.0, %v7482
        %7484 = vmatmul.f32.gmra.mxu0 %v7445
        %v7485 = vpop.f32.mrf.mxu0
        %v7486 = vadd.f32 0.0, %v7485
        %7487 = vdwg.mxu0
        %v7488 = vadd.f32 %v7404, %v7465
        %v7489 = vadd.f32 %v7405, %v7468
        %v7490 = vadd.f32 %v7406, %v7471
        %v7491 = vadd.f32 %v7407, %v7474
        %v7492 = vadd.f32 %v7408, %v7477
        %v7493 = vadd.f32 %v7409, %v7480
        %v7494 = vadd.f32 %v7410, %v7483
        %v7495 = vadd.f32 %v7411, %v7486
        %v7496 = vld [vmem:[%s4030 + $0x2] sm:$0xff]
        %v7497 = vld [vmem:[%s4030 + $0x1a] sm:$0xff]
        %v7498 = vld [vmem:[%s4030 + $0x32] sm:$0xff]
        %v7499 = vld [vmem:[%s4030 + $0x4a] sm:$0xff]
        %v7500 = vld [vmem:[%s4030 + $0x62] sm:$0xff]
        %v7501 = vld [vmem:[%s4030 + $0x7a] sm:$0xff]
        %v7502 = vld [vmem:[%s4030 + $0x92] sm:$0xff]
        %v7503 = vld [vmem:[%s4030 + $0xaa] sm:$0xff]
        %s7504 = scalar_lea.vmem %s4, 128
        %v7505 = vld [vmem:[%s7504] sm:$0xff]
        %v7506 = vld [vmem:[%s7504 + $0x8] sm:$0xff]
        %v7508 = vsel %vm6052, %v7496, 0
        %v7511 = vsel %vm6052, %v7497, 0
        %v7514 = vsel %vm6052, %v7498, 0
        %v7517 = vsel %vm6052, %v7499, 0
        %v7520 = vsel %vm6052, %v7500, 0
        %v7523 = vsel %vm6052, %v7501, 0
        %v7526 = vsel %vm6052, %v7502, 0
        %v7529 = vsel %vm6052, %v7503, 0
        %7531 = vmatpush.msra.mxu0 0.0
        %7532 = vmatpush.msra.mxu0 0.0
        %7533 = vmatpush.msra.mxu0 0.0
        %7534 = vmatpush.msra.mxu0 0.0
        %7535 = vmatpush.msra.mxu0 0.0
        %7536 = vmatpush.msra.mxu0 0.0
        %7537 = vmatpush.msra.mxu0 0.0
        %7538 = vmatpush.msra.mxu0 0.0
        %7539 = vmatpush.msra.mxu0 0.0
        %7540 = vmatpush.msra.mxu0 0.0
        %7541 = vmatpush.msra.mxu0 0.0
        %7542 = vmatpush.msra.mxu0 0.0
        %7543 = vmatpush.msra.mxu0 0.0
        %7544 = vmatpush.msra.mxu0 0.0
        %7545 = vmatpush.msra.mxu0 %v7506
        %7546 = vmatpush.msra.mxu0 %v7505
        %7547 = vmatmul.f32.gmra.mxu0 %v7508
        %v7548 = vpop.f32.mrf.mxu0
        %v7549 = vadd.f32 0.0, %v7548
        %7550 = vmatmul.f32.gmra.mxu0 %v7511
        %v7551 = vpop.f32.mrf.mxu0
        %v7552 = vadd.f32 0.0, %v7551
        %7553 = vmatmul.f32.gmra.mxu0 %v7514
        %v7554 = vpop.f32.mrf.mxu0
        %v7555 = vadd.f32 0.0, %v7554
        %7556 = vmatmul.f32.gmra.mxu0 %v7517
        %v7557 = vpop.f32.mrf.mxu0
        %v7558 = vadd.f32 0.0, %v7557
        %7559 = vmatmul.f32.gmra.mxu0 %v7520
        %v7560 = vpop.f32.mrf.mxu0
        %v7561 = vadd.f32 0.0, %v7560
        %7562 = vmatmul.f32.gmra.mxu0 %v7523
        %v7563 = vpop.f32.mrf.mxu0
        %v7564 = vadd.f32 0.0, %v7563
        %7565 = vmatmul.f32.gmra.mxu0 %v7526
        %v7566 = vpop.f32.mrf.mxu0
        %v7567 = vadd.f32 0.0, %v7566
        %7568 = vmatmul.f32.gmra.mxu0 %v7529
        %v7569 = vpop.f32.mrf.mxu0
        %v7570 = vadd.f32 0.0, %v7569
        %7571 = vdwg.mxu0
        %v7572 = vadd.f32 %v7488, %v7549
        %v7573 = vadd.f32 %v7489, %v7552
        %v7574 = vadd.f32 %v7490, %v7555
        %v7575 = vadd.f32 %v7491, %v7558
        %v7576 = vadd.f32 %v7492, %v7561
        %v7577 = vadd.f32 %v7493, %v7564
        %v7578 = vadd.f32 %v7494, %v7567
        %v7579 = vadd.f32 %v7495, %v7570
        %vm7580 = vcmp.ge.f32.partialorder %v7572, 0.0
        %vm7581 = vcmp.ge.f32.partialorder %v7573, 0.0
        %vm7582 = vcmp.ge.f32.partialorder %v7574, 0.0
        %vm7583 = vcmp.ge.f32.partialorder %v7575, 0.0
        %vm7584 = vcmp.ge.f32.partialorder %v7576, 0.0
        %vm7585 = vcmp.ge.f32.partialorder %v7577, 0.0
        %vm7586 = vcmp.ge.f32.partialorder %v7578, 0.0
        %vm7587 = vcmp.ge.f32.partialorder %v7579, 0.0
        %v7588 = vmul.f32 %v7572, 0.01
        %v7589 = vmul.f32 %v7573, 0.01
        %v7590 = vmul.f32 %v7574, 0.01
        %v7591 = vmul.f32 %v7575, 0.01
        %v7592 = vmul.f32 %v7576, 0.01
        %v7593 = vmul.f32 %v7577, 0.01
        %v7594 = vmul.f32 %v7578, 0.01
        %v7595 = vmul.f32 %v7579, 0.01
        %v7596 = vsel %vm7580, %v7572, %v7588
        %v7597 = vsel %vm7581, %v7573, %v7589
        %v7598 = vsel %vm7582, %v7574, %v7590
        %v7599 = vsel %vm7583, %v7575, %v7591
        %v7600 = vsel %vm7584, %v7576, %v7592
        %v7601 = vsel %vm7585, %v7577, %v7593
        %v7602 = vsel %vm7586, %v7578, %v7594
        %v7603 = vsel %vm7587, %v7579, %v7595
        %7604 = vst.msk [vmem:[%s252] sm:$0xff] %vm6052, %v7596
        %7605 = vst.msk [vmem:[%s252 + $0x8] sm:$0xff] %vm6052, %v7597
        %7606 = vst.msk [vmem:[%s252 + $0x10] sm:$0xff] %vm6052, %v7598
        %7607 = vst.msk [vmem:[%s252 + $0x18] sm:$0xff] %vm6052, %v7599
        %7608 = vst.msk [vmem:[%s252 + $0x20] sm:$0xff] %vm6052, %v7600
        %7609 = vst.msk [vmem:[%s252 + $0x28] sm:$0xff] %vm6052, %v7601
        %7610 = vst.msk [vmem:[%s252 + $0x30] sm:$0xff] %vm6052, %v7602
        %7611 = vst.msk [vmem:[%s252 + $0x38] sm:$0xff] %vm6052, %v7603
        %p7612 = scmp.lt.s32.totalorder %s21, 1
        %s7613 = scalar_select %p7612, %s21, 1
        %s7614 = smul.addr %s7613, 32
        %s7615 = smul.addr %s7614, 8
        %s7616 = scalar_lea.vmem %s5, %s7615
        %s7617 = sand.u32 %s165, 1
        %s7618 = scalar_lea.sflag [#allocation5], %s7617
        %s7619 = sand.u32 %s165, 1
        %s7620 = smul.addr %s7619, 64
        %s7621 = scalar_lea.vmem [#allocation4], %s7620
        // Predicated region
        $region41: #{encoder_forward.1} parent=39 // pred_check
          %p7622 = pneg %p149
        $region42: #{encoder_forward.1} parent=39 // pred_check_branch
          %7624 = sbr.rel (%p7622) target = $region44
        $region43: #{encoder_forward.1} parent=39 // pred_region
          _
        $region44: #{encoder_forward.1} parent=39 // pred_fallthru
          _
        // Predicated region
        $region45: #{encoder_forward.1} parent=39 // pred_check
          %p7625 = pneg %p175
        $region46: #{encoder_forward.1} parent=39 // pred_check_branch
          %7627 = sbr.rel (%p7625) target = $region48
        $region47: #{encoder_forward.1} parent=39 // pred_region
          %7629 = vsyncadd %s7618, 0
          %s7630 = smul.addr %s21, 8
          %s7631 = smul.addr %s7630, 8
          %s7632 = scalar_lea.hbm %s6, %s7631
          %s7633 = sshll.u32 %s7621, 4
          %s7634 = int_to_ptr.vmem [resolvable:$true] %s7633
          %s7635 = sshll.u32 %s7632, 4
          %s7636 = int_to_ptr.hbm [resolvable:$true] %s7635
          %7641 = dma.vmem_to_hbm [thread:$0]  %s7634, 1024, %s7636, %s7618, 128, 128, 8
        $region48: #{encoder_forward.1} parent=39 // pred_fallthru
          _
      $region40: #{encoder_forward.1} parent=5 // pred_fallthru
        _
      %p7642 = scmp.le.s32.totalorder 2, %s16
      // Predicated region
      $region49: #{encoder_forward.1} parent=5 // pred_check
        %p7643 = pneg %p7642
      $region50: #{encoder_forward.1} parent=5 // pred_check_branch
        %7645 = sbr.rel (%p7643) target = $region52
      $region51: #{encoder_forward.1} parent=5 // pred_region
        %s7646 = ssub.s32 %s16, 2
        // Predicated region
        $region53: #{encoder_forward.1} parent=51 // pred_check
          %p7647 = pneg %p155
        $region54: #{encoder_forward.1} parent=51 // pred_check_branch
          %7649 = sbr.rel (%p7647) target = $region56
        $region55: #{encoder_forward.1} parent=51 // pred_region
          %p7650 = scmp.lt.s32.totalorder %s22, 1
          %s7651 = scalar_select %p7650, %s22, 1
          %s7652 = smul.addr %s7651, 32
          %s7653 = smul.addr %s7652, 8
          %s7654 = scalar_lea.vmem %s5, %s7653
        $region56: #{encoder_forward.1} parent=51 // pred_fallthru
          _
        // Predicated region
        $region57: #{encoder_forward.1} parent=51 // pred_check
          %p7655 = pneg %p181
        $region58: #{encoder_forward.1} parent=51 // pred_check_branch
          %7657 = sbr.rel (%p7655) target = $region60
        $region59: #{encoder_forward.1} parent=51 // pred_region
          %s7658 = sand.u32 %s166, 1
          %s7659 = scalar_lea.sflag [#allocation5], %s7658
          %s7660 = sand.u32 %s166, 1
          %s7661 = smul.addr %s7660, 64
          %s7662 = scalar_lea.vmem [#allocation4], %s7661
          %7664 = dma.done %s7659, 1024
        $region60: #{encoder_forward.1} parent=51 // pred_fallthru
          _
      $region52: #{encoder_forward.1} parent=5 // pred_fallthru
        _
    $region6: #{encoder_forward.1} parent=1 // loop_footer
      %s20 = sadd.s32 1, %s16
    $region7: #{encoder_forward.1} parent=1 // loop_footer_branch
      %15 = sbr.rel target = $region3
    $region8: #{encoder_forward.1} parent=1 // loop_exit
      _
    %7665 = vsyncpa [#allocation5], 1
    %s7666 = scalar_lea.sflag [#allocation5], 1
    %7667 = vsyncpa %s7666, 1

</llo_original>
